<compile_context>
chip_gen: v7x
topology: tpu7x:2x2x1
jax: 0.10.0
libtpu: 0.0.40
codegen_flags: <defaults>
</compile_context>

<pallas_src>
import functools
import math

import jax
import jax.numpy as jnp
from jax import lax
from jax.experimental import pallas as pl
from jax.experimental.pallas import tpu as pltpu

PAD_ID, SOS_ID, EOS_ID, UNK_ID = 0, 1, 2, 3
NEG_INF = -1e9
LN_EPS = 1e-5


def _detect_vmem_capacity():
    try:
        info = pltpu.get_tpu_info()
        cap = getattr(info, "vmem_capacity_bytes", None)
        if cap:
            return int(cap)
    except Exception:
        pass
    return 128 * 1024 * 1024


# Generation-aware scoped-VMEM budget: ~43 MiB on v7x (64 MiB phys),
# ~87-100 MiB on v5e/v6e (128 MiB phys).
VMEM_LIMIT = min(100 * 1024 * 1024, int(0.68 * _detect_vmem_capacity()))


def _tile_pad(dim, target, align):
    """Pick a tile and (possibly padded) extent for `dim`.
    Returns (tile, padded_dim).  dim <= target -> full-extent block (always
    legal).  Otherwise prefer an exact aligned divisor; else pad up."""
    if dim <= target:
        return dim, dim
    tile = max(align, (target // align) * align)
    t = tile
    while t >= align:
        if dim % t == 0:
            return t, dim
        t -= align
    return tile, ((dim + tile - 1) // tile) * tile


def _pad_dim(a, axis, new_size):
    if a.shape[axis] == new_size:
        return a
    widths = [(0, 0)] * a.ndim
    widths[axis] = (0, new_size - a.shape[axis])
    return jnp.pad(a, widths)


# ----------------------------- Pallas kernels -----------------------------

def _linear_kernel(x_ref, w_ref, b_ref, o_ref, acc_ref):
    """Tiled y = x @ w + b with K as a reduction grid axis (axis 2).
    w arrives bf16; x is cast in-kernel; accumulation in f32."""
    k = pl.program_id(2)

    @pl.when(k == 0)
    def _():
        acc_ref[...] = jnp.zeros_like(acc_ref)

    acc_ref[...] += jnp.dot(
        x_ref[...].astype(jnp.bfloat16),
        w_ref[...],
        preferred_element_type=jnp.float32,
    )

    @pl.when(k == pl.num_programs(2) - 1)
    def _():
        o_ref[...] = (acc_ref[...] + b_ref[...]).astype(o_ref.dtype)


def pallas_linear(x2d, w, b, *, out_dtype=jnp.float32,
                  tm_target=256, tn_target=512, tk_target=1024):
    """x2d: [M, K], w: [K, N] (bf16), b: [N] (f32) -> [M, N] in out_dtype."""
    M, K = x2d.shape
    N = w.shape[1]
    tm, Mp = _tile_pad(M, tm_target, 8)
    tn, Np = _tile_pad(N, tn_target, 128)
    tk, Kp = _tile_pad(K, tk_target, 128)
    xp = _pad_dim(_pad_dim(x2d, 0, Mp), 1, Kp)
    wp = _pad_dim(_pad_dim(w, 0, Kp), 1, Np)
    bp = _pad_dim(b, 0, Np).reshape(1, Np)
    grid = (Mp // tm, Np // tn, Kp // tk)
    out = pl.pallas_call(
        _linear_kernel,
        out_shape=jax.ShapeDtypeStruct((Mp, Np), out_dtype),
        grid=grid,
        in_specs=[
            pl.BlockSpec((tm, tk), lambda i, j, k: (i, k)),
            pl.BlockSpec((tk, tn), lambda i, j, k: (k, j)),
            pl.BlockSpec((1, tn), lambda i, j, k: (0, j)),
        ],
        out_specs=pl.BlockSpec((tm, tn), lambda i, j, k: (i, j)),
        scratch_shapes=[pltpu.VMEM((tm, tn), jnp.float32)],
        compiler_params=pltpu.CompilerParams(
            dimension_semantics=("parallel", "parallel", "arbitrary"),
            vmem_limit_bytes=VMEM_LIMIT,
        ),
    )(xp, wp, bp)
    if Mp != M or Np != N:
        out = out[:M, :N]
    return out


def _ffn_ln_kernel(x_ref, w1_ref, b1_ref, w2_ref, b2_ref, g_ref, be_ref,
                   o_ref, acc_ref):
    """Fused FFN + residual + LayerNorm, streaming d_ff as a reduction axis:
       out = LN(x + sum_f relu(x @ w1[:, f] + b1[f]) @ w2[f, :] + b2)."""
    f = pl.program_id(1)

    @pl.when(f == 0)
    def _():
        acc_ref[...] = jnp.zeros_like(acc_ref)

    h = jnp.dot(
        x_ref[...].astype(jnp.bfloat16),
        w1_ref[...],
        preferred_element_type=jnp.float32,
    ) + b1_ref[...]
    h = jnp.maximum(h, 0.0)  # ReLU (elementwise in d_ff -> chunk-safe)
    acc_ref[...] += jnp.dot(
        h.astype(jnp.bfloat16),
        w2_ref[...],
        preferred_element_type=jnp.float32,
    )

    @pl.when(f == pl.num_programs(1) - 1)
    def _():
        y = acc_ref[...] + b2_ref[...] + x_ref[...]  # residual = FFN input
        mean = jnp.mean(y, axis=-1, keepdims=True)
        c = y - mean
        var = jnp.mean(c * c, axis=-1, keepdims=True)  # biased var (torch LN)
        o_ref[...] = c * lax.rsqrt(var + LN_EPS) * g_ref[...] + be_ref[...]


def pallas_ffn_add_ln(x2d, w1, b1, w2, b2, gamma, beta,
                      *, tm_target=256, tf_target=512):
    """Fused Linear -> ReLU -> Linear -> +residual -> LayerNorm.  x2d: [M, D]
    f32; w1/w2 bf16."""
    M, D = x2d.shape
    F = w1.shape[1]
    tm, Mp = _tile_pad(M, tm_target, 8)
    tf, Fp = _tile_pad(F, tf_target, 128)
    xp = _pad_dim(x2d, 0, Mp)
    w1p = _pad_dim(w1, 1, Fp)
    b1p = _pad_dim(b1, 0, Fp).reshape(1, Fp)
    w2p = _pad_dim(w2, 0, Fp)
    grid = (Mp // tm, Fp // tf)
    out = pl.pallas_call(
        _ffn_ln_kernel,
        out_shape=jax.ShapeDtypeStruct((Mp, D), jnp.float32),
        grid=grid,
        in_specs=[
            pl.BlockSpec((tm, D), lambda i, f: (i, 0)),   # x (also the residual)
            pl.BlockSpec((D, tf), lambda i, f: (0, f)),   # w1 column block (bf16)
            pl.BlockSpec((1, tf), lambda i, f: (0, f)),   # b1 chunk
            pl.BlockSpec((tf, D), lambda i, f: (f, 0)),   # w2 row block (bf16)
            pl.BlockSpec((1, D), lambda i, f: (0, 0)),    # b2
            pl.BlockSpec((1, D), lambda i, f: (0, 0)),    # gamma
            pl.BlockSpec((1, D), lambda i, f: (0, 0)),    # beta
        ],
        out_specs=pl.BlockSpec((tm, D), lambda i, f: (i, 0)),
        scratch_shapes=[pltpu.VMEM((tm, D), jnp.float32)],
        compiler_params=pltpu.CompilerParams(
            dimension_semantics=("parallel", "arbitrary"),
            vmem_limit_bytes=VMEM_LIMIT,
        ),
    )(xp, w1p, b1p, w2p, b2.reshape(1, D), gamma.reshape(1, D),
      beta.reshape(1, D))
    return out[:M] if Mp != M else out


def _mha_out_ln(q_all, k_all, v_all, bias, wo, bo, resid, gamma, beta,
                num_heads, d_model, scale):
    """Per-head attention, out-projection accumulation, residual + LayerNorm.
    q_all: [T, D] bf16, k_all/v_all: [S, D] bf16, bias: [Tb, S] f32 additive,
    wo: [D, D] bf16, resid: [T, D] f32.  Returns LN(concat_h(attn_h) @ wo +
    bo + resid) as f32 [T, D] without materializing the concatenate:
    concat @ wo == sum_h attn_h @ wo[h*dh:(h+1)*dh, :]."""
    dh = d_model // num_heads
    acc = None
    for h in range(num_heads):
        q = q_all[:, h * dh:(h + 1) * dh]
        k = k_all[:, h * dh:(h + 1) * dh]
        v = v_all[:, h * dh:(h + 1) * dh]
        # Contract the Dh dims directly -- no k.T materialization.
        s = lax.dot_general(q, k, (((1,), (1,)), ((), ())),
                            preferred_element_type=jnp.float32)
        s = s * scale + bias
        s = s - jnp.max(s, axis=-1, keepdims=True)
        p = jnp.exp(s)
        p = p * pl.reciprocal(jnp.sum(p, axis=-1, keepdims=True), approx=True)
        o_h = jnp.dot(p.astype(jnp.bfloat16), v,
                      preferred_element_type=jnp.float32)          # [T, dh]
        contrib = jnp.dot(o_h.astype(jnp.bfloat16),
                          wo[h * dh:(h + 1) * dh, :],
                          preferred_element_type=jnp.float32)      # [T, D]
        acc = contrib if acc is None else acc + contrib
    y = acc + bo + resid
    mean = jnp.mean(y, axis=-1, keepdims=True)
    c = y - mean
    var = jnp.mean(c * c, axis=-1, keepdims=True)
    return c * lax.rsqrt(var + LN_EPS) * gamma + beta


def _self_attn_kernel(qkv_ref, kpad_ref, resid_ref, wo_ref, bo_ref, g_ref,
                      be_ref, o_ref, *, num_heads, d_model, scale, causal):
    qkv = qkv_ref[0]                     # [S, 3D] packed q|k|v, bf16
    kpad = kpad_ref[0]                   # [1, S] f32 key-padding bias
    T = qkv.shape[0]
    if causal:
        # Generate the causal mask in-kernel (no [T,S] HBM bias tensor).
        r = lax.broadcasted_iota(jnp.int32, (T, T), 0)
        c = lax.broadcasted_iota(jnp.int32, (T, T), 1)
        bias = kpad + jnp.where(c <= r, 0.0, NEG_INF)
    else:
        bias = kpad
    o_ref[0] = _mha_out_ln(
        qkv[:, 0:d_model], qkv[:, d_model:2 * d_model],
        qkv[:, 2 * d_model:3 * d_model], bias,
        wo_ref[...], bo_ref[...], resid_ref[0], g_ref[...], be_ref[...],
        num_heads, d_model, scale)


def _cross_attn_kernel(q_ref, kv_ref, kpad_ref, resid_ref, wo_ref, bo_ref,
                       g_ref, be_ref, o_ref, *, num_heads, d_model, scale):
    q_all = q_ref[0]                     # [T, D] bf16
    kv = kv_ref[0]                       # [S, 2D] packed k|v, bf16
    bias = kpad_ref[0]                   # [1, S] f32
    o_ref[0] = _mha_out_ln(
        q_all, kv[:, 0:d_model], kv[:, d_model:2 * d_model], bias,
        wo_ref[...], bo_ref[...], resid_ref[0], g_ref[...], be_ref[...],
        num_heads, d_model, scale)


def pallas_self_attention(qkv, kpad_bias, resid, wo, bo, gamma, beta,
                          *, num_heads, causal):
    """qkv: [B, S, 3D] bf16, kpad_bias: [B, 1, S] f32, resid: [B, S, D] f32.
    Returns LN(MHA(qkv) @ wo + bo + resid): [B, S, D] f32."""
    B, S, threeD = qkv.shape
    D = threeD // 3
    scale = 1.0 / math.sqrt(D // num_heads)
    kern = functools.partial(_self_attn_kernel, num_heads=num_heads,
                             d_model=D, scale=scale, causal=causal)
    return pl.pallas_call(
        kern,
        out_shape=jax.ShapeDtypeStruct((B, S, D), jnp.float32),
        grid=(B,),
        in_specs=[
            pl.BlockSpec((1, S, threeD), lambda b: (b, 0, 0)),
            pl.BlockSpec((1, 1, S), lambda b: (b, 0, 0)),
            pl.BlockSpec((1, S, D), lambda b: (b, 0, 0)),
            pl.BlockSpec((D, D), lambda b: (0, 0)),
            pl.BlockSpec((1, D), lambda b: (0, 0)),
            pl.BlockSpec((1, D), lambda b: (0, 0)),
            pl.BlockSpec((1, D), lambda b: (0, 0)),
        ],
        out_specs=pl.BlockSpec((1, S, D), lambda b: (b, 0, 0)),
        compiler_params=pltpu.CompilerParams(
            dimension_semantics=("parallel",),
            vmem_limit_bytes=VMEM_LIMIT,
        ),
    )(qkv, kpad_bias, resid, wo, bo.reshape(1, D), gamma.reshape(1, D),
      beta.reshape(1, D))


def pallas_cross_attention(q, kv, kpad_bias, resid, wo, bo, gamma, beta,
                           *, num_heads):
    """q: [B, T, D] bf16, kv: [B, S, 2D] bf16, kpad_bias: [B, 1, S] f32,
    resid: [B, T, D] f32 -> LN(MHA(q, kv) @ wo + bo + resid): [B, T, D]."""
    B, T, D = q.shape
    S = kv.shape[1]
    scale = 1.0 / math.sqrt(D // num_heads)
    kern = functools.partial(_cross_attn_kernel, num_heads=num_heads,
                             d_model=D, scale=scale)
    return pl.pallas_call(
        kern,
        out_shape=jax.ShapeDtypeStruct((B, T, D), jnp.float32),
        grid=(B,),
        in_specs=[
            pl.BlockSpec((1, T, D), lambda b: (b, 0, 0)),
            pl.BlockSpec((1, S, 2 * D), lambda b: (b, 0, 0)),
            pl.BlockSpec((1, 1, S), lambda b: (b, 0, 0)),
            pl.BlockSpec((1, T, D), lambda b: (b, 0, 0)),
            pl.BlockSpec((D, D), lambda b: (0, 0)),
            pl.BlockSpec((1, D), lambda b: (0, 0)),
            pl.BlockSpec((1, D), lambda b: (0, 0)),
            pl.BlockSpec((1, D), lambda b: (0, 0)),
        ],
        out_specs=pl.BlockSpec((1, T, D), lambda b: (b, 0, 0)),
        compiler_params=pltpu.CompilerParams(
            dimension_semantics=("parallel",),
            vmem_limit_bytes=VMEM_LIMIT,
        ),
    )(q, kv, kpad_bias, resid, wo, bo.reshape(1, D), gamma.reshape(1, D),
      beta.reshape(1, D))


# ----------------------------- model (glue) -----------------------------

def encoder_layer(x, src_kpad, p, num_heads):
    B, S, D = x.shape
    x2d = x.reshape(B * S, D)
    qkv = pallas_linear(x2d, p["wqkv"], p["bqkv"],
                        out_dtype=jnp.bfloat16).reshape(B, S, 3 * D)
    # attention + out-projection + residual + LayerNorm fused
    x1 = pallas_self_attention(qkv, src_kpad, x, p["wo"], p["bo"],
                               p["ln1_g"], p["ln1_b"],
                               num_heads=num_heads, causal=False)
    # FFN + residual + LayerNorm fused
    x2 = pallas_ffn_add_ln(x1.reshape(B * S, D), p["ff_w1"], p["ff_b1"],
                           p["ff_w2"], p["ff_b2"], p["ln2_g"], p["ln2_b"])
    return x2.reshape(B, S, D)


def decoder_layer(y, enc_out, tgt_kpad, src_kpad, p, num_heads):
    B, T, D = y.shape
    S = enc_out.shape[1]
    y2d = y.reshape(B * T, D)
    # masked self-attention (causal mask generated in-kernel)
    qkv = pallas_linear(y2d, p["sa_wqkv"], p["sa_bqkv"],
                        out_dtype=jnp.bfloat16).reshape(B, T, 3 * D)
    y1 = pallas_self_attention(qkv, tgt_kpad, y, p["sa_wo"], p["sa_bo"],
                               p["ln1_g"], p["ln1_b"],
                               num_heads=num_heads, causal=True)
    # cross attention: q from decoder state, fused k|v from encoder output
    q = pallas_linear(y1.reshape(B * T, D), p["ca_wq"], p["ca_bq"],
                      out_dtype=jnp.bfloat16).reshape(B, T, D)
    kv = pallas_linear(enc_out.reshape(B * S, D), p["ca_wkv"], p["ca_bkv"],
                       out_dtype=jnp.bfloat16).reshape(B, S, 2 * D)
    y2 = pallas_cross_attention(q, kv, src_kpad, y1, p["ca_wo"], p["ca_bo"],
                                p["ln2_g"], p["ln2_b"], num_heads=num_heads)
    # FFN + residual + LayerNorm fused
    y3 = pallas_ffn_add_ln(y2.reshape(B * T, D), p["ff_w1"], p["ff_b1"],
                           p["ff_w2"], p["ff_b2"], p["ln3_g"], p["ln3_b"])
    return y3.reshape(B, T, D)


def sinusoidal_pe(max_len, d_model):
    pos = jnp.arange(max_len, dtype=jnp.float32)[:, None]
    div = jnp.exp(
        jnp.arange(0, d_model, 2, dtype=jnp.float32) * (-math.log(10000.0) / d_model)
    )
    pe = jnp.zeros((max_len, d_model), jnp.float32)
    pe = pe.at[:, 0::2].set(jnp.sin(pos * div))
    pe = pe.at[:, 1::2].set(jnp.cos(pos * div))
    return pe


def transformer_forward(params, src, tgt, num_heads):
    B, Ss = src.shape
    _, St = tgt.shape

    # Key-padding additive biases only ([B,1,S] f32, tiny).  The decoder
    # causal mask is generated inside the attention kernel from iota.
    src_kpad = jnp.where(src != PAD_ID, 0.0, NEG_INF).astype(jnp.float32)[:, None, :]
    tgt_kpad = jnp.where(tgt != PAD_ID, 0.0, NEG_INF).astype(jnp.float32)[:, None, :]

    # embedding + positional encoding
    # TODO(synk): some PositionalEncoding variants also scale the embedding by
    # sqrt(d_model); plain "x + pe" is used here.
    pe = params["pe"]
    x = params["emb"][src] + pe[:Ss][None]
    y = params["emb"][tgt] + pe[:St][None]

    for enc_p in params["encoders"]:
        x = encoder_layer(x, src_kpad, enc_p, num_heads)
    for dec_p in params["decoders"]:
        y = decoder_layer(y, x, tgt_kpad, src_kpad, dec_p, num_heads)

    D = y.shape[-1]
    logits = pallas_linear(y.reshape(B * St, D), params["w_final"],
                           params["b_final"], out_dtype=jnp.float32)
    return logits.reshape(B, St, -1)


# ----------------------------- init -----------------------------

def init_params(key, vocab_size, d_model, num_encoders, num_decoders, d_ff,
                max_seq_len):
    keys = iter(jax.random.split(key, 512))

    def lin(in_d, out_d):
        # MXU weights are stored bf16 (halves HBM->VMEM DMA); biases stay f32.
        w = jax.random.normal(next(keys), (in_d, out_d), jnp.float32) / math.sqrt(in_d)
        b = jnp.zeros((out_d,), jnp.float32)
        return w.astype(jnp.bfloat16), b

    def fused_lin(in_d, out_d, n):
        ws, bs = zip(*(lin(in_d, out_d) for _ in range(n)))
        return jnp.concatenate(ws, axis=1), jnp.concatenate(bs, axis=0)

    def enc_params():
        wqkv, bqkv = fused_lin(d_model, d_model, 3)
        wo, bo = lin(d_model, d_model)
        w1, b1 = lin(d_model, d_ff)
        w2, b2 = lin(d_ff, d_model)
        return {
            "wqkv": wqkv, "bqkv": bqkv, "wo": wo, "bo": bo,
            "ln1_g": jnp.ones((d_model,)), "ln1_b": jnp.zeros((d_model,)),
            "ff_w1": w1, "ff_b1": b1, "ff_w2": w2, "ff_b2": b2,
            "ln2_g": jnp.ones((d_model,)), "ln2_b": jnp.zeros((d_model,)),
        }

    def dec_params():
        sa_wqkv, sa_bqkv = fused_lin(d_model, d_model, 3)
        sa_wo, sa_bo = lin(d_model, d_model)
        ca_wq, ca_bq = lin(d_model, d_model)
        ca_wkv, ca_bkv = fused_lin(d_model, d_model, 2)
        ca_wo, ca_bo = lin(d_model, d_model)
        w1, b1 = lin(d_model, d_ff)
        w2, b2 = lin(d_ff, d_model)
        return {
            "sa_wqkv": sa_wqkv, "sa_bqkv": sa_bqkv, "sa_wo": sa_wo, "sa_bo": sa_bo,
            "ln1_g": jnp.ones((d_model,)), "ln1_b": jnp.zeros((d_model,)),
            "ca_wq": ca_wq, "ca_bq": ca_bq, "ca_wkv": ca_wkv, "ca_bkv": ca_bkv,
            "ca_wo": ca_wo, "ca_bo": ca_bo,
            "ln2_g": jnp.ones((d_model,)), "ln2_b": jnp.zeros((d_model,)),
            "ff_w1": w1, "ff_b1": b1, "ff_w2": w2, "ff_b2": b2,
            "ln3_g": jnp.ones((d_model,)), "ln3_b": jnp.zeros((d_model,)),
        }

    emb = jax.random.normal(next(keys), (vocab_size, d_model), jnp.float32) * 0.02
    emb = emb.at[PAD_ID].set(0.0)  # nn.Embedding padding_idx
    w_final, b_final = lin(d_model, vocab_size)

    return {
        "emb": emb,
        "pe": sinusoidal_pe(max_seq_len, d_model),
        "encoders": [enc_params() for _ in range(num_encoders)],
        "decoders": [dec_params() for _ in range(num_decoders)],
        "w_final": w_final,
        "b_final": b_final,
    }


# ----------------------------- main -----------------------------

if __name__ == "__main__":
    VOCAB, D_MODEL, NUM_HEADS = 64, 32, 4
    NUM_ENC, NUM_DEC, D_FF = 2, 2, 64
    MAX_SEQ = 64
    B, S_SRC, S_TGT = 2, 8, 8

    key = jax.random.PRNGKey(0)
    pkey, skey, tkey = jax.random.split(key, 3)
    params = init_params(pkey, VOCAB, D_MODEL, NUM_ENC, NUM_DEC, D_FF, MAX_SEQ)

    # tokens: SOS, random content, EOS, trailing PAD
    src_body = jax.random.randint(skey, (B, S_SRC), UNK_ID + 1, VOCAB)
    tgt_body = jax.random.randint(tkey, (B, S_TGT), UNK_ID + 1, VOCAB)
    src = src_body.at[:, 0].set(SOS_ID).at[:, -2].set(EOS_ID).at[:, -1].set(PAD_ID)
    tgt = tgt_body.at[:, 0].set(SOS_ID).at[:, -2].set(EOS_ID).at[:, -1].set(PAD_ID)
    src = src.astype(jnp.int32)
    tgt = tgt.astype(jnp.int32)

    fwd = jax.jit(functools.partial(transformer_forward, num_heads=NUM_HEADS))
    logits = fwd(params, src, tgt)
    jax.block_until_ready(logits)

    assert logits.shape == (B, S_TGT, VOCAB), logits.shape
    assert bool(jnp.isfinite(logits).all())
    print("KERNEL_OK")
</pallas_src>

<mosaic_0001>
module attributes {stable_mosaic.version = 11 : i64} {
  func.func @_linear_kernel(%arg0: i32, %arg1: i32, %arg2: i32, %arg3: memref<16x32xf32, #tpu.memory_space<vmem>>, %arg4: memref<32x96xbf16, #tpu.memory_space<vmem>>, %arg5: memref<1x96xf32, #tpu.memory_space<vmem>>, %arg6: memref<16x96xbf16, #tpu.memory_space<vmem>>, %arg7: memref<16x96xf32, #tpu.memory_space<vmem>>) attributes {dimension_semantics = [#tpu.dimension_semantics<parallel>, #tpu.dimension_semantics<parallel>, #tpu.dimension_semantics<arbitrary>], iteration_bounds = array<i64: 1, 1, 1>, scalar_prefetch = 0 : i64, scratch_operands = 1 : i64, tpu.core_type = #tpu.core_type<tc>, window_params = [{transform_indices = @transform_0, window_bounds = array<i64: 16, 32>}, {transform_indices = @transform_1, window_bounds = array<i64: 32, 96>}, {transform_indices = @transform_2, window_bounds = array<i64: 1, 96>}, {transform_indices = @transform_3, window_bounds = array<i64: 16, 96>}]} {
    %c0_i32 = arith.constant 0 : i32
    %0 = arith.cmpi eq, %arg2, %c0_i32 : i32
    %1 = arith.extui %0 : i1 to i32
    %c0_i32_0 = arith.constant 0 : i32
    %2 = arith.cmpi ne, %1, %c0_i32_0 : i32
    scf.if %2 {
      %cst_10 = arith.constant 0.000000e+00 : f32
      %13 = vector.broadcast %cst_10 : f32 to vector<16x96xf32>
      %c0_11 = arith.constant 0 : index
      %c0_12 = arith.constant 0 : index
      %14 = vector.load %arg7[%c0_11, %c0_12] : memref<16x96xf32, #tpu.memory_space<vmem>>, vector<16x96xf32>
      tpu.vector_store %arg7[%c0_11, %c0_12], %13 {strides = array<i32>} : memref<16x96xf32, #tpu.memory_space<vmem>>, vector<16x96xf32>,
    } else {
    }
    %c0 = arith.constant 0 : index
    %c0_1 = arith.constant 0 : index
    %3 = vector.load %arg7[%c0, %c0_1] : memref<16x96xf32, #tpu.memory_space<vmem>>, vector<16x96xf32>
    %c0_2 = arith.constant 0 : index
    %c0_3 = arith.constant 0 : index
    %4 = vector.load %arg3[%c0_2, %c0_3] : memref<16x32xf32, #tpu.memory_space<vmem>>, vector<16x32xf32>
    %5 = arith.truncf %4 : vector<16x32xf32> to vector<16x32xbf16>
    %c0_4 = arith.constant 0 : index
    %c0_5 = arith.constant 0 : index
    %6 = vector.load %arg4[%c0_4, %c0_5] : memref<32x96xbf16, #tpu.memory_space<vmem>>, vector<32x96xbf16>
    %cst = arith.constant dense<0.000000e+00> : vector<16x96xf32>
    %7 = tpu.matmul %5, %6, %cst {dimension_numbers = #tpu.dot_dimension_numbers<[1], [0], [0], [1], [0, 0, 1, 1], [], []>} : vector<16x32xbf16>, vector<32x96xbf16>, vector<16x96xf32> -> vector<16x96xf32>
    %8 = arith.addf %3, %7 : vector<16x96xf32>
    %c0_6 = arith.constant 0 : index
    %c0_7 = arith.constant 0 : index
    %9 = vector.load %arg7[%c0_6, %c0_7] : memref<16x96xf32, #tpu.memory_space<vmem>>, vector<16x96xf32>
    tpu.vector_store %arg7[%c0_6, %c0_7], %8 {strides = array<i32>} : memref<16x96xf32, #tpu.memory_space<vmem>>, vector<16x96xf32>,
    %c0_i32_8 = arith.constant 0 : i32
    %10 = arith.cmpi eq, %arg2, %c0_i32_8 : i32
    %11 = arith.extui %10 : i1 to i32
    %c0_i32_9 = arith.constant 0 : i32
    %12 = arith.cmpi ne, %11, %c0_i32_9 : i32
    scf.if %12 {
      %c0_10 = arith.constant 0 : index
      %c0_11 = arith.constant 0 : index
      %13 = vector.load %arg7[%c0_10, %c0_11] : memref<16x96xf32, #tpu.memory_space<vmem>>, vector<16x96xf32>
      %c0_12 = arith.constant 0 : index
      %c0_13 = arith.constant 0 : index
      %14 = vector.load %arg5[%c0_12, %c0_13] : memref<1x96xf32, #tpu.memory_space<vmem>>, vector<1x96xf32>
      %15 = vector.broadcast %14 : vector<1x96xf32> to vector<16x96xf32>
      %16 = arith.addf %13, %15 : vector<16x96xf32>
      %17 = arith.truncf %16 : vector<16x96xf32> to vector<16x96xbf16>
      %c0_14 = arith.constant 0 : index
      %c0_15 = arith.constant 0 : index
      %18 = vector.load %arg6[%c0_14, %c0_15] : memref<16x96xbf16, #tpu.memory_space<vmem>>, vector<16x96xbf16>
      tpu.vector_store %arg6[%c0_14, %c0_15], %17 {strides = array<i32>} : memref<16x96xbf16, #tpu.memory_space<vmem>>, vector<16x96xbf16>,
    } else {
    }
    return
  }
  func.func @transform_0(%arg0: i32, %arg1: i32, %arg2: i32) -> (i32, i32) {
    %c0_i32 = arith.constant 0 : i32
    return %arg0, %arg2 : i32, i32
  }
  func.func @transform_1(%arg0: i32, %arg1: i32, %arg2: i32) -> (i32, i32) {
    %c0_i32 = arith.constant 0 : i32
    return %arg2, %arg1 : i32, i32
  }
  func.func @transform_2(%arg0: i32, %arg1: i32, %arg2: i32) -> (i32, i32) {
    %c0_i32 = arith.constant 0 : i32
    %c0_i32_0 = arith.constant 0 : i32
    return %c0_i32, %arg1 : i32, i32
  }
  func.func @transform_3(%arg0: i32, %arg1: i32, %arg2: i32) -> (i32, i32) {
    %c0_i32 = arith.constant 0 : i32
    return %arg0, %arg1 : i32, i32
  }
}

module attributes {stable_mosaic.version = 11 : i64} {
  func.func @_self_attn_kernel(%arg0: i32, %arg1: memref<1x8x96xbf16, #tpu.memory_space<vmem>>, %arg2: memref<1x1x8xf32, #tpu.memory_space<vmem>>, %arg3: memref<1x8x32xf32, #tpu.memory_space<vmem>>, %arg4: memref<32x32xbf16, #tpu.memory_space<vmem>>, %arg5: memref<1x32xf32, #tpu.memory_space<vmem>>, %arg6: memref<1x32xf32, #tpu.memory_space<vmem>>, %arg7: memref<1x32xf32, #tpu.memory_space<vmem>>, %arg8: memref<1x8x32xf32, #tpu.memory_space<vmem>>) attributes {dimension_semantics = [#tpu.dimension_semantics<parallel>], iteration_bounds = array<i64: 2>, scalar_prefetch = 0 : i64, scratch_operands = 0 : i64, tpu.core_type = #tpu.core_type<tc>, window_params = [{transform_indices = @transform_0, window_bounds = array<i64: 1, 8, 96>}, {transform_indices = @transform_1, window_bounds = array<i64: 1, 1, 8>}, {transform_indices = @transform_2, window_bounds = array<i64: 1, 8, 32>}, {pipeline_mode = #tpu.pipeline_mode<synchronous>, transform_indices = @transform_3, window_bounds = array<i64: 32, 32>}, {pipeline_mode = #tpu.pipeline_mode<synchronous>, transform_indices = @transform_4, window_bounds = array<i64: 1, 32>}, {pipeline_mode = #tpu.pipeline_mode<synchronous>, transform_indices = @transform_5, window_bounds = array<i64: 1, 32>}, {pipeline_mode = #tpu.pipeline_mode<synchronous>, transform_indices = @transform_6, window_bounds = array<i64: 1, 32>}, {transform_indices = @transform_7, window_bounds = array<i64: 1, 8, 32>}]} {
    %c0 = arith.constant 0 : index
    %c0_0 = arith.constant 0 : index
    %c0_1 = arith.constant 0 : index
    %0 = vector.load %arg1[%c0, %c0_0, %c0_1] : memref<1x8x96xbf16, #tpu.memory_space<vmem>>, vector<1x8x96xbf16>
    %1 = vector.shape_cast %0 : vector<1x8x96xbf16> to vector<8x96xbf16>
    %c0_2 = arith.constant 0 : index
    %c0_3 = arith.constant 0 : index
    %c0_4 = arith.constant 0 : index
    %2 = vector.load %arg2[%c0_2, %c0_3, %c0_4] : memref<1x1x8xf32, #tpu.memory_space<vmem>>, vector<1x1x8xf32>
    %3 = vector.shape_cast %2 : vector<1x1x8xf32> to vector<1x8xf32>
    %4 = vector.extract_strided_slice %1 {offsets = [0, 0], sizes = [8, 32], strides = [1, 1]} : vector<8x96xbf16> to vector<8x32xbf16>
    %5 = vector.extract_strided_slice %1 {offsets = [0, 32], sizes = [8, 32], strides = [1, 1]} : vector<8x96xbf16> to vector<8x32xbf16>
    %6 = vector.extract_strided_slice %1 {offsets = [0, 64], sizes = [8, 32], strides = [1, 1]} : vector<8x96xbf16> to vector<8x32xbf16>
    %c0_5 = arith.constant 0 : index
    %c0_6 = arith.constant 0 : index
    %7 = vector.load %arg4[%c0_5, %c0_6] : memref<32x32xbf16, #tpu.memory_space<vmem>>, vector<32x32xbf16>
    %c0_7 = arith.constant 0 : index
    %c0_8 = arith.constant 0 : index
    %8 = vector.load %arg5[%c0_7, %c0_8] : memref<1x32xf32, #tpu.memory_space<vmem>>, vector<1x32xf32>
    %c0_9 = arith.constant 0 : index
    %c0_10 = arith.constant 0 : index
    %c0_11 = arith.constant 0 : index
    %9 = vector.load %arg3[%c0_9, %c0_10, %c0_11] : memref<1x8x32xf32, #tpu.memory_space<vmem>>, vector<1x8x32xf32>
    %10 = vector.shape_cast %9 : vector<1x8x32xf32> to vector<8x32xf32>
    %c0_12 = arith.constant 0 : index
    %c0_13 = arith.constant 0 : index
    %11 = vector.load %arg6[%c0_12, %c0_13] : memref<1x32xf32, #tpu.memory_space<vmem>>, vector<1x32xf32>
    %c0_14 = arith.constant 0 : index
    %c0_15 = arith.constant 0 : index
    %12 = vector.load %arg7[%c0_14, %c0_15] : memref<1x32xf32, #tpu.memory_space<vmem>>, vector<1x32xf32>
    %13 = vector.extract_strided_slice %4 {offsets = [0, 0], sizes = [8, 8], strides = [1, 1]} : vector<8x32xbf16> to vector<8x8xbf16>
    %14 = vector.extract_strided_slice %5 {offsets = [0, 0], sizes = [8, 8], strides = [1, 1]} : vector<8x32xbf16> to vector<8x8xbf16>
    %15 = vector.extract_strided_slice %6 {offsets = [0, 0], sizes = [8, 8], strides = [1, 1]} : vector<8x32xbf16> to vector<8x8xbf16>
    %cst = arith.constant dense<0.000000e+00> : vector<8x8xf32>
    %16 = tpu.matmul %13, %14, %cst {dimension_numbers = #tpu.dot_dimension_numbers<[1], [1], [0], [0], [0, 0, 1, 0], [], []>} : vector<8x8xbf16>, vector<8x8xbf16>, vector<8x8xf32> -> vector<8x8xf32>
    %cst_16 = arith.constant 0.353553385 : f32
    %17 = vector.broadcast %cst_16 : f32 to vector<8x8xf32>
    %18 = arith.mulf %16, %17 : vector<8x8xf32>
    %19 = vector.broadcast %3 : vector<1x8xf32> to vector<8x8xf32>
    %20 = arith.addf %18, %19 : vector<8x8xf32>
    %cst_17 = arith.constant dense<0xFF800000> : vector<8xf32>
    %21 = vector.multi_reduction <maximumf>, %20, %cst_17 [1] : vector<8x8xf32> to vector<8xf32>
    %22 = vector.shape_cast %21 : vector<8xf32> to vector<8x1xf32>
    %23 = vector.broadcast %22 : vector<8x1xf32> to vector<8x8xf32>
    %24 = arith.subf %20, %23 : vector<8x8xf32>
    %25 = math.exp %24 : vector<8x8xf32>
    %cst_18 = arith.constant dense<0.000000e+00> : vector<8xf32>
    %26 = vector.multi_reduction <add>, %25, %cst_18 [1] : vector<8x8xf32> to vector<8xf32>
    %27 = vector.shape_cast %26 : vector<8xf32> to vector<8x1xf32>
    %28 = tpu.reciprocal %27 {approx = true} : vector<8x1xf32> -> vector<8x1xf32>
    %29 = vector.broadcast %28 : vector<8x1xf32> to vector<8x8xf32>
    %30 = arith.mulf %25, %29 : vector<8x8xf32>
    %31 = arith.truncf %30 : vector<8x8xf32> to vector<8x8xbf16>
    %cst_19 = arith.constant dense<0.000000e+00> : vector<8x8xf32>
    %32 = tpu.matmul %31, %15, %cst_19 {dimension_numbers = #tpu.dot_dimension_numbers<[1], [0], [0], [1], [0, 0, 1, 1], [], []>} : vector<8x8xbf16>, vector<8x8xbf16>, vector<8x8xf32> -> vector<8x8xf32>
    %33 = arith.truncf %32 : vector<8x8xf32> to vector<8x8xbf16>
    %34 = vector.extract_strided_slice %7 {offsets = [0, 0], sizes = [8, 32], strides = [1, 1]} : vector<32x32xbf16> to vector<8x32xbf16>
    %cst_20 = arith.constant dense<0.000000e+00> : vector<8x32xf32>
    %35 = tpu.matmul %33, %34, %cst_20 {dimension_numbers = #tpu.dot_dimension_numbers<[1], [0], [0], [1], [0, 0, 1, 1], [], []>} : vector<8x8xbf16>, vector<8x32xbf16>, vector<8x32xf32> -> vector<8x32xf32>
    %36 = vector.extract_strided_slice %4 {offsets = [0, 8], sizes = [8, 8], strides = [1, 1]} : vector<8x32xbf16> to vector<8x8xbf16>
    %37 = vector.extract_strided_slice %5 {offsets = [0, 8], sizes = [8, 8], strides = [1, 1]} : vector<8x32xbf16> to vector<8x8xbf16>
    %38 = vector.extract_strided_slice %6 {offsets = [0, 8], sizes = [8, 8], strides = [1, 1]} : vector<8x32xbf16> to vector<8x8xbf16>
    %cst_21 = arith.constant dense<0.000000e+00> : vector<8x8xf32>
    %39 = tpu.matmul %36, %37, %cst_21 {dimension_numbers = #tpu.dot_dimension_numbers<[1], [1], [0], [0], [0, 0, 1, 0], [], []>} : vector<8x8xbf16>, vector<8x8xbf16>, vector<8x8xf32> -> vector<8x8xf32>
    %cst_22 = arith.constant 0.353553385 : f32
    %40 = vector.broadcast %cst_22 : f32 to vector<8x8xf32>
    %41 = arith.mulf %39, %40 : vector<8x8xf32>
    %42 = vector.broadcast %3 : vector<1x8xf32> to vector<8x8xf32>
    %43 = arith.addf %41, %42 : vector<8x8xf32>
    %cst_23 = arith.constant dense<0xFF800000> : vector<8xf32>
    %44 = vector.multi_reduction <maximumf>, %43, %cst_23 [1] : vector<8x8xf32> to vector<8xf32>
    %45 = vector.shape_cast %44 : vector<8xf32> to vector<8x1xf32>
    %46 = vector.broadcast %45 : vector<8x1xf32> to vector<8x8xf32>
    %47 = arith.subf %43, %46 : vector<8x8xf32>
    %48 = math.exp %47 : vector<8x8xf32>
    %cst_24 = arith.constant dense<0.000000e+00> : vector<8xf32>
    %49 = vector.multi_reduction <add>, %48, %cst_24 [1] : vector<8x8xf32> to vector<8xf32>
    %50 = vector.shape_cast %49 : vector<8xf32> to vector<8x1xf32>
    %51 = tpu.reciprocal %50 {approx = true} : vector<8x1xf32> -> vector<8x1xf32>
    %52 = vector.broadcast %51 : vector<8x1xf32> to vector<8x8xf32>
    %53 = arith.mulf %48, %52 : vector<8x8xf32>
    %54 = arith.truncf %53 : vector<8x8xf32> to vector<8x8xbf16>
    %cst_25 = arith.constant dense<0.000000e+00> : vector<8x8xf32>
    %55 = tpu.matmul %54, %38, %cst_25 {dimension_numbers = #tpu.dot_dimension_numbers<[1], [0], [0], [1], [0, 0, 1, 1], [], []>} : vector<8x8xbf16>, vector<8x8xbf16>, vector<8x8xf32> -> vector<8x8xf32>
    %56 = arith.truncf %55 : vector<8x8xf32> to vector<8x8xbf16>
    %57 = vector.extract_strided_slice %7 {offsets = [8, 0], sizes = [8, 32], strides = [1, 1]} : vector<32x32xbf16> to vector<8x32xbf16>
    %cst_26 = arith.constant dense<0.000000e+00> : vector<8x32xf32>
    %58 = tpu.matmul %56, %57, %cst_26 {dimension_numbers = #tpu.dot_dimension_numbers<[1], [0], [0], [1], [0, 0, 1, 1], [], []>} : vector<8x8xbf16>, vector<8x32xbf16>, vector<8x32xf32> -> vector<8x32xf32>
    %59 = arith.addf %35, %58 : vector<8x32xf32>
    %60 = vector.extract_strided_slice %4 {offsets = [0, 16], sizes = [8, 8], strides = [1, 1]} : vector<8x32xbf16> to vector<8x8xbf16>
    %61 = vector.extract_strided_slice %5 {offsets = [0, 16], sizes = [8, 8], strides = [1, 1]} : vector<8x32xbf16> to vector<8x8xbf16>
    %62 = vector.extract_strided_slice %6 {offsets = [0, 16], sizes = [8, 8], strides = [1, 1]} : vector<8x32xbf16> to vector<8x8xbf16>
    %cst_27 = arith.constant dense<0.000000e+00> : vector<8x8xf32>
    %63 = tpu.matmul %60, %61, %cst_27 {dimension_numbers = #tpu.dot_dimension_numbers<[1], [1], [0], [0], [0, 0, 1, 0], [], []>} : vector<8x8xbf16>, vector<8x8xbf16>, vector<8x8xf32> -> vector<8x8xf32>
    %cst_28 = arith.constant 0.353553385 : f32
    %64 = vector.broadcast %cst_28 : f32 to vector<8x8xf32>
    %65 = arith.mulf %63, %64 : vector<8x8xf32>
    %66 = vector.broadcast %3 : vector<1x8xf32> to vector<8x8xf32>
    %67 = arith.addf %65, %66 : vector<8x8xf32>
    %cst_29 = arith.constant dense<0xFF800000> : vector<8xf32>
    %68 = vector.multi_reduction <maximumf>, %67, %cst_29 [1] : vector<8x8xf32> to vector<8xf32>
    %69 = vector.shape_cast %68 : vector<8xf32> to vector<8x1xf32>
    %70 = vector.broadcast %69 : vector<8x1xf32> to vector<8x8xf32>
    %71 = arith.subf %67, %70 : vector<8x8xf32>
    %72 = math.exp %71 : vector<8x8xf32>
    %cst_30 = arith.constant dense<0.000000e+00> : vector<8xf32>
    %73 = vector.multi_reduction <add>, %72, %cst_30 [1] : vector<8x8xf32> to vector<8xf32>
    %74 = vector.shape_cast %73 : vector<8xf32> to vector<8x1xf32>
    %75 = tpu.reciprocal %74 {approx = true} : vector<8x1xf32> -> vector<8x1xf32>
    %76 = vector.broadcast %75 : vector<8x1xf32> to vector<8x8xf32>
    %77 = arith.mulf %72, %76 : vector<8x8xf32>
    %78 = arith.truncf %77 : vector<8x8xf32> to vector<8x8xbf16>
    %cst_31 = arith.constant dense<0.000000e+00> : vector<8x8xf32>
    %79 = tpu.matmul %78, %62, %cst_31 {dimension_numbers = #tpu.dot_dimension_numbers<[1], [0], [0], [1], [0, 0, 1, 1], [], []>} : vector<8x8xbf16>, vector<8x8xbf16>, vector<8x8xf32> -> vector<8x8xf32>
    %80 = arith.truncf %79 : vector<8x8xf32> to vector<8x8xbf16>
    %81 = vector.extract_strided_slice %7 {offsets = [16, 0], sizes = [8, 32], strides = [1, 1]} : vector<32x32xbf16> to vector<8x32xbf16>
    %cst_32 = arith.constant dense<0.000000e+00> : vector<8x32xf32>
    %82 = tpu.matmul %80, %81, %cst_32 {dimension_numbers = #tpu.dot_dimension_numbers<[1], [0], [0], [1], [0, 0, 1, 1], [], []>} : vector<8x8xbf16>, vector<8x32xbf16>, vector<8x32xf32> -> vector<8x32xf32>
    %83 = arith.addf %59, %82 : vector<8x32xf32>
    %84 = vector.extract_strided_slice %4 {offsets = [0, 24], sizes = [8, 8], strides = [1, 1]} : vector<8x32xbf16> to vector<8x8xbf16>
    %85 = vector.extract_strided_slice %5 {offsets = [0, 24], sizes = [8, 8], strides = [1, 1]} : vector<8x32xbf16> to vector<8x8xbf16>
    %86 = vector.extract_strided_slice %6 {offsets = [0, 24], sizes = [8, 8], strides = [1, 1]} : vector<8x32xbf16> to vector<8x8xbf16>
    %cst_33 = arith.constant dense<0.000000e+00> : vector<8x8xf32>
    %87 = tpu.matmul %84, %85, %cst_33 {dimension_numbers = #tpu.dot_dimension_numbers<[1], [1], [0], [0], [0, 0, 1, 0], [], []>} : vector<8x8xbf16>, vector<8x8xbf16>, vector<8x8xf32> -> vector<8x8xf32>
    %cst_34 = arith.constant 0.353553385 : f32
    %88 = vector.broadcast %cst_34 : f32 to vector<8x8xf32>
    %89 = arith.mulf %87, %88 : vector<8x8xf32>
    %90 = vector.broadcast %3 : vector<1x8xf32> to vector<8x8xf32>
    %91 = arith.addf %89, %90 : vector<8x8xf32>
    %cst_35 = arith.constant dense<0xFF800000> : vector<8xf32>
    %92 = vector.multi_reduction <maximumf>, %91, %cst_35 [1] : vector<8x8xf32> to vector<8xf32>
    %93 = vector.shape_cast %92 : vector<8xf32> to vector<8x1xf32>
    %94 = vector.broadcast %93 : vector<8x1xf32> to vector<8x8xf32>
    %95 = arith.subf %91, %94 : vector<8x8xf32>
    %96 = math.exp %95 : vector<8x8xf32>
    %cst_36 = arith.constant dense<0.000000e+00> : vector<8xf32>
    %97 = vector.multi_reduction <add>, %96, %cst_36 [1] : vector<8x8xf32> to vector<8xf32>
    %98 = vector.shape_cast %97 : vector<8xf32> to vector<8x1xf32>
    %99 = tpu.reciprocal %98 {approx = true} : vector<8x1xf32> -> vector<8x1xf32>
    %100 = vector.broadcast %99 : vector<8x1xf32> to vector<8x8xf32>
    %101 = arith.mulf %96, %100 : vector<8x8xf32>
    %102 = arith.truncf %101 : vector<8x8xf32> to vector<8x8xbf16>
    %cst_37 = arith.constant dense<0.000000e+00> : vector<8x8xf32>
    %103 = tpu.matmul %102, %86, %cst_37 {dimension_numbers = #tpu.dot_dimension_numbers<[1], [0], [0], [1], [0, 0, 1, 1], [], []>} : vector<8x8xbf16>, vector<8x8xbf16>, vector<8x8xf32> -> vector<8x8xf32>
    %104 = arith.truncf %103 : vector<8x8xf32> to vector<8x8xbf16>
    %105 = vector.extract_strided_slice %7 {offsets = [24, 0], sizes = [8, 32], strides = [1, 1]} : vector<32x32xbf16> to vector<8x32xbf16>
    %cst_38 = arith.constant dense<0.000000e+00> : vector<8x32xf32>
    %106 = tpu.matmul %104, %105, %cst_38 {dimension_numbers = #tpu.dot_dimension_numbers<[1], [0], [0], [1], [0, 0, 1, 1], [], []>} : vector<8x8xbf16>, vector<8x32xbf16>, vector<8x32xf32> -> vector<8x32xf32>
    %107 = arith.addf %83, %106 : vector<8x32xf32>
    %108 = vector.broadcast %8 : vector<1x32xf32> to vector<8x32xf32>
    %109 = arith.addf %107, %108 : vector<8x32xf32>
    %110 = arith.addf %109, %10 : vector<8x32xf32>
    %cst_39 = arith.constant dense<0.000000e+00> : vector<8xf32>
    %111 = vector.multi_reduction <add>, %110, %cst_39 [1] : vector<8x32xf32> to vector<8xf32>
    %112 = vector.shape_cast %111 : vector<8xf32> to vector<8x1xf32>
    %cst_40 = arith.constant 3.200000e+01 : f32
    %113 = vector.broadcast %cst_40 : f32 to vector<8x1xf32>
    %114 = arith.divf %112, %113 : vector<8x1xf32>
    %115 = vector.broadcast %114 : vector<8x1xf32> to vector<8x32xf32>
    %116 = arith.subf %110, %115 : vector<8x32xf32>
    %117 = arith.mulf %116, %116 : vector<8x32xf32>
    %cst_41 = arith.constant dense<0.000000e+00> : vector<8xf32>
    %118 = vector.multi_reduction <add>, %117, %cst_41 [1] : vector<8x32xf32> to vector<8xf32>
    %119 = vector.shape_cast %118 : vector<8xf32> to vector<8x1xf32>
    %cst_42 = arith.constant 3.200000e+01 : f32
    %120 = vector.broadcast %cst_42 : f32 to vector<8x1xf32>
    %121 = arith.divf %119, %120 : vector<8x1xf32>
    %cst_43 = arith.constant 9.99999974E-6 : f32
    %122 = vector.broadcast %cst_43 : f32 to vector<8x1xf32>
    %123 = arith.addf %121, %122 : vector<8x1xf32>
    %124 = math.rsqrt %123 : vector<8x1xf32>
    %125 = vector.broadcast %124 : vector<8x1xf32> to vector<8x32xf32>
    %126 = arith.mulf %116, %125 : vector<8x32xf32>
    %127 = vector.broadcast %11 : vector<1x32xf32> to vector<8x32xf32>
    %128 = arith.mulf %126, %127 : vector<8x32xf32>
    %129 = vector.broadcast %12 : vector<1x32xf32> to vector<8x32xf32>
    %130 = arith.addf %128, %129 : vector<8x32xf32>
    %c0_44 = arith.constant 0 : index
    %c0_45 = arith.constant 0 : index
    %c0_46 = arith.constant 0 : index
    %131 = vector.load %arg8[%c0_44, %c0_45, %c0_46] : memref<1x8x32xf32, #tpu.memory_space<vmem>>, vector<1x8x32xf32>
    %132 = vector.shape_cast %131 : vector<1x8x32xf32> to vector<8x32xf32>
    %133 = vector.shape_cast %130 : vector<8x32xf32> to vector<1x8x32xf32>
    tpu.vector_store %arg8[%c0_44, %c0_45, %c0_46], %133 {strides = array<i32>} : memref<1x8x32xf32, #tpu.memory_space<vmem>>, vector<1x8x32xf32>,
    return
  }
  func.func @transform_0(%arg0: i32) -> (i32, i32, i32) {
    %c0_i32 = arith.constant 0 : i32
    %c0_i32_0 = arith.constant 0 : i32
    %c0_i32_1 = arith.constant 0 : i32
    return %arg0, %c0_i32, %c0_i32_0 : i32, i32, i32
  }
  func.func @transform_1(%arg0: i32) -> (i32, i32, i32) {
    %c0_i32 = arith.constant 0 : i32
    %c0_i32_0 = arith.constant 0 : i32
    %c0_i32_1 = arith.constant 0 : i32
    return %arg0, %c0_i32, %c0_i32_0 : i32, i32, i32
  }
  func.func @transform_2(%arg0: i32) -> (i32, i32, i32) {
    %c0_i32 = arith.constant 0 : i32
    %c0_i32_0 = arith.constant 0 : i32
    %c0_i32_1 = arith.constant 0 : i32
    return %arg0, %c0_i32, %c0_i32_0 : i32, i32, i32
  }
  func.func @transform_3(%arg0: i32) -> (i32, i32) {
    %c0_i32 = arith.constant 0 : i32
    %c0_i32_0 = arith.constant 0 : i32
    %c0_i32_1 = arith.constant 0 : i32
    return %c0_i32, %c0_i32_0 : i32, i32
  }
  func.func @transform_4(%arg0: i32) -> (i32, i32) {
    %c0_i32 = arith.constant 0 : i32
    %c0_i32_0 = arith.constant 0 : i32
    %c0_i32_1 = arith.constant 0 : i32
    return %c0_i32, %c0_i32_0 : i32, i32
  }
  func.func @transform_5(%arg0: i32) -> (i32, i32) {
    %c0_i32 = arith.constant 0 : i32
    %c0_i32_0 = arith.constant 0 : i32
    %c0_i32_1 = arith.constant 0 : i32
    return %c0_i32, %c0_i32_0 : i32, i32
  }
  func.func @transform_6(%arg0: i32) -> (i32, i32) {
    %c0_i32 = arith.constant 0 : i32
    %c0_i32_0 = arith.constant 0 : i32
    %c0_i32_1 = arith.constant 0 : i32
    return %c0_i32, %c0_i32_0 : i32, i32
  }
  func.func @transform_7(%arg0: i32) -> (i32, i32, i32) {
    %c0_i32 = arith.constant 0 : i32
    %c0_i32_0 = arith.constant 0 : i32
    %c0_i32_1 = arith.constant 0 : i32
    return %arg0, %c0_i32, %c0_i32_0 : i32, i32, i32
  }
}

module attributes {stable_mosaic.version = 11 : i64} {
  func.func @_ffn_ln_kernel(%arg0: i32, %arg1: i32, %arg2: memref<16x32xf32, #tpu.memory_space<vmem>>, %arg3: memref<32x64xbf16, #tpu.memory_space<vmem>>, %arg4: memref<1x64xf32, #tpu.memory_space<vmem>>, %arg5: memref<64x32xbf16, #tpu.memory_space<vmem>>, %arg6: memref<1x32xf32, #tpu.memory_space<vmem>>, %arg7: memref<1x32xf32, #tpu.memory_space<vmem>>, %arg8: memref<1x32xf32, #tpu.memory_space<vmem>>, %arg9: memref<16x32xf32, #tpu.memory_space<vmem>>, %arg10: memref<16x32xf32, #tpu.memory_space<vmem>>) attributes {dimension_semantics = [#tpu.dimension_semantics<parallel>, #tpu.dimension_semantics<arbitrary>], iteration_bounds = array<i64: 1, 1>, scalar_prefetch = 0 : i64, scratch_operands = 1 : i64, tpu.core_type = #tpu.core_type<tc>, window_params = [{transform_indices = @transform_0, window_bounds = array<i64: 16, 32>}, {transform_indices = @transform_1, window_bounds = array<i64: 32, 64>}, {transform_indices = @transform_2, window_bounds = array<i64: 1, 64>}, {transform_indices = @transform_3, window_bounds = array<i64: 64, 32>}, {pipeline_mode = #tpu.pipeline_mode<synchronous>, transform_indices = @transform_4, window_bounds = array<i64: 1, 32>}, {pipeline_mode = #tpu.pipeline_mode<synchronous>, transform_indices = @transform_5, window_bounds = array<i64: 1, 32>}, {pipeline_mode = #tpu.pipeline_mode<synchronous>, transform_indices = @transform_6, window_bounds = array<i64: 1, 32>}, {transform_indices = @transform_7, window_bounds = array<i64: 16, 32>}]} {
    %c0_i32 = arith.constant 0 : i32
    %0 = arith.cmpi eq, %arg1, %c0_i32 : i32
    %1 = arith.extui %0 : i1 to i32
    %c0_i32_0 = arith.constant 0 : i32
    %2 = arith.cmpi ne, %1, %c0_i32_0 : i32
    scf.if %2 {
      %cst_16 = arith.constant 0.000000e+00 : f32
      %21 = vector.broadcast %cst_16 : f32 to vector<16x32xf32>
      %c0_17 = arith.constant 0 : index
      %c0_18 = arith.constant 0 : index
      %22 = vector.load %arg10[%c0_17, %c0_18] : memref<16x32xf32, #tpu.memory_space<vmem>>, vector<16x32xf32>
      tpu.vector_store %arg10[%c0_17, %c0_18], %21 {strides = array<i32>} : memref<16x32xf32, #tpu.memory_space<vmem>>, vector<16x32xf32>,
    } else {
    }
    %c0 = arith.constant 0 : index
    %c0_1 = arith.constant 0 : index
    %3 = vector.load %arg2[%c0, %c0_1] : memref<16x32xf32, #tpu.memory_space<vmem>>, vector<16x32xf32>
    %4 = arith.truncf %3 : vector<16x32xf32> to vector<16x32xbf16>
    %c0_2 = arith.constant 0 : index
    %c0_3 = arith.constant 0 : index
    %5 = vector.load %arg3[%c0_2, %c0_3] : memref<32x64xbf16, #tpu.memory_space<vmem>>, vector<32x64xbf16>
    %cst = arith.constant dense<0.000000e+00> : vector<16x64xf32>
    %6 = tpu.matmul %4, %5, %cst {dimension_numbers = #tpu.dot_dimension_numbers<[1], [0], [0], [1], [0, 0, 1, 1], [], []>} : vector<16x32xbf16>, vector<32x64xbf16>, vector<16x64xf32> -> vector<16x64xf32>
    %c0_4 = arith.constant 0 : index
    %c0_5 = arith.constant 0 : index
    %7 = vector.load %arg4[%c0_4, %c0_5] : memref<1x64xf32, #tpu.memory_space<vmem>>, vector<1x64xf32>
    %8 = vector.broadcast %7 : vector<1x64xf32> to vector<16x64xf32>
    %9 = arith.addf %6, %8 : vector<16x64xf32>
    %cst_6 = arith.constant 0.000000e+00 : f32
    %10 = vector.broadcast %cst_6 : f32 to vector<16x64xf32>
    %11 = arith.maximumf %9, %10 : vector<16x64xf32>
    %c0_7 = arith.constant 0 : index
    %c0_8 = arith.constant 0 : index
    %12 = vector.load %arg10[%c0_7, %c0_8] : memref<16x32xf32, #tpu.memory_space<vmem>>, vector<16x32xf32>
    %13 = arith.truncf %11 : vector<16x64xf32> to vector<16x64xbf16>
    %c0_9 = arith.constant 0 : index
    %c0_10 = arith.constant 0 : index
    %14 = vector.load %arg5[%c0_9, %c0_10] : memref<64x32xbf16, #tpu.memory_space<vmem>>, vector<64x32xbf16>
    %cst_11 = arith.constant dense<0.000000e+00> : vector<16x32xf32>
    %15 = tpu.matmul %13, %14, %cst_11 {dimension_numbers = #tpu.dot_dimension_numbers<[1], [0], [0], [1], [0, 0, 1, 1], [], []>} : vector<16x64xbf16>, vector<64x32xbf16>, vector<16x32xf32> -> vector<16x32xf32>
    %16 = arith.addf %12, %15 : vector<16x32xf32>
    %c0_12 = arith.constant 0 : index
    %c0_13 = arith.constant 0 : index
    %17 = vector.load %arg10[%c0_12, %c0_13] : memref<16x32xf32, #tpu.memory_space<vmem>>, vector<16x32xf32>
    tpu.vector_store %arg10[%c0_12, %c0_13], %16 {strides = array<i32>} : memref<16x32xf32, #tpu.memory_space<vmem>>, vector<16x32xf32>,
    %c0_i32_14 = arith.constant 0 : i32
    %18 = arith.cmpi eq, %arg1, %c0_i32_14 : i32
    %19 = arith.extui %18 : i1 to i32
    %c0_i32_15 = arith.constant 0 : i32
    %20 = arith.cmpi ne, %19, %c0_i32_15 : i32
    scf.if %20 {
      %c0_16 = arith.constant 0 : index
      %c0_17 = arith.constant 0 : index
      %21 = vector.load %arg10[%c0_16, %c0_17] : memref<16x32xf32, #tpu.memory_space<vmem>>, vector<16x32xf32>
      %c0_18 = arith.constant 0 : index
      %c0_19 = arith.constant 0 : index
      %22 = vector.load %arg6[%c0_18, %c0_19] : memref<1x32xf32, #tpu.memory_space<vmem>>, vector<1x32xf32>
      %23 = vector.broadcast %22 : vector<1x32xf32> to vector<16x32xf32>
      %24 = arith.addf %21, %23 : vector<16x32xf32>
      %c0_20 = arith.constant 0 : index
      %c0_21 = arith.constant 0 : index
      %25 = vector.load %arg2[%c0_20, %c0_21] : memref<16x32xf32, #tpu.memory_space<vmem>>, vector<16x32xf32>
      %26 = arith.addf %24, %25 : vector<16x32xf32>
      %cst_22 = arith.constant dense<0.000000e+00> : vector<16xf32>
      %27 = vector.multi_reduction <add>, %26, %cst_22 [1] : vector<16x32xf32> to vector<16xf32>
      %28 = vector.shape_cast %27 : vector<16xf32> to vector<16x1xf32>
      %cst_23 = arith.constant 3.200000e+01 : f32
      %29 = vector.broadcast %cst_23 : f32 to vector<16x1xf32>
      %30 = arith.divf %28, %29 : vector<16x1xf32>
      %31 = vector.broadcast %30 : vector<16x1xf32> to vector<16x32xf32>
      %32 = arith.subf %26, %31 : vector<16x32xf32>
      %33 = arith.mulf %32, %32 : vector<16x32xf32>
      %cst_24 = arith.constant dense<0.000000e+00> : vector<16xf32>
      %34 = vector.multi_reduction <add>, %33, %cst_24 [1] : vector<16x32xf32> to vector<16xf32>
      %35 = vector.shape_cast %34 : vector<16xf32> to vector<16x1xf32>
      %cst_25 = arith.constant 3.200000e+01 : f32
      %36 = vector.broadcast %cst_25 : f32 to vector<16x1xf32>
      %37 = arith.divf %35, %36 : vector<16x1xf32>
      %cst_26 = arith.constant 9.99999974E-6 : f32
      %38 = vector.broadcast %cst_26 : f32 to vector<16x1xf32>
      %39 = arith.addf %37, %38 : vector<16x1xf32>
      %40 = math.rsqrt %39 : vector<16x1xf32>
      %41 = vector.broadcast %40 : vector<16x1xf32> to vector<16x32xf32>
      %42 = arith.mulf %32, %41 : vector<16x32xf32>
      %c0_27 = arith.constant 0 : index
      %c0_28 = arith.constant 0 : index
      %43 = vector.load %arg7[%c0_27, %c0_28] : memref<1x32xf32, #tpu.memory_space<vmem>>, vector<1x32xf32>
      %44 = vector.broadcast %43 : vector<1x32xf32> to vector<16x32xf32>
      %45 = arith.mulf %42, %44 : vector<16x32xf32>
      %c0_29 = arith.constant 0 : index
      %c0_30 = arith.constant 0 : index
      %46 = vector.load %arg8[%c0_29, %c0_30] : memref<1x32xf32, #tpu.memory_space<vmem>>, vector<1x32xf32>
      %47 = vector.broadcast %46 : vector<1x32xf32> to vector<16x32xf32>
      %48 = arith.addf %45, %47 : vector<16x32xf32>
      %c0_31 = arith.constant 0 : index
      %c0_32 = arith.constant 0 : index
      %49 = vector.load %arg9[%c0_31, %c0_32] : memref<16x32xf32, #tpu.memory_space<vmem>>, vector<16x32xf32>
      tpu.vector_store %arg9[%c0_31, %c0_32], %48 {strides = array<i32>} : memref<16x32xf32, #tpu.memory_space<vmem>>, vector<16x32xf32>,
    } else {
    }
    return
  }
  func.func @transform_0(%arg0: i32, %arg1: i32) -> (i32, i32) {
    %c0_i32 = arith.constant 0 : i32
    %c0_i32_0 = arith.constant 0 : i32
    return %arg0, %c0_i32 : i32, i32
  }
  func.func @transform_1(%arg0: i32, %arg1: i32) -> (i32, i32) {
    %c0_i32 = arith.constant 0 : i32
    %c0_i32_0 = arith.constant 0 : i32
    return %c0_i32, %arg1 : i32, i32
  }
  func.func @transform_2(%arg0: i32, %arg1: i32) -> (i32, i32) {
    %c0_i32 = arith.constant 0 : i32
    %c0_i32_0 = arith.constant 0 : i32
    return %c0_i32, %arg1 : i32, i32
  }
  func.func @transform_3(%arg0: i32, %arg1: i32) -> (i32, i32) {
    %c0_i32 = arith.constant 0 : i32
    %c0_i32_0 = arith.constant 0 : i32
    return %arg1, %c0_i32 : i32, i32
  }
  func.func @transform_4(%arg0: i32, %arg1: i32) -> (i32, i32) {
    %c0_i32 = arith.constant 0 : i32
    %c0_i32_0 = arith.constant 0 : i32
    %c0_i32_1 = arith.constant 0 : i32
    return %c0_i32, %c0_i32_0 : i32, i32
  }
  func.func @transform_5(%arg0: i32, %arg1: i32) -> (i32, i32) {
    %c0_i32 = arith.constant 0 : i32
    %c0_i32_0 = arith.constant 0 : i32
    %c0_i32_1 = arith.constant 0 : i32
    return %c0_i32, %c0_i32_0 : i32, i32
  }
  func.func @transform_6(%arg0: i32, %arg1: i32) -> (i32, i32) {
    %c0_i32 = arith.constant 0 : i32
    %c0_i32_0 = arith.constant 0 : i32
    %c0_i32_1 = arith.constant 0 : i32
    return %c0_i32, %c0_i32_0 : i32, i32
  }
  func.func @transform_7(%arg0: i32, %arg1: i32) -> (i32, i32) {
    %c0_i32 = arith.constant 0 : i32
    %c0_i32_0 = arith.constant 0 : i32
    return %arg0, %c0_i32 : i32, i32
  }
}

module attributes {stable_mosaic.version = 11 : i64} {
  func.func @_linear_kernel(%arg0: i32, %arg1: i32, %arg2: i32, %arg3: memref<16x32xf32, #tpu.memory_space<vmem>>, %arg4: memref<32x64xbf16, #tpu.memory_space<vmem>>, %arg5: memref<1x64xf32, #tpu.memory_space<vmem>>, %arg6: memref<16x64xbf16, #tpu.memory_space<vmem>>, %arg7: memref<16x64xf32, #tpu.memory_space<vmem>>) attributes {dimension_semantics = [#tpu.dimension_semantics<parallel>, #tpu.dimension_semantics<parallel>, #tpu.dimension_semantics<arbitrary>], iteration_bounds = array<i64: 1, 1, 1>, scalar_prefetch = 0 : i64, scratch_operands = 1 : i64, tpu.core_type = #tpu.core_type<tc>, window_params = [{transform_indices = @transform_0, window_bounds = array<i64: 16, 32>}, {transform_indices = @transform_1, window_bounds = array<i64: 32, 64>}, {transform_indices = @transform_2, window_bounds = array<i64: 1, 64>}, {transform_indices = @transform_3, window_bounds = array<i64: 16, 64>}]} {
    %c0_i32 = arith.constant 0 : i32
    %0 = arith.cmpi eq, %arg2, %c0_i32 : i32
    %1 = arith.extui %0 : i1 to i32
    %c0_i32_0 = arith.constant 0 : i32
    %2 = arith.cmpi ne, %1, %c0_i32_0 : i32
    scf.if %2 {
      %cst_10 = arith.constant 0.000000e+00 : f32
      %13 = vector.broadcast %cst_10 : f32 to vector<16x64xf32>
      %c0_11 = arith.constant 0 : index
      %c0_12 = arith.constant 0 : index
      %14 = vector.load %arg7[%c0_11, %c0_12] : memref<16x64xf32, #tpu.memory_space<vmem>>, vector<16x64xf32>
      tpu.vector_store %arg7[%c0_11, %c0_12], %13 {strides = array<i32>} : memref<16x64xf32, #tpu.memory_space<vmem>>, vector<16x64xf32>,
    } else {
    }
    %c0 = arith.constant 0 : index
    %c0_1 = arith.constant 0 : index
    %3 = vector.load %arg7[%c0, %c0_1] : memref<16x64xf32, #tpu.memory_space<vmem>>, vector<16x64xf32>
    %c0_2 = arith.constant 0 : index
    %c0_3 = arith.constant 0 : index
    %4 = vector.load %arg3[%c0_2, %c0_3] : memref<16x32xf32, #tpu.memory_space<vmem>>, vector<16x32xf32>
    %5 = arith.truncf %4 : vector<16x32xf32> to vector<16x32xbf16>
    %c0_4 = arith.constant 0 : index
    %c0_5 = arith.constant 0 : index
    %6 = vector.load %arg4[%c0_4, %c0_5] : memref<32x64xbf16, #tpu.memory_space<vmem>>, vector<32x64xbf16>
    %cst = arith.constant dense<0.000000e+00> : vector<16x64xf32>
    %7 = tpu.matmul %5, %6, %cst {dimension_numbers = #tpu.dot_dimension_numbers<[1], [0], [0], [1], [0, 0, 1, 1], [], []>} : vector<16x32xbf16>, vector<32x64xbf16>, vector<16x64xf32> -> vector<16x64xf32>
    %8 = arith.addf %3, %7 : vector<16x64xf32>
    %c0_6 = arith.constant 0 : index
    %c0_7 = arith.constant 0 : index
    %9 = vector.load %arg7[%c0_6, %c0_7] : memref<16x64xf32, #tpu.memory_space<vmem>>, vector<16x64xf32>
    tpu.vector_store %arg7[%c0_6, %c0_7], %8 {strides = array<i32>} : memref<16x64xf32, #tpu.memory_space<vmem>>, vector<16x64xf32>,
    %c0_i32_8 = arith.constant 0 : i32
    %10 = arith.cmpi eq, %arg2, %c0_i32_8 : i32
    %11 = arith.extui %10 : i1 to i32
    %c0_i32_9 = arith.constant 0 : i32
    %12 = arith.cmpi ne, %11, %c0_i32_9 : i32
    scf.if %12 {
      %c0_10 = arith.constant 0 : index
      %c0_11 = arith.constant 0 : index
      %13 = vector.load %arg7[%c0_10, %c0_11] : memref<16x64xf32, #tpu.memory_space<vmem>>, vector<16x64xf32>
      %c0_12 = arith.constant 0 : index
      %c0_13 = arith.constant 0 : index
      %14 = vector.load %arg5[%c0_12, %c0_13] : memref<1x64xf32, #tpu.memory_space<vmem>>, vector<1x64xf32>
      %15 = vector.broadcast %14 : vector<1x64xf32> to vector<16x64xf32>
      %16 = arith.addf %13, %15 : vector<16x64xf32>
      %17 = arith.truncf %16 : vector<16x64xf32> to vector<16x64xbf16>
      %c0_14 = arith.constant 0 : index
      %c0_15 = arith.constant 0 : index
      %18 = vector.load %arg6[%c0_14, %c0_15] : memref<16x64xbf16, #tpu.memory_space<vmem>>, vector<16x64xbf16>
      tpu.vector_store %arg6[%c0_14, %c0_15], %17 {strides = array<i32>} : memref<16x64xbf16, #tpu.memory_space<vmem>>, vector<16x64xbf16>,
    } else {
    }
    return
  }
  func.func @transform_0(%arg0: i32, %arg1: i32, %arg2: i32) -> (i32, i32) {
    %c0_i32 = arith.constant 0 : i32
    return %arg0, %arg2 : i32, i32
  }
  func.func @transform_1(%arg0: i32, %arg1: i32, %arg2: i32) -> (i32, i32) {
    %c0_i32 = arith.constant 0 : i32
    return %arg2, %arg1 : i32, i32
  }
  func.func @transform_2(%arg0: i32, %arg1: i32, %arg2: i32) -> (i32, i32) {
    %c0_i32 = arith.constant 0 : i32
    %c0_i32_0 = arith.constant 0 : i32
    return %c0_i32, %arg1 : i32, i32
  }
  func.func @transform_3(%arg0: i32, %arg1: i32, %arg2: i32) -> (i32, i32) {
    %c0_i32 = arith.constant 0 : i32
    return %arg0, %arg1 : i32, i32
  }
}

module attributes {stable_mosaic.version = 11 : i64} {
  func.func @_linear_kernel(%arg0: i32, %arg1: i32, %arg2: i32, %arg3: memref<16x32xf32, #tpu.memory_space<vmem>>, %arg4: memref<32x32xbf16, #tpu.memory_space<vmem>>, %arg5: memref<1x32xf32, #tpu.memory_space<vmem>>, %arg6: memref<16x32xbf16, #tpu.memory_space<vmem>>, %arg7: memref<16x32xf32, #tpu.memory_space<vmem>>) attributes {dimension_semantics = [#tpu.dimension_semantics<parallel>, #tpu.dimension_semantics<parallel>, #tpu.dimension_semantics<arbitrary>], iteration_bounds = array<i64: 1, 1, 1>, scalar_prefetch = 0 : i64, scratch_operands = 1 : i64, tpu.core_type = #tpu.core_type<tc>, window_params = [{transform_indices = @transform_0, window_bounds = array<i64: 16, 32>}, {transform_indices = @transform_1, window_bounds = array<i64: 32, 32>}, {transform_indices = @transform_2, window_bounds = array<i64: 1, 32>}, {transform_indices = @transform_3, window_bounds = array<i64: 16, 32>}]} {
    %c0_i32 = arith.constant 0 : i32
    %0 = arith.cmpi eq, %arg2, %c0_i32 : i32
    %1 = arith.extui %0 : i1 to i32
    %c0_i32_0 = arith.constant 0 : i32
    %2 = arith.cmpi ne, %1, %c0_i32_0 : i32
    scf.if %2 {
      %cst_10 = arith.constant 0.000000e+00 : f32
      %13 = vector.broadcast %cst_10 : f32 to vector<16x32xf32>
      %c0_11 = arith.constant 0 : index
      %c0_12 = arith.constant 0 : index
      %14 = vector.load %arg7[%c0_11, %c0_12] : memref<16x32xf32, #tpu.memory_space<vmem>>, vector<16x32xf32>
      tpu.vector_store %arg7[%c0_11, %c0_12], %13 {strides = array<i32>} : memref<16x32xf32, #tpu.memory_space<vmem>>, vector<16x32xf32>,
    } else {
    }
    %c0 = arith.constant 0 : index
    %c0_1 = arith.constant 0 : index
    %3 = vector.load %arg7[%c0, %c0_1] : memref<16x32xf32, #tpu.memory_space<vmem>>, vector<16x32xf32>
    %c0_2 = arith.constant 0 : index
    %c0_3 = arith.constant 0 : index
    %4 = vector.load %arg3[%c0_2, %c0_3] : memref<16x32xf32, #tpu.memory_space<vmem>>, vector<16x32xf32>
    %5 = arith.truncf %4 : vector<16x32xf32> to vector<16x32xbf16>
    %c0_4 = arith.constant 0 : index
    %c0_5 = arith.constant 0 : index
    %6 = vector.load %arg4[%c0_4, %c0_5] : memref<32x32xbf16, #tpu.memory_space<vmem>>, vector<32x32xbf16>
    %cst = arith.constant dense<0.000000e+00> : vector<16x32xf32>
    %7 = tpu.matmul %5, %6, %cst {dimension_numbers = #tpu.dot_dimension_numbers<[1], [0], [0], [1], [0, 0, 1, 1], [], []>} : vector<16x32xbf16>, vector<32x32xbf16>, vector<16x32xf32> -> vector<16x32xf32>
    %8 = arith.addf %3, %7 : vector<16x32xf32>
    %c0_6 = arith.constant 0 : index
    %c0_7 = arith.constant 0 : index
    %9 = vector.load %arg7[%c0_6, %c0_7] : memref<16x32xf32, #tpu.memory_space<vmem>>, vector<16x32xf32>
    tpu.vector_store %arg7[%c0_6, %c0_7], %8 {strides = array<i32>} : memref<16x32xf32, #tpu.memory_space<vmem>>, vector<16x32xf32>,
    %c0_i32_8 = arith.constant 0 : i32
    %10 = arith.cmpi eq, %arg2, %c0_i32_8 : i32
    %11 = arith.extui %10 : i1 to i32
    %c0_i32_9 = arith.constant 0 : i32
    %12 = arith.cmpi ne, %11, %c0_i32_9 : i32
    scf.if %12 {
      %c0_10 = arith.constant 0 : index
      %c0_11 = arith.constant 0 : index
      %13 = vector.load %arg7[%c0_10, %c0_11] : memref<16x32xf32, #tpu.memory_space<vmem>>, vector<16x32xf32>
      %c0_12 = arith.constant 0 : index
      %c0_13 = arith.constant 0 : index
      %14 = vector.load %arg5[%c0_12, %c0_13] : memref<1x32xf32, #tpu.memory_space<vmem>>, vector<1x32xf32>
      %15 = vector.broadcast %14 : vector<1x32xf32> to vector<16x32xf32>
      %16 = arith.addf %13, %15 : vector<16x32xf32>
      %17 = arith.truncf %16 : vector<16x32xf32> to vector<16x32xbf16>
      %c0_14 = arith.constant 0 : index
      %c0_15 = arith.constant 0 : index
      %18 = vector.load %arg6[%c0_14, %c0_15] : memref<16x32xbf16, #tpu.memory_space<vmem>>, vector<16x32xbf16>
      tpu.vector_store %arg6[%c0_14, %c0_15], %17 {strides = array<i32>} : memref<16x32xbf16, #tpu.memory_space<vmem>>, vector<16x32xbf16>,
    } else {
    }
    return
  }
  func.func @transform_0(%arg0: i32, %arg1: i32, %arg2: i32) -> (i32, i32) {
    %c0_i32 = arith.constant 0 : i32
    return %arg0, %arg2 : i32, i32
  }
  func.func @transform_1(%arg0: i32, %arg1: i32, %arg2: i32) -> (i32, i32) {
    %c0_i32 = arith.constant 0 : i32
    return %arg2, %arg1 : i32, i32
  }
  func.func @transform_2(%arg0: i32, %arg1: i32, %arg2: i32) -> (i32, i32) {
    %c0_i32 = arith.constant 0 : i32
    %c0_i32_0 = arith.constant 0 : i32
    return %c0_i32, %arg1 : i32, i32
  }
  func.func @transform_3(%arg0: i32, %arg1: i32, %arg2: i32) -> (i32, i32) {
    %c0_i32 = arith.constant 0 : i32
    return %arg0, %arg1 : i32, i32
  }
}

module attributes {stable_mosaic.version = 11 : i64} {
  func.func @_linear_kernel(%arg0: i32, %arg1: i32, %arg2: i32, %arg3: memref<16x32xf32, #tpu.memory_space<vmem>>, %arg4: memref<32x64xbf16, #tpu.memory_space<vmem>>, %arg5: memref<1x64xf32, #tpu.memory_space<vmem>>, %arg6: memref<16x64xf32, #tpu.memory_space<vmem>>, %arg7: memref<16x64xf32, #tpu.memory_space<vmem>>) attributes {dimension_semantics = [#tpu.dimension_semantics<parallel>, #tpu.dimension_semantics<parallel>, #tpu.dimension_semantics<arbitrary>], iteration_bounds = array<i64: 1, 1, 1>, scalar_prefetch = 0 : i64, scratch_operands = 1 : i64, tpu.core_type = #tpu.core_type<tc>, window_params = [{transform_indices = @transform_0, window_bounds = array<i64: 16, 32>}, {transform_indices = @transform_1, window_bounds = array<i64: 32, 64>}, {transform_indices = @transform_2, window_bounds = array<i64: 1, 64>}, {transform_indices = @transform_3, window_bounds = array<i64: 16, 64>}]} {
    %c0_i32 = arith.constant 0 : i32
    %0 = arith.cmpi eq, %arg2, %c0_i32 : i32
    %1 = arith.extui %0 : i1 to i32
    %c0_i32_0 = arith.constant 0 : i32
    %2 = arith.cmpi ne, %1, %c0_i32_0 : i32
    scf.if %2 {
      %cst_10 = arith.constant 0.000000e+00 : f32
      %13 = vector.broadcast %cst_10 : f32 to vector<16x64xf32>
      %c0_11 = arith.constant 0 : index
      %c0_12 = arith.constant 0 : index
      %14 = vector.load %arg7[%c0_11, %c0_12] : memref<16x64xf32, #tpu.memory_space<vmem>>, vector<16x64xf32>
      tpu.vector_store %arg7[%c0_11, %c0_12], %13 {strides = array<i32>} : memref<16x64xf32, #tpu.memory_space<vmem>>, vector<16x64xf32>,
    } else {
    }
    %c0 = arith.constant 0 : index
    %c0_1 = arith.constant 0 : index
    %3 = vector.load %arg7[%c0, %c0_1] : memref<16x64xf32, #tpu.memory_space<vmem>>, vector<16x64xf32>
    %c0_2 = arith.constant 0 : index
    %c0_3 = arith.constant 0 : index
    %4 = vector.load %arg3[%c0_2, %c0_3] : memref<16x32xf32, #tpu.memory_space<vmem>>, vector<16x32xf32>
    %5 = arith.truncf %4 : vector<16x32xf32> to vector<16x32xbf16>
    %c0_4 = arith.constant 0 : index
    %c0_5 = arith.constant 0 : index
    %6 = vector.load %arg4[%c0_4, %c0_5] : memref<32x64xbf16, #tpu.memory_space<vmem>>, vector<32x64xbf16>
    %cst = arith.constant dense<0.000000e+00> : vector<16x64xf32>
    %7 = tpu.matmul %5, %6, %cst {dimension_numbers = #tpu.dot_dimension_numbers<[1], [0], [0], [1], [0, 0, 1, 1], [], []>} : vector<16x32xbf16>, vector<32x64xbf16>, vector<16x64xf32> -> vector<16x64xf32>
    %8 = arith.addf %3, %7 : vector<16x64xf32>
    %c0_6 = arith.constant 0 : index
    %c0_7 = arith.constant 0 : index
    %9 = vector.load %arg7[%c0_6, %c0_7] : memref<16x64xf32, #tpu.memory_space<vmem>>, vector<16x64xf32>
    tpu.vector_store %arg7[%c0_6, %c0_7], %8 {strides = array<i32>} : memref<16x64xf32, #tpu.memory_space<vmem>>, vector<16x64xf32>,
    %c0_i32_8 = arith.constant 0 : i32
    %10 = arith.cmpi eq, %arg2, %c0_i32_8 : i32
    %11 = arith.extui %10 : i1 to i32
    %c0_i32_9 = arith.constant 0 : i32
    %12 = arith.cmpi ne, %11, %c0_i32_9 : i32
    scf.if %12 {
      %c0_10 = arith.constant 0 : index
      %c0_11 = arith.constant 0 : index
      %13 = vector.load %arg7[%c0_10, %c0_11] : memref<16x64xf32, #tpu.memory_space<vmem>>, vector<16x64xf32>
      %c0_12 = arith.constant 0 : index
      %c0_13 = arith.constant 0 : index
      %14 = vector.load %arg5[%c0_12, %c0_13] : memref<1x64xf32, #tpu.memory_space<vmem>>, vector<1x64xf32>
      %15 = vector.broadcast %14 : vector<1x64xf32> to vector<16x64xf32>
      %16 = arith.addf %13, %15 : vector<16x64xf32>
      %c0_14 = arith.constant 0 : index
      %c0_15 = arith.constant 0 : index
      %17 = vector.load %arg6[%c0_14, %c0_15] : memref<16x64xf32, #tpu.memory_space<vmem>>, vector<16x64xf32>
      tpu.vector_store %arg6[%c0_14, %c0_15], %16 {strides = array<i32>} : memref<16x64xf32, #tpu.memory_space<vmem>>, vector<16x64xf32>,
    } else {
    }
    return
  }
  func.func @transform_0(%arg0: i32, %arg1: i32, %arg2: i32) -> (i32, i32) {
    %c0_i32 = arith.constant 0 : i32
    return %arg0, %arg2 : i32, i32
  }
  func.func @transform_1(%arg0: i32, %arg1: i32, %arg2: i32) -> (i32, i32) {
    %c0_i32 = arith.constant 0 : i32
    return %arg2, %arg1 : i32, i32
  }
  func.func @transform_2(%arg0: i32, %arg1: i32, %arg2: i32) -> (i32, i32) {
    %c0_i32 = arith.constant 0 : i32
    %c0_i32_0 = arith.constant 0 : i32
    return %c0_i32, %arg1 : i32, i32
  }
  func.func @transform_3(%arg0: i32, %arg1: i32, %arg2: i32) -> (i32, i32) {
    %c0_i32 = arith.constant 0 : i32
    return %arg0, %arg1 : i32, i32
  }
}

module attributes {stable_mosaic.version = 11 : i64} {
  func.func @_self_attn_kernel(%arg0: i32, %arg1: memref<1x8x96xbf16, #tpu.memory_space<vmem>>, %arg2: memref<1x1x8xf32, #tpu.memory_space<vmem>>, %arg3: memref<1x8x32xf32, #tpu.memory_space<vmem>>, %arg4: memref<32x32xbf16, #tpu.memory_space<vmem>>, %arg5: memref<1x32xf32, #tpu.memory_space<vmem>>, %arg6: memref<1x32xf32, #tpu.memory_space<vmem>>, %arg7: memref<1x32xf32, #tpu.memory_space<vmem>>, %arg8: memref<1x8x32xf32, #tpu.memory_space<vmem>>) attributes {dimension_semantics = [#tpu.dimension_semantics<parallel>], iteration_bounds = array<i64: 2>, scalar_prefetch = 0 : i64, scratch_operands = 0 : i64, tpu.core_type = #tpu.core_type<tc>, window_params = [{transform_indices = @transform_0, window_bounds = array<i64: 1, 8, 96>}, {transform_indices = @transform_1, window_bounds = array<i64: 1, 1, 8>}, {transform_indices = @transform_2, window_bounds = array<i64: 1, 8, 32>}, {pipeline_mode = #tpu.pipeline_mode<synchronous>, transform_indices = @transform_3, window_bounds = array<i64: 32, 32>}, {pipeline_mode = #tpu.pipeline_mode<synchronous>, transform_indices = @transform_4, window_bounds = array<i64: 1, 32>}, {pipeline_mode = #tpu.pipeline_mode<synchronous>, transform_indices = @transform_5, window_bounds = array<i64: 1, 32>}, {pipeline_mode = #tpu.pipeline_mode<synchronous>, transform_indices = @transform_6, window_bounds = array<i64: 1, 32>}, {transform_indices = @transform_7, window_bounds = array<i64: 1, 8, 32>}]} {
    %c0 = arith.constant 0 : index
    %c0_0 = arith.constant 0 : index
    %c0_1 = arith.constant 0 : index
    %0 = vector.load %arg1[%c0, %c0_0, %c0_1] : memref<1x8x96xbf16, #tpu.memory_space<vmem>>, vector<1x8x96xbf16>
    %1 = vector.shape_cast %0 : vector<1x8x96xbf16> to vector<8x96xbf16>
    %c0_2 = arith.constant 0 : index
    %c0_3 = arith.constant 0 : index
    %c0_4 = arith.constant 0 : index
    %2 = vector.load %arg2[%c0_2, %c0_3, %c0_4] : memref<1x1x8xf32, #tpu.memory_space<vmem>>, vector<1x1x8xf32>
    %3 = vector.shape_cast %2 : vector<1x1x8xf32> to vector<1x8xf32>
    %4 = tpu.iota {dimensions = array<i32: 0>} : vector<8x8xi32>
    %5 = tpu.iota {dimensions = array<i32: 1>} : vector<8x8xi32>
    %6 = arith.cmpi sle, %5, %4 : vector<8x8xi32>
    %cst = arith.constant 0.000000e+00 : f32
    %cst_5 = arith.constant -1.000000e+09 : f32
    %7 = vector.broadcast %cst : f32 to vector<8x8xf32>
    %8 = vector.broadcast %cst_5 : f32 to vector<8x8xf32>
    %9 = arith.select %6, %7, %8 : vector<8x8xi1>, vector<8x8xf32>
    %10 = vector.broadcast %3 : vector<1x8xf32> to vector<8x8xf32>
    %11 = arith.addf %10, %9 : vector<8x8xf32>
    %12 = vector.extract_strided_slice %1 {offsets = [0, 0], sizes = [8, 32], strides = [1, 1]} : vector<8x96xbf16> to vector<8x32xbf16>
    %13 = vector.extract_strided_slice %1 {offsets = [0, 32], sizes = [8, 32], strides = [1, 1]} : vector<8x96xbf16> to vector<8x32xbf16>
    %14 = vector.extract_strided_slice %1 {offsets = [0, 64], sizes = [8, 32], strides = [1, 1]} : vector<8x96xbf16> to vector<8x32xbf16>
    %c0_6 = arith.constant 0 : index
    %c0_7 = arith.constant 0 : index
    %15 = vector.load %arg4[%c0_6, %c0_7] : memref<32x32xbf16, #tpu.memory_space<vmem>>, vector<32x32xbf16>
    %c0_8 = arith.constant 0 : index
    %c0_9 = arith.constant 0 : index
    %16 = vector.load %arg5[%c0_8, %c0_9] : memref<1x32xf32, #tpu.memory_space<vmem>>, vector<1x32xf32>
    %c0_10 = arith.constant 0 : index
    %c0_11 = arith.constant 0 : index
    %c0_12 = arith.constant 0 : index
    %17 = vector.load %arg3[%c0_10, %c0_11, %c0_12] : memref<1x8x32xf32, #tpu.memory_space<vmem>>, vector<1x8x32xf32>
    %18 = vector.shape_cast %17 : vector<1x8x32xf32> to vector<8x32xf32>
    %c0_13 = arith.constant 0 : index
    %c0_14 = arith.constant 0 : index
    %19 = vector.load %arg6[%c0_13, %c0_14] : memref<1x32xf32, #tpu.memory_space<vmem>>, vector<1x32xf32>
    %c0_15 = arith.constant 0 : index
    %c0_16 = arith.constant 0 : index
    %20 = vector.load %arg7[%c0_15, %c0_16] : memref<1x32xf32, #tpu.memory_space<vmem>>, vector<1x32xf32>
    %21 = vector.extract_strided_slice %12 {offsets = [0, 0], sizes = [8, 8], strides = [1, 1]} : vector<8x32xbf16> to vector<8x8xbf16>
    %22 = vector.extract_strided_slice %13 {offsets = [0, 0], sizes = [8, 8], strides = [1, 1]} : vector<8x32xbf16> to vector<8x8xbf16>
    %23 = vector.extract_strided_slice %14 {offsets = [0, 0], sizes = [8, 8], strides = [1, 1]} : vector<8x32xbf16> to vector<8x8xbf16>
    %cst_17 = arith.constant dense<0.000000e+00> : vector<8x8xf32>
    %24 = tpu.matmul %21, %22, %cst_17 {dimension_numbers = #tpu.dot_dimension_numbers<[1], [1], [0], [0], [0, 0, 1, 0], [], []>} : vector<8x8xbf16>, vector<8x8xbf16>, vector<8x8xf32> -> vector<8x8xf32>
    %cst_18 = arith.constant 0.353553385 : f32
    %25 = vector.broadcast %cst_18 : f32 to vector<8x8xf32>
    %26 = arith.mulf %24, %25 : vector<8x8xf32>
    %27 = arith.addf %26, %11 : vector<8x8xf32>
    %cst_19 = arith.constant dense<0xFF800000> : vector<8xf32>
    %28 = vector.multi_reduction <maximumf>, %27, %cst_19 [1] : vector<8x8xf32> to vector<8xf32>
    %29 = vector.shape_cast %28 : vector<8xf32> to vector<8x1xf32>
    %30 = vector.broadcast %29 : vector<8x1xf32> to vector<8x8xf32>
    %31 = arith.subf %27, %30 : vector<8x8xf32>
    %32 = math.exp %31 : vector<8x8xf32>
    %cst_20 = arith.constant dense<0.000000e+00> : vector<8xf32>
    %33 = vector.multi_reduction <add>, %32, %cst_20 [1] : vector<8x8xf32> to vector<8xf32>
    %34 = vector.shape_cast %33 : vector<8xf32> to vector<8x1xf32>
    %35 = tpu.reciprocal %34 {approx = true} : vector<8x1xf32> -> vector<8x1xf32>
    %36 = vector.broadcast %35 : vector<8x1xf32> to vector<8x8xf32>
    %37 = arith.mulf %32, %36 : vector<8x8xf32>
    %38 = arith.truncf %37 : vector<8x8xf32> to vector<8x8xbf16>
    %cst_21 = arith.constant dense<0.000000e+00> : vector<8x8xf32>
    %39 = tpu.matmul %38, %23, %cst_21 {dimension_numbers = #tpu.dot_dimension_numbers<[1], [0], [0], [1], [0, 0, 1, 1], [], []>} : vector<8x8xbf16>, vector<8x8xbf16>, vector<8x8xf32> -> vector<8x8xf32>
    %40 = arith.truncf %39 : vector<8x8xf32> to vector<8x8xbf16>
    %41 = vector.extract_strided_slice %15 {offsets = [0, 0], sizes = [8, 32], strides = [1, 1]} : vector<32x32xbf16> to vector<8x32xbf16>
    %cst_22 = arith.constant dense<0.000000e+00> : vector<8x32xf32>
    %42 = tpu.matmul %40, %41, %cst_22 {dimension_numbers = #tpu.dot_dimension_numbers<[1], [0], [0], [1], [0, 0, 1, 1], [], []>} : vector<8x8xbf16>, vector<8x32xbf16>, vector<8x32xf32> -> vector<8x32xf32>
    %43 = vector.extract_strided_slice %12 {offsets = [0, 8], sizes = [8, 8], strides = [1, 1]} : vector<8x32xbf16> to vector<8x8xbf16>
    %44 = vector.extract_strided_slice %13 {offsets = [0, 8], sizes = [8, 8], strides = [1, 1]} : vector<8x32xbf16> to vector<8x8xbf16>
    %45 = vector.extract_strided_slice %14 {offsets = [0, 8], sizes = [8, 8], strides = [1, 1]} : vector<8x32xbf16> to vector<8x8xbf16>
    %cst_23 = arith.constant dense<0.000000e+00> : vector<8x8xf32>
    %46 = tpu.matmul %43, %44, %cst_23 {dimension_numbers = #tpu.dot_dimension_numbers<[1], [1], [0], [0], [0, 0, 1, 0], [], []>} : vector<8x8xbf16>, vector<8x8xbf16>, vector<8x8xf32> -> vector<8x8xf32>
    %cst_24 = arith.constant 0.353553385 : f32
    %47 = vector.broadcast %cst_24 : f32 to vector<8x8xf32>
    %48 = arith.mulf %46, %47 : vector<8x8xf32>
    %49 = arith.addf %48, %11 : vector<8x8xf32>
    %cst_25 = arith.constant dense<0xFF800000> : vector<8xf32>
    %50 = vector.multi_reduction <maximumf>, %49, %cst_25 [1] : vector<8x8xf32> to vector<8xf32>
    %51 = vector.shape_cast %50 : vector<8xf32> to vector<8x1xf32>
    %52 = vector.broadcast %51 : vector<8x1xf32> to vector<8x8xf32>
    %53 = arith.subf %49, %52 : vector<8x8xf32>
    %54 = math.exp %53 : vector<8x8xf32>
    %cst_26 = arith.constant dense<0.000000e+00> : vector<8xf32>
    %55 = vector.multi_reduction <add>, %54, %cst_26 [1] : vector<8x8xf32> to vector<8xf32>
    %56 = vector.shape_cast %55 : vector<8xf32> to vector<8x1xf32>
    %57 = tpu.reciprocal %56 {approx = true} : vector<8x1xf32> -> vector<8x1xf32>
    %58 = vector.broadcast %57 : vector<8x1xf32> to vector<8x8xf32>
    %59 = arith.mulf %54, %58 : vector<8x8xf32>
    %60 = arith.truncf %59 : vector<8x8xf32> to vector<8x8xbf16>
    %cst_27 = arith.constant dense<0.000000e+00> : vector<8x8xf32>
    %61 = tpu.matmul %60, %45, %cst_27 {dimension_numbers = #tpu.dot_dimension_numbers<[1], [0], [0], [1], [0, 0, 1, 1], [], []>} : vector<8x8xbf16>, vector<8x8xbf16>, vector<8x8xf32> -> vector<8x8xf32>
    %62 = arith.truncf %61 : vector<8x8xf32> to vector<8x8xbf16>
    %63 = vector.extract_strided_slice %15 {offsets = [8, 0], sizes = [8, 32], strides = [1, 1]} : vector<32x32xbf16> to vector<8x32xbf16>
    %cst_28 = arith.constant dense<0.000000e+00> : vector<8x32xf32>
    %64 = tpu.matmul %62, %63, %cst_28 {dimension_numbers = #tpu.dot_dimension_numbers<[1], [0], [0], [1], [0, 0, 1, 1], [], []>} : vector<8x8xbf16>, vector<8x32xbf16>, vector<8x32xf32> -> vector<8x32xf32>
    %65 = arith.addf %42, %64 : vector<8x32xf32>
    %66 = vector.extract_strided_slice %12 {offsets = [0, 16], sizes = [8, 8], strides = [1, 1]} : vector<8x32xbf16> to vector<8x8xbf16>
    %67 = vector.extract_strided_slice %13 {offsets = [0, 16], sizes = [8, 8], strides = [1, 1]} : vector<8x32xbf16> to vector<8x8xbf16>
    %68 = vector.extract_strided_slice %14 {offsets = [0, 16], sizes = [8, 8], strides = [1, 1]} : vector<8x32xbf16> to vector<8x8xbf16>
    %cst_29 = arith.constant dense<0.000000e+00> : vector<8x8xf32>
    %69 = tpu.matmul %66, %67, %cst_29 {dimension_numbers = #tpu.dot_dimension_numbers<[1], [1], [0], [0], [0, 0, 1, 0], [], []>} : vector<8x8xbf16>, vector<8x8xbf16>, vector<8x8xf32> -> vector<8x8xf32>
    %cst_30 = arith.constant 0.353553385 : f32
    %70 = vector.broadcast %cst_30 : f32 to vector<8x8xf32>
    %71 = arith.mulf %69, %70 : vector<8x8xf32>
    %72 = arith.addf %71, %11 : vector<8x8xf32>
    %cst_31 = arith.constant dense<0xFF800000> : vector<8xf32>
    %73 = vector.multi_reduction <maximumf>, %72, %cst_31 [1] : vector<8x8xf32> to vector<8xf32>
    %74 = vector.shape_cast %73 : vector<8xf32> to vector<8x1xf32>
    %75 = vector.broadcast %74 : vector<8x1xf32> to vector<8x8xf32>
    %76 = arith.subf %72, %75 : vector<8x8xf32>
    %77 = math.exp %76 : vector<8x8xf32>
    %cst_32 = arith.constant dense<0.000000e+00> : vector<8xf32>
    %78 = vector.multi_reduction <add>, %77, %cst_32 [1] : vector<8x8xf32> to vector<8xf32>
    %79 = vector.shape_cast %78 : vector<8xf32> to vector<8x1xf32>
    %80 = tpu.reciprocal %79 {approx = true} : vector<8x1xf32> -> vector<8x1xf32>
    %81 = vector.broadcast %80 : vector<8x1xf32> to vector<8x8xf32>
    %82 = arith.mulf %77, %81 : vector<8x8xf32>
    %83 = arith.truncf %82 : vector<8x8xf32> to vector<8x8xbf16>
    %cst_33 = arith.constant dense<0.000000e+00> : vector<8x8xf32>
    %84 = tpu.matmul %83, %68, %cst_33 {dimension_numbers = #tpu.dot_dimension_numbers<[1], [0], [0], [1], [0, 0, 1, 1], [], []>} : vector<8x8xbf16>, vector<8x8xbf16>, vector<8x8xf32> -> vector<8x8xf32>
    %85 = arith.truncf %84 : vector<8x8xf32> to vector<8x8xbf16>
    %86 = vector.extract_strided_slice %15 {offsets = [16, 0], sizes = [8, 32], strides = [1, 1]} : vector<32x32xbf16> to vector<8x32xbf16>
    %cst_34 = arith.constant dense<0.000000e+00> : vector<8x32xf32>
    %87 = tpu.matmul %85, %86, %cst_34 {dimension_numbers = #tpu.dot_dimension_numbers<[1], [0], [0], [1], [0, 0, 1, 1], [], []>} : vector<8x8xbf16>, vector<8x32xbf16>, vector<8x32xf32> -> vector<8x32xf32>
    %88 = arith.addf %65, %87 : vector<8x32xf32>
    %89 = vector.extract_strided_slice %12 {offsets = [0, 24], sizes = [8, 8], strides = [1, 1]} : vector<8x32xbf16> to vector<8x8xbf16>
    %90 = vector.extract_strided_slice %13 {offsets = [0, 24], sizes = [8, 8], strides = [1, 1]} : vector<8x32xbf16> to vector<8x8xbf16>
    %91 = vector.extract_strided_slice %14 {offsets = [0, 24], sizes = [8, 8], strides = [1, 1]} : vector<8x32xbf16> to vector<8x8xbf16>
    %cst_35 = arith.constant dense<0.000000e+00> : vector<8x8xf32>
    %92 = tpu.matmul %89, %90, %cst_35 {dimension_numbers = #tpu.dot_dimension_numbers<[1], [1], [0], [0], [0, 0, 1, 0], [], []>} : vector<8x8xbf16>, vector<8x8xbf16>, vector<8x8xf32> -> vector<8x8xf32>
    %cst_36 = arith.constant 0.353553385 : f32
    %93 = vector.broadcast %cst_36 : f32 to vector<8x8xf32>
    %94 = arith.mulf %92, %93 : vector<8x8xf32>
    %95 = arith.addf %94, %11 : vector<8x8xf32>
    %cst_37 = arith.constant dense<0xFF800000> : vector<8xf32>
    %96 = vector.multi_reduction <maximumf>, %95, %cst_37 [1] : vector<8x8xf32> to vector<8xf32>
    %97 = vector.shape_cast %96 : vector<8xf32> to vector<8x1xf32>
    %98 = vector.broadcast %97 : vector<8x1xf32> to vector<8x8xf32>
    %99 = arith.subf %95, %98 : vector<8x8xf32>
    %100 = math.exp %99 : vector<8x8xf32>
    %cst_38 = arith.constant dense<0.000000e+00> : vector<8xf32>
    %101 = vector.multi_reduction <add>, %100, %cst_38 [1] : vector<8x8xf32> to vector<8xf32>
    %102 = vector.shape_cast %101 : vector<8xf32> to vector<8x1xf32>
    %103 = tpu.reciprocal %102 {approx = true} : vector<8x1xf32> -> vector<8x1xf32>
    %104 = vector.broadcast %103 : vector<8x1xf32> to vector<8x8xf32>
    %105 = arith.mulf %100, %104 : vector<8x8xf32>
    %106 = arith.truncf %105 : vector<8x8xf32> to vector<8x8xbf16>
    %cst_39 = arith.constant dense<0.000000e+00> : vector<8x8xf32>
    %107 = tpu.matmul %106, %91, %cst_39 {dimension_numbers = #tpu.dot_dimension_numbers<[1], [0], [0], [1], [0, 0, 1, 1], [], []>} : vector<8x8xbf16>, vector<8x8xbf16>, vector<8x8xf32> -> vector<8x8xf32>
    %108 = arith.truncf %107 : vector<8x8xf32> to vector<8x8xbf16>
    %109 = vector.extract_strided_slice %15 {offsets = [24, 0], sizes = [8, 32], strides = [1, 1]} : vector<32x32xbf16> to vector<8x32xbf16>
    %cst_40 = arith.constant dense<0.000000e+00> : vector<8x32xf32>
    %110 = tpu.matmul %108, %109, %cst_40 {dimension_numbers = #tpu.dot_dimension_numbers<[1], [0], [0], [1], [0, 0, 1, 1], [], []>} : vector<8x8xbf16>, vector<8x32xbf16>, vector<8x32xf32> -> vector<8x32xf32>
    %111 = arith.addf %88, %110 : vector<8x32xf32>
    %112 = vector.broadcast %16 : vector<1x32xf32> to vector<8x32xf32>
    %113 = arith.addf %111, %112 : vector<8x32xf32>
    %114 = arith.addf %113, %18 : vector<8x32xf32>
    %cst_41 = arith.constant dense<0.000000e+00> : vector<8xf32>
    %115 = vector.multi_reduction <add>, %114, %cst_41 [1] : vector<8x32xf32> to vector<8xf32>
    %116 = vector.shape_cast %115 : vector<8xf32> to vector<8x1xf32>
    %cst_42 = arith.constant 3.200000e+01 : f32
    %117 = vector.broadcast %cst_42 : f32 to vector<8x1xf32>
    %118 = arith.divf %116, %117 : vector<8x1xf32>
    %119 = vector.broadcast %118 : vector<8x1xf32> to vector<8x32xf32>
    %120 = arith.subf %114, %119 : vector<8x32xf32>
    %121 = arith.mulf %120, %120 : vector<8x32xf32>
    %cst_43 = arith.constant dense<0.000000e+00> : vector<8xf32>
    %122 = vector.multi_reduction <add>, %121, %cst_43 [1] : vector<8x32xf32> to vector<8xf32>
    %123 = vector.shape_cast %122 : vector<8xf32> to vector<8x1xf32>
    %cst_44 = arith.constant 3.200000e+01 : f32
    %124 = vector.broadcast %cst_44 : f32 to vector<8x1xf32>
    %125 = arith.divf %123, %124 : vector<8x1xf32>
    %cst_45 = arith.constant 9.99999974E-6 : f32
    %126 = vector.broadcast %cst_45 : f32 to vector<8x1xf32>
    %127 = arith.addf %125, %126 : vector<8x1xf32>
    %128 = math.rsqrt %127 : vector<8x1xf32>
    %129 = vector.broadcast %128 : vector<8x1xf32> to vector<8x32xf32>
    %130 = arith.mulf %120, %129 : vector<8x32xf32>
    %131 = vector.broadcast %19 : vector<1x32xf32> to vector<8x32xf32>
    %132 = arith.mulf %130, %131 : vector<8x32xf32>
    %133 = vector.broadcast %20 : vector<1x32xf32> to vector<8x32xf32>
    %134 = arith.addf %132, %133 : vector<8x32xf32>
    %c0_46 = arith.constant 0 : index
    %c0_47 = arith.constant 0 : index
    %c0_48 = arith.constant 0 : index
    %135 = vector.load %arg8[%c0_46, %c0_47, %c0_48] : memref<1x8x32xf32, #tpu.memory_space<vmem>>, vector<1x8x32xf32>
    %136 = vector.shape_cast %135 : vector<1x8x32xf32> to vector<8x32xf32>
    %137 = vector.shape_cast %134 : vector<8x32xf32> to vector<1x8x32xf32>
    tpu.vector_store %arg8[%c0_46, %c0_47, %c0_48], %137 {strides = array<i32>} : memref<1x8x32xf32, #tpu.memory_space<vmem>>, vector<1x8x32xf32>,
    return
  }
  func.func @transform_0(%arg0: i32) -> (i32, i32, i32) {
    %c0_i32 = arith.constant 0 : i32
    %c0_i32_0 = arith.constant 0 : i32
    %c0_i32_1 = arith.constant 0 : i32
    return %arg0, %c0_i32, %c0_i32_0 : i32, i32, i32
  }
  func.func @transform_1(%arg0: i32) -> (i32, i32, i32) {
    %c0_i32 = arith.constant 0 : i32
    %c0_i32_0 = arith.constant 0 : i32
    %c0_i32_1 = arith.constant 0 : i32
    return %arg0, %c0_i32, %c0_i32_0 : i32, i32, i32
  }
  func.func @transform_2(%arg0: i32) -> (i32, i32, i32) {
    %c0_i32 = arith.constant 0 : i32
    %c0_i32_0 = arith.constant 0 : i32
    %c0_i32_1 = arith.constant 0 : i32
    return %arg0, %c0_i32, %c0_i32_0 : i32, i32, i32
  }
  func.func @transform_3(%arg0: i32) -> (i32, i32) {
    %c0_i32 = arith.constant 0 : i32
    %c0_i32_0 = arith.constant 0 : i32
    %c0_i32_1 = arith.constant 0 : i32
    return %c0_i32, %c0_i32_0 : i32, i32
  }
  func.func @transform_4(%arg0: i32) -> (i32, i32) {
    %c0_i32 = arith.constant 0 : i32
    %c0_i32_0 = arith.constant 0 : i32
    %c0_i32_1 = arith.constant 0 : i32
    return %c0_i32, %c0_i32_0 : i32, i32
  }
  func.func @transform_5(%arg0: i32) -> (i32, i32) {
    %c0_i32 = arith.constant 0 : i32
    %c0_i32_0 = arith.constant 0 : i32
    %c0_i32_1 = arith.constant 0 : i32
    return %c0_i32, %c0_i32_0 : i32, i32
  }
  func.func @transform_6(%arg0: i32) -> (i32, i32) {
    %c0_i32 = arith.constant 0 : i32
    %c0_i32_0 = arith.constant 0 : i32
    %c0_i32_1 = arith.constant 0 : i32
    return %c0_i32, %c0_i32_0 : i32, i32
  }
  func.func @transform_7(%arg0: i32) -> (i32, i32, i32) {
    %c0_i32 = arith.constant 0 : i32
    %c0_i32_0 = arith.constant 0 : i32
    %c0_i32_1 = arith.constant 0 : i32
    return %arg0, %c0_i32, %c0_i32_0 : i32, i32, i32
  }
}

module attributes {stable_mosaic.version = 11 : i64} {
  func.func @_cross_attn_kernel(%arg0: i32, %arg1: memref<1x8x32xbf16, #tpu.memory_space<vmem>>, %arg2: memref<1x8x64xbf16, #tpu.memory_space<vmem>>, %arg3: memref<1x1x8xf32, #tpu.memory_space<vmem>>, %arg4: memref<1x8x32xf32, #tpu.memory_space<vmem>>, %arg5: memref<32x32xbf16, #tpu.memory_space<vmem>>, %arg6: memref<1x32xf32, #tpu.memory_space<vmem>>, %arg7: memref<1x32xf32, #tpu.memory_space<vmem>>, %arg8: memref<1x32xf32, #tpu.memory_space<vmem>>, %arg9: memref<1x8x32xf32, #tpu.memory_space<vmem>>) attributes {dimension_semantics = [#tpu.dimension_semantics<parallel>], iteration_bounds = array<i64: 2>, scalar_prefetch = 0 : i64, scratch_operands = 0 : i64, tpu.core_type = #tpu.core_type<tc>, window_params = [{transform_indices = @transform_0, window_bounds = array<i64: 1, 8, 32>}, {transform_indices = @transform_1, window_bounds = array<i64: 1, 8, 64>}, {transform_indices = @transform_2, window_bounds = array<i64: 1, 1, 8>}, {transform_indices = @transform_3, window_bounds = array<i64: 1, 8, 32>}, {pipeline_mode = #tpu.pipeline_mode<synchronous>, transform_indices = @transform_4, window_bounds = array<i64: 32, 32>}, {pipeline_mode = #tpu.pipeline_mode<synchronous>, transform_indices = @transform_5, window_bounds = array<i64: 1, 32>}, {pipeline_mode = #tpu.pipeline_mode<synchronous>, transform_indices = @transform_6, window_bounds = array<i64: 1, 32>}, {pipeline_mode = #tpu.pipeline_mode<synchronous>, transform_indices = @transform_7, window_bounds = array<i64: 1, 32>}, {transform_indices = @transform_8, window_bounds = array<i64: 1, 8, 32>}]} {
    %c0 = arith.constant 0 : index
    %c0_0 = arith.constant 0 : index
    %c0_1 = arith.constant 0 : index
    %0 = vector.load %arg1[%c0, %c0_0, %c0_1] : memref<1x8x32xbf16, #tpu.memory_space<vmem>>, vector<1x8x32xbf16>
    %1 = vector.shape_cast %0 : vector<1x8x32xbf16> to vector<8x32xbf16>
    %c0_2 = arith.constant 0 : index
    %c0_3 = arith.constant 0 : index
    %c0_4 = arith.constant 0 : index
    %2 = vector.load %arg2[%c0_2, %c0_3, %c0_4] : memref<1x8x64xbf16, #tpu.memory_space<vmem>>, vector<1x8x64xbf16>
    %3 = vector.shape_cast %2 : vector<1x8x64xbf16> to vector<8x64xbf16>
    %c0_5 = arith.constant 0 : index
    %c0_6 = arith.constant 0 : index
    %c0_7 = arith.constant 0 : index
    %4 = vector.load %arg3[%c0_5, %c0_6, %c0_7] : memref<1x1x8xf32, #tpu.memory_space<vmem>>, vector<1x1x8xf32>
    %5 = vector.shape_cast %4 : vector<1x1x8xf32> to vector<1x8xf32>
    %6 = vector.extract_strided_slice %3 {offsets = [0, 0], sizes = [8, 32], strides = [1, 1]} : vector<8x64xbf16> to vector<8x32xbf16>
    %7 = vector.extract_strided_slice %3 {offsets = [0, 32], sizes = [8, 32], strides = [1, 1]} : vector<8x64xbf16> to vector<8x32xbf16>
    %c0_8 = arith.constant 0 : index
    %c0_9 = arith.constant 0 : index
    %8 = vector.load %arg5[%c0_8, %c0_9] : memref<32x32xbf16, #tpu.memory_space<vmem>>, vector<32x32xbf16>
    %c0_10 = arith.constant 0 : index
    %c0_11 = arith.constant 0 : index
    %9 = vector.load %arg6[%c0_10, %c0_11] : memref<1x32xf32, #tpu.memory_space<vmem>>, vector<1x32xf32>
    %c0_12 = arith.constant 0 : index
    %c0_13 = arith.constant 0 : index
    %c0_14 = arith.constant 0 : index
    %10 = vector.load %arg4[%c0_12, %c0_13, %c0_14] : memref<1x8x32xf32, #tpu.memory_space<vmem>>, vector<1x8x32xf32>
    %11 = vector.shape_cast %10 : vector<1x8x32xf32> to vector<8x32xf32>
    %c0_15 = arith.constant 0 : index
    %c0_16 = arith.constant 0 : index
    %12 = vector.load %arg7[%c0_15, %c0_16] : memref<1x32xf32, #tpu.memory_space<vmem>>, vector<1x32xf32>
    %c0_17 = arith.constant 0 : index
    %c0_18 = arith.constant 0 : index
    %13 = vector.load %arg8[%c0_17, %c0_18] : memref<1x32xf32, #tpu.memory_space<vmem>>, vector<1x32xf32>
    %14 = vector.extract_strided_slice %1 {offsets = [0, 0], sizes = [8, 8], strides = [1, 1]} : vector<8x32xbf16> to vector<8x8xbf16>
    %15 = vector.extract_strided_slice %6 {offsets = [0, 0], sizes = [8, 8], strides = [1, 1]} : vector<8x32xbf16> to vector<8x8xbf16>
    %16 = vector.extract_strided_slice %7 {offsets = [0, 0], sizes = [8, 8], strides = [1, 1]} : vector<8x32xbf16> to vector<8x8xbf16>
    %cst = arith.constant dense<0.000000e+00> : vector<8x8xf32>
    %17 = tpu.matmul %14, %15, %cst {dimension_numbers = #tpu.dot_dimension_numbers<[1], [1], [0], [0], [0, 0, 1, 0], [], []>} : vector<8x8xbf16>, vector<8x8xbf16>, vector<8x8xf32> -> vector<8x8xf32>
    %cst_19 = arith.constant 0.353553385 : f32
    %18 = vector.broadcast %cst_19 : f32 to vector<8x8xf32>
    %19 = arith.mulf %17, %18 : vector<8x8xf32>
    %20 = vector.broadcast %5 : vector<1x8xf32> to vector<8x8xf32>
    %21 = arith.addf %19, %20 : vector<8x8xf32>
    %cst_20 = arith.constant dense<0xFF800000> : vector<8xf32>
    %22 = vector.multi_reduction <maximumf>, %21, %cst_20 [1] : vector<8x8xf32> to vector<8xf32>
    %23 = vector.shape_cast %22 : vector<8xf32> to vector<8x1xf32>
    %24 = vector.broadcast %23 : vector<8x1xf32> to vector<8x8xf32>
    %25 = arith.subf %21, %24 : vector<8x8xf32>
    %26 = math.exp %25 : vector<8x8xf32>
    %cst_21 = arith.constant dense<0.000000e+00> : vector<8xf32>
    %27 = vector.multi_reduction <add>, %26, %cst_21 [1] : vector<8x8xf32> to vector<8xf32>
    %28 = vector.shape_cast %27 : vector<8xf32> to vector<8x1xf32>
    %29 = tpu.reciprocal %28 {approx = true} : vector<8x1xf32> -> vector<8x1xf32>
    %30 = vector.broadcast %29 : vector<8x1xf32> to vector<8x8xf32>
    %31 = arith.mulf %26, %30 : vector<8x8xf32>
    %32 = arith.truncf %31 : vector<8x8xf32> to vector<8x8xbf16>
    %cst_22 = arith.constant dense<0.000000e+00> : vector<8x8xf32>
    %33 = tpu.matmul %32, %16, %cst_22 {dimension_numbers = #tpu.dot_dimension_numbers<[1], [0], [0], [1], [0, 0, 1, 1], [], []>} : vector<8x8xbf16>, vector<8x8xbf16>, vector<8x8xf32> -> vector<8x8xf32>
    %34 = arith.truncf %33 : vector<8x8xf32> to vector<8x8xbf16>
    %35 = vector.extract_strided_slice %8 {offsets = [0, 0], sizes = [8, 32], strides = [1, 1]} : vector<32x32xbf16> to vector<8x32xbf16>
    %cst_23 = arith.constant dense<0.000000e+00> : vector<8x32xf32>
    %36 = tpu.matmul %34, %35, %cst_23 {dimension_numbers = #tpu.dot_dimension_numbers<[1], [0], [0], [1], [0, 0, 1, 1], [], []>} : vector<8x8xbf16>, vector<8x32xbf16>, vector<8x32xf32> -> vector<8x32xf32>
    %37 = vector.extract_strided_slice %1 {offsets = [0, 8], sizes = [8, 8], strides = [1, 1]} : vector<8x32xbf16> to vector<8x8xbf16>
    %38 = vector.extract_strided_slice %6 {offsets = [0, 8], sizes = [8, 8], strides = [1, 1]} : vector<8x32xbf16> to vector<8x8xbf16>
    %39 = vector.extract_strided_slice %7 {offsets = [0, 8], sizes = [8, 8], strides = [1, 1]} : vector<8x32xbf16> to vector<8x8xbf16>
    %cst_24 = arith.constant dense<0.000000e+00> : vector<8x8xf32>
    %40 = tpu.matmul %37, %38, %cst_24 {dimension_numbers = #tpu.dot_dimension_numbers<[1], [1], [0], [0], [0, 0, 1, 0], [], []>} : vector<8x8xbf16>, vector<8x8xbf16>, vector<8x8xf32> -> vector<8x8xf32>
    %cst_25 = arith.constant 0.353553385 : f32
    %41 = vector.broadcast %cst_25 : f32 to vector<8x8xf32>
    %42 = arith.mulf %40, %41 : vector<8x8xf32>
    %43 = vector.broadcast %5 : vector<1x8xf32> to vector<8x8xf32>
    %44 = arith.addf %42, %43 : vector<8x8xf32>
    %cst_26 = arith.constant dense<0xFF800000> : vector<8xf32>
    %45 = vector.multi_reduction <maximumf>, %44, %cst_26 [1] : vector<8x8xf32> to vector<8xf32>
    %46 = vector.shape_cast %45 : vector<8xf32> to vector<8x1xf32>
    %47 = vector.broadcast %46 : vector<8x1xf32> to vector<8x8xf32>
    %48 = arith.subf %44, %47 : vector<8x8xf32>
    %49 = math.exp %48 : vector<8x8xf32>
    %cst_27 = arith.constant dense<0.000000e+00> : vector<8xf32>
    %50 = vector.multi_reduction <add>, %49, %cst_27 [1] : vector<8x8xf32> to vector<8xf32>
    %51 = vector.shape_cast %50 : vector<8xf32> to vector<8x1xf32>
    %52 = tpu.reciprocal %51 {approx = true} : vector<8x1xf32> -> vector<8x1xf32>
    %53 = vector.broadcast %52 : vector<8x1xf32> to vector<8x8xf32>
    %54 = arith.mulf %49, %53 : vector<8x8xf32>
    %55 = arith.truncf %54 : vector<8x8xf32> to vector<8x8xbf16>
    %cst_28 = arith.constant dense<0.000000e+00> : vector<8x8xf32>
    %56 = tpu.matmul %55, %39, %cst_28 {dimension_numbers = #tpu.dot_dimension_numbers<[1], [0], [0], [1], [0, 0, 1, 1], [], []>} : vector<8x8xbf16>, vector<8x8xbf16>, vector<8x8xf32> -> vector<8x8xf32>
    %57 = arith.truncf %56 : vector<8x8xf32> to vector<8x8xbf16>
    %58 = vector.extract_strided_slice %8 {offsets = [8, 0], sizes = [8, 32], strides = [1, 1]} : vector<32x32xbf16> to vector<8x32xbf16>
    %cst_29 = arith.constant dense<0.000000e+00> : vector<8x32xf32>
    %59 = tpu.matmul %57, %58, %cst_29 {dimension_numbers = #tpu.dot_dimension_numbers<[1], [0], [0], [1], [0, 0, 1, 1], [], []>} : vector<8x8xbf16>, vector<8x32xbf16>, vector<8x32xf32> -> vector<8x32xf32>
    %60 = arith.addf %36, %59 : vector<8x32xf32>
    %61 = vector.extract_strided_slice %1 {offsets = [0, 16], sizes = [8, 8], strides = [1, 1]} : vector<8x32xbf16> to vector<8x8xbf16>
    %62 = vector.extract_strided_slice %6 {offsets = [0, 16], sizes = [8, 8], strides = [1, 1]} : vector<8x32xbf16> to vector<8x8xbf16>
    %63 = vector.extract_strided_slice %7 {offsets = [0, 16], sizes = [8, 8], strides = [1, 1]} : vector<8x32xbf16> to vector<8x8xbf16>
    %cst_30 = arith.constant dense<0.000000e+00> : vector<8x8xf32>
    %64 = tpu.matmul %61, %62, %cst_30 {dimension_numbers = #tpu.dot_dimension_numbers<[1], [1], [0], [0], [0, 0, 1, 0], [], []>} : vector<8x8xbf16>, vector<8x8xbf16>, vector<8x8xf32> -> vector<8x8xf32>
    %cst_31 = arith.constant 0.353553385 : f32
    %65 = vector.broadcast %cst_31 : f32 to vector<8x8xf32>
    %66 = arith.mulf %64, %65 : vector<8x8xf32>
    %67 = vector.broadcast %5 : vector<1x8xf32> to vector<8x8xf32>
    %68 = arith.addf %66, %67 : vector<8x8xf32>
    %cst_32 = arith.constant dense<0xFF800000> : vector<8xf32>
    %69 = vector.multi_reduction <maximumf>, %68, %cst_32 [1] : vector<8x8xf32> to vector<8xf32>
    %70 = vector.shape_cast %69 : vector<8xf32> to vector<8x1xf32>
    %71 = vector.broadcast %70 : vector<8x1xf32> to vector<8x8xf32>
    %72 = arith.subf %68, %71 : vector<8x8xf32>
    %73 = math.exp %72 : vector<8x8xf32>
    %cst_33 = arith.constant dense<0.000000e+00> : vector<8xf32>
    %74 = vector.multi_reduction <add>, %73, %cst_33 [1] : vector<8x8xf32> to vector<8xf32>
    %75 = vector.shape_cast %74 : vector<8xf32> to vector<8x1xf32>
    %76 = tpu.reciprocal %75 {approx = true} : vector<8x1xf32> -> vector<8x1xf32>
    %77 = vector.broadcast %76 : vector<8x1xf32> to vector<8x8xf32>
    %78 = arith.mulf %73, %77 : vector<8x8xf32>
    %79 = arith.truncf %78 : vector<8x8xf32> to vector<8x8xbf16>
    %cst_34 = arith.constant dense<0.000000e+00> : vector<8x8xf32>
    %80 = tpu.matmul %79, %63, %cst_34 {dimension_numbers = #tpu.dot_dimension_numbers<[1], [0], [0], [1], [0, 0, 1, 1], [], []>} : vector<8x8xbf16>, vector<8x8xbf16>, vector<8x8xf32> -> vector<8x8xf32>
    %81 = arith.truncf %80 : vector<8x8xf32> to vector<8x8xbf16>
    %82 = vector.extract_strided_slice %8 {offsets = [16, 0], sizes = [8, 32], strides = [1, 1]} : vector<32x32xbf16> to vector<8x32xbf16>
    %cst_35 = arith.constant dense<0.000000e+00> : vector<8x32xf32>
    %83 = tpu.matmul %81, %82, %cst_35 {dimension_numbers = #tpu.dot_dimension_numbers<[1], [0], [0], [1], [0, 0, 1, 1], [], []>} : vector<8x8xbf16>, vector<8x32xbf16>, vector<8x32xf32> -> vector<8x32xf32>
    %84 = arith.addf %60, %83 : vector<8x32xf32>
    %85 = vector.extract_strided_slice %1 {offsets = [0, 24], sizes = [8, 8], strides = [1, 1]} : vector<8x32xbf16> to vector<8x8xbf16>
    %86 = vector.extract_strided_slice %6 {offsets = [0, 24], sizes = [8, 8], strides = [1, 1]} : vector<8x32xbf16> to vector<8x8xbf16>
    %87 = vector.extract_strided_slice %7 {offsets = [0, 24], sizes = [8, 8], strides = [1, 1]} : vector<8x32xbf16> to vector<8x8xbf16>
    %cst_36 = arith.constant dense<0.000000e+00> : vector<8x8xf32>
    %88 = tpu.matmul %85, %86, %cst_36 {dimension_numbers = #tpu.dot_dimension_numbers<[1], [1], [0], [0], [0, 0, 1, 0], [], []>} : vector<8x8xbf16>, vector<8x8xbf16>, vector<8x8xf32> -> vector<8x8xf32>
    %cst_37 = arith.constant 0.353553385 : f32
    %89 = vector.broadcast %cst_37 : f32 to vector<8x8xf32>
    %90 = arith.mulf %88, %89 : vector<8x8xf32>
    %91 = vector.broadcast %5 : vector<1x8xf32> to vector<8x8xf32>
    %92 = arith.addf %90, %91 : vector<8x8xf32>
    %cst_38 = arith.constant dense<0xFF800000> : vector<8xf32>
    %93 = vector.multi_reduction <maximumf>, %92, %cst_38 [1] : vector<8x8xf32> to vector<8xf32>
    %94 = vector.shape_cast %93 : vector<8xf32> to vector<8x1xf32>
    %95 = vector.broadcast %94 : vector<8x1xf32> to vector<8x8xf32>
    %96 = arith.subf %92, %95 : vector<8x8xf32>
    %97 = math.exp %96 : vector<8x8xf32>
    %cst_39 = arith.constant dense<0.000000e+00> : vector<8xf32>
    %98 = vector.multi_reduction <add>, %97, %cst_39 [1] : vector<8x8xf32> to vector<8xf32>
    %99 = vector.shape_cast %98 : vector<8xf32> to vector<8x1xf32>
    %100 = tpu.reciprocal %99 {approx = true} : vector<8x1xf32> -> vector<8x1xf32>
    %101 = vector.broadcast %100 : vector<8x1xf32> to vector<8x8xf32>
    %102 = arith.mulf %97, %101 : vector<8x8xf32>
    %103 = arith.truncf %102 : vector<8x8xf32> to vector<8x8xbf16>
    %cst_40 = arith.constant dense<0.000000e+00> : vector<8x8xf32>
    %104 = tpu.matmul %103, %87, %cst_40 {dimension_numbers = #tpu.dot_dimension_numbers<[1], [0], [0], [1], [0, 0, 1, 1], [], []>} : vector<8x8xbf16>, vector<8x8xbf16>, vector<8x8xf32> -> vector<8x8xf32>
    %105 = arith.truncf %104 : vector<8x8xf32> to vector<8x8xbf16>
    %106 = vector.extract_strided_slice %8 {offsets = [24, 0], sizes = [8, 32], strides = [1, 1]} : vector<32x32xbf16> to vector<8x32xbf16>
    %cst_41 = arith.constant dense<0.000000e+00> : vector<8x32xf32>
    %107 = tpu.matmul %105, %106, %cst_41 {dimension_numbers = #tpu.dot_dimension_numbers<[1], [0], [0], [1], [0, 0, 1, 1], [], []>} : vector<8x8xbf16>, vector<8x32xbf16>, vector<8x32xf32> -> vector<8x32xf32>
    %108 = arith.addf %84, %107 : vector<8x32xf32>
    %109 = vector.broadcast %9 : vector<1x32xf32> to vector<8x32xf32>
    %110 = arith.addf %108, %109 : vector<8x32xf32>
    %111 = arith.addf %110, %11 : vector<8x32xf32>
    %cst_42 = arith.constant dense<0.000000e+00> : vector<8xf32>
    %112 = vector.multi_reduction <add>, %111, %cst_42 [1] : vector<8x32xf32> to vector<8xf32>
    %113 = vector.shape_cast %112 : vector<8xf32> to vector<8x1xf32>
    %cst_43 = arith.constant 3.200000e+01 : f32
    %114 = vector.broadcast %cst_43 : f32 to vector<8x1xf32>
    %115 = arith.divf %113, %114 : vector<8x1xf32>
    %116 = vector.broadcast %115 : vector<8x1xf32> to vector<8x32xf32>
    %117 = arith.subf %111, %116 : vector<8x32xf32>
    %118 = arith.mulf %117, %117 : vector<8x32xf32>
    %cst_44 = arith.constant dense<0.000000e+00> : vector<8xf32>
    %119 = vector.multi_reduction <add>, %118, %cst_44 [1] : vector<8x32xf32> to vector<8xf32>
    %120 = vector.shape_cast %119 : vector<8xf32> to vector<8x1xf32>
    %cst_45 = arith.constant 3.200000e+01 : f32
    %121 = vector.broadcast %cst_45 : f32 to vector<8x1xf32>
    %122 = arith.divf %120, %121 : vector<8x1xf32>
    %cst_46 = arith.constant 9.99999974E-6 : f32
    %123 = vector.broadcast %cst_46 : f32 to vector<8x1xf32>
    %124 = arith.addf %122, %123 : vector<8x1xf32>
    %125 = math.rsqrt %124 : vector<8x1xf32>
    %126 = vector.broadcast %125 : vector<8x1xf32> to vector<8x32xf32>
    %127 = arith.mulf %117, %126 : vector<8x32xf32>
    %128 = vector.broadcast %12 : vector<1x32xf32> to vector<8x32xf32>
    %129 = arith.mulf %127, %128 : vector<8x32xf32>
    %130 = vector.broadcast %13 : vector<1x32xf32> to vector<8x32xf32>
    %131 = arith.addf %129, %130 : vector<8x32xf32>
    %c0_47 = arith.constant 0 : index
    %c0_48 = arith.constant 0 : index
    %c0_49 = arith.constant 0 : index
    %132 = vector.load %arg9[%c0_47, %c0_48, %c0_49] : memref<1x8x32xf32, #tpu.memory_space<vmem>>, vector<1x8x32xf32>
    %133 = vector.shape_cast %132 : vector<1x8x32xf32> to vector<8x32xf32>
    %134 = vector.shape_cast %131 : vector<8x32xf32> to vector<1x8x32xf32>
    tpu.vector_store %arg9[%c0_47, %c0_48, %c0_49], %134 {strides = array<i32>} : memref<1x8x32xf32, #tpu.memory_space<vmem>>, vector<1x8x32xf32>,
    return
  }
  func.func @transform_0(%arg0: i32) -> (i32, i32, i32) {
    %c0_i32 = arith.constant 0 : i32
    %c0_i32_0 = arith.constant 0 : i32
    %c0_i32_1 = arith.constant 0 : i32
    return %arg0, %c0_i32, %c0_i32_0 : i32, i32, i32
  }
  func.func @transform_1(%arg0: i32) -> (i32, i32, i32) {
    %c0_i32 = arith.constant 0 : i32
    %c0_i32_0 = arith.constant 0 : i32
    %c0_i32_1 = arith.constant 0 : i32
    return %arg0, %c0_i32, %c0_i32_0 : i32, i32, i32
  }
  func.func @transform_2(%arg0: i32) -> (i32, i32, i32) {
    %c0_i32 = arith.constant 0 : i32
    %c0_i32_0 = arith.constant 0 : i32
    %c0_i32_1 = arith.constant 0 : i32
    return %arg0, %c0_i32, %c0_i32_0 : i32, i32, i32
  }
  func.func @transform_3(%arg0: i32) -> (i32, i32, i32) {
    %c0_i32 = arith.constant 0 : i32
    %c0_i32_0 = arith.constant 0 : i32
    %c0_i32_1 = arith.constant 0 : i32
    return %arg0, %c0_i32, %c0_i32_0 : i32, i32, i32
  }
  func.func @transform_4(%arg0: i32) -> (i32, i32) {
    %c0_i32 = arith.constant 0 : i32
    %c0_i32_0 = arith.constant 0 : i32
    %c0_i32_1 = arith.constant 0 : i32
    return %c0_i32, %c0_i32_0 : i32, i32
  }
  func.func @transform_5(%arg0: i32) -> (i32, i32) {
    %c0_i32 = arith.constant 0 : i32
    %c0_i32_0 = arith.constant 0 : i32
    %c0_i32_1 = arith.constant 0 : i32
    return %c0_i32, %c0_i32_0 : i32, i32
  }
  func.func @transform_6(%arg0: i32) -> (i32, i32) {
    %c0_i32 = arith.constant 0 : i32
    %c0_i32_0 = arith.constant 0 : i32
    %c0_i32_1 = arith.constant 0 : i32
    return %c0_i32, %c0_i32_0 : i32, i32
  }
  func.func @transform_7(%arg0: i32) -> (i32, i32) {
    %c0_i32 = arith.constant 0 : i32
    %c0_i32_0 = arith.constant 0 : i32
    %c0_i32_1 = arith.constant 0 : i32
    return %c0_i32, %c0_i32_0 : i32, i32
  }
  func.func @transform_8(%arg0: i32) -> (i32, i32, i32) {
    %c0_i32 = arith.constant 0 : i32
    %c0_i32_0 = arith.constant 0 : i32
    %c0_i32_1 = arith.constant 0 : i32
    return %arg0, %c0_i32, %c0_i32_0 : i32, i32, i32
  }
}

</mosaic_0001>

<llo_original>
// kernel: transformer_forward.19
$region0: #{transformer_forward.19}
  #allocation0 [shape = 'u32[]', space=smem, size = 0x4, offset = 0x4, fixed_abs, tag = 'smem constant byte address 0x4 - core index']
  #allocation1 [shape = 'u32[144,128]{1,0:T(1,128)}', space=vmem, size = 0x12000, scoped, tag = 'internal scratch']
  #allocation2 [shape = 'f32[16,96]{1,0:T(8,128)}', space=vmem, size = 0x2000, scoped, tag = 'scratch operand']
  %s0 = inlined_call_operand.hbm [shape: f32[16,32], index: 0, kind: input, shape index: {}]
  %s1 = inlined_call_operand.hbm [shape: bf16[32,96], index: 1, kind: input, shape index: {}]
  %s2 = inlined_call_operand.hbm [shape: f32[1,96], index: 2, kind: input, shape index: {}]
  %s3 = inlined_call_operand.hbm [shape: bf16[16,96], index: 3, kind: output, shape index: {}]
  %s4 = sld [smem:[#allocation0]]
  $region42: #{transformer_forward.19} parent=0
    _
  %s6 = ssub.s32 1, %s4
  %s7 = scalar_select 0, %s6, %s4
  $region1: #{transformer_forward.19} parent=0
    #allocation3 [shape = 'u8[8192]{0}', space=vmem, size = 0x2000, scoped, tag = 'input window, operand 0, single buffered']
    #allocation4 [shape = 's32[1]{0}', space=sflag, size = 0x4, scoped, tag = 'scoped memory for transformer_forward.19']
    #allocation5 [shape = 's32[1]{0}', space=sflag, size = 0x4, scoped, tag = 'scoped memory for transformer_forward.19']
    #allocation6 [shape = 'u8[8192]{0}', space=vmem, size = 0x2000, scoped, tag = 'input window, operand 1, single buffered']
    #allocation7 [shape = 's32[1]{0}', space=sflag, size = 0x4, scoped, tag = 'scoped memory for transformer_forward.19']
    #allocation8 [shape = 'u8[512]{0}', space=vmem, size = 0x400, scoped, tag = 'input window, operand 2, single buffered']
    #allocation9 [shape = 'u8[4096]{0}', space=vmem, size = 0x1000, scoped, tag = 'output window, operand 0, single buffered']
    %8 = vsyncpa [#allocation4], 0
    %9 = vsyncpa [#allocation7], 0
    %10 = vsyncpa [#allocation5], 0
    // Predicated region
    $region2: #{transformer_forward.19} parent=1 // pred_check
      _
    $region3: #{transformer_forward.19} parent=1 // pred_check_branch
      %12 = sbr.rel (0) target = $region5
    $region4: #{transformer_forward.19} parent=1 // pred_region
      %s14 = ssub.s32 256, 256
      %15 = vsyncadd [#allocation4], %s14
      %s16 = sshll.u32 [#allocation3], 4
      %s17 = int_to_ptr.vmem [resolvable:$true] %s16
      %22 = dma.hbm_to_vmem [thread:$0]  %s0, 256, %s17, [#allocation4], 128, 128, 8
    $region5: #{transformer_forward.19} parent=1 // pred_fallthru
      _
    // Predicated region
    $region6: #{transformer_forward.19} parent=1 // pred_check
      _
    $region7: #{transformer_forward.19} parent=1 // pred_check_branch
      %24 = sbr.rel (0) target = $region9
    $region8: #{transformer_forward.19} parent=1 // pred_region
      %s26 = ssub.s32 256, 256
      %27 = vsyncadd [#allocation7], %s26
      %s28 = sshll.u32 [#allocation6], 4
      %s29 = int_to_ptr.vmem [resolvable:$true] %s28
      %34 = dma.hbm_to_vmem [thread:$0]  %s1, 256, %s29, [#allocation7], 64, 64, 4
    $region9: #{transformer_forward.19} parent=1 // pred_fallthru
      _
    // Predicated region
    $region10: #{transformer_forward.19} parent=1 // pred_check
      _
    $region11: #{transformer_forward.19} parent=1 // pred_check_branch
      %36 = sbr.rel (0) target = $region13
    $region12: #{transformer_forward.19} parent=1 // pred_region
      %s38 = ssub.s32 16, 16
      %39 = vsyncadd [#allocation7], %s38
      %s41 = sshll.u32 [#allocation8], 4
      %s42 = int_to_ptr.vmem [resolvable:$true] %s41
      %44 = dma.hbm_to_vmem [thread:$0]  %s2, 16, %s42, [#allocation7]
    $region13: #{transformer_forward.19} parent=1 // pred_fallthru
      _
    // Predicated region
    $region14: #{transformer_forward.19} parent=1 // pred_check
      _
    $region15: #{transformer_forward.19} parent=1 // pred_check_branch
      %46 = sbr.rel (0) target = $region17
    $region16: #{transformer_forward.19} parent=1 // pred_region
      %47 = dma.done [#allocation4], 256
    $region17: #{transformer_forward.19} parent=1 // pred_fallthru
      _
    // Predicated region
    $region18: #{transformer_forward.19} parent=1 // pred_check
      _
    $region19: #{transformer_forward.19} parent=1 // pred_check_branch
      %49 = sbr.rel (0) target = $region21
    $region20: #{transformer_forward.19} parent=1 // pred_region
      %50 = dma.done [#allocation7], 256
    $region21: #{transformer_forward.19} parent=1 // pred_fallthru
      _
    // Predicated region
    $region22: #{transformer_forward.19} parent=1 // pred_check
      _
    $region23: #{transformer_forward.19} parent=1 // pred_check_branch
      %52 = sbr.rel (0) target = $region25
    $region24: #{transformer_forward.19} parent=1 // pred_region
      %53 = dma.done [#allocation7], 16
    $region25: #{transformer_forward.19} parent=1 // pred_fallthru
      _
    %p55 = scmp.eq.s32.totalorder 0, 0
    // Predicated region
    $region26: #{transformer_forward.19} parent=1 // pred_check
      %p56 = pneg %p55
    $region27: #{transformer_forward.19} parent=1 // pred_check_branch
      %58 = sbr.rel (%p56) target = $region29
    $region28: #{transformer_forward.19} parent=1 // pred_region
      %vm59 = vcmask 785408
      %60 = vst.msk [vmem:[#allocation2] sm:$0xff] %vm59, 0.0
      %61 = vst.msk [vmem:[#allocation2 + $0x8] sm:$0xff] %vm59, 0.0
    $region29: #{transformer_forward.19} parent=1 // pred_fallthru
      _
    %v62 = vld [vmem:[#allocation2] sm:$0xff]
    %v63 = vld [vmem:[#allocation2 + $0x8] sm:$0xff]
    %v64 = vld [vmem:[#allocation3] sm:$0xff]
    %v65 = vld [vmem:[#allocation3 + $0x8] sm:$0xff]
    %v66 = vpack.c.bf16 %v65, %v64
    %v67 = vld [vmem:[#allocation6] sm:$0xf]
    %v68 = vld [vmem:[#allocation6 + $0x4] sm:$0xf]
    %v69 = vld [vmem:[#allocation6 + $0x8] sm:$0xf]
    %v70 = vld [vmem:[#allocation6 + $0xc] sm:$0xf]
    %v75 = vunpack.c.l.b16 %v67
    %v76 = vunpack.c.l.b16 %v68
    %v77 = vunpack.c.l.b16 %v69
    %v78 = vunpack.c.l.b16 %v70
    %v79 = vpack.c.b16 %v76, %v75
    %v80 = vpack.c.b16 %v78, %v77
    %vm83 = vcmask 261120
    %v85 = vsel %vm83, %v66, 0
    %87 = vmatprep.subr.bf16.mxu0 0
    %88 = vmatpush1.bf16.msra.mxu0 %v79
    %89 = vmatprep.subr.bf16.mxu0 0
    %90 = vmatpush1.bf16.msra.mxu0 %v80
    %91 = vmatprep.subr.bf16.mxu0 0
    %92 = vmatpush1.bf16.msra.mxu0 0
    %93 = vmatprep.subr.bf16.mxu0 0
    %94 = vmatpush1.bf16.msra.mxu0 0
    %95 = vmatprep.subr.bf16.mxu0 0
    %96 = vmatpush1.bf16.msra.mxu0 0
    %97 = vmatprep.subr.bf16.mxu0 0
    %98 = vmatpush1.bf16.msra.mxu0 0
    %99 = vmatprep.subr.bf16.mxu0 0
    %100 = vmatpush1.bf16.msra.mxu0 0
    %101 = vmatprep.subr.bf16.mxu0 0
    %102 = vmatpush1.bf16.msra.mxu0 0
    %103 = vmatprep.subr.bf16.mxu0 0
    %104 = vmatpush1.bf16.msra.mxu0 0
    %105 = vmatprep.subr.bf16.mxu0 0
    %106 = vmatpush1.bf16.msra.mxu0 0
    %107 = vmatprep.subr.bf16.mxu0 0
    %108 = vmatpush1.bf16.msra.mxu0 0
    %109 = vmatprep.subr.bf16.mxu0 0
    %110 = vmatpush1.bf16.msra.mxu0 0
    %111 = vmatprep.subr.bf16.mxu0 0
    %112 = vmatpush1.bf16.msra.mxu0 0
    %113 = vmatprep.subr.bf16.mxu0 0
    %114 = vmatpush1.bf16.msra.mxu0 0
    %115 = vmatprep.subr.bf16.mxu0 0
    %116 = vmatpush1.bf16.msra.mxu0 0
    %117 = vmatprep.subr.bf16.mxu0 0
    %118 = vmatpush1.bf16.msra.mxu0 0
    %119 = vmatprep.mubr.bf16.mxu0 0
    %120 = vmatmul.mubr.bf16.gmra.mrb[0].mxu0 %v85
    %v121 = vpop.f32.mrb[0].mxu0
    %v122 = vadd.f32 0.0, %v121
    %v123 = vpop.f32.mrb[0].mxu0
    %v124 = vpop.f32.mrb[0].mxu0
    %v125 = vadd.f32 0.0, %v124
    %v126 = vpop.f32.mrb[0].mxu0
    %127 = vdwg.mxu0
    %v128 = vadd.f32 %v62, %v122
    %v129 = vadd.f32 %v63, %v125
    %vm130 = vcmask 785408
    %131 = vst.msk [vmem:[#allocation2] sm:$0xff] %vm130, %v128
    %132 = vst.msk [vmem:[#allocation2 + $0x8] sm:$0xff] %vm130, %v129
    // Predicated region
    $region30: #{transformer_forward.19} parent=1 // pred_check
      %p133 = pneg %p55
    $region31: #{transformer_forward.19} parent=1 // pred_check_branch
      %135 = sbr.rel (%p133) target = $region33
    $region32: #{transformer_forward.19} parent=1 // pred_region
      %v136 = vld [vmem:[#allocation2] sm:$0xff]
      %v137 = vld [vmem:[#allocation2 + $0x8] sm:$0xff]
      %v138 = vld [vmem:[#allocation8] sm:$0x1]
      %v140 = vlaneseq
      %v141 = vshrl.u32 %v140, 7
      %v142 = vsub.s32 0, %v141
      %v143 = vrot.slane %v138, %v142
      %v145 = vadd.f32 %v136, %v143
      %v146 = vadd.f32 %v137, %v143
      %v147 = vpack.c.bf16 %v146, %v145
      %v149 = vunpack.c.l.b16 %v147
      %v150 = vunpack.c.h.b16 %v147
      %v151 = vpack.c.b16 %v149, %v149
      %v152 = vpack.c.b16 %v150, %v150
      %vm155 = vcmask 781312
      %156 = vst.msk [vmem:[#allocation9] sm:$0xf] %vm155, %v151
      %157 = vst.msk [vmem:[#allocation9 + $0x4] sm:$0xf] %vm155, %v152
    $region33: #{transformer_forward.19} parent=1 // pred_fallthru
      _
    // Predicated region
    $region34: #{transformer_forward.19} parent=1 // pred_check
      _
    $region35: #{transformer_forward.19} parent=1 // pred_check_branch
      %159 = sbr.rel (0) target = $region37
    $region36: #{transformer_forward.19} parent=1 // pred_region
      %s161 = ssub.s32 128, 128
      %162 = vsyncadd [#allocation5], %s161
      %s163 = sshll.u32 [#allocation9], 4
      %s164 = int_to_ptr.vmem [resolvable:$true] %s163
      %169 = dma.vmem_to_hbm [thread:$0]  %s164, 128, %s3, [#allocation5], 64, 64, 4
    $region37: #{transformer_forward.19} parent=1 // pred_fallthru
      _
    // Predicated region
    $region38: #{transformer_forward.19} parent=1 // pred_check
      _
    $region39: #{transformer_forward.19} parent=1 // pred_check_branch
      %171 = sbr.rel (0) target = $region41
    $region40: #{transformer_forward.19} parent=1 // pred_region
      %172 = dma.done [#allocation5], 128
    $region41: #{transformer_forward.19} parent=1 // pred_fallthru
      _
    %173 = vsyncpa [#allocation4], 1
    %174 = vsyncpa [#allocation7], 1
    %175 = vsyncpa [#allocation5], 1

// kernel: transformer_forward.28
$region0: #{transformer_forward.28}
  #allocation0 [shape = 'u32[]', space=smem, size = 0x4, offset = 0x4, fixed_abs, tag = 'smem constant byte address 0x4 - core index']
  #allocation1 [shape = 'u32[144,128]{1,0:T(1,128)}', space=vmem, size = 0x12000, scoped, tag = 'internal scratch']
  #allocation2 [shape = 'f32[16,64]{1,0:T(8,128)}', space=vmem, size = 0x2000, scoped, tag = 'scratch operand']
  %s0 = inlined_call_operand.hbm [shape: f32[16,32], index: 0, kind: input, shape index: {}]
  %s1 = inlined_call_operand.hbm [shape: bf16[32,64], index: 1, kind: input, shape index: {}]
  %s2 = inlined_call_operand.hbm [shape: f32[1,64], index: 2, kind: input, shape index: {}]
  %s3 = inlined_call_operand.hbm [shape: bf16[16,64], index: 3, kind: output, shape index: {}]
  %s4 = sld [smem:[#allocation0]]
  $region42: #{transformer_forward.28} parent=0
    _
  %s6 = ssub.s32 1, %s4
  %s7 = scalar_select 0, %s6, %s4
  $region1: #{transformer_forward.28} parent=0
    #allocation3 [shape = 'u8[8192]{0}', space=vmem, size = 0x2000, scoped, tag = 'input window, operand 0, single buffered']
    #allocation4 [shape = 's32[1]{0}', space=sflag, size = 0x4, scoped, tag = 'scoped memory for transformer_forward.28']
    #allocation5 [shape = 's32[1]{0}', space=sflag, size = 0x4, scoped, tag = 'scoped memory for transformer_forward.28']
    #allocation6 [shape = 'u8[8192]{0}', space=vmem, size = 0x2000, scoped, tag = 'input window, operand 1, single buffered']
    #allocation7 [shape = 's32[1]{0}', space=sflag, size = 0x4, scoped, tag = 'scoped memory for transformer_forward.28']
    #allocation8 [shape = 'u8[512]{0}', space=vmem, size = 0x400, scoped, tag = 'input window, operand 2, single buffered']
    #allocation9 [shape = 'u8[4096]{0}', space=vmem, size = 0x1000, scoped, tag = 'output window, operand 0, single buffered']
    %8 = vsyncpa [#allocation4], 0
    %9 = vsyncpa [#allocation7], 0
    %10 = vsyncpa [#allocation5], 0
    // Predicated region
    $region2: #{transformer_forward.28} parent=1 // pred_check
      _
    $region3: #{transformer_forward.28} parent=1 // pred_check_branch
      %12 = sbr.rel (0) target = $region5
    $region4: #{transformer_forward.28} parent=1 // pred_region
      %s14 = ssub.s32 256, 256
      %15 = vsyncadd [#allocation4], %s14
      %s16 = sshll.u32 [#allocation3], 4
      %s17 = int_to_ptr.vmem [resolvable:$true] %s16
      %22 = dma.hbm_to_vmem [thread:$0]  %s0, 256, %s17, [#allocation4], 128, 128, 8
    $region5: #{transformer_forward.28} parent=1 // pred_fallthru
      _
    // Predicated region
    $region6: #{transformer_forward.28} parent=1 // pred_check
      _
    $region7: #{transformer_forward.28} parent=1 // pred_check_branch
      %24 = sbr.rel (0) target = $region9
    $region8: #{transformer_forward.28} parent=1 // pred_region
      %s26 = ssub.s32 256, 256
      %27 = vsyncadd [#allocation7], %s26
      %s28 = sshll.u32 [#allocation6], 4
      %s29 = int_to_ptr.vmem [resolvable:$true] %s28
      %34 = dma.hbm_to_vmem [thread:$0]  %s1, 256, %s29, [#allocation7], 64, 64, 4
    $region9: #{transformer_forward.28} parent=1 // pred_fallthru
      _
    // Predicated region
    $region10: #{transformer_forward.28} parent=1 // pred_check
      _
    $region11: #{transformer_forward.28} parent=1 // pred_check_branch
      %36 = sbr.rel (0) target = $region13
    $region12: #{transformer_forward.28} parent=1 // pred_region
      %s38 = ssub.s32 16, 16
      %39 = vsyncadd [#allocation7], %s38
      %s41 = sshll.u32 [#allocation8], 4
      %s42 = int_to_ptr.vmem [resolvable:$true] %s41
      %44 = dma.hbm_to_vmem [thread:$0]  %s2, 16, %s42, [#allocation7]
    $region13: #{transformer_forward.28} parent=1 // pred_fallthru
      _
    // Predicated region
    $region14: #{transformer_forward.28} parent=1 // pred_check
      _
    $region15: #{transformer_forward.28} parent=1 // pred_check_branch
      %46 = sbr.rel (0) target = $region17
    $region16: #{transformer_forward.28} parent=1 // pred_region
      %47 = dma.done [#allocation4], 256
    $region17: #{transformer_forward.28} parent=1 // pred_fallthru
      _
    // Predicated region
    $region18: #{transformer_forward.28} parent=1 // pred_check
      _
    $region19: #{transformer_forward.28} parent=1 // pred_check_branch
      %49 = sbr.rel (0) target = $region21
    $region20: #{transformer_forward.28} parent=1 // pred_region
      %50 = dma.done [#allocation7], 256
    $region21: #{transformer_forward.28} parent=1 // pred_fallthru
      _
    // Predicated region
    $region22: #{transformer_forward.28} parent=1 // pred_check
      _
    $region23: #{transformer_forward.28} parent=1 // pred_check_branch
      %52 = sbr.rel (0) target = $region25
    $region24: #{transformer_forward.28} parent=1 // pred_region
      %53 = dma.done [#allocation7], 16
    $region25: #{transformer_forward.28} parent=1 // pred_fallthru
      _
    %p55 = scmp.eq.s32.totalorder 0, 0
    // Predicated region
    $region26: #{transformer_forward.28} parent=1 // pred_check
      %p56 = pneg %p55
    $region27: #{transformer_forward.28} parent=1 // pred_check_branch
      %58 = sbr.rel (%p56) target = $region29
    $region28: #{transformer_forward.28} parent=1 // pred_region
      %vm59 = vcmask 523264
      %60 = vst.msk [vmem:[#allocation2] sm:$0xff] %vm59, 0.0
      %61 = vst.msk [vmem:[#allocation2 + $0x8] sm:$0xff] %vm59, 0.0
    $region29: #{transformer_forward.28} parent=1 // pred_fallthru
      _
    %v62 = vld [vmem:[#allocation2] sm:$0xff]
    %v63 = vld [vmem:[#allocation2 + $0x8] sm:$0xff]
    %v64 = vld [vmem:[#allocation3] sm:$0xff]
    %v65 = vld [vmem:[#allocation3 + $0x8] sm:$0xff]
    %v66 = vpack.c.bf16 %v65, %v64
    %v67 = vld [vmem:[#allocation6] sm:$0xf]
    %v68 = vld [vmem:[#allocation6 + $0x4] sm:$0xf]
    %v69 = vld [vmem:[#allocation6 + $0x8] sm:$0xf]
    %v70 = vld [vmem:[#allocation6 + $0xc] sm:$0xf]
    %v75 = vunpack.c.l.b16 %v67
    %v76 = vunpack.c.l.b16 %v68
    %v77 = vunpack.c.l.b16 %v69
    %v78 = vunpack.c.l.b16 %v70
    %v79 = vpack.c.b16 %v76, %v75
    %v80 = vpack.c.b16 %v78, %v77
    %vm83 = vcmask 261120
    %v85 = vsel %vm83, %v66, 0
    %87 = vmatprep.subr.bf16.mxu0 0
    %88 = vmatpush1.bf16.msra.mxu0 %v79
    %89 = vmatprep.subr.bf16.mxu0 0
    %90 = vmatpush1.bf16.msra.mxu0 %v80
    %91 = vmatprep.subr.bf16.mxu0 0
    %92 = vmatpush1.bf16.msra.mxu0 0
    %93 = vmatprep.subr.bf16.mxu0 0
    %94 = vmatpush1.bf16.msra.mxu0 0
    %95 = vmatprep.subr.bf16.mxu0 0
    %96 = vmatpush1.bf16.msra.mxu0 0
    %97 = vmatprep.subr.bf16.mxu0 0
    %98 = vmatpush1.bf16.msra.mxu0 0
    %99 = vmatprep.subr.bf16.mxu0 0
    %100 = vmatpush1.bf16.msra.mxu0 0
    %101 = vmatprep.subr.bf16.mxu0 0
    %102 = vmatpush1.bf16.msra.mxu0 0
    %103 = vmatprep.subr.bf16.mxu0 0
    %104 = vmatpush1.bf16.msra.mxu0 0
    %105 = vmatprep.subr.bf16.mxu0 0
    %106 = vmatpush1.bf16.msra.mxu0 0
    %107 = vmatprep.subr.bf16.mxu0 0
    %108 = vmatpush1.bf16.msra.mxu0 0
    %109 = vmatprep.subr.bf16.mxu0 0
    %110 = vmatpush1.bf16.msra.mxu0 0
    %111 = vmatprep.subr.bf16.mxu0 0
    %112 = vmatpush1.bf16.msra.mxu0 0
    %113 = vmatprep.subr.bf16.mxu0 0
    %114 = vmatpush1.bf16.msra.mxu0 0
    %115 = vmatprep.subr.bf16.mxu0 0
    %116 = vmatpush1.bf16.msra.mxu0 0
    %117 = vmatprep.subr.bf16.mxu0 0
    %118 = vmatpush1.bf16.msra.mxu0 0
    %119 = vmatprep.mubr.bf16.mxu0 0
    %120 = vmatmul.mubr.bf16.gmra.mrb[0].mxu0 %v85
    %v121 = vpop.f32.mrb[0].mxu0
    %v122 = vadd.f32 0.0, %v121
    %v123 = vpop.f32.mrb[0].mxu0
    %v124 = vpop.f32.mrb[0].mxu0
    %v125 = vadd.f32 0.0, %v124
    %v126 = vpop.f32.mrb[0].mxu0
    %127 = vdwg.mxu0
    %v128 = vadd.f32 %v62, %v122
    %v129 = vadd.f32 %v63, %v125
    %vm130 = vcmask 523264
    %131 = vst.msk [vmem:[#allocation2] sm:$0xff] %vm130, %v128
    %132 = vst.msk [vmem:[#allocation2 + $0x8] sm:$0xff] %vm130, %v129
    // Predicated region
    $region30: #{transformer_forward.28} parent=1 // pred_check
      %p133 = pneg %p55
    $region31: #{transformer_forward.28} parent=1 // pred_check_branch
      %135 = sbr.rel (%p133) target = $region33
    $region32: #{transformer_forward.28} parent=1 // pred_region
      %v136 = vld [vmem:[#allocation2] sm:$0xff]
      %v137 = vld [vmem:[#allocation2 + $0x8] sm:$0xff]
      %v138 = vld [vmem:[#allocation8] sm:$0x1]
      %v140 = vlaneseq
      %v141 = vshrl.u32 %v140, 7
      %v142 = vsub.s32 0, %v141
      %v143 = vrot.slane %v138, %v142
      %v145 = vadd.f32 %v136, %v143
      %v146 = vadd.f32 %v137, %v143
      %v147 = vpack.c.bf16 %v146, %v145
      %v149 = vunpack.c.l.b16 %v147
      %v150 = vunpack.c.h.b16 %v147
      %v151 = vpack.c.b16 %v149, %v149
      %v152 = vpack.c.b16 %v150, %v150
      %vm155 = vcmask 519168
      %156 = vst.msk [vmem:[#allocation9] sm:$0xf] %vm155, %v151
      %157 = vst.msk [vmem:[#allocation9 + $0x4] sm:$0xf] %vm155, %v152
    $region33: #{transformer_forward.28} parent=1 // pred_fallthru
      _
    // Predicated region
    $region34: #{transformer_forward.28} parent=1 // pred_check
      _
    $region35: #{transformer_forward.28} parent=1 // pred_check_branch
      %159 = sbr.rel (0) target = $region37
    $region36: #{transformer_forward.28} parent=1 // pred_region
      %s161 = ssub.s32 128, 128
      %162 = vsyncadd [#allocation5], %s161
      %s163 = sshll.u32 [#allocation9], 4
      %s164 = int_to_ptr.vmem [resolvable:$true] %s163
      %169 = dma.vmem_to_hbm [thread:$0]  %s164, 128, %s3, [#allocation5], 64, 64, 4
    $region37: #{transformer_forward.28} parent=1 // pred_fallthru
      _
    // Predicated region
    $region38: #{transformer_forward.28} parent=1 // pred_check
      _
    $region39: #{transformer_forward.28} parent=1 // pred_check_branch
      %171 = sbr.rel (0) target = $region41
    $region40: #{transformer_forward.28} parent=1 // pred_region
      %172 = dma.done [#allocation5], 128
    $region41: #{transformer_forward.28} parent=1 // pred_fallthru
      _
    %173 = vsyncpa [#allocation4], 1
    %174 = vsyncpa [#allocation7], 1
    %175 = vsyncpa [#allocation5], 1

// kernel: transformer_forward.21
$region0: #{transformer_forward.21}
  #allocation0 [shape = 'u32[]', space=smem, size = 0x4, offset = 0x4, fixed_abs, tag = 'smem constant byte address 0x4 - core index']
  #allocation1 [shape = 'u32[144,128]{1,0:T(1,128)}', space=vmem, size = 0x12000, scoped, tag = 'internal scratch']
  #allocation2 [shape = 'f32[16,32]{1,0:T(8,128)}', space=vmem, size = 0x2000, scoped, tag = 'scratch operand']
  %s0 = inlined_call_operand.hbm [shape: f32[16,32], index: 0, kind: input, shape index: {}]
  %s1 = inlined_call_operand.hbm [shape: bf16[32,64], index: 1, kind: input, shape index: {}]
  %s2 = inlined_call_operand.hbm [shape: f32[1,64], index: 2, kind: input, shape index: {}]
  %s3 = inlined_call_operand.hbm [shape: bf16[64,32], index: 3, kind: input, shape index: {}]
  %s4 = inlined_call_operand.hbm [shape: f32[1,32], index: 4, kind: input, shape index: {}]
  %s5 = inlined_call_operand.hbm [shape: f32[1,32], index: 5, kind: input, shape index: {}]
  %s6 = inlined_call_operand.hbm [shape: f32[1,32], index: 6, kind: input, shape index: {}]
  %s7 = inlined_call_operand.hbm [shape: f32[16,32], index: 7, kind: output, shape index: {}]
  %s8 = sld [smem:[#allocation0]]
  $region74: #{transformer_forward.21} parent=0
    _
  %s10 = ssub.s32 1, %s8
  %s11 = scalar_select 0, %s10, %s8
  $region1: #{transformer_forward.21} parent=0
    #allocation3 [shape = 'u8[8192]{0}', space=vmem, size = 0x2000, scoped, tag = 'input window, operand 0, single buffered']
    #allocation4 [shape = 's32[1]{0}', space=sflag, size = 0x4, scoped, tag = 'scoped memory for transformer_forward.21']
    #allocation5 [shape = 's32[1]{0}', space=sflag, size = 0x4, scoped, tag = 'scoped memory for transformer_forward.21']
    #allocation6 [shape = 'u8[8192]{0}', space=vmem, size = 0x2000, scoped, tag = 'input window, operand 1, single buffered']
    #allocation7 [shape = 's32[1]{0}', space=sflag, size = 0x4, scoped, tag = 'scoped memory for transformer_forward.21']
    #allocation8 [shape = 'u8[512]{0}', space=vmem, size = 0x400, scoped, tag = 'input window, operand 2, single buffered']
    #allocation9 [shape = 'u8[16384]{0}', space=vmem, size = 0x4000, scoped, tag = 'input window, operand 3, single buffered']
    #allocation10 [shape = 's32[1]{0}', space=sflag, size = 0x4, scoped, tag = 'scoped memory for transformer_forward.21']
    #allocation11 [shape = 'u8[512]{0}', space=vmem, size = 0x400, scoped, tag = 'input window, operand 4, single buffered']
    #allocation12 [shape = 'u8[512]{0}', space=vmem, size = 0x400, scoped, tag = 'input window, operand 5, single buffered']
    #allocation13 [shape = 's32[1]{0}', space=sflag, size = 0x4, scoped, tag = 'scoped memory for transformer_forward.21']
    #allocation14 [shape = 'u8[512]{0}', space=vmem, size = 0x400, scoped, tag = 'input window, operand 6, single buffered']
    #allocation15 [shape = 'u8[8192]{0}', space=vmem, size = 0x2000, scoped, tag = 'output window, operand 0, single buffered']
    %12 = vsyncpa [#allocation4], 0
    %13 = vsyncpa [#allocation7], 0
    %14 = vsyncpa [#allocation10], 0
    %15 = vsyncpa [#allocation13], 0
    %16 = vsyncpa [#allocation5], 0
    // Predicated region
    $region2: #{transformer_forward.21} parent=1 // pred_check
      _
    $region3: #{transformer_forward.21} parent=1 // pred_check_branch
      %18 = sbr.rel (0) target = $region5
    $region4: #{transformer_forward.21} parent=1 // pred_region
      %s20 = ssub.s32 256, 256
      %21 = vsyncadd [#allocation4], %s20
      %s22 = sshll.u32 [#allocation3], 4
      %s23 = int_to_ptr.vmem [resolvable:$true] %s22
      %28 = dma.hbm_to_vmem [thread:$0]  %s0, 256, %s23, [#allocation4], 128, 128, 8
    $region5: #{transformer_forward.21} parent=1 // pred_fallthru
      _
    // Predicated region
    $region6: #{transformer_forward.21} parent=1 // pred_check
      _
    $region7: #{transformer_forward.21} parent=1 // pred_check_branch
      %30 = sbr.rel (0) target = $region9
    $region8: #{transformer_forward.21} parent=1 // pred_region
      %s32 = ssub.s32 256, 256
      %33 = vsyncadd [#allocation7], %s32
      %s34 = sshll.u32 [#allocation6], 4
      %s35 = int_to_ptr.vmem [resolvable:$true] %s34
      %40 = dma.hbm_to_vmem [thread:$0]  %s1, 256, %s35, [#allocation7], 64, 64, 4
    $region9: #{transformer_forward.21} parent=1 // pred_fallthru
      _
    // Predicated region
    $region10: #{transformer_forward.21} parent=1 // pred_check
      _
    $region11: #{transformer_forward.21} parent=1 // pred_check_branch
      %42 = sbr.rel (0) target = $region13
    $region12: #{transformer_forward.21} parent=1 // pred_region
      %s44 = ssub.s32 16, 16
      %45 = vsyncadd [#allocation7], %s44
      %s47 = sshll.u32 [#allocation8], 4
      %s48 = int_to_ptr.vmem [resolvable:$true] %s47
      %50 = dma.hbm_to_vmem [thread:$0]  %s2, 16, %s48, [#allocation7]
    $region13: #{transformer_forward.21} parent=1 // pred_fallthru
      _
    // Predicated region
    $region14: #{transformer_forward.21} parent=1 // pred_check
      _
    $region15: #{transformer_forward.21} parent=1 // pred_check_branch
      %52 = sbr.rel (0) target = $region17
    $region16: #{transformer_forward.21} parent=1 // pred_region
      %s54 = ssub.s32 512, 512
      %55 = vsyncadd [#allocation10], %s54
      %s56 = sshll.u32 [#allocation9], 4
      %s57 = int_to_ptr.vmem [resolvable:$true] %s56
      %62 = dma.hbm_to_vmem [thread:$0]  %s3, 512, %s57, [#allocation10], 64, 64, 4
    $region17: #{transformer_forward.21} parent=1 // pred_fallthru
      _
    // Predicated region
    $region18: #{transformer_forward.21} parent=1 // pred_check
      _
    $region19: #{transformer_forward.21} parent=1 // pred_check_branch
      %64 = sbr.rel (0) target = $region21
    $region20: #{transformer_forward.21} parent=1 // pred_region
      %s66 = ssub.s32 16, 16
      %67 = vsyncadd [#allocation10], %s66
      %s69 = sshll.u32 [#allocation11], 4
      %s70 = int_to_ptr.vmem [resolvable:$true] %s69
      %72 = dma.hbm_to_vmem [thread:$0]  %s4, 16, %s70, [#allocation10]
    $region21: #{transformer_forward.21} parent=1 // pred_fallthru
      _
    // Predicated region
    $region22: #{transformer_forward.21} parent=1 // pred_check
      _
    $region23: #{transformer_forward.21} parent=1 // pred_check_branch
      %74 = sbr.rel (0) target = $region25
    $region24: #{transformer_forward.21} parent=1 // pred_region
      %s76 = ssub.s32 16, 16
      %77 = vsyncadd [#allocation13], %s76
      %s79 = sshll.u32 [#allocation12], 4
      %s80 = int_to_ptr.vmem [resolvable:$true] %s79
      %82 = dma.hbm_to_vmem [thread:$0]  %s5, 16, %s80, [#allocation13]
    $region25: #{transformer_forward.21} parent=1 // pred_fallthru
      _
    // Predicated region
    $region26: #{transformer_forward.21} parent=1 // pred_check
      _
    $region27: #{transformer_forward.21} parent=1 // pred_check_branch
      %84 = sbr.rel (0) target = $region29
    $region28: #{transformer_forward.21} parent=1 // pred_region
      %s86 = ssub.s32 16, 16
      %87 = vsyncadd [#allocation13], %s86
      %s89 = sshll.u32 [#allocation14], 4
      %s90 = int_to_ptr.vmem [resolvable:$true] %s89
      %92 = dma.hbm_to_vmem [thread:$0]  %s6, 16, %s90, [#allocation13]
    $region29: #{transformer_forward.21} parent=1 // pred_fallthru
      _
    // Predicated region
    $region30: #{transformer_forward.21} parent=1 // pred_check
      _
    $region31: #{transformer_forward.21} parent=1 // pred_check_branch
      %94 = sbr.rel (0) target = $region33
    $region32: #{transformer_forward.21} parent=1 // pred_region
      %95 = dma.done [#allocation4], 256
    $region33: #{transformer_forward.21} parent=1 // pred_fallthru
      _
    // Predicated region
    $region34: #{transformer_forward.21} parent=1 // pred_check
      _
    $region35: #{transformer_forward.21} parent=1 // pred_check_branch
      %97 = sbr.rel (0) target = $region37
    $region36: #{transformer_forward.21} parent=1 // pred_region
      %98 = dma.done [#allocation7], 256
    $region37: #{transformer_forward.21} parent=1 // pred_fallthru
      _
    // Predicated region
    $region38: #{transformer_forward.21} parent=1 // pred_check
      _
    $region39: #{transformer_forward.21} parent=1 // pred_check_branch
      %100 = sbr.rel (0) target = $region41
    $region40: #{transformer_forward.21} parent=1 // pred_region
      %101 = dma.done [#allocation7], 16
    $region41: #{transformer_forward.21} parent=1 // pred_fallthru
      _
    // Predicated region
    $region42: #{transformer_forward.21} parent=1 // pred_check
      _
    $region43: #{transformer_forward.21} parent=1 // pred_check_branch
      %103 = sbr.rel (0) target = $region45
    $region44: #{transformer_forward.21} parent=1 // pred_region
      %104 = dma.done [#allocation10], 512
    $region45: #{transformer_forward.21} parent=1 // pred_fallthru
      _
    // Predicated region
    $region46: #{transformer_forward.21} parent=1 // pred_check
      _
    $region47: #{transformer_forward.21} parent=1 // pred_check_branch
      %106 = sbr.rel (0) target = $region49
    $region48: #{transformer_forward.21} parent=1 // pred_region
      %107 = dma.done [#allocation10], 16
    $region49: #{transformer_forward.21} parent=1 // pred_fallthru
      _
    // Predicated region
    $region50: #{transformer_forward.21} parent=1 // pred_check
      _
    $region51: #{transformer_forward.21} parent=1 // pred_check_branch
      %109 = sbr.rel (0) target = $region53
    $region52: #{transformer_forward.21} parent=1 // pred_region
      %110 = dma.done [#allocation13], 16
    $region53: #{transformer_forward.21} parent=1 // pred_fallthru
      _
    // Predicated region
    $region54: #{transformer_forward.21} parent=1 // pred_check
      _
    $region55: #{transformer_forward.21} parent=1 // pred_check_branch
      %112 = sbr.rel (0) target = $region57
    $region56: #{transformer_forward.21} parent=1 // pred_region
      %113 = dma.done [#allocation13], 16
    $region57: #{transformer_forward.21} parent=1 // pred_fallthru
      _
    %p115 = scmp.eq.s32.totalorder 0, 0
    // Predicated region
    $region58: #{transformer_forward.21} parent=1 // pred_check
      %p116 = pneg %p115
    $region59: #{transformer_forward.21} parent=1 // pred_check_branch
      %118 = sbr.rel (%p116) target = $region61
    $region60: #{transformer_forward.21} parent=1 // pred_region
      %vm119 = vcmask 261120
      %120 = vst.msk [vmem:[#allocation2] sm:$0xff] %vm119, 0.0
      %121 = vst.msk [vmem:[#allocation2 + $0x8] sm:$0xff] %vm119, 0.0
    $region61: #{transformer_forward.21} parent=1 // pred_fallthru
      _
    %v122 = vld [vmem:[#allocation3] sm:$0xff]
    %v123 = vld [vmem:[#allocation3 + $0x8] sm:$0xff]
    %v124 = vpack.c.bf16 %v123, %v122
    %v125 = vld [vmem:[#allocation6] sm:$0xf]
    %v126 = vld [vmem:[#allocation6 + $0x4] sm:$0xf]
    %v127 = vld [vmem:[#allocation6 + $0x8] sm:$0xf]
    %v128 = vld [vmem:[#allocation6 + $0xc] sm:$0xf]
    %v129 = vld [vmem:[#allocation8] sm:$0x1]
    %v131 = vlaneseq
    %v132 = vshrl.u32 %v131, 7
    %v133 = vsub.s32 0, %v132
    %v134 = vrot.slane %v129, %v133
    %v140 = vunpack.c.l.b16 %v125
    %v141 = vunpack.c.l.b16 %v126
    %v142 = vunpack.c.l.b16 %v127
    %v143 = vunpack.c.l.b16 %v128
    %v144 = vpack.c.b16 %v141, %v140
    %v145 = vpack.c.b16 %v143, %v142
    %vm148 = vcmask 261120
    %v150 = vsel %vm148, %v124, 0
    %152 = vmatprep.subr.bf16.mxu0 0
    %153 = vmatpush1.bf16.msra.mxu0 %v144
    %154 = vmatprep.subr.bf16.mxu0 0
    %155 = vmatpush1.bf16.msra.mxu0 %v145
    %156 = vmatprep.subr.bf16.mxu0 0
    %157 = vmatpush1.bf16.msra.mxu0 0
    %158 = vmatprep.subr.bf16.mxu0 0
    %159 = vmatpush1.bf16.msra.mxu0 0
    %160 = vmatprep.subr.bf16.mxu0 0
    %161 = vmatpush1.bf16.msra.mxu0 0
    %162 = vmatprep.subr.bf16.mxu0 0
    %163 = vmatpush1.bf16.msra.mxu0 0
    %164 = vmatprep.subr.bf16.mxu0 0
    %165 = vmatpush1.bf16.msra.mxu0 0
    %166 = vmatprep.subr.bf16.mxu0 0
    %167 = vmatpush1.bf16.msra.mxu0 0
    %168 = vmatprep.subr.bf16.mxu0 0
    %169 = vmatpush1.bf16.msra.mxu0 0
    %170 = vmatprep.subr.bf16.mxu0 0
    %171 = vmatpush1.bf16.msra.mxu0 0
    %172 = vmatprep.subr.bf16.mxu0 0
    %173 = vmatpush1.bf16.msra.mxu0 0
    %174 = vmatprep.subr.bf16.mxu0 0
    %175 = vmatpush1.bf16.msra.mxu0 0
    %176 = vmatprep.subr.bf16.mxu0 0
    %177 = vmatpush1.bf16.msra.mxu0 0
    %178 = vmatprep.subr.bf16.mxu0 0
    %179 = vmatpush1.bf16.msra.mxu0 0
    %180 = vmatprep.subr.bf16.mxu0 0
    %181 = vmatpush1.bf16.msra.mxu0 0
    %182 = vmatprep.subr.bf16.mxu0 0
    %183 = vmatpush1.bf16.msra.mxu0 0
    %184 = vmatprep.mubr.bf16.mxu0 0
    %185 = vmatmul.mubr.bf16.gmra.mrb[0].mxu0 %v150
    %v186 = vpop.f32.mrb[0].mxu0
    %v187 = vadd.f32 %v134, %v186
    %v188 = vpop.f32.mrb[0].mxu0
    %v189 = vpop.f32.mrb[0].mxu0
    %v190 = vadd.f32 %v134, %v189
    %v191 = vpop.f32.mrb[0].mxu0
    %192 = vdwg.mxu0
    %v193 = vmax.f32 %v187, 0.0
    %v194 = vmax.f32 %v190, 0.0
    %v195 = vld [vmem:[#allocation2] sm:$0xff]
    %v196 = vld [vmem:[#allocation2 + $0x8] sm:$0xff]
    %v197 = vpack.c.bf16 %v194, %v193
    %v198 = vld [vmem:[#allocation9] sm:$0xf]
    %v199 = vld [vmem:[#allocation9 + $0x4] sm:$0xf]
    %v200 = vld [vmem:[#allocation9 + $0x8] sm:$0xf]
    %v201 = vld [vmem:[#allocation9 + $0xc] sm:$0xf]
    %v202 = vld [vmem:[#allocation9 + $0x10] sm:$0xf]
    %v203 = vld [vmem:[#allocation9 + $0x14] sm:$0xf]
    %v204 = vld [vmem:[#allocation9 + $0x18] sm:$0xf]
    %v205 = vld [vmem:[#allocation9 + $0x1c] sm:$0xf]
    %v214 = vunpack.c.l.b16 %v198
    %v215 = vunpack.c.l.b16 %v199
    %v216 = vunpack.c.l.b16 %v200
    %v217 = vunpack.c.l.b16 %v201
    %v218 = vunpack.c.l.b16 %v202
    %v219 = vunpack.c.l.b16 %v203
    %v220 = vunpack.c.l.b16 %v204
    %v221 = vunpack.c.l.b16 %v205
    %v222 = vpack.c.b16 %v215, %v214
    %v223 = vpack.c.b16 %v217, %v216
    %v224 = vpack.c.b16 %v219, %v218
    %v225 = vpack.c.b16 %v221, %v220
    %vm230 = vcmask 523264
    %v232 = vsel %vm230, %v197, 0
    %234 = vmatprep.subr.bf16.mxu0 0
    %235 = vmatpush1.bf16.msra.mxu0 %v222
    %236 = vmatprep.subr.bf16.mxu0 0
    %237 = vmatpush1.bf16.msra.mxu0 %v223
    %238 = vmatprep.subr.bf16.mxu0 0
    %239 = vmatpush1.bf16.msra.mxu0 %v224
    %240 = vmatprep.subr.bf16.mxu0 0
    %241 = vmatpush1.bf16.msra.mxu0 %v225
    %242 = vmatprep.subr.bf16.mxu0 0
    %243 = vmatpush1.bf16.msra.mxu0 0
    %244 = vmatprep.subr.bf16.mxu0 0
    %245 = vmatpush1.bf16.msra.mxu0 0
    %246 = vmatprep.subr.bf16.mxu0 0
    %247 = vmatpush1.bf16.msra.mxu0 0
    %248 = vmatprep.subr.bf16.mxu0 0
    %249 = vmatpush1.bf16.msra.mxu0 0
    %250 = vmatprep.subr.bf16.mxu0 0
    %251 = vmatpush1.bf16.msra.mxu0 0
    %252 = vmatprep.subr.bf16.mxu0 0
    %253 = vmatpush1.bf16.msra.mxu0 0
    %254 = vmatprep.subr.bf16.mxu0 0
    %255 = vmatpush1.bf16.msra.mxu0 0
    %256 = vmatprep.subr.bf16.mxu0 0
    %257 = vmatpush1.bf16.msra.mxu0 0
    %258 = vmatprep.subr.bf16.mxu0 0
    %259 = vmatpush1.bf16.msra.mxu0 0
    %260 = vmatprep.subr.bf16.mxu0 0
    %261 = vmatpush1.bf16.msra.mxu0 0
    %262 = vmatprep.subr.bf16.mxu0 0
    %263 = vmatpush1.bf16.msra.mxu0 0
    %264 = vmatprep.subr.bf16.mxu0 0
    %265 = vmatpush1.bf16.msra.mxu0 0
    %266 = vmatprep.mubr.bf16.mxu0 0
    %267 = vmatmul.mubr.bf16.gmra.mrb[0].mxu0 %v232
    %v268 = vpop.f32.mrb[0].mxu0
    %v269 = vadd.f32 0.0, %v268
    %v270 = vpop.f32.mrb[0].mxu0
    %v271 = vpop.f32.mrb[0].mxu0
    %v272 = vadd.f32 0.0, %v271
    %v273 = vpop.f32.mrb[0].mxu0
    %274 = vdwg.mxu0
    %v275 = vadd.f32 %v195, %v269
    %v276 = vadd.f32 %v196, %v272
    %277 = vst.msk [vmem:[#allocation2] sm:$0xff] %vm148, %v275
    %278 = vst.msk [vmem:[#allocation2 + $0x8] sm:$0xff] %vm148, %v276
    // Predicated region
    $region62: #{transformer_forward.21} parent=1 // pred_check
      %p279 = pneg %p115
    $region63: #{transformer_forward.21} parent=1 // pred_check_branch
      %281 = sbr.rel (%p279) target = $region65
    $region64: #{transformer_forward.21} parent=1 // pred_region
      %v282 = vld [vmem:[#allocation2] sm:$0xff]
      %v283 = vld [vmem:[#allocation2 + $0x8] sm:$0xff]
      %v284 = vld [vmem:[#allocation11] sm:$0x1]
      %v286 = vlaneseq
      %v287 = vshrl.u32 %v286, 7
      %v288 = vsub.s32 0, %v287
      %v289 = vrot.slane %v284, %v288
      %v291 = vadd.f32 %v282, %v289
      %v292 = vadd.f32 %v283, %v289
      %v293 = vld [vmem:[#allocation3] sm:$0xff]
      %v294 = vld [vmem:[#allocation3 + $0x8] sm:$0xff]
      %v295 = vadd.f32 %v291, %v293
      %v296 = vadd.f32 %v292, %v294
      %v297 = vsel %vm148, %v295, 0.0
      %298 = vadd.xlane.f32.xlu0 %v297
      %v299 = vpop.xlane.xlu0 %298
      %v300 = vsel %vm148, %v296, 0.0
      %301 = vadd.xlane.f32.xlu0 %v300
      %v302 = vpop.xlane.xlu0 %301
      %v303 = vrcp.pop 32.0
      %v304 = vmul.f32 %v299, %v303
      %v305 = vmul.f32 %v302, %v303
      %v306 = vsub.f32 %v295, %v304
      %v307 = vsub.f32 %v296, %v305
      %v308 = vmul.f32 %v306, %v306
      %v309 = vmul.f32 %v307, %v307
      %v310 = vsel %vm148, %v308, 0.0
      %311 = vadd.xlane.f32.xlu0 %v310
      %v312 = vpop.xlane.xlu0 %311
      %v313 = vsel %vm148, %v309, 0.0
      %314 = vadd.xlane.f32.xlu0 %v313
      %v315 = vpop.xlane.xlu0 %314
      %v316 = vmul.f32 %v312, %v303
      %v317 = vmul.f32 %v315, %v303
      %v318 = vadd.f32 %v316, 1e-05
      %v319 = vadd.f32 %v317, 1e-05
      %v320 = vrsqrt.pop %v318
      %v321 = vrsqrt.pop %v319
      %v322 = vmul.f32 %v306, %v320
      %v323 = vmul.f32 %v307, %v321
      %v324 = vld [vmem:[#allocation12] sm:$0x1]
      %v326 = vlaneseq
      %v327 = vshrl.u32 %v326, 7
      %v328 = vsub.s32 0, %v327
      %v329 = vrot.slane %v324, %v328
      %v331 = vmul.f32 %v322, %v329
      %v332 = vmul.f32 %v323, %v329
      %v333 = vld [vmem:[#allocation14] sm:$0x1]
      %v335 = vlaneseq
      %v336 = vshrl.u32 %v335, 7
      %v337 = vsub.s32 0, %v336
      %v338 = vrot.slane %v333, %v337
      %v340 = vadd.f32 %v331, %v338
      %v341 = vadd.f32 %v332, %v338
      %342 = vst.msk [vmem:[#allocation15] sm:$0xff] %vm148, %v340
      %343 = vst.msk [vmem:[#allocation15 + $0x8] sm:$0xff] %vm148, %v341
    $region65: #{transformer_forward.21} parent=1 // pred_fallthru
      _
    // Predicated region
    $region66: #{transformer_forward.21} parent=1 // pred_check
      _
    $region67: #{transformer_forward.21} parent=1 // pred_check_branch
      %345 = sbr.rel (0) target = $region69
    $region68: #{transformer_forward.21} parent=1 // pred_region
      %s347 = ssub.s32 256, 256
      %348 = vsyncadd [#allocation5], %s347
      %s349 = sshll.u32 [#allocation15], 4
      %s350 = int_to_ptr.vmem [resolvable:$true] %s349
      %355 = dma.vmem_to_hbm [thread:$0]  %s350, 256, %s7, [#allocation5], 128, 128, 8
    $region69: #{transformer_forward.21} parent=1 // pred_fallthru
      _
    // Predicated region
    $region70: #{transformer_forward.21} parent=1 // pred_check
      _
    $region71: #{transformer_forward.21} parent=1 // pred_check_branch
      %357 = sbr.rel (0) target = $region73
    $region72: #{transformer_forward.21} parent=1 // pred_region
      %358 = dma.done [#allocation5], 256
    $region73: #{transformer_forward.21} parent=1 // pred_fallthru
      _
    %359 = vsyncpa [#allocation4], 1
    %360 = vsyncpa [#allocation7], 1
    %361 = vsyncpa [#allocation10], 1
    %362 = vsyncpa [#allocation13], 1
    %363 = vsyncpa [#allocation5], 1

// kernel: transformer_forward.20
$region0: #{transformer_forward.20}
  #allocation0 [shape = 'u32[]', space=smem, size = 0x4, offset = 0x4, fixed_abs, tag = 'smem constant byte address 0x4 - core index']
  #allocation1 [shape = 'u32[144,128]{1,0:T(1,128)}', space=vmem, size = 0x12000, scoped, tag = 'internal scratch']
  %s0 = inlined_call_operand.hbm [shape: bf16[2,8,96], index: 0, kind: input, shape index: {}]
  %s1 = inlined_call_operand.hbm [shape: f32[2,1,8], index: 1, kind: input, shape index: {}]
  %s2 = inlined_call_operand.hbm [shape: f32[2,8,32], index: 2, kind: input, shape index: {}]
  %s3 = inlined_call_operand.hbm [shape: bf16[32,32], index: 3, kind: input, shape index: {}]
  %s4 = inlined_call_operand.hbm [shape: f32[1,32], index: 4, kind: input, shape index: {}]
  %s5 = inlined_call_operand.hbm [shape: f32[1,32], index: 5, kind: input, shape index: {}]
  %s6 = inlined_call_operand.hbm [shape: f32[1,32], index: 6, kind: input, shape index: {}]
  %s7 = inlined_call_operand.hbm [shape: f32[2,8,32], index: 7, kind: output, shape index: {}]
  %s8 = sld [smem:[#allocation0]]
  $region89: #{transformer_forward.20} parent=0
    _
  %s10 = ssub.s32 1, %s8
  %s11 = scalar_select 0, %s10, %s8
  $region1: #{transformer_forward.20} parent=0
    #allocation2 [shape = 'u8[4096]{0}', space=vmem, size = 0x1000, scoped, tag = 'input window, operand 0']
    #allocation3 [shape = 's32[2]{0}', space=sflag, size = 0x8, scoped, tag = 'scoped memory for transformer_forward.20']
    #allocation4 [shape = 's32[2]{0}', space=sflag, size = 0x8, scoped, tag = 'scoped memory for transformer_forward.20']
    #allocation5 [shape = 'u8[1024]{0}', space=vmem, size = 0x400, scoped, tag = 'input window, operand 1']
    #allocation6 [shape = 's32[2]{0}', space=sflag, size = 0x8, scoped, tag = 'scoped memory for transformer_forward.20']
    #allocation7 [shape = 'u8[8192]{0}', space=vmem, size = 0x2000, scoped, tag = 'input window, operand 2']
    #allocation8 [shape = 'u8[8192]{0}', space=vmem, size = 0x2000, scoped, tag = 'input window, operand 3, single buffered']
    #allocation9 [shape = 's32[1]{0}', space=sflag, size = 0x4, scoped, tag = 'scoped memory for transformer_forward.20']
    #allocation10 [shape = 'u8[512]{0}', space=vmem, size = 0x400, scoped, tag = 'input window, operand 4, single buffered']
    #allocation11 [shape = 'u8[512]{0}', space=vmem, size = 0x400, scoped, tag = 'input window, operand 5, single buffered']
    #allocation12 [shape = 's32[1]{0}', space=sflag, size = 0x4, scoped, tag = 'scoped memory for transformer_forward.20']
    #allocation13 [shape = 'u8[512]{0}', space=vmem, size = 0x400, scoped, tag = 'input window, operand 6, single buffered']
    #allocation14 [shape = 'u8[8192]{0}', space=vmem, size = 0x2000, scoped, tag = 'output window, operand 0']
    %12 = vsyncpa [#allocation3], 0
    %s13 = scalar_lea.sflag [#allocation3], 1
    %14 = vsyncpa %s13, 0
    %15 = vsyncpa [#allocation6], 0
    %s16 = scalar_lea.sflag [#allocation6], 1
    %17 = vsyncpa %s16, 0
    %18 = vsyncpa [#allocation9], 0
    %19 = vsyncpa [#allocation12], 0
    %20 = vsyncpa [#allocation4], 0
    %s21 = scalar_lea.sflag [#allocation4], 1
    %22 = vsyncpa %s21, 0
    loop: start=0, step=1, limit=4
    $region2: #{transformer_forward.20} parent=1 // loop_pre_header
      _
    $region3: #{transformer_forward.20} parent=1 // loop_header
      %s24 = sphi 0, %s28
      %p25 = scmp.ge.s32.totalorder %s24, 4
      %s34 = sphi 0, %s36
      %s37 = sphi 0, %s34
      %s38 = sphi 0, %s37
      %s54 = sphi 0, %s38
      %s60 = sphi 0, %s62
      %s63 = sphi 0, %s60
      %s64 = sphi 0, %s63
      %s80 = sphi 0, %s64
      %s86 = sphi 0, %s88
      %s89 = sphi 0, %s86
      %s90 = sphi 0, %s89
      %s106 = sphi 0, %s90
      %s110 = sphi 0, %s110
      %s112 = sphi 0, %s110
      %s113 = sphi 0, %s112
      %s127 = sphi 0, %s113
      %s131 = sphi 0, %s131
      %s133 = sphi 0, %s131
      %s134 = sphi 0, %s133
      %s148 = sphi 0, %s134
      %s152 = sphi 0, %s152
      %s154 = sphi 0, %s152
      %s155 = sphi 0, %s154
      %s169 = sphi 0, %s155
      %s173 = sphi 0, %s173
      %s175 = sphi 0, %s173
      %s176 = sphi 0, %s175
      %s190 = sphi 0, %s176
      %s196 = sphi 0, %s198
      %s199 = sphi 0, %s196
      %s200 = sphi 0, %s199
      %s216 = sphi 0, %s200
    $region4: #{transformer_forward.20} parent=1 // loop_header_branch
      %27 = sbr.rel (%p25) target = $region8
    $region5: #{transformer_forward.20} parent=1 // loop_body
      %s29 = ssub.s32 %s24, 1
      %s30 = ssub.s32 %s24, 2
      %s31 = sadd.s32 %s24, 1
      %s32 = ssub.s32 %s24, %s31
      %p33 = scmp.eq.s32.totalorder %s32, 0
      %s35 = sadd.s32 %s34, 1
      %s36 = scalar_select %p33, %s34, %s35
      %p39 = pneg %p33
      %p40 = scmp.eq.s32.totalorder %s24, 1
      %p41 = por %p39, %p40
      %p42 = scmp.ne.s32.totalorder %s34, %s37
      %p43 = scmp.eq.s32.totalorder %s24, 0
      %p44 = por %p42, %p43
      %p45 = scmp.ne.s32.totalorder %s34, %s37
      %p46 = scmp.eq.s32.totalorder %s29, 1
      %p47 = por %p45, %p46
      %p48 = scmp.ne.s32.totalorder %s37, %s38
      %p49 = scmp.eq.s32.totalorder %s29, 0
      %p50 = por %p48, %p49
      %p51 = scmp.ne.s32.totalorder %s37, %s38
      %p52 = scmp.eq.s32.totalorder %s30, 1
      %p53 = por %p51, %p52
      %p55 = scmp.ne.s32.totalorder %s38, %s54
      %p56 = scmp.eq.s32.totalorder %s30, 0
      %p57 = por %p55, %p56
      %s58 = ssub.s32 %s24, %s31
      %p59 = scmp.eq.s32.totalorder %s58, 0
      %s61 = sadd.s32 %s60, 1
      %s62 = scalar_select %p59, %s60, %s61
      %p65 = pneg %p59
      %p66 = scmp.eq.s32.totalorder %s24, 1
      %p67 = por %p65, %p66
      %p68 = scmp.ne.s32.totalorder %s60, %s63
      %p69 = scmp.eq.s32.totalorder %s24, 0
      %p70 = por %p68, %p69
      %p71 = scmp.ne.s32.totalorder %s60, %s63
      %p72 = scmp.eq.s32.totalorder %s29, 1
      %p73 = por %p71, %p72
      %p74 = scmp.ne.s32.totalorder %s63, %s64
      %p75 = scmp.eq.s32.totalorder %s29, 0
      %p76 = por %p74, %p75
      %p77 = scmp.ne.s32.totalorder %s63, %s64
      %p78 = scmp.eq.s32.totalorder %s30, 1
      %p79 = por %p77, %p78
      %p81 = scmp.ne.s32.totalorder %s64, %s80
      %p82 = scmp.eq.s32.totalorder %s30, 0
      %p83 = por %p81, %p82
      %s84 = ssub.s32 %s24, %s31
      %p85 = scmp.eq.s32.totalorder %s84, 0
      %s87 = sadd.s32 %s86, 1
      %s88 = scalar_select %p85, %s86, %s87
      %p91 = pneg %p85
      %p92 = scmp.eq.s32.totalorder %s24, 1
      %p93 = por %p91, %p92
      %p94 = scmp.ne.s32.totalorder %s86, %s89
      %p95 = scmp.eq.s32.totalorder %s24, 0
      %p96 = por %p94, %p95
      %p97 = scmp.ne.s32.totalorder %s86, %s89
      %p98 = scmp.eq.s32.totalorder %s29, 1
      %p99 = por %p97, %p98
      %p100 = scmp.ne.s32.totalorder %s89, %s90
      %p101 = scmp.eq.s32.totalorder %s29, 0
      %p102 = por %p100, %p101
      %p103 = scmp.ne.s32.totalorder %s89, %s90
      %p104 = scmp.eq.s32.totalorder %s30, 1
      %p105 = por %p103, %p104
      %p107 = scmp.ne.s32.totalorder %s90, %s106
      %p108 = scmp.eq.s32.totalorder %s30, 0
      %p109 = por %p107, %p108
      %s111 = sadd.s32 %s110, 1
      %p114 = scmp.eq.s32.totalorder %s24, 1
      %p115 = scmp.ne.s32.totalorder %s110, %s112
      %p116 = scmp.eq.s32.totalorder %s24, 0
      %p117 = por %p115, %p116
      %p118 = scmp.ne.s32.totalorder %s110, %s112
      %p119 = scmp.eq.s32.totalorder %s29, 1
      %p120 = por %p118, %p119
      %p121 = scmp.ne.s32.totalorder %s112, %s113
      %p122 = scmp.eq.s32.totalorder %s29, 0
      %p123 = por %p121, %p122
      %p124 = scmp.ne.s32.totalorder %s112, %s113
      %p125 = scmp.eq.s32.totalorder %s30, 1
      %p126 = por %p124, %p125
      %p128 = scmp.ne.s32.totalorder %s113, %s127
      %p129 = scmp.eq.s32.totalorder %s30, 0
      %p130 = por %p128, %p129
      %s132 = sadd.s32 %s131, 1
      %p135 = scmp.eq.s32.totalorder %s24, 1
      %p136 = scmp.ne.s32.totalorder %s131, %s133
      %p137 = scmp.eq.s32.totalorder %s24, 0
      %p138 = por %p136, %p137
      %p139 = scmp.ne.s32.totalorder %s131, %s133
      %p140 = scmp.eq.s32.totalorder %s29, 1
      %p141 = por %p139, %p140
      %p142 = scmp.ne.s32.totalorder %s133, %s134
      %p143 = scmp.eq.s32.totalorder %s29, 0
      %p144 = por %p142, %p143
      %p145 = scmp.ne.s32.totalorder %s133, %s134
      %p146 = scmp.eq.s32.totalorder %s30, 1
      %p147 = por %p145, %p146
      %p149 = scmp.ne.s32.totalorder %s134, %s148
      %p150 = scmp.eq.s32.totalorder %s30, 0
      %p151 = por %p149, %p150
      %s153 = sadd.s32 %s152, 1
      %p156 = scmp.eq.s32.totalorder %s24, 1
      %p157 = scmp.ne.s32.totalorder %s152, %s154
      %p158 = scmp.eq.s32.totalorder %s24, 0
      %p159 = por %p157, %p158
      %p160 = scmp.ne.s32.totalorder %s152, %s154
      %p161 = scmp.eq.s32.totalorder %s29, 1
      %p162 = por %p160, %p161
      %p163 = scmp.ne.s32.totalorder %s154, %s155
      %p164 = scmp.eq.s32.totalorder %s29, 0
      %p165 = por %p163, %p164
      %p166 = scmp.ne.s32.totalorder %s154, %s155
      %p167 = scmp.eq.s32.totalorder %s30, 1
      %p168 = por %p166, %p167
      %p170 = scmp.ne.s32.totalorder %s155, %s169
      %p171 = scmp.eq.s32.totalorder %s30, 0
      %p172 = por %p170, %p171
      %s174 = sadd.s32 %s173, 1
      %p177 = scmp.eq.s32.totalorder %s24, 1
      %p178 = scmp.ne.s32.totalorder %s173, %s175
      %p179 = scmp.eq.s32.totalorder %s24, 0
      %p180 = por %p178, %p179
      %p181 = scmp.ne.s32.totalorder %s173, %s175
      %p182 = scmp.eq.s32.totalorder %s29, 1
      %p183 = por %p181, %p182
      %p184 = scmp.ne.s32.totalorder %s175, %s176
      %p185 = scmp.eq.s32.totalorder %s29, 0
      %p186 = por %p184, %p185
      %p187 = scmp.ne.s32.totalorder %s175, %s176
      %p188 = scmp.eq.s32.totalorder %s30, 1
      %p189 = por %p187, %p188
      %p191 = scmp.ne.s32.totalorder %s176, %s190
      %p192 = scmp.eq.s32.totalorder %s30, 0
      %p193 = por %p191, %p192
      %s194 = ssub.s32 %s24, %s31
      %p195 = scmp.eq.s32.totalorder %s194, 0
      %s197 = sadd.s32 %s196, 1
      %s198 = scalar_select %p195, %s196, %s197
      %p201 = pneg %p195
      %p202 = scmp.eq.s32.totalorder %s24, 1
      %p203 = por %p201, %p202
      %p204 = scmp.ne.s32.totalorder %s196, %s199
      %p205 = scmp.eq.s32.totalorder %s24, 0
      %p206 = por %p204, %p205
      %p207 = scmp.ne.s32.totalorder %s196, %s199
      %p208 = scmp.eq.s32.totalorder %s29, 1
      %p209 = por %p207, %p208
      %p210 = scmp.ne.s32.totalorder %s199, %s200
      %p211 = scmp.eq.s32.totalorder %s29, 0
      %p212 = por %p210, %p211
      %p213 = scmp.ne.s32.totalorder %s199, %s200
      %p214 = scmp.eq.s32.totalorder %s30, 1
      %p215 = por %p213, %p214
      %p217 = scmp.ne.s32.totalorder %s200, %s216
      %p218 = scmp.eq.s32.totalorder %s30, 0
      %p219 = por %p217, %p218
      %p220 = scmp.le.s32.totalorder 1, %s24
      %p221 = scmp.lt.s32.totalorder %s24, 3
      %p222 = pnand %p220, %p221
      %p223 = pneg %p222
      // Predicated region
      $region9: #{transformer_forward.20} parent=5 // pred_check
        _
      $region10: #{transformer_forward.20} parent=5 // pred_check_branch
        %225 = sbr.rel (%p222) target = $region12
      $region11: #{transformer_forward.20} parent=5 // pred_region
        %s226 = ssub.s32 %s24, 1
        // Predicated region
        $region13: #{transformer_forward.20} parent=11 // pred_check
          %p227 = pneg %p123
        $region14: #{transformer_forward.20} parent=11 // pred_check_branch
          %229 = sbr.rel (%p227) target = $region16
        $region15: #{transformer_forward.20} parent=11 // pred_region
          %s231 = ssub.s32 256, 256
          %232 = vsyncadd [#allocation9], %s231
          %s233 = sshll.u32 [#allocation8], 4
          %s234 = int_to_ptr.vmem [resolvable:$true] %s233
          %239 = dma.hbm_to_vmem [thread:$0]  %s3, 256, %s234, [#allocation9], 64, 64, 4
        $region16: #{transformer_forward.20} parent=11 // pred_fallthru
          _
        // Predicated region
        $region17: #{transformer_forward.20} parent=11 // pred_check
          %p240 = pneg %p144
        $region18: #{transformer_forward.20} parent=11 // pred_check_branch
          %242 = sbr.rel (%p240) target = $region20
        $region19: #{transformer_forward.20} parent=11 // pred_region
          %s244 = ssub.s32 16, 16
          %245 = vsyncadd [#allocation9], %s244
          %s247 = sshll.u32 [#allocation10], 4
          %s248 = int_to_ptr.vmem [resolvable:$true] %s247
          %250 = dma.hbm_to_vmem [thread:$0]  %s4, 16, %s248, [#allocation9]
        $region20: #{transformer_forward.20} parent=11 // pred_fallthru
          _
        // Predicated region
        $region21: #{transformer_forward.20} parent=11 // pred_check
          %p251 = pneg %p165
        $region22: #{transformer_forward.20} parent=11 // pred_check_branch
          %253 = sbr.rel (%p251) target = $region24
        $region23: #{transformer_forward.20} parent=11 // pred_region
          %s255 = ssub.s32 16, 16
          %256 = vsyncadd [#allocation12], %s255
          %s258 = sshll.u32 [#allocation11], 4
          %s259 = int_to_ptr.vmem [resolvable:$true] %s258
          %261 = dma.hbm_to_vmem [thread:$0]  %s5, 16, %s259, [#allocation12]
        $region24: #{transformer_forward.20} parent=11 // pred_fallthru
          _
        // Predicated region
        $region25: #{transformer_forward.20} parent=11 // pred_check
          %p262 = pneg %p186
        $region26: #{transformer_forward.20} parent=11 // pred_check_branch
          %264 = sbr.rel (%p262) target = $region28
        $region27: #{transformer_forward.20} parent=11 // pred_region
          %s266 = ssub.s32 16, 16
          %267 = vsyncadd [#allocation12], %s266
          %s269 = sshll.u32 [#allocation13], 4
          %s270 = int_to_ptr.vmem [resolvable:$true] %s269
          %272 = dma.hbm_to_vmem [thread:$0]  %s6, 16, %s270, [#allocation12]
        $region28: #{transformer_forward.20} parent=11 // pred_fallthru
          _
      $region12: #{transformer_forward.20} parent=5 // pred_fallthru
        _
      %p273 = scmp.lt.s32.totalorder %s24, 2
      // Predicated region
      $region29: #{transformer_forward.20} parent=5 // pred_check
        %p274 = pneg %p273
      $region30: #{transformer_forward.20} parent=5 // pred_check_branch
        %276 = sbr.rel (%p274) target = $region32
      $region31: #{transformer_forward.20} parent=5 // pred_region
        // Predicated region
        $region33: #{transformer_forward.20} parent=31 // pred_check
          %p277 = pneg %p44
        $region34: #{transformer_forward.20} parent=31 // pred_check_branch
          %279 = sbr.rel (%p277) target = $region36
        $region35: #{transformer_forward.20} parent=31 // pred_region
          %s280 = sand.u32 %s34, 1
          %s281 = scalar_lea.sflag [#allocation3], %s280
          %s282 = sand.u32 %s34, 1
          %s283 = smul.addr %s282, 4
          %s284 = scalar_lea.vmem [#allocation2], %s283
          %s286 = ssub.s32 64, 64
          %287 = vsyncadd %s281, %s286
          %s288 = smul.addr %s24, 64
          %s289 = scalar_lea.hbm %s0, %s288
          %s291 = sshll.u32 %s284, 4
          %s292 = int_to_ptr.vmem [resolvable:$true] %s291
          %294 = dma.hbm_to_vmem [thread:$0]  %s289, 64, %s292, %s281
        $region36: #{transformer_forward.20} parent=31 // pred_fallthru
          _
        // Predicated region
        $region37: #{transformer_forward.20} parent=31 // pred_check
          %p295 = pneg %p70
        $region38: #{transformer_forward.20} parent=31 // pred_check_branch
          %297 = sbr.rel (%p295) target = $region40
        $region39: #{transformer_forward.20} parent=31 // pred_region
          %s298 = sand.u32 %s24, 1
          %s299 = scalar_lea.sflag [#allocation6], %s298
          %s300 = sand.u32 %s60, 1
          %s301 = scalar_lea.vmem [#allocation5], %s300
          %s303 = ssub.s32 16, 16
          %304 = vsyncadd %s299, %s303
          %s305 = smul.addr %s24, 16
          %s306 = scalar_lea.hbm %s1, %s305
          %s308 = sshll.u32 %s301, 4
          %s309 = int_to_ptr.vmem [resolvable:$true] %s308
          %311 = dma.hbm_to_vmem [thread:$0]  %s306, 16, %s309, %s299
        $region40: #{transformer_forward.20} parent=31 // pred_fallthru
          _
        // Predicated region
        $region41: #{transformer_forward.20} parent=31 // pred_check
          %p312 = pneg %p96
        $region42: #{transformer_forward.20} parent=31 // pred_check_branch
          %314 = sbr.rel (%p312) target = $region44
        $region43: #{transformer_forward.20} parent=31 // pred_region
          %s315 = sand.u32 %s24, 1
          %s316 = scalar_lea.sflag [#allocation6], %s315
          %s317 = sand.u32 %s86, 1
          %s318 = smul.addr %s317, 8
          %s319 = scalar_lea.vmem [#allocation7], %s318
          %s321 = ssub.s32 128, 128
          %322 = vsyncadd %s316, %s321
          %s323 = smul.addr %s24, 128
          %s324 = scalar_lea.hbm %s2, %s323
          %s326 = sshll.u32 %s319, 4
          %s327 = int_to_ptr.vmem [resolvable:$true] %s326
          %329 = dma.hbm_to_vmem [thread:$0]  %s324, 128, %s327, %s316
        $region44: #{transformer_forward.20} parent=31 // pred_fallthru
          _
      $region32: #{transformer_forward.20} parent=5 // pred_fallthru
        _
      %p330 = scmp.le.s32.totalorder 1, %s24
      %p331 = scmp.lt.s32.totalorder %s24, 3
      %p332 = pnand %p330, %p331
      %p333 = pneg %p332
      // Predicated region
      $region45: #{transformer_forward.20} parent=5 // pred_check
        _
      $region46: #{transformer_forward.20} parent=5 // pred_check_branch
        %335 = sbr.rel (%p332) target = $region48
      $region47: #{transformer_forward.20} parent=5 // pred_region
        %s336 = ssub.s32 %s24, 1
        %s337 = sand.u32 %s37, 1
        %s338 = scalar_lea.sflag [#allocation3], %s337
        %s339 = sand.u32 %s37, 1
        %s340 = smul.addr %s339, 4
        %s341 = scalar_lea.vmem [#allocation2], %s340
        // Predicated region
        $region49: #{transformer_forward.20} parent=47 // pred_check
          %p342 = pneg %p50
        $region50: #{transformer_forward.20} parent=47 // pred_check_branch
          %344 = sbr.rel (%p342) target = $region52
        $region51: #{transformer_forward.20} parent=47 // pred_region
          %345 = dma.done %s338, 64
        $region52: #{transformer_forward.20} parent=47 // pred_fallthru
          _
        %s346 = sand.u32 %s29, 1
        %s347 = scalar_lea.sflag [#allocation6], %s346
        %s348 = sand.u32 %s63, 1
        %s349 = scalar_lea.vmem [#allocation5], %s348
        // Predicated region
        $region53: #{transformer_forward.20} parent=47 // pred_check
          %p350 = pneg %p76
        $region54: #{transformer_forward.20} parent=47 // pred_check_branch
          %352 = sbr.rel (%p350) target = $region56
        $region55: #{transformer_forward.20} parent=47 // pred_region
          %353 = dma.done %s347, 16
        $region56: #{transformer_forward.20} parent=47 // pred_fallthru
          _
        %s354 = sand.u32 %s29, 1
        %s355 = scalar_lea.sflag [#allocation6], %s354
        %s356 = sand.u32 %s89, 1
        %s357 = smul.addr %s356, 8
        %s358 = scalar_lea.vmem [#allocation7], %s357
        // Predicated region
        $region57: #{transformer_forward.20} parent=47 // pred_check
          %p359 = pneg %p102
        $region58: #{transformer_forward.20} parent=47 // pred_check_branch
          %361 = sbr.rel (%p359) target = $region60
        $region59: #{transformer_forward.20} parent=47 // pred_region
          %362 = dma.done %s355, 128
        $region60: #{transformer_forward.20} parent=47 // pred_fallthru
          _
        // Predicated region
        $region61: #{transformer_forward.20} parent=47 // pred_check
          %p363 = pneg %p123
        $region62: #{transformer_forward.20} parent=47 // pred_check_branch
          %365 = sbr.rel (%p363) target = $region64
        $region63: #{transformer_forward.20} parent=47 // pred_region
          %366 = dma.done [#allocation9], 256
        $region64: #{transformer_forward.20} parent=47 // pred_fallthru
          _
        // Predicated region
        $region65: #{transformer_forward.20} parent=47 // pred_check
          %p367 = pneg %p144
        $region66: #{transformer_forward.20} parent=47 // pred_check_branch
          %369 = sbr.rel (%p367) target = $region68
        $region67: #{transformer_forward.20} parent=47 // pred_region
          %370 = dma.done [#allocation9], 16
        $region68: #{transformer_forward.20} parent=47 // pred_fallthru
          _
        // Predicated region
        $region69: #{transformer_forward.20} parent=47 // pred_check
          %p371 = pneg %p165
        $region70: #{transformer_forward.20} parent=47 // pred_check_branch
          %373 = sbr.rel (%p371) target = $region72
        $region71: #{transformer_forward.20} parent=47 // pred_region
          %374 = dma.done [#allocation12], 16
        $region72: #{transformer_forward.20} parent=47 // pred_fallthru
          _
        // Predicated region
        $region73: #{transformer_forward.20} parent=47 // pred_check
          %p375 = pneg %p186
        $region74: #{transformer_forward.20} parent=47 // pred_check_branch
          %377 = sbr.rel (%p375) target = $region76
        $region75: #{transformer_forward.20} parent=47 // pred_region
          %378 = dma.done [#allocation12], 16
        $region76: #{transformer_forward.20} parent=47 // pred_fallthru
          _
        %s379 = sand.u32 %s37, 1
        %s380 = scalar_lea.sflag [#allocation3], %s379
        %s381 = sand.u32 %s37, 1
        %s382 = smul.addr %s381, 4
        %s383 = scalar_lea.vmem [#allocation2], %s382
        %p384 = pneg %p50
        %p385 = pneg %p47
        %s386 = sand.u32 %s29, 1
        %s387 = scalar_lea.sflag [#allocation6], %s386
        %s388 = sand.u32 %s63, 1
        %s389 = scalar_lea.vmem [#allocation5], %s388
        %p390 = pneg %p76
        %p391 = pneg %p73
        %s392 = sand.u32 %s29, 1
        %s393 = scalar_lea.sflag [#allocation6], %s392
        %s394 = sand.u32 %s89, 1
        %s395 = smul.addr %s394, 8
        %s396 = scalar_lea.vmem [#allocation7], %s395
        %p397 = pneg %p102
        %p398 = pneg %p99
        %p399 = pneg %p123
        %p400 = pneg %p120
        %p401 = pneg %p144
        %p402 = pneg %p141
        %p403 = pneg %p165
        %p404 = pneg %p162
        %p405 = pneg %p186
        %p406 = pneg %p183
        %p407 = pneg %p212
        %p408 = pneg %p209
        %s409 = sand.u32 %s199, 1
        %s410 = scalar_lea.sflag [#allocation4], %s409
        %s411 = sand.u32 %s199, 1
        %s412 = smul.addr %s411, 8
        %s413 = scalar_lea.vmem [#allocation14], %s412
        %v415 = vld [vmem:[%s341] sm:$0xf]
        %v416 = vld [vmem:[%s349] sm:$0x1]
        %v417 = vld [vmem:[#allocation8] sm:$0xf]
        %v418 = vld [vmem:[#allocation8 + $0x4] sm:$0xf]
        %v419 = vld [vmem:[#allocation8 + $0x8] sm:$0xf]
        %v420 = vld [vmem:[#allocation8 + $0xc] sm:$0xf]
        %v421 = vld [vmem:[#allocation10] sm:$0x1]
        %v422 = vld [vmem:[%s358] sm:$0xff]
        %v423 = vld [vmem:[#allocation11] sm:$0x1]
        %v424 = vld [vmem:[#allocation13] sm:$0x1]
        %v426 = vunpack.c.l.b16 %v415
        %v427 = vpack.c.b16 %v426, %v426
        %428 = vrot.lane.b32.xlu0 %v427, 96
        %v429 = vpop.permute.xlu0 %428
        %vm430 = vcmask 64512
        %v432 = vsel %vm430, %v415, 0
        %v435 = vsel %vm430, %v429, 0
        %437 = vmatprep.subr.bf16.mxu0 0
        %438 = vmatpush1.bf16.xpose.msra.mxu0 %v435
        %439 = vmatprep.subr.bf16.mxu0 0
        %440 = vmatpush1.bf16.xpose.msra.mxu0 0
        %441 = vmatprep.subr.bf16.mxu0 0
        %442 = vmatpush1.bf16.xpose.msra.mxu0 0
        %443 = vmatprep.subr.bf16.mxu0 0
        %444 = vmatpush1.bf16.xpose.msra.mxu0 0
        %445 = vmatprep.subr.bf16.mxu0 0
        %446 = vmatpush1.bf16.xpose.msra.mxu0 0
        %447 = vmatprep.subr.bf16.mxu0 0
        %448 = vmatpush1.bf16.xpose.msra.mxu0 0
        %449 = vmatprep.subr.bf16.mxu0 0
        %450 = vmatpush1.bf16.xpose.msra.mxu0 0
        %451 = vmatprep.subr.bf16.mxu0 0
        %452 = vmatpush1.bf16.xpose.msra.mxu0 0
        %453 = vmatprep.subr.bf16.mxu0 0
        %454 = vmatpush1.bf16.xpose.msra.mxu0 0
        %455 = vmatprep.subr.bf16.mxu0 0
        %456 = vmatpush1.bf16.xpose.msra.mxu0 0
        %457 = vmatprep.subr.bf16.mxu0 0
        %458 = vmatpush1.bf16.xpose.msra.mxu0 0
        %459 = vmatprep.subr.bf16.mxu0 0
        %460 = vmatpush1.bf16.xpose.msra.mxu0 0
        %461 = vmatprep.subr.bf16.mxu0 0
        %462 = vmatpush1.bf16.xpose.msra.mxu0 0
        %463 = vmatprep.subr.bf16.mxu0 0
        %464 = vmatpush1.bf16.xpose.msra.mxu0 0
        %465 = vmatprep.subr.bf16.mxu0 0
        %466 = vmatpush1.bf16.xpose.msra.mxu0 0
        %467 = vmatprep.subr.bf16.mxu0 0
        %468 = vmatpush1.bf16.xpose.msra.mxu0 0
        %469 = vmatprep.mubr.bf16.mxu0 0
        %470 = vmatmul.mubr.bf16.gmra.mrb[0].mxu0 %v432
        %v471 = vpop.f32.mrb[0].mxu0
        %v472 = vadd.f32 0.0, %v471
        %v473 = vpop.f32.mrb[0].mxu0
        %v474 = vpop.f32.mrb[0].mxu0
        %v475 = vpop.f32.mrb[0].mxu0
        %476 = vdwg.mxu0
        %v477 = vmul.f32 %v472, 0.35355338
        %v479 = vlaneseq
        %v480 = vshrl.u32 %v479, 7
        %v481 = vsub.s32 0, %v480
        %v482 = vrot.slane %v416, %v481
        %v484 = vadd.f32 %v477, %v482
        %v485 = vsel %vm430, %v484, -inf
        %486 = vmax.xlane.f32.xlu0 %v485
        %v487 = vpop.xlane.xlu0 %486
        %v488 = vsub.f32 %v484, %v487
        %v489 = vmul.f32 %v488, 1.442695
        %v490 = vpow.pop %v489
        %v491 = vsel %vm430, %v490, 0.0
        %492 = vadd.xlane.f32.xlu0 %v491
        %v493 = vpop.xlane.xlu0 %492
        %v494 = vrcp.pop %v493
        %v495 = vmul.f32 %v490, %v494
        %v496 = vpack.c.bf16 %v495, %v495
        %497 = vrot.lane.b32.xlu0 %v427, 64
        %v498 = vpop.permute.xlu0 %497
        %v500 = vsel %vm430, %v496, 0
        %vm502 = vcmask 1043456
        %v504 = vsel %vm502, %v498, 0
        %506 = vmatprep.subr.bf16.mxu0 0
        %507 = vmatpush1.bf16.msra.mxu0 %v504
        %508 = vmatprep.subr.bf16.mxu0 0
        %509 = vmatpush1.bf16.msra.mxu0 0
        %510 = vmatprep.subr.bf16.mxu0 0
        %511 = vmatpush1.bf16.msra.mxu0 0
        %512 = vmatprep.subr.bf16.mxu0 0
        %513 = vmatpush1.bf16.msra.mxu0 0
        %514 = vmatprep.subr.bf16.mxu0 0
        %515 = vmatpush1.bf16.msra.mxu0 0
        %516 = vmatprep.subr.bf16.mxu0 0
        %517 = vmatpush1.bf16.msra.mxu0 0
        %518 = vmatprep.subr.bf16.mxu0 0
        %519 = vmatpush1.bf16.msra.mxu0 0
        %520 = vmatprep.subr.bf16.mxu0 0
        %521 = vmatpush1.bf16.msra.mxu0 0
        %522 = vmatprep.subr.bf16.mxu0 0
        %523 = vmatpush1.bf16.msra.mxu0 0
        %524 = vmatprep.subr.bf16.mxu0 0
        %525 = vmatpush1.bf16.msra.mxu0 0
        %526 = vmatprep.subr.bf16.mxu0 0
        %527 = vmatpush1.bf16.msra.mxu0 0
        %528 = vmatprep.subr.bf16.mxu0 0
        %529 = vmatpush1.bf16.msra.mxu0 0
        %530 = vmatprep.subr.bf16.mxu0 0
        %531 = vmatpush1.bf16.msra.mxu0 0
        %532 = vmatprep.subr.bf16.mxu0 0
        %533 = vmatpush1.bf16.msra.mxu0 0
        %534 = vmatprep.subr.bf16.mxu0 0
        %535 = vmatpush1.bf16.msra.mxu0 0
        %536 = vmatprep.subr.bf16.mxu0 0
        %537 = vmatpush1.bf16.msra.mxu0 0
        %538 = vmatprep.mubr.bf16.mxu0 0
        %539 = vmatmul.mubr.bf16.gmra.mrb[0].mxu0 %v500
        %v540 = vpop.f32.mrb[0].mxu0
        %v541 = vadd.f32 0.0, %v540
        %v542 = vpop.f32.mrb[0].mxu0
        %v543 = vpop.f32.mrb[0].mxu0
        %v544 = vpop.f32.mrb[0].mxu0
        %545 = vdwg.mxu0
        %v546 = vpack.c.bf16 %v541, %v541
        %547 = vrot.lane.b32.xlu0 %v427, 120
        %v548 = vpop.permute.xlu0 %547
        %549 = vrot.lane.b32.xlu0 %v427, 88
        %v550 = vpop.permute.xlu0 %549
        %v552 = vsel %vm430, %v548, 0
        %v555 = vsel %vm430, %v550, 0
        %557 = vmatprep.subr.bf16.mxu0 0
        %558 = vmatpush1.bf16.xpose.msra.mxu0 %v555
        %559 = vmatprep.subr.bf16.mxu0 0
        %560 = vmatpush1.bf16.xpose.msra.mxu0 0
        %561 = vmatprep.subr.bf16.mxu0 0
        %562 = vmatpush1.bf16.xpose.msra.mxu0 0
        %563 = vmatprep.subr.bf16.mxu0 0
        %564 = vmatpush1.bf16.xpose.msra.mxu0 0
        %565 = vmatprep.subr.bf16.mxu0 0
        %566 = vmatpush1.bf16.xpose.msra.mxu0 0
        %567 = vmatprep.subr.bf16.mxu0 0
        %568 = vmatpush1.bf16.xpose.msra.mxu0 0
        %569 = vmatprep.subr.bf16.mxu0 0
        %570 = vmatpush1.bf16.xpose.msra.mxu0 0
        %571 = vmatprep.subr.bf16.mxu0 0
        %572 = vmatpush1.bf16.xpose.msra.mxu0 0
        %573 = vmatprep.subr.bf16.mxu0 0
        %574 = vmatpush1.bf16.xpose.msra.mxu0 0
        %575 = vmatprep.subr.bf16.mxu0 0
        %576 = vmatpush1.bf16.xpose.msra.mxu0 0
        %577 = vmatprep.subr.bf16.mxu0 0
        %578 = vmatpush1.bf16.xpose.msra.mxu0 0
        %579 = vmatprep.subr.bf16.mxu0 0
        %580 = vmatpush1.bf16.xpose.msra.mxu0 0
        %581 = vmatprep.subr.bf16.mxu0 0
        %582 = vmatpush1.bf16.xpose.msra.mxu0 0
        %583 = vmatprep.subr.bf16.mxu0 0
        %584 = vmatpush1.bf16.xpose.msra.mxu0 0
        %585 = vmatprep.subr.bf16.mxu0 0
        %586 = vmatpush1.bf16.xpose.msra.mxu0 0
        %587 = vmatprep.subr.bf16.mxu0 0
        %588 = vmatpush1.bf16.xpose.msra.mxu0 0
        %589 = vmatprep.mubr.bf16.mxu0 0
        %590 = vmatmul.mubr.bf16.gmra.mrb[0].mxu0 %v552
        %v591 = vpop.f32.mrb[0].mxu0
        %v592 = vadd.f32 0.0, %v591
        %v593 = vpop.f32.mrb[0].mxu0
        %v594 = vpop.f32.mrb[0].mxu0
        %v595 = vpop.f32.mrb[0].mxu0
        %596 = vdwg.mxu0
        %v597 = vmul.f32 %v592, 0.35355338
        %v598 = vadd.f32 %v597, %v482
        %v599 = vsel %vm430, %v598, -inf
        %600 = vmax.xlane.f32.xlu0 %v599
        %v601 = vpop.xlane.xlu0 %600
        %v602 = vsub.f32 %v598, %v601
        %v603 = vmul.f32 %v602, 1.442695
        %v604 = vpow.pop %v603
        %v605 = vsel %vm430, %v604, 0.0
        %606 = vadd.xlane.f32.xlu0 %v605
        %v607 = vpop.xlane.xlu0 %606
        %v608 = vrcp.pop %v607
        %v609 = vmul.f32 %v604, %v608
        %v610 = vpack.c.bf16 %v609, %v609
        %611 = vrot.lane.b32.xlu0 %v427, 56
        %v612 = vpop.permute.xlu0 %611
        %v614 = vsel %vm430, %v610, 0
        %v617 = vsel %vm502, %v612, 0
        %619 = vmatprep.subr.bf16.mxu0 0
        %620 = vmatpush1.bf16.msra.mxu0 %v617
        %621 = vmatprep.subr.bf16.mxu0 0
        %622 = vmatpush1.bf16.msra.mxu0 0
        %623 = vmatprep.subr.bf16.mxu0 0
        %624 = vmatpush1.bf16.msra.mxu0 0
        %625 = vmatprep.subr.bf16.mxu0 0
        %626 = vmatpush1.bf16.msra.mxu0 0
        %627 = vmatprep.subr.bf16.mxu0 0
        %628 = vmatpush1.bf16.msra.mxu0 0
        %629 = vmatprep.subr.bf16.mxu0 0
        %630 = vmatpush1.bf16.msra.mxu0 0
        %631 = vmatprep.subr.bf16.mxu0 0
        %632 = vmatpush1.bf16.msra.mxu0 0
        %633 = vmatprep.subr.bf16.mxu0 0
        %634 = vmatpush1.bf16.msra.mxu0 0
        %635 = vmatprep.subr.bf16.mxu0 0
        %636 = vmatpush1.bf16.msra.mxu0 0
        %637 = vmatprep.subr.bf16.mxu0 0
        %638 = vmatpush1.bf16.msra.mxu0 0
        %639 = vmatprep.subr.bf16.mxu0 0
        %640 = vmatpush1.bf16.msra.mxu0 0
        %641 = vmatprep.subr.bf16.mxu0 0
        %642 = vmatpush1.bf16.msra.mxu0 0
        %643 = vmatprep.subr.bf16.mxu0 0
        %644 = vmatpush1.bf16.msra.mxu0 0
        %645 = vmatprep.subr.bf16.mxu0 0
        %646 = vmatpush1.bf16.msra.mxu0 0
        %647 = vmatprep.subr.bf16.mxu0 0
        %648 = vmatpush1.bf16.msra.mxu0 0
        %649 = vmatprep.subr.bf16.mxu0 0
        %650 = vmatpush1.bf16.msra.mxu0 0
        %651 = vmatprep.mubr.bf16.mxu0 0
        %652 = vmatmul.mubr.bf16.gmra.mrb[0].mxu0 %v614
        %v653 = vpop.f32.mrb[0].mxu0
        %v654 = vadd.f32 0.0, %v653
        %v655 = vpop.f32.mrb[0].mxu0
        %v656 = vpop.f32.mrb[0].mxu0
        %v657 = vpop.f32.mrb[0].mxu0
        %658 = vdwg.mxu0
        %v659 = vpack.c.bf16 %v654, %v654
        %v661 = vsel %vm430, %v659, 0
        %v664 = vsel %vm502, %v418, 0
        %666 = vmatprep.subr.bf16.mxu0 0
        %667 = vmatpush1.bf16.msra.mxu0 %v664
        %668 = vmatprep.subr.bf16.mxu0 0
        %669 = vmatpush1.bf16.msra.mxu0 0
        %670 = vmatprep.subr.bf16.mxu0 0
        %671 = vmatpush1.bf16.msra.mxu0 0
        %672 = vmatprep.subr.bf16.mxu0 0
        %673 = vmatpush1.bf16.msra.mxu0 0
        %674 = vmatprep.subr.bf16.mxu0 0
        %675 = vmatpush1.bf16.msra.mxu0 0
        %676 = vmatprep.subr.bf16.mxu0 0
        %677 = vmatpush1.bf16.msra.mxu0 0
        %678 = vmatprep.subr.bf16.mxu0 0
        %679 = vmatpush1.bf16.msra.mxu0 0
        %680 = vmatprep.subr.bf16.mxu0 0
        %681 = vmatpush1.bf16.msra.mxu0 0
        %682 = vmatprep.subr.bf16.mxu0 0
        %683 = vmatpush1.bf16.msra.mxu0 0
        %684 = vmatprep.subr.bf16.mxu0 0
        %685 = vmatpush1.bf16.msra.mxu0 0
        %686 = vmatprep.subr.bf16.mxu0 0
        %687 = vmatpush1.bf16.msra.mxu0 0
        %688 = vmatprep.subr.bf16.mxu0 0
        %689 = vmatpush1.bf16.msra.mxu0 0
        %690 = vmatprep.subr.bf16.mxu0 0
        %691 = vmatpush1.bf16.msra.mxu0 0
        %692 = vmatprep.subr.bf16.mxu0 0
        %693 = vmatpush1.bf16.msra.mxu0 0
        %694 = vmatprep.subr.bf16.mxu0 0
        %695 = vmatpush1.bf16.msra.mxu0 0
        %696 = vmatprep.subr.bf16.mxu0 0
        %697 = vmatpush1.bf16.msra.mxu0 0
        %698 = vmatprep.mubr.bf16.mxu0 0
        %699 = vmatmul.mubr.bf16.gmra.mrb[0].mxu0 %v661
        %v700 = vpop.f32.mrb[0].mxu0
        %v701 = vadd.f32 0.0, %v700
        %v702 = vpop.f32.mrb[0].mxu0
        %v703 = vpop.f32.mrb[0].mxu0
        %v704 = vpop.f32.mrb[0].mxu0
        %705 = vdwg.mxu0
        %v707 = vsel %vm430, %v546, 0
        %v710 = vsel %vm502, %v417, 0
        %712 = vmatprep.subr.bf16.mxu0 0
        %713 = vmatpush1.bf16.msra.mxu0 %v710
        %714 = vmatprep.subr.bf16.mxu0 0
        %715 = vmatpush1.bf16.msra.mxu0 0
        %716 = vmatprep.subr.bf16.mxu0 0
        %717 = vmatpush1.bf16.msra.mxu0 0
        %718 = vmatprep.subr.bf16.mxu0 0
        %719 = vmatpush1.bf16.msra.mxu0 0
        %720 = vmatprep.subr.bf16.mxu0 0
        %721 = vmatpush1.bf16.msra.mxu0 0
        %722 = vmatprep.subr.bf16.mxu0 0
        %723 = vmatpush1.bf16.msra.mxu0 0
        %724 = vmatprep.subr.bf16.mxu0 0
        %725 = vmatpush1.bf16.msra.mxu0 0
        %726 = vmatprep.subr.bf16.mxu0 0
        %727 = vmatpush1.bf16.msra.mxu0 0
        %728 = vmatprep.subr.bf16.mxu0 0
        %729 = vmatpush1.bf16.msra.mxu0 0
        %730 = vmatprep.subr.bf16.mxu0 0
        %731 = vmatpush1.bf16.msra.mxu0 0
        %732 = vmatprep.subr.bf16.mxu0 0
        %733 = vmatpush1.bf16.msra.mxu0 0
        %734 = vmatprep.subr.bf16.mxu0 0
        %735 = vmatpush1.bf16.msra.mxu0 0
        %736 = vmatprep.subr.bf16.mxu0 0
        %737 = vmatpush1.bf16.msra.mxu0 0
        %738 = vmatprep.subr.bf16.mxu0 0
        %739 = vmatpush1.bf16.msra.mxu0 0
        %740 = vmatprep.subr.bf16.mxu0 0
        %741 = vmatpush1.bf16.msra.mxu0 0
        %742 = vmatprep.subr.bf16.mxu0 0
        %743 = vmatpush1.bf16.msra.mxu0 0
        %744 = vmatprep.mubr.bf16.mxu0 0
        %745 = vmatmul.mubr.bf16.gmra.mrb[0].mxu0 %v707
        %v746 = vpop.f32.mrb[0].mxu0
        %v747 = vadd.f32 %v701, %v746
        %v748 = vpop.f32.mrb[0].mxu0
        %v749 = vpop.f32.mrb[0].mxu0
        %v750 = vpop.f32.mrb[0].mxu0
        %751 = vdwg.mxu0
        %752 = vrot.lane.b32.xlu0 %v427, 112
        %v753 = vpop.permute.xlu0 %752
        %754 = vrot.lane.b32.xlu0 %v427, 80
        %v755 = vpop.permute.xlu0 %754
        %v757 = vsel %vm430, %v753, 0
        %v760 = vsel %vm430, %v755, 0
        %762 = vmatprep.subr.bf16.mxu0 0
        %763 = vmatpush1.bf16.xpose.msra.mxu0 %v760
        %764 = vmatprep.subr.bf16.mxu0 0
        %765 = vmatpush1.bf16.xpose.msra.mxu0 0
        %766 = vmatprep.subr.bf16.mxu0 0
        %767 = vmatpush1.bf16.xpose.msra.mxu0 0
        %768 = vmatprep.subr.bf16.mxu0 0
        %769 = vmatpush1.bf16.xpose.msra.mxu0 0
        %770 = vmatprep.subr.bf16.mxu0 0
        %771 = vmatpush1.bf16.xpose.msra.mxu0 0
        %772 = vmatprep.subr.bf16.mxu0 0
        %773 = vmatpush1.bf16.xpose.msra.mxu0 0
        %774 = vmatprep.subr.bf16.mxu0 0
        %775 = vmatpush1.bf16.xpose.msra.mxu0 0
        %776 = vmatprep.subr.bf16.mxu0 0
        %777 = vmatpush1.bf16.xpose.msra.mxu0 0
        %778 = vmatprep.subr.bf16.mxu0 0
        %779 = vmatpush1.bf16.xpose.msra.mxu0 0
        %780 = vmatprep.subr.bf16.mxu0 0
        %781 = vmatpush1.bf16.xpose.msra.mxu0 0
        %782 = vmatprep.subr.bf16.mxu0 0
        %783 = vmatpush1.bf16.xpose.msra.mxu0 0
        %784 = vmatprep.subr.bf16.mxu0 0
        %785 = vmatpush1.bf16.xpose.msra.mxu0 0
        %786 = vmatprep.subr.bf16.mxu0 0
        %787 = vmatpush1.bf16.xpose.msra.mxu0 0
        %788 = vmatprep.subr.bf16.mxu0 0
        %789 = vmatpush1.bf16.xpose.msra.mxu0 0
        %790 = vmatprep.subr.bf16.mxu0 0
        %791 = vmatpush1.bf16.xpose.msra.mxu0 0
        %792 = vmatprep.subr.bf16.mxu0 0
        %793 = vmatpush1.bf16.xpose.msra.mxu0 0
        %794 = vmatprep.mubr.bf16.mxu0 0
        %795 = vmatmul.mubr.bf16.gmra.mrb[0].mxu0 %v757
        %v796 = vpop.f32.mrb[0].mxu0
        %v797 = vadd.f32 0.0, %v796
        %v798 = vpop.f32.mrb[0].mxu0
        %v799 = vpop.f32.mrb[0].mxu0
        %v800 = vpop.f32.mrb[0].mxu0
        %801 = vdwg.mxu0
        %v802 = vmul.f32 %v797, 0.35355338
        %v803 = vadd.f32 %v802, %v482
        %v804 = vsel %vm430, %v803, -inf
        %805 = vmax.xlane.f32.xlu0 %v804
        %v806 = vpop.xlane.xlu0 %805
        %v807 = vsub.f32 %v803, %v806
        %v808 = vmul.f32 %v807, 1.442695
        %v809 = vpow.pop %v808
        %v810 = vsel %vm430, %v809, 0.0
        %811 = vadd.xlane.f32.xlu0 %v810
        %v812 = vpop.xlane.xlu0 %811
        %v813 = vrcp.pop %v812
        %v814 = vmul.f32 %v809, %v813
        %v815 = vpack.c.bf16 %v814, %v814
        %816 = vrot.lane.b32.xlu0 %v427, 48
        %v817 = vpop.permute.xlu0 %816
        %v819 = vsel %vm430, %v815, 0
        %v822 = vsel %vm502, %v817, 0
        %824 = vmatprep.subr.bf16.mxu0 0
        %825 = vmatpush1.bf16.msra.mxu0 %v822
        %826 = vmatprep.subr.bf16.mxu0 0
        %827 = vmatpush1.bf16.msra.mxu0 0
        %828 = vmatprep.subr.bf16.mxu0 0
        %829 = vmatpush1.bf16.msra.mxu0 0
        %830 = vmatprep.subr.bf16.mxu0 0
        %831 = vmatpush1.bf16.msra.mxu0 0
        %832 = vmatprep.subr.bf16.mxu0 0
        %833 = vmatpush1.bf16.msra.mxu0 0
        %834 = vmatprep.subr.bf16.mxu0 0
        %835 = vmatpush1.bf16.msra.mxu0 0
        %836 = vmatprep.subr.bf16.mxu0 0
        %837 = vmatpush1.bf16.msra.mxu0 0
        %838 = vmatprep.subr.bf16.mxu0 0
        %839 = vmatpush1.bf16.msra.mxu0 0
        %840 = vmatprep.subr.bf16.mxu0 0
        %841 = vmatpush1.bf16.msra.mxu0 0
        %842 = vmatprep.subr.bf16.mxu0 0
        %843 = vmatpush1.bf16.msra.mxu0 0
        %844 = vmatprep.subr.bf16.mxu0 0
        %845 = vmatpush1.bf16.msra.mxu0 0
        %846 = vmatprep.subr.bf16.mxu0 0
        %847 = vmatpush1.bf16.msra.mxu0 0
        %848 = vmatprep.subr.bf16.mxu0 0
        %849 = vmatpush1.bf16.msra.mxu0 0
        %850 = vmatprep.subr.bf16.mxu0 0
        %851 = vmatpush1.bf16.msra.mxu0 0
        %852 = vmatprep.subr.bf16.mxu0 0
        %853 = vmatpush1.bf16.msra.mxu0 0
        %854 = vmatprep.subr.bf16.mxu0 0
        %855 = vmatpush1.bf16.msra.mxu0 0
        %856 = vmatprep.mubr.bf16.mxu0 0
        %857 = vmatmul.mubr.bf16.gmra.mrb[0].mxu0 %v819
        %v858 = vpop.f32.mrb[0].mxu0
        %v859 = vadd.f32 0.0, %v858
        %v860 = vpop.f32.mrb[0].mxu0
        %v861 = vpop.f32.mrb[0].mxu0
        %v862 = vpop.f32.mrb[0].mxu0
        %863 = vdwg.mxu0
        %v864 = vpack.c.bf16 %v859, %v859
        %v866 = vsel %vm430, %v864, 0
        %v869 = vsel %vm502, %v419, 0
        %871 = vmatprep.subr.bf16.mxu0 0
        %872 = vmatpush1.bf16.msra.mxu0 %v869
        %873 = vmatprep.subr.bf16.mxu0 0
        %874 = vmatpush1.bf16.msra.mxu0 0
        %875 = vmatprep.subr.bf16.mxu0 0
        %876 = vmatpush1.bf16.msra.mxu0 0
        %877 = vmatprep.subr.bf16.mxu0 0
        %878 = vmatpush1.bf16.msra.mxu0 0
        %879 = vmatprep.subr.bf16.mxu0 0
        %880 = vmatpush1.bf16.msra.mxu0 0
        %881 = vmatprep.subr.bf16.mxu0 0
        %882 = vmatpush1.bf16.msra.mxu0 0
        %883 = vmatprep.subr.bf16.mxu0 0
        %884 = vmatpush1.bf16.msra.mxu0 0
        %885 = vmatprep.subr.bf16.mxu0 0
        %886 = vmatpush1.bf16.msra.mxu0 0
        %887 = vmatprep.subr.bf16.mxu0 0
        %888 = vmatpush1.bf16.msra.mxu0 0
        %889 = vmatprep.subr.bf16.mxu0 0
        %890 = vmatpush1.bf16.msra.mxu0 0
        %891 = vmatprep.subr.bf16.mxu0 0
        %892 = vmatpush1.bf16.msra.mxu0 0
        %893 = vmatprep.subr.bf16.mxu0 0
        %894 = vmatpush1.bf16.msra.mxu0 0
        %895 = vmatprep.subr.bf16.mxu0 0
        %896 = vmatpush1.bf16.msra.mxu0 0
        %897 = vmatprep.subr.bf16.mxu0 0
        %898 = vmatpush1.bf16.msra.mxu0 0
        %899 = vmatprep.subr.bf16.mxu0 0
        %900 = vmatpush1.bf16.msra.mxu0 0
        %901 = vmatprep.subr.bf16.mxu0 0
        %902 = vmatpush1.bf16.msra.mxu0 0
        %903 = vmatprep.mubr.bf16.mxu0 0
        %904 = vmatmul.mubr.bf16.gmra.mrb[0].mxu0 %v866
        %v905 = vpop.f32.mrb[0].mxu0
        %v906 = vadd.f32 0.0, %v905
        %v907 = vpop.f32.mrb[0].mxu0
        %v908 = vpop.f32.mrb[0].mxu0
        %v909 = vpop.f32.mrb[0].mxu0
        %910 = vdwg.mxu0
        %v911 = vadd.f32 %v747, %v906
        %912 = vrot.lane.b32.xlu0 %v427, 104
        %v913 = vpop.permute.xlu0 %912
        %914 = vrot.lane.b32.xlu0 %v427, 72
        %v915 = vpop.permute.xlu0 %914
        %v917 = vsel %vm430, %v913, 0
        %v920 = vsel %vm430, %v915, 0
        %922 = vmatprep.subr.bf16.mxu0 0
        %923 = vmatpush1.bf16.xpose.msra.mxu0 %v920
        %924 = vmatprep.subr.bf16.mxu0 0
        %925 = vmatpush1.bf16.xpose.msra.mxu0 0
        %926 = vmatprep.subr.bf16.mxu0 0
        %927 = vmatpush1.bf16.xpose.msra.mxu0 0
        %928 = vmatprep.subr.bf16.mxu0 0
        %929 = vmatpush1.bf16.xpose.msra.mxu0 0
        %930 = vmatprep.subr.bf16.mxu0 0
        %931 = vmatpush1.bf16.xpose.msra.mxu0 0
        %932 = vmatprep.subr.bf16.mxu0 0
        %933 = vmatpush1.bf16.xpose.msra.mxu0 0
        %934 = vmatprep.subr.bf16.mxu0 0
        %935 = vmatpush1.bf16.xpose.msra.mxu0 0
        %936 = vmatprep.subr.bf16.mxu0 0
        %937 = vmatpush1.bf16.xpose.msra.mxu0 0
        %938 = vmatprep.subr.bf16.mxu0 0
        %939 = vmatpush1.bf16.xpose.msra.mxu0 0
        %940 = vmatprep.subr.bf16.mxu0 0
        %941 = vmatpush1.bf16.xpose.msra.mxu0 0
        %942 = vmatprep.subr.bf16.mxu0 0
        %943 = vmatpush1.bf16.xpose.msra.mxu0 0
        %944 = vmatprep.subr.bf16.mxu0 0
        %945 = vmatpush1.bf16.xpose.msra.mxu0 0
        %946 = vmatprep.subr.bf16.mxu0 0
        %947 = vmatpush1.bf16.xpose.msra.mxu0 0
        %948 = vmatprep.subr.bf16.mxu0 0
        %949 = vmatpush1.bf16.xpose.msra.mxu0 0
        %950 = vmatprep.subr.bf16.mxu0 0
        %951 = vmatpush1.bf16.xpose.msra.mxu0 0
        %952 = vmatprep.subr.bf16.mxu0 0
        %953 = vmatpush1.bf16.xpose.msra.mxu0 0
        %954 = vmatprep.mubr.bf16.mxu0 0
        %955 = vmatmul.mubr.bf16.gmra.mrb[0].mxu0 %v917
        %v956 = vpop.f32.mrb[0].mxu0
        %v957 = vadd.f32 0.0, %v956
        %v958 = vpop.f32.mrb[0].mxu0
        %v959 = vpop.f32.mrb[0].mxu0
        %v960 = vpop.f32.mrb[0].mxu0
        %961 = vdwg.mxu0
        %v962 = vmul.f32 %v957, 0.35355338
        %v963 = vadd.f32 %v962, %v482
        %v964 = vsel %vm430, %v963, -inf
        %965 = vmax.xlane.f32.xlu0 %v964
        %v966 = vpop.xlane.xlu0 %965
        %v967 = vsub.f32 %v963, %v966
        %v968 = vmul.f32 %v967, 1.442695
        %v969 = vpow.pop %v968
        %v970 = vsel %vm430, %v969, 0.0
        %971 = vadd.xlane.f32.xlu0 %v970
        %v972 = vpop.xlane.xlu0 %971
        %v973 = vrcp.pop %v972
        %v974 = vmul.f32 %v969, %v973
        %v975 = vpack.c.bf16 %v974, %v974
        %976 = vrot.lane.b32.xlu0 %v427, 40
        %v977 = vpop.permute.xlu0 %976
        %v979 = vsel %vm430, %v975, 0
        %v982 = vsel %vm502, %v977, 0
        %984 = vmatprep.subr.bf16.mxu0 0
        %985 = vmatpush1.bf16.msra.mxu0 %v982
        %986 = vmatprep.subr.bf16.mxu0 0
        %987 = vmatpush1.bf16.msra.mxu0 0
        %988 = vmatprep.subr.bf16.mxu0 0
        %989 = vmatpush1.bf16.msra.mxu0 0
        %990 = vmatprep.subr.bf16.mxu0 0
        %991 = vmatpush1.bf16.msra.mxu0 0
        %992 = vmatprep.subr.bf16.mxu0 0
        %993 = vmatpush1.bf16.msra.mxu0 0
        %994 = vmatprep.subr.bf16.mxu0 0
        %995 = vmatpush1.bf16.msra.mxu0 0
        %996 = vmatprep.subr.bf16.mxu0 0
        %997 = vmatpush1.bf16.msra.mxu0 0
        %998 = vmatprep.subr.bf16.mxu0 0
        %999 = vmatpush1.bf16.msra.mxu0 0
        %1000 = vmatprep.subr.bf16.mxu0 0
        %1001 = vmatpush1.bf16.msra.mxu0 0
        %1002 = vmatprep.subr.bf16.mxu0 0
        %1003 = vmatpush1.bf16.msra.mxu0 0
        %1004 = vmatprep.subr.bf16.mxu0 0
        %1005 = vmatpush1.bf16.msra.mxu0 0
        %1006 = vmatprep.subr.bf16.mxu0 0
        %1007 = vmatpush1.bf16.msra.mxu0 0
        %1008 = vmatprep.subr.bf16.mxu0 0
        %1009 = vmatpush1.bf16.msra.mxu0 0
        %1010 = vmatprep.subr.bf16.mxu0 0
        %1011 = vmatpush1.bf16.msra.mxu0 0
        %1012 = vmatprep.subr.bf16.mxu0 0
        %1013 = vmatpush1.bf16.msra.mxu0 0
        %1014 = vmatprep.subr.bf16.mxu0 0
        %1015 = vmatpush1.bf16.msra.mxu0 0
        %1016 = vmatprep.mubr.bf16.mxu0 0
        %1017 = vmatmul.mubr.bf16.gmra.mrb[0].mxu0 %v979
        %v1018 = vpop.f32.mrb[0].mxu0
        %v1019 = vadd.f32 0.0, %v1018
        %v1020 = vpop.f32.mrb[0].mxu0
        %v1021 = vpop.f32.mrb[0].mxu0
        %v1022 = vpop.f32.mrb[0].mxu0
        %1023 = vdwg.mxu0
        %v1024 = vpack.c.bf16 %v1019, %v1019
        %v1026 = vsel %vm430, %v1024, 0
        %v1029 = vsel %vm502, %v420, 0
        %1031 = vmatprep.subr.bf16.mxu0 0
        %1032 = vmatpush1.bf16.msra.mxu0 %v1029
        %1033 = vmatprep.subr.bf16.mxu0 0
        %1034 = vmatpush1.bf16.msra.mxu0 0
        %1035 = vmatprep.subr.bf16.mxu0 0
        %1036 = vmatpush1.bf16.msra.mxu0 0
        %1037 = vmatprep.subr.bf16.mxu0 0
        %1038 = vmatpush1.bf16.msra.mxu0 0
        %1039 = vmatprep.subr.bf16.mxu0 0
        %1040 = vmatpush1.bf16.msra.mxu0 0
        %1041 = vmatprep.subr.bf16.mxu0 0
        %1042 = vmatpush1.bf16.msra.mxu0 0
        %1043 = vmatprep.subr.bf16.mxu0 0
        %1044 = vmatpush1.bf16.msra.mxu0 0
        %1045 = vmatprep.subr.bf16.mxu0 0
        %1046 = vmatpush1.bf16.msra.mxu0 0
        %1047 = vmatprep.subr.bf16.mxu0 0
        %1048 = vmatpush1.bf16.msra.mxu0 0
        %1049 = vmatprep.subr.bf16.mxu0 0
        %1050 = vmatpush1.bf16.msra.mxu0 0
        %1051 = vmatprep.subr.bf16.mxu0 0
        %1052 = vmatpush1.bf16.msra.mxu0 0
        %1053 = vmatprep.subr.bf16.mxu0 0
        %1054 = vmatpush1.bf16.msra.mxu0 0
        %1055 = vmatprep.subr.bf16.mxu0 0
        %1056 = vmatpush1.bf16.msra.mxu0 0
        %1057 = vmatprep.subr.bf16.mxu0 0
        %1058 = vmatpush1.bf16.msra.mxu0 0
        %1059 = vmatprep.subr.bf16.mxu0 0
        %1060 = vmatpush1.bf16.msra.mxu0 0
        %1061 = vmatprep.subr.bf16.mxu0 0
        %1062 = vmatpush1.bf16.msra.mxu0 0
        %1063 = vmatprep.mubr.bf16.mxu0 0
        %1064 = vmatmul.mubr.bf16.gmra.mrb[0].mxu0 %v1026
        %v1065 = vpop.f32.mrb[0].mxu0
        %v1066 = vadd.f32 0.0, %v1065
        %v1067 = vpop.f32.mrb[0].mxu0
        %v1068 = vpop.f32.mrb[0].mxu0
        %v1069 = vpop.f32.mrb[0].mxu0
        %1070 = vdwg.mxu0
        %v1071 = vadd.f32 %v911, %v1066
        %v1073 = vlaneseq
        %v1074 = vshrl.u32 %v1073, 7
        %v1075 = vsub.s32 0, %v1074
        %v1076 = vrot.slane %v421, %v1075
        %v1078 = vadd.f32 %v1071, %v1076
        %v1079 = vadd.f32 %v1078, %v422
        %vm1080 = vcmask 261120
        %v1081 = vsel %vm1080, %v1079, 0.0
        %1082 = vadd.xlane.f32.xlu0 %v1081
        %v1083 = vpop.xlane.xlu0 %1082
        %v1084 = vrcp.pop 32.0
        %v1085 = vmul.f32 %v1083, %v1084
        %v1086 = vsub.f32 %v1079, %v1085
        %v1087 = vmul.f32 %v1086, %v1086
        %v1088 = vsel %vm1080, %v1087, 0.0
        %1089 = vadd.xlane.f32.xlu0 %v1088
        %v1090 = vpop.xlane.xlu0 %1089
        %v1091 = vmul.f32 %v1090, %v1084
        %v1092 = vadd.f32 %v1091, 1e-05
        %v1093 = vrsqrt.pop %v1092
        %v1094 = vmul.f32 %v1086, %v1093
        %v1096 = vlaneseq
        %v1097 = vshrl.u32 %v1096, 7
        %v1098 = vsub.s32 0, %v1097
        %v1099 = vrot.slane %v423, %v1098
        %v1101 = vmul.f32 %v1094, %v1099
        %v1103 = vlaneseq
        %v1104 = vshrl.u32 %v1103, 7
        %v1105 = vsub.s32 0, %v1104
        %v1106 = vrot.slane %v424, %v1105
        %v1108 = vadd.f32 %v1101, %v1106
        %1109 = vst.msk [vmem:[%s413] sm:$0xff] %vm1080, %v1108
        %s1110 = sand.u32 %s199, 1
        %s1111 = scalar_lea.sflag [#allocation4], %s1110
        %s1112 = sand.u32 %s199, 1
        %s1113 = smul.addr %s1112, 8
        %s1114 = scalar_lea.vmem [#allocation14], %s1113
        // Predicated region
        $region77: #{transformer_forward.20} parent=47 // pred_check
          %p1115 = pneg %p209
        $region78: #{transformer_forward.20} parent=47 // pred_check_branch
          %1117 = sbr.rel (%p1115) target = $region80
        $region79: #{transformer_forward.20} parent=47 // pred_region
          %s1119 = ssub.s32 128, 128
          %1120 = vsyncadd %s1111, %s1119
          %s1121 = smul.addr %s29, 128
          %s1122 = scalar_lea.hbm %s7, %s1121
          %s1124 = sshll.u32 %s1114, 4
          %s1125 = int_to_ptr.vmem [resolvable:$true] %s1124
          %1127 = dma.vmem_to_hbm [thread:$0]  %s1125, 128, %s1122, %s1111
        $region80: #{transformer_forward.20} parent=47 // pred_fallthru
          _
      $region48: #{transformer_forward.20} parent=5 // pred_fallthru
        _
      %p1128 = scmp.le.s32.totalorder 2, %s24
      // Predicated region
      $region81: #{transformer_forward.20} parent=5 // pred_check
        %p1129 = pneg %p1128
      $region82: #{transformer_forward.20} parent=5 // pred_check_branch
        %1131 = sbr.rel (%p1129) target = $region84
      $region83: #{transformer_forward.20} parent=5 // pred_region
        %s1132 = ssub.s32 %s24, 2
        // Predicated region
        $region85: #{transformer_forward.20} parent=83 // pred_check
          %p1133 = pneg %p215
        $region86: #{transformer_forward.20} parent=83 // pred_check_branch
          %1135 = sbr.rel (%p1133) target = $region88
        $region87: #{transformer_forward.20} parent=83 // pred_region
          %s1136 = sand.u32 %s200, 1
          %s1137 = scalar_lea.sflag [#allocation4], %s1136
          %s1138 = sand.u32 %s200, 1
          %s1139 = smul.addr %s1138, 8
          %s1140 = scalar_lea.vmem [#allocation14], %s1139
          %1141 = dma.done %s1137, 128
        $region88: #{transformer_forward.20} parent=83 // pred_fallthru
          _
      $region84: #{transformer_forward.20} parent=5 // pred_fallthru
        _
    $region6: #{transformer_forward.20} parent=1 // loop_footer
      %s28 = sadd.s32 1, %s24
    $region7: #{transformer_forward.20} parent=1 // loop_footer_branch
      %23 = sbr.rel target = $region3
    $region8: #{transformer_forward.20} parent=1 // loop_exit
      _
    %1142 = vsyncpa [#allocation3], 1
    %s1143 = scalar_lea.sflag [#allocation3], 1
    %1144 = vsyncpa %s1143, 1
    %1145 = vsyncpa [#allocation6], 1
    %s1146 = scalar_lea.sflag [#allocation6], 1
    %1147 = vsyncpa %s1146, 1
    %1148 = vsyncpa [#allocation9], 1
    %1149 = vsyncpa [#allocation12], 1
    %1150 = vsyncpa [#allocation4], 1
    %s1151 = scalar_lea.sflag [#allocation4], 1
    %1152 = vsyncpa %s1151, 1

// kernel: transformer_forward.27
$region0: #{transformer_forward.27}
  #allocation0 [shape = 'u32[]', space=smem, size = 0x4, offset = 0x4, fixed_abs, tag = 'smem constant byte address 0x4 - core index']
  #allocation1 [shape = 'u32[144,128]{1,0:T(1,128)}', space=vmem, size = 0x12000, scoped, tag = 'internal scratch']
  #allocation2 [shape = 'f32[16,32]{1,0:T(8,128)}', space=vmem, size = 0x2000, scoped, tag = 'scratch operand']
  %s0 = inlined_call_operand.hbm [shape: f32[16,32], index: 0, kind: input, shape index: {}]
  %s1 = inlined_call_operand.hbm [shape: bf16[32,32], index: 1, kind: input, shape index: {}]
  %s2 = inlined_call_operand.hbm [shape: f32[1,32], index: 2, kind: input, shape index: {}]
  %s3 = inlined_call_operand.hbm [shape: bf16[16,32], index: 3, kind: output, shape index: {}]
  %s4 = sld [smem:[#allocation0]]
  $region42: #{transformer_forward.27} parent=0
    _
  %s6 = ssub.s32 1, %s4
  %s7 = scalar_select 0, %s6, %s4
  $region1: #{transformer_forward.27} parent=0
    #allocation3 [shape = 'u8[8192]{0}', space=vmem, size = 0x2000, scoped, tag = 'input window, operand 0, single buffered']
    #allocation4 [shape = 's32[1]{0}', space=sflag, size = 0x4, scoped, tag = 'scoped memory for transformer_forward.27']
    #allocation5 [shape = 's32[1]{0}', space=sflag, size = 0x4, scoped, tag = 'scoped memory for transformer_forward.27']
    #allocation6 [shape = 'u8[8192]{0}', space=vmem, size = 0x2000, scoped, tag = 'input window, operand 1, single buffered']
    #allocation7 [shape = 's32[1]{0}', space=sflag, size = 0x4, scoped, tag = 'scoped memory for transformer_forward.27']
    #allocation8 [shape = 'u8[512]{0}', space=vmem, size = 0x400, scoped, tag = 'input window, operand 2, single buffered']
    #allocation9 [shape = 'u8[4096]{0}', space=vmem, size = 0x1000, scoped, tag = 'output window, operand 0, single buffered']
    %8 = vsyncpa [#allocation4], 0
    %9 = vsyncpa [#allocation7], 0
    %10 = vsyncpa [#allocation5], 0
    // Predicated region
    $region2: #{transformer_forward.27} parent=1 // pred_check
      _
    $region3: #{transformer_forward.27} parent=1 // pred_check_branch
      %12 = sbr.rel (0) target = $region5
    $region4: #{transformer_forward.27} parent=1 // pred_region
      %s14 = ssub.s32 256, 256
      %15 = vsyncadd [#allocation4], %s14
      %s16 = sshll.u32 [#allocation3], 4
      %s17 = int_to_ptr.vmem [resolvable:$true] %s16
      %22 = dma.hbm_to_vmem [thread:$0]  %s0, 256, %s17, [#allocation4], 128, 128, 8
    $region5: #{transformer_forward.27} parent=1 // pred_fallthru
      _
    // Predicated region
    $region6: #{transformer_forward.27} parent=1 // pred_check
      _
    $region7: #{transformer_forward.27} parent=1 // pred_check_branch
      %24 = sbr.rel (0) target = $region9
    $region8: #{transformer_forward.27} parent=1 // pred_region
      %s26 = ssub.s32 256, 256
      %27 = vsyncadd [#allocation7], %s26
      %s28 = sshll.u32 [#allocation6], 4
      %s29 = int_to_ptr.vmem [resolvable:$true] %s28
      %34 = dma.hbm_to_vmem [thread:$0]  %s1, 256, %s29, [#allocation7], 64, 64, 4
    $region9: #{transformer_forward.27} parent=1 // pred_fallthru
      _
    // Predicated region
    $region10: #{transformer_forward.27} parent=1 // pred_check
      _
    $region11: #{transformer_forward.27} parent=1 // pred_check_branch
      %36 = sbr.rel (0) target = $region13
    $region12: #{transformer_forward.27} parent=1 // pred_region
      %s38 = ssub.s32 16, 16
      %39 = vsyncadd [#allocation7], %s38
      %s41 = sshll.u32 [#allocation8], 4
      %s42 = int_to_ptr.vmem [resolvable:$true] %s41
      %44 = dma.hbm_to_vmem [thread:$0]  %s2, 16, %s42, [#allocation7]
    $region13: #{transformer_forward.27} parent=1 // pred_fallthru
      _
    // Predicated region
    $region14: #{transformer_forward.27} parent=1 // pred_check
      _
    $region15: #{transformer_forward.27} parent=1 // pred_check_branch
      %46 = sbr.rel (0) target = $region17
    $region16: #{transformer_forward.27} parent=1 // pred_region
      %47 = dma.done [#allocation4], 256
    $region17: #{transformer_forward.27} parent=1 // pred_fallthru
      _
    // Predicated region
    $region18: #{transformer_forward.27} parent=1 // pred_check
      _
    $region19: #{transformer_forward.27} parent=1 // pred_check_branch
      %49 = sbr.rel (0) target = $region21
    $region20: #{transformer_forward.27} parent=1 // pred_region
      %50 = dma.done [#allocation7], 256
    $region21: #{transformer_forward.27} parent=1 // pred_fallthru
      _
    // Predicated region
    $region22: #{transformer_forward.27} parent=1 // pred_check
      _
    $region23: #{transformer_forward.27} parent=1 // pred_check_branch
      %52 = sbr.rel (0) target = $region25
    $region24: #{transformer_forward.27} parent=1 // pred_region
      %53 = dma.done [#allocation7], 16
    $region25: #{transformer_forward.27} parent=1 // pred_fallthru
      _
    %p55 = scmp.eq.s32.totalorder 0, 0
    // Predicated region
    $region26: #{transformer_forward.27} parent=1 // pred_check
      %p56 = pneg %p55
    $region27: #{transformer_forward.27} parent=1 // pred_check_branch
      %58 = sbr.rel (%p56) target = $region29
    $region28: #{transformer_forward.27} parent=1 // pred_region
      %vm59 = vcmask 261120
      %60 = vst.msk [vmem:[#allocation2] sm:$0xff] %vm59, 0.0
      %61 = vst.msk [vmem:[#allocation2 + $0x8] sm:$0xff] %vm59, 0.0
    $region29: #{transformer_forward.27} parent=1 // pred_fallthru
      _
    %v62 = vld [vmem:[#allocation2] sm:$0xff]
    %v63 = vld [vmem:[#allocation2 + $0x8] sm:$0xff]
    %v64 = vld [vmem:[#allocation3] sm:$0xff]
    %v65 = vld [vmem:[#allocation3 + $0x8] sm:$0xff]
    %v66 = vpack.c.bf16 %v65, %v64
    %v67 = vld [vmem:[#allocation6] sm:$0xf]
    %v68 = vld [vmem:[#allocation6 + $0x4] sm:$0xf]
    %v69 = vld [vmem:[#allocation6 + $0x8] sm:$0xf]
    %v70 = vld [vmem:[#allocation6 + $0xc] sm:$0xf]
    %v75 = vunpack.c.l.b16 %v67
    %v76 = vunpack.c.l.b16 %v68
    %v77 = vunpack.c.l.b16 %v69
    %v78 = vunpack.c.l.b16 %v70
    %v79 = vpack.c.b16 %v76, %v75
    %v80 = vpack.c.b16 %v78, %v77
    %vm83 = vcmask 261120
    %v85 = vsel %vm83, %v66, 0
    %87 = vmatprep.subr.bf16.mxu0 0
    %88 = vmatpush1.bf16.msra.mxu0 %v79
    %89 = vmatprep.subr.bf16.mxu0 0
    %90 = vmatpush1.bf16.msra.mxu0 %v80
    %91 = vmatprep.subr.bf16.mxu0 0
    %92 = vmatpush1.bf16.msra.mxu0 0
    %93 = vmatprep.subr.bf16.mxu0 0
    %94 = vmatpush1.bf16.msra.mxu0 0
    %95 = vmatprep.subr.bf16.mxu0 0
    %96 = vmatpush1.bf16.msra.mxu0 0
    %97 = vmatprep.subr.bf16.mxu0 0
    %98 = vmatpush1.bf16.msra.mxu0 0
    %99 = vmatprep.subr.bf16.mxu0 0
    %100 = vmatpush1.bf16.msra.mxu0 0
    %101 = vmatprep.subr.bf16.mxu0 0
    %102 = vmatpush1.bf16.msra.mxu0 0
    %103 = vmatprep.subr.bf16.mxu0 0
    %104 = vmatpush1.bf16.msra.mxu0 0
    %105 = vmatprep.subr.bf16.mxu0 0
    %106 = vmatpush1.bf16.msra.mxu0 0
    %107 = vmatprep.subr.bf16.mxu0 0
    %108 = vmatpush1.bf16.msra.mxu0 0
    %109 = vmatprep.subr.bf16.mxu0 0
    %110 = vmatpush1.bf16.msra.mxu0 0
    %111 = vmatprep.subr.bf16.mxu0 0
    %112 = vmatpush1.bf16.msra.mxu0 0
    %113 = vmatprep.subr.bf16.mxu0 0
    %114 = vmatpush1.bf16.msra.mxu0 0
    %115 = vmatprep.subr.bf16.mxu0 0
    %116 = vmatpush1.bf16.msra.mxu0 0
    %117 = vmatprep.subr.bf16.mxu0 0
    %118 = vmatpush1.bf16.msra.mxu0 0
    %119 = vmatprep.mubr.bf16.mxu0 0
    %120 = vmatmul.mubr.bf16.gmra.mrb[0].mxu0 %v85
    %v121 = vpop.f32.mrb[0].mxu0
    %v122 = vadd.f32 0.0, %v121
    %v123 = vpop.f32.mrb[0].mxu0
    %v124 = vpop.f32.mrb[0].mxu0
    %v125 = vadd.f32 0.0, %v124
    %v126 = vpop.f32.mrb[0].mxu0
    %127 = vdwg.mxu0
    %v128 = vadd.f32 %v62, %v122
    %v129 = vadd.f32 %v63, %v125
    %130 = vst.msk [vmem:[#allocation2] sm:$0xff] %vm83, %v128
    %131 = vst.msk [vmem:[#allocation2 + $0x8] sm:$0xff] %vm83, %v129
    // Predicated region
    $region30: #{transformer_forward.27} parent=1 // pred_check
      %p132 = pneg %p55
    $region31: #{transformer_forward.27} parent=1 // pred_check_branch
      %134 = sbr.rel (%p132) target = $region33
    $region32: #{transformer_forward.27} parent=1 // pred_region
      %v135 = vld [vmem:[#allocation2] sm:$0xff]
      %v136 = vld [vmem:[#allocation2 + $0x8] sm:$0xff]
      %v137 = vld [vmem:[#allocation8] sm:$0x1]
      %v139 = vlaneseq
      %v140 = vshrl.u32 %v139, 7
      %v141 = vsub.s32 0, %v140
      %v142 = vrot.slane %v137, %v141
      %v144 = vadd.f32 %v135, %v142
      %v145 = vadd.f32 %v136, %v142
      %v146 = vpack.c.bf16 %v145, %v144
      %v148 = vunpack.c.l.b16 %v146
      %v149 = vunpack.c.h.b16 %v146
      %v150 = vpack.c.b16 %v148, %v148
      %v151 = vpack.c.b16 %v149, %v149
      %vm154 = vcmask 257024
      %155 = vst.msk [vmem:[#allocation9] sm:$0xf] %vm154, %v150
      %156 = vst.msk [vmem:[#allocation9 + $0x4] sm:$0xf] %vm154, %v151
    $region33: #{transformer_forward.27} parent=1 // pred_fallthru
      _
    // Predicated region
    $region34: #{transformer_forward.27} parent=1 // pred_check
      _
    $region35: #{transformer_forward.27} parent=1 // pred_check_branch
      %158 = sbr.rel (0) target = $region37
    $region36: #{transformer_forward.27} parent=1 // pred_region
      %s160 = ssub.s32 128, 128
      %161 = vsyncadd [#allocation5], %s160
      %s162 = sshll.u32 [#allocation9], 4
      %s163 = int_to_ptr.vmem [resolvable:$true] %s162
      %168 = dma.vmem_to_hbm [thread:$0]  %s163, 128, %s3, [#allocation5], 64, 64, 4
    $region37: #{transformer_forward.27} parent=1 // pred_fallthru
      _
    // Predicated region
    $region38: #{transformer_forward.27} parent=1 // pred_check
      _
    $region39: #{transformer_forward.27} parent=1 // pred_check_branch
      %170 = sbr.rel (0) target = $region41
    $region40: #{transformer_forward.27} parent=1 // pred_region
      %171 = dma.done [#allocation5], 128
    $region41: #{transformer_forward.27} parent=1 // pred_fallthru
      _
    %172 = vsyncpa [#allocation4], 1
    %173 = vsyncpa [#allocation7], 1
    %174 = vsyncpa [#allocation5], 1

// kernel: transformer_forward.37
$region0: #{transformer_forward.37}
  #allocation0 [shape = 'u32[]', space=smem, size = 0x4, offset = 0x4, fixed_abs, tag = 'smem constant byte address 0x4 - core index']
  #allocation1 [shape = 'u32[144,128]{1,0:T(1,128)}', space=vmem, size = 0x12000, scoped, tag = 'internal scratch']
  #allocation2 [shape = 'f32[16,64]{1,0:T(8,128)}', space=vmem, size = 0x2000, scoped, tag = 'scratch operand']
  %s0 = inlined_call_operand.hbm [shape: f32[16,32], index: 0, kind: input, shape index: {}]
  %s1 = inlined_call_operand.hbm [shape: bf16[32,64], index: 1, kind: input, shape index: {}]
  %s2 = inlined_call_operand.hbm [shape: f32[1,64], index: 2, kind: input, shape index: {}]
  %s3 = inlined_call_operand.hbm [shape: f32[16,64], index: 3, kind: output, shape index: {}]
  %s4 = sld [smem:[#allocation0]]
  $region42: #{transformer_forward.37} parent=0
    _
  %s6 = ssub.s32 1, %s4
  %s7 = scalar_select 0, %s6, %s4
  $region1: #{transformer_forward.37} parent=0
    #allocation3 [shape = 'u8[8192]{0}', space=vmem, size = 0x2000, scoped, tag = 'input window, operand 0, single buffered']
    #allocation4 [shape = 's32[1]{0}', space=sflag, size = 0x4, scoped, tag = 'scoped memory for transformer_forward.37']
    #allocation5 [shape = 's32[1]{0}', space=sflag, size = 0x4, scoped, tag = 'scoped memory for transformer_forward.37']
    #allocation6 [shape = 'u8[8192]{0}', space=vmem, size = 0x2000, scoped, tag = 'input window, operand 1, single buffered']
    #allocation7 [shape = 's32[1]{0}', space=sflag, size = 0x4, scoped, tag = 'scoped memory for transformer_forward.37']
    #allocation8 [shape = 'u8[512]{0}', space=vmem, size = 0x400, scoped, tag = 'input window, operand 2, single buffered']
    #allocation9 [shape = 'u8[8192]{0}', space=vmem, size = 0x2000, scoped, tag = 'output window, operand 0, single buffered']
    %8 = vsyncpa [#allocation4], 0
    %9 = vsyncpa [#allocation7], 0
    %10 = vsyncpa [#allocation5], 0
    // Predicated region
    $region2: #{transformer_forward.37} parent=1 // pred_check
      _
    $region3: #{transformer_forward.37} parent=1 // pred_check_branch
      %12 = sbr.rel (0) target = $region5
    $region4: #{transformer_forward.37} parent=1 // pred_region
      %s14 = ssub.s32 256, 256
      %15 = vsyncadd [#allocation4], %s14
      %s16 = sshll.u32 [#allocation3], 4
      %s17 = int_to_ptr.vmem [resolvable:$true] %s16
      %22 = dma.hbm_to_vmem [thread:$0]  %s0, 256, %s17, [#allocation4], 128, 128, 8
    $region5: #{transformer_forward.37} parent=1 // pred_fallthru
      _
    // Predicated region
    $region6: #{transformer_forward.37} parent=1 // pred_check
      _
    $region7: #{transformer_forward.37} parent=1 // pred_check_branch
      %24 = sbr.rel (0) target = $region9
    $region8: #{transformer_forward.37} parent=1 // pred_region
      %s26 = ssub.s32 256, 256
      %27 = vsyncadd [#allocation7], %s26
      %s28 = sshll.u32 [#allocation6], 4
      %s29 = int_to_ptr.vmem [resolvable:$true] %s28
      %34 = dma.hbm_to_vmem [thread:$0]  %s1, 256, %s29, [#allocation7], 64, 64, 4
    $region9: #{transformer_forward.37} parent=1 // pred_fallthru
      _
    // Predicated region
    $region10: #{transformer_forward.37} parent=1 // pred_check
      _
    $region11: #{transformer_forward.37} parent=1 // pred_check_branch
      %36 = sbr.rel (0) target = $region13
    $region12: #{transformer_forward.37} parent=1 // pred_region
      %s38 = ssub.s32 16, 16
      %39 = vsyncadd [#allocation7], %s38
      %s41 = sshll.u32 [#allocation8], 4
      %s42 = int_to_ptr.vmem [resolvable:$true] %s41
      %44 = dma.hbm_to_vmem [thread:$0]  %s2, 16, %s42, [#allocation7]
    $region13: #{transformer_forward.37} parent=1 // pred_fallthru
      _
    // Predicated region
    $region14: #{transformer_forward.37} parent=1 // pred_check
      _
    $region15: #{transformer_forward.37} parent=1 // pred_check_branch
      %46 = sbr.rel (0) target = $region17
    $region16: #{transformer_forward.37} parent=1 // pred_region
      %47 = dma.done [#allocation4], 256
    $region17: #{transformer_forward.37} parent=1 // pred_fallthru
      _
    // Predicated region
    $region18: #{transformer_forward.37} parent=1 // pred_check
      _
    $region19: #{transformer_forward.37} parent=1 // pred_check_branch
      %49 = sbr.rel (0) target = $region21
    $region20: #{transformer_forward.37} parent=1 // pred_region
      %50 = dma.done [#allocation7], 256
    $region21: #{transformer_forward.37} parent=1 // pred_fallthru
      _
    // Predicated region
    $region22: #{transformer_forward.37} parent=1 // pred_check
      _
    $region23: #{transformer_forward.37} parent=1 // pred_check_branch
      %52 = sbr.rel (0) target = $region25
    $region24: #{transformer_forward.37} parent=1 // pred_region
      %53 = dma.done [#allocation7], 16
    $region25: #{transformer_forward.37} parent=1 // pred_fallthru
      _
    %p55 = scmp.eq.s32.totalorder 0, 0
    // Predicated region
    $region26: #{transformer_forward.37} parent=1 // pred_check
      %p56 = pneg %p55
    $region27: #{transformer_forward.37} parent=1 // pred_check_branch
      %58 = sbr.rel (%p56) target = $region29
    $region28: #{transformer_forward.37} parent=1 // pred_region
      %vm59 = vcmask 523264
      %60 = vst.msk [vmem:[#allocation2] sm:$0xff] %vm59, 0.0
      %61 = vst.msk [vmem:[#allocation2 + $0x8] sm:$0xff] %vm59, 0.0
    $region29: #{transformer_forward.37} parent=1 // pred_fallthru
      _
    %v62 = vld [vmem:[#allocation2] sm:$0xff]
    %v63 = vld [vmem:[#allocation2 + $0x8] sm:$0xff]
    %v64 = vld [vmem:[#allocation3] sm:$0xff]
    %v65 = vld [vmem:[#allocation3 + $0x8] sm:$0xff]
    %v66 = vpack.c.bf16 %v65, %v64
    %v67 = vld [vmem:[#allocation6] sm:$0xf]
    %v68 = vld [vmem:[#allocation6 + $0x4] sm:$0xf]
    %v69 = vld [vmem:[#allocation6 + $0x8] sm:$0xf]
    %v70 = vld [vmem:[#allocation6 + $0xc] sm:$0xf]
    %v75 = vunpack.c.l.b16 %v67
    %v76 = vunpack.c.l.b16 %v68
    %v77 = vunpack.c.l.b16 %v69
    %v78 = vunpack.c.l.b16 %v70
    %v79 = vpack.c.b16 %v76, %v75
    %v80 = vpack.c.b16 %v78, %v77
    %vm83 = vcmask 261120
    %v85 = vsel %vm83, %v66, 0
    %87 = vmatprep.subr.bf16.mxu0 0
    %88 = vmatpush1.bf16.msra.mxu0 %v79
    %89 = vmatprep.subr.bf16.mxu0 0
    %90 = vmatpush1.bf16.msra.mxu0 %v80
    %91 = vmatprep.subr.bf16.mxu0 0
    %92 = vmatpush1.bf16.msra.mxu0 0
    %93 = vmatprep.subr.bf16.mxu0 0
    %94 = vmatpush1.bf16.msra.mxu0 0
    %95 = vmatprep.subr.bf16.mxu0 0
    %96 = vmatpush1.bf16.msra.mxu0 0
    %97 = vmatprep.subr.bf16.mxu0 0
    %98 = vmatpush1.bf16.msra.mxu0 0
    %99 = vmatprep.subr.bf16.mxu0 0
    %100 = vmatpush1.bf16.msra.mxu0 0
    %101 = vmatprep.subr.bf16.mxu0 0
    %102 = vmatpush1.bf16.msra.mxu0 0
    %103 = vmatprep.subr.bf16.mxu0 0
    %104 = vmatpush1.bf16.msra.mxu0 0
    %105 = vmatprep.subr.bf16.mxu0 0
    %106 = vmatpush1.bf16.msra.mxu0 0
    %107 = vmatprep.subr.bf16.mxu0 0
    %108 = vmatpush1.bf16.msra.mxu0 0
    %109 = vmatprep.subr.bf16.mxu0 0
    %110 = vmatpush1.bf16.msra.mxu0 0
    %111 = vmatprep.subr.bf16.mxu0 0
    %112 = vmatpush1.bf16.msra.mxu0 0
    %113 = vmatprep.subr.bf16.mxu0 0
    %114 = vmatpush1.bf16.msra.mxu0 0
    %115 = vmatprep.subr.bf16.mxu0 0
    %116 = vmatpush1.bf16.msra.mxu0 0
    %117 = vmatprep.subr.bf16.mxu0 0
    %118 = vmatpush1.bf16.msra.mxu0 0
    %119 = vmatprep.mubr.bf16.mxu0 0
    %120 = vmatmul.mubr.bf16.gmra.mrb[0].mxu0 %v85
    %v121 = vpop.f32.mrb[0].mxu0
    %v122 = vadd.f32 0.0, %v121
    %v123 = vpop.f32.mrb[0].mxu0
    %v124 = vpop.f32.mrb[0].mxu0
    %v125 = vadd.f32 0.0, %v124
    %v126 = vpop.f32.mrb[0].mxu0
    %127 = vdwg.mxu0
    %v128 = vadd.f32 %v62, %v122
    %v129 = vadd.f32 %v63, %v125
    %vm130 = vcmask 523264
    %131 = vst.msk [vmem:[#allocation2] sm:$0xff] %vm130, %v128
    %132 = vst.msk [vmem:[#allocation2 + $0x8] sm:$0xff] %vm130, %v129
    // Predicated region
    $region30: #{transformer_forward.37} parent=1 // pred_check
      %p133 = pneg %p55
    $region31: #{transformer_forward.37} parent=1 // pred_check_branch
      %135 = sbr.rel (%p133) target = $region33
    $region32: #{transformer_forward.37} parent=1 // pred_region
      %v136 = vld [vmem:[#allocation2] sm:$0xff]
      %v137 = vld [vmem:[#allocation2 + $0x8] sm:$0xff]
      %v138 = vld [vmem:[#allocation8] sm:$0x1]
      %v140 = vlaneseq
      %v141 = vshrl.u32 %v140, 7
      %v142 = vsub.s32 0, %v141
      %v143 = vrot.slane %v138, %v142
      %v145 = vadd.f32 %v136, %v143
      %v146 = vadd.f32 %v137, %v143
      %147 = vst.msk [vmem:[#allocation9] sm:$0xff] %vm130, %v145
      %148 = vst.msk [vmem:[#allocation9 + $0x8] sm:$0xff] %vm130, %v146
    $region33: #{transformer_forward.37} parent=1 // pred_fallthru
      _
    // Predicated region
    $region34: #{transformer_forward.37} parent=1 // pred_check
      _
    $region35: #{transformer_forward.37} parent=1 // pred_check_branch
      %150 = sbr.rel (0) target = $region37
    $region36: #{transformer_forward.37} parent=1 // pred_region
      %s152 = ssub.s32 256, 256
      %153 = vsyncadd [#allocation5], %s152
      %s154 = sshll.u32 [#allocation9], 4
      %s155 = int_to_ptr.vmem [resolvable:$true] %s154
      %160 = dma.vmem_to_hbm [thread:$0]  %s155, 256, %s3, [#allocation5], 128, 128, 8
    $region37: #{transformer_forward.37} parent=1 // pred_fallthru
      _
    // Predicated region
    $region38: #{transformer_forward.37} parent=1 // pred_check
      _
    $region39: #{transformer_forward.37} parent=1 // pred_check_branch
      %162 = sbr.rel (0) target = $region41
    $region40: #{transformer_forward.37} parent=1 // pred_region
      %163 = dma.done [#allocation5], 256
    $region41: #{transformer_forward.37} parent=1 // pred_fallthru
      _
    %164 = vsyncpa [#allocation4], 1
    %165 = vsyncpa [#allocation7], 1
    %166 = vsyncpa [#allocation5], 1

// kernel: transformer_forward.26
$region0: #{transformer_forward.26}
  #allocation0 [shape = 'u32[]', space=smem, size = 0x4, offset = 0x4, fixed_abs, tag = 'smem constant byte address 0x4 - core index']
  #allocation1 [shape = 'u32[144,128]{1,0:T(1,128)}', space=vmem, size = 0x12000, scoped, tag = 'internal scratch']
  %s0 = inlined_call_operand.hbm [shape: bf16[2,8,96], index: 0, kind: input, shape index: {}]
  %s1 = inlined_call_operand.hbm [shape: f32[2,1,8], index: 1, kind: input, shape index: {}]
  %s2 = inlined_call_operand.hbm [shape: f32[2,8,32], index: 2, kind: input, shape index: {}]
  %s3 = inlined_call_operand.hbm [shape: bf16[32,32], index: 3, kind: input, shape index: {}]
  %s4 = inlined_call_operand.hbm [shape: f32[1,32], index: 4, kind: input, shape index: {}]
  %s5 = inlined_call_operand.hbm [shape: f32[1,32], index: 5, kind: input, shape index: {}]
  %s6 = inlined_call_operand.hbm [shape: f32[1,32], index: 6, kind: input, shape index: {}]
  %s7 = inlined_call_operand.hbm [shape: f32[2,8,32], index: 7, kind: output, shape index: {}]
  %s8 = sld [smem:[#allocation0]]
  $region89: #{transformer_forward.26} parent=0
    _
  %s10 = ssub.s32 1, %s8
  %s11 = scalar_select 0, %s10, %s8
  $region1: #{transformer_forward.26} parent=0
    #allocation2 [shape = 'u8[4096]{0}', space=vmem, size = 0x1000, scoped, tag = 'input window, operand 0']
    #allocation3 [shape = 's32[2]{0}', space=sflag, size = 0x8, scoped, tag = 'scoped memory for transformer_forward.26']
    #allocation4 [shape = 's32[2]{0}', space=sflag, size = 0x8, scoped, tag = 'scoped memory for transformer_forward.26']
    #allocation5 [shape = 'u8[1024]{0}', space=vmem, size = 0x400, scoped, tag = 'input window, operand 1']
    #allocation6 [shape = 's32[2]{0}', space=sflag, size = 0x8, scoped, tag = 'scoped memory for transformer_forward.26']
    #allocation7 [shape = 'u8[8192]{0}', space=vmem, size = 0x2000, scoped, tag = 'input window, operand 2']
    #allocation8 [shape = 'u8[8192]{0}', space=vmem, size = 0x2000, scoped, tag = 'input window, operand 3, single buffered']
    #allocation9 [shape = 's32[1]{0}', space=sflag, size = 0x4, scoped, tag = 'scoped memory for transformer_forward.26']
    #allocation10 [shape = 'u8[512]{0}', space=vmem, size = 0x400, scoped, tag = 'input window, operand 4, single buffered']
    #allocation11 [shape = 'u8[512]{0}', space=vmem, size = 0x400, scoped, tag = 'input window, operand 5, single buffered']
    #allocation12 [shape = 's32[1]{0}', space=sflag, size = 0x4, scoped, tag = 'scoped memory for transformer_forward.26']
    #allocation13 [shape = 'u8[512]{0}', space=vmem, size = 0x400, scoped, tag = 'input window, operand 6, single buffered']
    #allocation14 [shape = 'u8[8192]{0}', space=vmem, size = 0x2000, scoped, tag = 'output window, operand 0']
    %12 = vsyncpa [#allocation3], 0
    %s13 = scalar_lea.sflag [#allocation3], 1
    %14 = vsyncpa %s13, 0
    %15 = vsyncpa [#allocation6], 0
    %s16 = scalar_lea.sflag [#allocation6], 1
    %17 = vsyncpa %s16, 0
    %18 = vsyncpa [#allocation9], 0
    %19 = vsyncpa [#allocation12], 0
    %20 = vsyncpa [#allocation4], 0
    %s21 = scalar_lea.sflag [#allocation4], 1
    %22 = vsyncpa %s21, 0
    loop: start=0, step=1, limit=4
    $region2: #{transformer_forward.26} parent=1 // loop_pre_header
      _
    $region3: #{transformer_forward.26} parent=1 // loop_header
      %s24 = sphi 0, %s28
      %p25 = scmp.ge.s32.totalorder %s24, 4
      %s34 = sphi 0, %s36
      %s37 = sphi 0, %s34
      %s38 = sphi 0, %s37
      %s54 = sphi 0, %s38
      %s60 = sphi 0, %s62
      %s63 = sphi 0, %s60
      %s64 = sphi 0, %s63
      %s80 = sphi 0, %s64
      %s86 = sphi 0, %s88
      %s89 = sphi 0, %s86
      %s90 = sphi 0, %s89
      %s106 = sphi 0, %s90
      %s110 = sphi 0, %s110
      %s112 = sphi 0, %s110
      %s113 = sphi 0, %s112
      %s127 = sphi 0, %s113
      %s131 = sphi 0, %s131
      %s133 = sphi 0, %s131
      %s134 = sphi 0, %s133
      %s148 = sphi 0, %s134
      %s152 = sphi 0, %s152
      %s154 = sphi 0, %s152
      %s155 = sphi 0, %s154
      %s169 = sphi 0, %s155
      %s173 = sphi 0, %s173
      %s175 = sphi 0, %s173
      %s176 = sphi 0, %s175
      %s190 = sphi 0, %s176
      %s196 = sphi 0, %s198
      %s199 = sphi 0, %s196
      %s200 = sphi 0, %s199
      %s216 = sphi 0, %s200
    $region4: #{transformer_forward.26} parent=1 // loop_header_branch
      %27 = sbr.rel (%p25) target = $region8
    $region5: #{transformer_forward.26} parent=1 // loop_body
      %s29 = ssub.s32 %s24, 1
      %s30 = ssub.s32 %s24, 2
      %s31 = sadd.s32 %s24, 1
      %s32 = ssub.s32 %s24, %s31
      %p33 = scmp.eq.s32.totalorder %s32, 0
      %s35 = sadd.s32 %s34, 1
      %s36 = scalar_select %p33, %s34, %s35
      %p39 = pneg %p33
      %p40 = scmp.eq.s32.totalorder %s24, 1
      %p41 = por %p39, %p40
      %p42 = scmp.ne.s32.totalorder %s34, %s37
      %p43 = scmp.eq.s32.totalorder %s24, 0
      %p44 = por %p42, %p43
      %p45 = scmp.ne.s32.totalorder %s34, %s37
      %p46 = scmp.eq.s32.totalorder %s29, 1
      %p47 = por %p45, %p46
      %p48 = scmp.ne.s32.totalorder %s37, %s38
      %p49 = scmp.eq.s32.totalorder %s29, 0
      %p50 = por %p48, %p49
      %p51 = scmp.ne.s32.totalorder %s37, %s38
      %p52 = scmp.eq.s32.totalorder %s30, 1
      %p53 = por %p51, %p52
      %p55 = scmp.ne.s32.totalorder %s38, %s54
      %p56 = scmp.eq.s32.totalorder %s30, 0
      %p57 = por %p55, %p56
      %s58 = ssub.s32 %s24, %s31
      %p59 = scmp.eq.s32.totalorder %s58, 0
      %s61 = sadd.s32 %s60, 1
      %s62 = scalar_select %p59, %s60, %s61
      %p65 = pneg %p59
      %p66 = scmp.eq.s32.totalorder %s24, 1
      %p67 = por %p65, %p66
      %p68 = scmp.ne.s32.totalorder %s60, %s63
      %p69 = scmp.eq.s32.totalorder %s24, 0
      %p70 = por %p68, %p69
      %p71 = scmp.ne.s32.totalorder %s60, %s63
      %p72 = scmp.eq.s32.totalorder %s29, 1
      %p73 = por %p71, %p72
      %p74 = scmp.ne.s32.totalorder %s63, %s64
      %p75 = scmp.eq.s32.totalorder %s29, 0
      %p76 = por %p74, %p75
      %p77 = scmp.ne.s32.totalorder %s63, %s64
      %p78 = scmp.eq.s32.totalorder %s30, 1
      %p79 = por %p77, %p78
      %p81 = scmp.ne.s32.totalorder %s64, %s80
      %p82 = scmp.eq.s32.totalorder %s30, 0
      %p83 = por %p81, %p82
      %s84 = ssub.s32 %s24, %s31
      %p85 = scmp.eq.s32.totalorder %s84, 0
      %s87 = sadd.s32 %s86, 1
      %s88 = scalar_select %p85, %s86, %s87
      %p91 = pneg %p85
      %p92 = scmp.eq.s32.totalorder %s24, 1
      %p93 = por %p91, %p92
      %p94 = scmp.ne.s32.totalorder %s86, %s89
      %p95 = scmp.eq.s32.totalorder %s24, 0
      %p96 = por %p94, %p95
      %p97 = scmp.ne.s32.totalorder %s86, %s89
      %p98 = scmp.eq.s32.totalorder %s29, 1
      %p99 = por %p97, %p98
      %p100 = scmp.ne.s32.totalorder %s89, %s90
      %p101 = scmp.eq.s32.totalorder %s29, 0
      %p102 = por %p100, %p101
      %p103 = scmp.ne.s32.totalorder %s89, %s90
      %p104 = scmp.eq.s32.totalorder %s30, 1
      %p105 = por %p103, %p104
      %p107 = scmp.ne.s32.totalorder %s90, %s106
      %p108 = scmp.eq.s32.totalorder %s30, 0
      %p109 = por %p107, %p108
      %s111 = sadd.s32 %s110, 1
      %p114 = scmp.eq.s32.totalorder %s24, 1
      %p115 = scmp.ne.s32.totalorder %s110, %s112
      %p116 = scmp.eq.s32.totalorder %s24, 0
      %p117 = por %p115, %p116
      %p118 = scmp.ne.s32.totalorder %s110, %s112
      %p119 = scmp.eq.s32.totalorder %s29, 1
      %p120 = por %p118, %p119
      %p121 = scmp.ne.s32.totalorder %s112, %s113
      %p122 = scmp.eq.s32.totalorder %s29, 0
      %p123 = por %p121, %p122
      %p124 = scmp.ne.s32.totalorder %s112, %s113
      %p125 = scmp.eq.s32.totalorder %s30, 1
      %p126 = por %p124, %p125
      %p128 = scmp.ne.s32.totalorder %s113, %s127
      %p129 = scmp.eq.s32.totalorder %s30, 0
      %p130 = por %p128, %p129
      %s132 = sadd.s32 %s131, 1
      %p135 = scmp.eq.s32.totalorder %s24, 1
      %p136 = scmp.ne.s32.totalorder %s131, %s133
      %p137 = scmp.eq.s32.totalorder %s24, 0
      %p138 = por %p136, %p137
      %p139 = scmp.ne.s32.totalorder %s131, %s133
      %p140 = scmp.eq.s32.totalorder %s29, 1
      %p141 = por %p139, %p140
      %p142 = scmp.ne.s32.totalorder %s133, %s134
      %p143 = scmp.eq.s32.totalorder %s29, 0
      %p144 = por %p142, %p143
      %p145 = scmp.ne.s32.totalorder %s133, %s134
      %p146 = scmp.eq.s32.totalorder %s30, 1
      %p147 = por %p145, %p146
      %p149 = scmp.ne.s32.totalorder %s134, %s148
      %p150 = scmp.eq.s32.totalorder %s30, 0
      %p151 = por %p149, %p150
      %s153 = sadd.s32 %s152, 1
      %p156 = scmp.eq.s32.totalorder %s24, 1
      %p157 = scmp.ne.s32.totalorder %s152, %s154
      %p158 = scmp.eq.s32.totalorder %s24, 0
      %p159 = por %p157, %p158
      %p160 = scmp.ne.s32.totalorder %s152, %s154
      %p161 = scmp.eq.s32.totalorder %s29, 1
      %p162 = por %p160, %p161
      %p163 = scmp.ne.s32.totalorder %s154, %s155
      %p164 = scmp.eq.s32.totalorder %s29, 0
      %p165 = por %p163, %p164
      %p166 = scmp.ne.s32.totalorder %s154, %s155
      %p167 = scmp.eq.s32.totalorder %s30, 1
      %p168 = por %p166, %p167
      %p170 = scmp.ne.s32.totalorder %s155, %s169
      %p171 = scmp.eq.s32.totalorder %s30, 0
      %p172 = por %p170, %p171
      %s174 = sadd.s32 %s173, 1
      %p177 = scmp.eq.s32.totalorder %s24, 1
      %p178 = scmp.ne.s32.totalorder %s173, %s175
      %p179 = scmp.eq.s32.totalorder %s24, 0
      %p180 = por %p178, %p179
      %p181 = scmp.ne.s32.totalorder %s173, %s175
      %p182 = scmp.eq.s32.totalorder %s29, 1
      %p183 = por %p181, %p182
      %p184 = scmp.ne.s32.totalorder %s175, %s176
      %p185 = scmp.eq.s32.totalorder %s29, 0
      %p186 = por %p184, %p185
      %p187 = scmp.ne.s32.totalorder %s175, %s176
      %p188 = scmp.eq.s32.totalorder %s30, 1
      %p189 = por %p187, %p188
      %p191 = scmp.ne.s32.totalorder %s176, %s190
      %p192 = scmp.eq.s32.totalorder %s30, 0
      %p193 = por %p191, %p192
      %s194 = ssub.s32 %s24, %s31
      %p195 = scmp.eq.s32.totalorder %s194, 0
      %s197 = sadd.s32 %s196, 1
      %s198 = scalar_select %p195, %s196, %s197
      %p201 = pneg %p195
      %p202 = scmp.eq.s32.totalorder %s24, 1
      %p203 = por %p201, %p202
      %p204 = scmp.ne.s32.totalorder %s196, %s199
      %p205 = scmp.eq.s32.totalorder %s24, 0
      %p206 = por %p204, %p205
      %p207 = scmp.ne.s32.totalorder %s196, %s199
      %p208 = scmp.eq.s32.totalorder %s29, 1
      %p209 = por %p207, %p208
      %p210 = scmp.ne.s32.totalorder %s199, %s200
      %p211 = scmp.eq.s32.totalorder %s29, 0
      %p212 = por %p210, %p211
      %p213 = scmp.ne.s32.totalorder %s199, %s200
      %p214 = scmp.eq.s32.totalorder %s30, 1
      %p215 = por %p213, %p214
      %p217 = scmp.ne.s32.totalorder %s200, %s216
      %p218 = scmp.eq.s32.totalorder %s30, 0
      %p219 = por %p217, %p218
      %p220 = scmp.le.s32.totalorder 1, %s24
      %p221 = scmp.lt.s32.totalorder %s24, 3
      %p222 = pnand %p220, %p221
      %p223 = pneg %p222
      // Predicated region
      $region9: #{transformer_forward.26} parent=5 // pred_check
        _
      $region10: #{transformer_forward.26} parent=5 // pred_check_branch
        %225 = sbr.rel (%p222) target = $region12
      $region11: #{transformer_forward.26} parent=5 // pred_region
        %s226 = ssub.s32 %s24, 1
        // Predicated region
        $region13: #{transformer_forward.26} parent=11 // pred_check
          %p227 = pneg %p123
        $region14: #{transformer_forward.26} parent=11 // pred_check_branch
          %229 = sbr.rel (%p227) target = $region16
        $region15: #{transformer_forward.26} parent=11 // pred_region
          %s231 = ssub.s32 256, 256
          %232 = vsyncadd [#allocation9], %s231
          %s233 = sshll.u32 [#allocation8], 4
          %s234 = int_to_ptr.vmem [resolvable:$true] %s233
          %239 = dma.hbm_to_vmem [thread:$0]  %s3, 256, %s234, [#allocation9], 64, 64, 4
        $region16: #{transformer_forward.26} parent=11 // pred_fallthru
          _
        // Predicated region
        $region17: #{transformer_forward.26} parent=11 // pred_check
          %p240 = pneg %p144
        $region18: #{transformer_forward.26} parent=11 // pred_check_branch
          %242 = sbr.rel (%p240) target = $region20
        $region19: #{transformer_forward.26} parent=11 // pred_region
          %s244 = ssub.s32 16, 16
          %245 = vsyncadd [#allocation9], %s244
          %s247 = sshll.u32 [#allocation10], 4
          %s248 = int_to_ptr.vmem [resolvable:$true] %s247
          %250 = dma.hbm_to_vmem [thread:$0]  %s4, 16, %s248, [#allocation9]
        $region20: #{transformer_forward.26} parent=11 // pred_fallthru
          _
        // Predicated region
        $region21: #{transformer_forward.26} parent=11 // pred_check
          %p251 = pneg %p165
        $region22: #{transformer_forward.26} parent=11 // pred_check_branch
          %253 = sbr.rel (%p251) target = $region24
        $region23: #{transformer_forward.26} parent=11 // pred_region
          %s255 = ssub.s32 16, 16
          %256 = vsyncadd [#allocation12], %s255
          %s258 = sshll.u32 [#allocation11], 4
          %s259 = int_to_ptr.vmem [resolvable:$true] %s258
          %261 = dma.hbm_to_vmem [thread:$0]  %s5, 16, %s259, [#allocation12]
        $region24: #{transformer_forward.26} parent=11 // pred_fallthru
          _
        // Predicated region
        $region25: #{transformer_forward.26} parent=11 // pred_check
          %p262 = pneg %p186
        $region26: #{transformer_forward.26} parent=11 // pred_check_branch
          %264 = sbr.rel (%p262) target = $region28
        $region27: #{transformer_forward.26} parent=11 // pred_region
          %s266 = ssub.s32 16, 16
          %267 = vsyncadd [#allocation12], %s266
          %s269 = sshll.u32 [#allocation13], 4
          %s270 = int_to_ptr.vmem [resolvable:$true] %s269
          %272 = dma.hbm_to_vmem [thread:$0]  %s6, 16, %s270, [#allocation12]
        $region28: #{transformer_forward.26} parent=11 // pred_fallthru
          _
      $region12: #{transformer_forward.26} parent=5 // pred_fallthru
        _
      %p273 = scmp.lt.s32.totalorder %s24, 2
      // Predicated region
      $region29: #{transformer_forward.26} parent=5 // pred_check
        %p274 = pneg %p273
      $region30: #{transformer_forward.26} parent=5 // pred_check_branch
        %276 = sbr.rel (%p274) target = $region32
      $region31: #{transformer_forward.26} parent=5 // pred_region
        // Predicated region
        $region33: #{transformer_forward.26} parent=31 // pred_check
          %p277 = pneg %p44
        $region34: #{transformer_forward.26} parent=31 // pred_check_branch
          %279 = sbr.rel (%p277) target = $region36
        $region35: #{transformer_forward.26} parent=31 // pred_region
          %s280 = sand.u32 %s34, 1
          %s281 = scalar_lea.sflag [#allocation3], %s280
          %s282 = sand.u32 %s34, 1
          %s283 = smul.addr %s282, 4
          %s284 = scalar_lea.vmem [#allocation2], %s283
          %s286 = ssub.s32 64, 64
          %287 = vsyncadd %s281, %s286
          %s288 = smul.addr %s24, 64
          %s289 = scalar_lea.hbm %s0, %s288
          %s291 = sshll.u32 %s284, 4
          %s292 = int_to_ptr.vmem [resolvable:$true] %s291
          %294 = dma.hbm_to_vmem [thread:$0]  %s289, 64, %s292, %s281
        $region36: #{transformer_forward.26} parent=31 // pred_fallthru
          _
        // Predicated region
        $region37: #{transformer_forward.26} parent=31 // pred_check
          %p295 = pneg %p70
        $region38: #{transformer_forward.26} parent=31 // pred_check_branch
          %297 = sbr.rel (%p295) target = $region40
        $region39: #{transformer_forward.26} parent=31 // pred_region
          %s298 = sand.u32 %s24, 1
          %s299 = scalar_lea.sflag [#allocation6], %s298
          %s300 = sand.u32 %s60, 1
          %s301 = scalar_lea.vmem [#allocation5], %s300
          %s303 = ssub.s32 16, 16
          %304 = vsyncadd %s299, %s303
          %s305 = smul.addr %s24, 16
          %s306 = scalar_lea.hbm %s1, %s305
          %s308 = sshll.u32 %s301, 4
          %s309 = int_to_ptr.vmem [resolvable:$true] %s308
          %311 = dma.hbm_to_vmem [thread:$0]  %s306, 16, %s309, %s299
        $region40: #{transformer_forward.26} parent=31 // pred_fallthru
          _
        // Predicated region
        $region41: #{transformer_forward.26} parent=31 // pred_check
          %p312 = pneg %p96
        $region42: #{transformer_forward.26} parent=31 // pred_check_branch
          %314 = sbr.rel (%p312) target = $region44
        $region43: #{transformer_forward.26} parent=31 // pred_region
          %s315 = sand.u32 %s24, 1
          %s316 = scalar_lea.sflag [#allocation6], %s315
          %s317 = sand.u32 %s86, 1
          %s318 = smul.addr %s317, 8
          %s319 = scalar_lea.vmem [#allocation7], %s318
          %s321 = ssub.s32 128, 128
          %322 = vsyncadd %s316, %s321
          %s323 = smul.addr %s24, 128
          %s324 = scalar_lea.hbm %s2, %s323
          %s326 = sshll.u32 %s319, 4
          %s327 = int_to_ptr.vmem [resolvable:$true] %s326
          %329 = dma.hbm_to_vmem [thread:$0]  %s324, 128, %s327, %s316
        $region44: #{transformer_forward.26} parent=31 // pred_fallthru
          _
      $region32: #{transformer_forward.26} parent=5 // pred_fallthru
        _
      %p330 = scmp.le.s32.totalorder 1, %s24
      %p331 = scmp.lt.s32.totalorder %s24, 3
      %p332 = pnand %p330, %p331
      %p333 = pneg %p332
      // Predicated region
      $region45: #{transformer_forward.26} parent=5 // pred_check
        _
      $region46: #{transformer_forward.26} parent=5 // pred_check_branch
        %335 = sbr.rel (%p332) target = $region48
      $region47: #{transformer_forward.26} parent=5 // pred_region
        %s336 = ssub.s32 %s24, 1
        %s337 = sand.u32 %s37, 1
        %s338 = scalar_lea.sflag [#allocation3], %s337
        %s339 = sand.u32 %s37, 1
        %s340 = smul.addr %s339, 4
        %s341 = scalar_lea.vmem [#allocation2], %s340
        // Predicated region
        $region49: #{transformer_forward.26} parent=47 // pred_check
          %p342 = pneg %p50
        $region50: #{transformer_forward.26} parent=47 // pred_check_branch
          %344 = sbr.rel (%p342) target = $region52
        $region51: #{transformer_forward.26} parent=47 // pred_region
          %345 = dma.done %s338, 64
        $region52: #{transformer_forward.26} parent=47 // pred_fallthru
          _
        %s346 = sand.u32 %s29, 1
        %s347 = scalar_lea.sflag [#allocation6], %s346
        %s348 = sand.u32 %s63, 1
        %s349 = scalar_lea.vmem [#allocation5], %s348
        // Predicated region
        $region53: #{transformer_forward.26} parent=47 // pred_check
          %p350 = pneg %p76
        $region54: #{transformer_forward.26} parent=47 // pred_check_branch
          %352 = sbr.rel (%p350) target = $region56
        $region55: #{transformer_forward.26} parent=47 // pred_region
          %353 = dma.done %s347, 16
        $region56: #{transformer_forward.26} parent=47 // pred_fallthru
          _
        %s354 = sand.u32 %s29, 1
        %s355 = scalar_lea.sflag [#allocation6], %s354
        %s356 = sand.u32 %s89, 1
        %s357 = smul.addr %s356, 8
        %s358 = scalar_lea.vmem [#allocation7], %s357
        // Predicated region
        $region57: #{transformer_forward.26} parent=47 // pred_check
          %p359 = pneg %p102
        $region58: #{transformer_forward.26} parent=47 // pred_check_branch
          %361 = sbr.rel (%p359) target = $region60
        $region59: #{transformer_forward.26} parent=47 // pred_region
          %362 = dma.done %s355, 128
        $region60: #{transformer_forward.26} parent=47 // pred_fallthru
          _
        // Predicated region
        $region61: #{transformer_forward.26} parent=47 // pred_check
          %p363 = pneg %p123
        $region62: #{transformer_forward.26} parent=47 // pred_check_branch
          %365 = sbr.rel (%p363) target = $region64
        $region63: #{transformer_forward.26} parent=47 // pred_region
          %366 = dma.done [#allocation9], 256
        $region64: #{transformer_forward.26} parent=47 // pred_fallthru
          _
        // Predicated region
        $region65: #{transformer_forward.26} parent=47 // pred_check
          %p367 = pneg %p144
        $region66: #{transformer_forward.26} parent=47 // pred_check_branch
          %369 = sbr.rel (%p367) target = $region68
        $region67: #{transformer_forward.26} parent=47 // pred_region
          %370 = dma.done [#allocation9], 16
        $region68: #{transformer_forward.26} parent=47 // pred_fallthru
          _
        // Predicated region
        $region69: #{transformer_forward.26} parent=47 // pred_check
          %p371 = pneg %p165
        $region70: #{transformer_forward.26} parent=47 // pred_check_branch
          %373 = sbr.rel (%p371) target = $region72
        $region71: #{transformer_forward.26} parent=47 // pred_region
          %374 = dma.done [#allocation12], 16
        $region72: #{transformer_forward.26} parent=47 // pred_fallthru
          _
        // Predicated region
        $region73: #{transformer_forward.26} parent=47 // pred_check
          %p375 = pneg %p186
        $region74: #{transformer_forward.26} parent=47 // pred_check_branch
          %377 = sbr.rel (%p375) target = $region76
        $region75: #{transformer_forward.26} parent=47 // pred_region
          %378 = dma.done [#allocation12], 16
        $region76: #{transformer_forward.26} parent=47 // pred_fallthru
          _
        %s379 = sand.u32 %s37, 1
        %s380 = scalar_lea.sflag [#allocation3], %s379
        %s381 = sand.u32 %s37, 1
        %s382 = smul.addr %s381, 4
        %s383 = scalar_lea.vmem [#allocation2], %s382
        %p384 = pneg %p50
        %p385 = pneg %p47
        %s386 = sand.u32 %s29, 1
        %s387 = scalar_lea.sflag [#allocation6], %s386
        %s388 = sand.u32 %s63, 1
        %s389 = scalar_lea.vmem [#allocation5], %s388
        %p390 = pneg %p76
        %p391 = pneg %p73
        %s392 = sand.u32 %s29, 1
        %s393 = scalar_lea.sflag [#allocation6], %s392
        %s394 = sand.u32 %s89, 1
        %s395 = smul.addr %s394, 8
        %s396 = scalar_lea.vmem [#allocation7], %s395
        %p397 = pneg %p102
        %p398 = pneg %p99
        %p399 = pneg %p123
        %p400 = pneg %p120
        %p401 = pneg %p144
        %p402 = pneg %p141
        %p403 = pneg %p165
        %p404 = pneg %p162
        %p405 = pneg %p186
        %p406 = pneg %p183
        %p407 = pneg %p212
        %p408 = pneg %p209
        %s409 = sand.u32 %s199, 1
        %s410 = scalar_lea.sflag [#allocation4], %s409
        %s411 = sand.u32 %s199, 1
        %s412 = smul.addr %s411, 8
        %s413 = scalar_lea.vmem [#allocation14], %s412
        %v415 = vld [vmem:[%s341] sm:$0xf]
        %v416 = vld [vmem:[%s349] sm:$0x1]
        %v417 = vlaneseq
        %v418 = vshrl.u32 %v417, 7
        %v419 = vlaneseq
        %v420 = vand.u32 %v419, 127
        %vm421 = vcmp.le.s32.totalorder %v420, %v418
        %v422 = vsel %vm421, 0.0, -1e+09
        %v424 = vlaneseq
        %v425 = vshrl.u32 %v424, 7
        %v426 = vsub.s32 0, %v425
        %v427 = vrot.slane %v416, %v426
        %v429 = vadd.f32 %v427, %v422
        %v430 = vld [vmem:[#allocation8] sm:$0xf]
        %v431 = vld [vmem:[#allocation8 + $0x4] sm:$0xf]
        %v432 = vld [vmem:[#allocation8 + $0x8] sm:$0xf]
        %v433 = vld [vmem:[#allocation8 + $0xc] sm:$0xf]
        %v434 = vld [vmem:[#allocation10] sm:$0x1]
        %v435 = vld [vmem:[%s358] sm:$0xff]
        %v436 = vld [vmem:[#allocation11] sm:$0x1]
        %v437 = vld [vmem:[#allocation13] sm:$0x1]
        %v439 = vunpack.c.l.b16 %v415
        %v440 = vpack.c.b16 %v439, %v439
        %441 = vrot.lane.b32.xlu0 %v440, 96
        %v442 = vpop.permute.xlu0 %441
        %vm443 = vcmask 64512
        %v445 = vsel %vm443, %v415, 0
        %v448 = vsel %vm443, %v442, 0
        %450 = vmatprep.subr.bf16.mxu0 0
        %451 = vmatpush1.bf16.xpose.msra.mxu0 %v448
        %452 = vmatprep.subr.bf16.mxu0 0
        %453 = vmatpush1.bf16.xpose.msra.mxu0 0
        %454 = vmatprep.subr.bf16.mxu0 0
        %455 = vmatpush1.bf16.xpose.msra.mxu0 0
        %456 = vmatprep.subr.bf16.mxu0 0
        %457 = vmatpush1.bf16.xpose.msra.mxu0 0
        %458 = vmatprep.subr.bf16.mxu0 0
        %459 = vmatpush1.bf16.xpose.msra.mxu0 0
        %460 = vmatprep.subr.bf16.mxu0 0
        %461 = vmatpush1.bf16.xpose.msra.mxu0 0
        %462 = vmatprep.subr.bf16.mxu0 0
        %463 = vmatpush1.bf16.xpose.msra.mxu0 0
        %464 = vmatprep.subr.bf16.mxu0 0
        %465 = vmatpush1.bf16.xpose.msra.mxu0 0
        %466 = vmatprep.subr.bf16.mxu0 0
        %467 = vmatpush1.bf16.xpose.msra.mxu0 0
        %468 = vmatprep.subr.bf16.mxu0 0
        %469 = vmatpush1.bf16.xpose.msra.mxu0 0
        %470 = vmatprep.subr.bf16.mxu0 0
        %471 = vmatpush1.bf16.xpose.msra.mxu0 0
        %472 = vmatprep.subr.bf16.mxu0 0
        %473 = vmatpush1.bf16.xpose.msra.mxu0 0
        %474 = vmatprep.subr.bf16.mxu0 0
        %475 = vmatpush1.bf16.xpose.msra.mxu0 0
        %476 = vmatprep.subr.bf16.mxu0 0
        %477 = vmatpush1.bf16.xpose.msra.mxu0 0
        %478 = vmatprep.subr.bf16.mxu0 0
        %479 = vmatpush1.bf16.xpose.msra.mxu0 0
        %480 = vmatprep.subr.bf16.mxu0 0
        %481 = vmatpush1.bf16.xpose.msra.mxu0 0
        %482 = vmatprep.mubr.bf16.mxu0 0
        %483 = vmatmul.mubr.bf16.gmra.mrb[0].mxu0 %v445
        %v484 = vpop.f32.mrb[0].mxu0
        %v485 = vadd.f32 0.0, %v484
        %v486 = vpop.f32.mrb[0].mxu0
        %v487 = vpop.f32.mrb[0].mxu0
        %v488 = vpop.f32.mrb[0].mxu0
        %489 = vdwg.mxu0
        %v490 = vmul.f32 %v485, 0.35355338
        %v491 = vadd.f32 %v490, %v429
        %v492 = vsel %vm443, %v491, -inf
        %493 = vmax.xlane.f32.xlu0 %v492
        %v494 = vpop.xlane.xlu0 %493
        %v495 = vsub.f32 %v491, %v494
        %v496 = vmul.f32 %v495, 1.442695
        %v497 = vpow.pop %v496
        %v498 = vsel %vm443, %v497, 0.0
        %499 = vadd.xlane.f32.xlu0 %v498
        %v500 = vpop.xlane.xlu0 %499
        %v501 = vrcp.pop %v500
        %v502 = vmul.f32 %v497, %v501
        %v503 = vpack.c.bf16 %v502, %v502
        %504 = vrot.lane.b32.xlu0 %v440, 64
        %v505 = vpop.permute.xlu0 %504
        %v507 = vsel %vm443, %v503, 0
        %vm509 = vcmask 1043456
        %v511 = vsel %vm509, %v505, 0
        %513 = vmatprep.subr.bf16.mxu0 0
        %514 = vmatpush1.bf16.msra.mxu0 %v511
        %515 = vmatprep.subr.bf16.mxu0 0
        %516 = vmatpush1.bf16.msra.mxu0 0
        %517 = vmatprep.subr.bf16.mxu0 0
        %518 = vmatpush1.bf16.msra.mxu0 0
        %519 = vmatprep.subr.bf16.mxu0 0
        %520 = vmatpush1.bf16.msra.mxu0 0
        %521 = vmatprep.subr.bf16.mxu0 0
        %522 = vmatpush1.bf16.msra.mxu0 0
        %523 = vmatprep.subr.bf16.mxu0 0
        %524 = vmatpush1.bf16.msra.mxu0 0
        %525 = vmatprep.subr.bf16.mxu0 0
        %526 = vmatpush1.bf16.msra.mxu0 0
        %527 = vmatprep.subr.bf16.mxu0 0
        %528 = vmatpush1.bf16.msra.mxu0 0
        %529 = vmatprep.subr.bf16.mxu0 0
        %530 = vmatpush1.bf16.msra.mxu0 0
        %531 = vmatprep.subr.bf16.mxu0 0
        %532 = vmatpush1.bf16.msra.mxu0 0
        %533 = vmatprep.subr.bf16.mxu0 0
        %534 = vmatpush1.bf16.msra.mxu0 0
        %535 = vmatprep.subr.bf16.mxu0 0
        %536 = vmatpush1.bf16.msra.mxu0 0
        %537 = vmatprep.subr.bf16.mxu0 0
        %538 = vmatpush1.bf16.msra.mxu0 0
        %539 = vmatprep.subr.bf16.mxu0 0
        %540 = vmatpush1.bf16.msra.mxu0 0
        %541 = vmatprep.subr.bf16.mxu0 0
        %542 = vmatpush1.bf16.msra.mxu0 0
        %543 = vmatprep.subr.bf16.mxu0 0
        %544 = vmatpush1.bf16.msra.mxu0 0
        %545 = vmatprep.mubr.bf16.mxu0 0
        %546 = vmatmul.mubr.bf16.gmra.mrb[0].mxu0 %v507
        %v547 = vpop.f32.mrb[0].mxu0
        %v548 = vadd.f32 0.0, %v547
        %v549 = vpop.f32.mrb[0].mxu0
        %v550 = vpop.f32.mrb[0].mxu0
        %v551 = vpop.f32.mrb[0].mxu0
        %552 = vdwg.mxu0
        %v553 = vpack.c.bf16 %v548, %v548
        %554 = vrot.lane.b32.xlu0 %v440, 120
        %v555 = vpop.permute.xlu0 %554
        %556 = vrot.lane.b32.xlu0 %v440, 88
        %v557 = vpop.permute.xlu0 %556
        %v559 = vsel %vm443, %v555, 0
        %v562 = vsel %vm443, %v557, 0
        %564 = vmatprep.subr.bf16.mxu0 0
        %565 = vmatpush1.bf16.xpose.msra.mxu0 %v562
        %566 = vmatprep.subr.bf16.mxu0 0
        %567 = vmatpush1.bf16.xpose.msra.mxu0 0
        %568 = vmatprep.subr.bf16.mxu0 0
        %569 = vmatpush1.bf16.xpose.msra.mxu0 0
        %570 = vmatprep.subr.bf16.mxu0 0
        %571 = vmatpush1.bf16.xpose.msra.mxu0 0
        %572 = vmatprep.subr.bf16.mxu0 0
        %573 = vmatpush1.bf16.xpose.msra.mxu0 0
        %574 = vmatprep.subr.bf16.mxu0 0
        %575 = vmatpush1.bf16.xpose.msra.mxu0 0
        %576 = vmatprep.subr.bf16.mxu0 0
        %577 = vmatpush1.bf16.xpose.msra.mxu0 0
        %578 = vmatprep.subr.bf16.mxu0 0
        %579 = vmatpush1.bf16.xpose.msra.mxu0 0
        %580 = vmatprep.subr.bf16.mxu0 0
        %581 = vmatpush1.bf16.xpose.msra.mxu0 0
        %582 = vmatprep.subr.bf16.mxu0 0
        %583 = vmatpush1.bf16.xpose.msra.mxu0 0
        %584 = vmatprep.subr.bf16.mxu0 0
        %585 = vmatpush1.bf16.xpose.msra.mxu0 0
        %586 = vmatprep.subr.bf16.mxu0 0
        %587 = vmatpush1.bf16.xpose.msra.mxu0 0
        %588 = vmatprep.subr.bf16.mxu0 0
        %589 = vmatpush1.bf16.xpose.msra.mxu0 0
        %590 = vmatprep.subr.bf16.mxu0 0
        %591 = vmatpush1.bf16.xpose.msra.mxu0 0
        %592 = vmatprep.subr.bf16.mxu0 0
        %593 = vmatpush1.bf16.xpose.msra.mxu0 0
        %594 = vmatprep.subr.bf16.mxu0 0
        %595 = vmatpush1.bf16.xpose.msra.mxu0 0
        %596 = vmatprep.mubr.bf16.mxu0 0
        %597 = vmatmul.mubr.bf16.gmra.mrb[0].mxu0 %v559
        %v598 = vpop.f32.mrb[0].mxu0
        %v599 = vadd.f32 0.0, %v598
        %v600 = vpop.f32.mrb[0].mxu0
        %v601 = vpop.f32.mrb[0].mxu0
        %v602 = vpop.f32.mrb[0].mxu0
        %603 = vdwg.mxu0
        %v604 = vmul.f32 %v599, 0.35355338
        %v605 = vadd.f32 %v604, %v429
        %v606 = vsel %vm443, %v605, -inf
        %607 = vmax.xlane.f32.xlu0 %v606
        %v608 = vpop.xlane.xlu0 %607
        %v609 = vsub.f32 %v605, %v608
        %v610 = vmul.f32 %v609, 1.442695
        %v611 = vpow.pop %v610
        %v612 = vsel %vm443, %v611, 0.0
        %613 = vadd.xlane.f32.xlu0 %v612
        %v614 = vpop.xlane.xlu0 %613
        %v615 = vrcp.pop %v614
        %v616 = vmul.f32 %v611, %v615
        %v617 = vpack.c.bf16 %v616, %v616
        %618 = vrot.lane.b32.xlu0 %v440, 56
        %v619 = vpop.permute.xlu0 %618
        %v621 = vsel %vm443, %v617, 0
        %v624 = vsel %vm509, %v619, 0
        %626 = vmatprep.subr.bf16.mxu0 0
        %627 = vmatpush1.bf16.msra.mxu0 %v624
        %628 = vmatprep.subr.bf16.mxu0 0
        %629 = vmatpush1.bf16.msra.mxu0 0
        %630 = vmatprep.subr.bf16.mxu0 0
        %631 = vmatpush1.bf16.msra.mxu0 0
        %632 = vmatprep.subr.bf16.mxu0 0
        %633 = vmatpush1.bf16.msra.mxu0 0
        %634 = vmatprep.subr.bf16.mxu0 0
        %635 = vmatpush1.bf16.msra.mxu0 0
        %636 = vmatprep.subr.bf16.mxu0 0
        %637 = vmatpush1.bf16.msra.mxu0 0
        %638 = vmatprep.subr.bf16.mxu0 0
        %639 = vmatpush1.bf16.msra.mxu0 0
        %640 = vmatprep.subr.bf16.mxu0 0
        %641 = vmatpush1.bf16.msra.mxu0 0
        %642 = vmatprep.subr.bf16.mxu0 0
        %643 = vmatpush1.bf16.msra.mxu0 0
        %644 = vmatprep.subr.bf16.mxu0 0
        %645 = vmatpush1.bf16.msra.mxu0 0
        %646 = vmatprep.subr.bf16.mxu0 0
        %647 = vmatpush1.bf16.msra.mxu0 0
        %648 = vmatprep.subr.bf16.mxu0 0
        %649 = vmatpush1.bf16.msra.mxu0 0
        %650 = vmatprep.subr.bf16.mxu0 0
        %651 = vmatpush1.bf16.msra.mxu0 0
        %652 = vmatprep.subr.bf16.mxu0 0
        %653 = vmatpush1.bf16.msra.mxu0 0
        %654 = vmatprep.subr.bf16.mxu0 0
        %655 = vmatpush1.bf16.msra.mxu0 0
        %656 = vmatprep.subr.bf16.mxu0 0
        %657 = vmatpush1.bf16.msra.mxu0 0
        %658 = vmatprep.mubr.bf16.mxu0 0
        %659 = vmatmul.mubr.bf16.gmra.mrb[0].mxu0 %v621
        %v660 = vpop.f32.mrb[0].mxu0
        %v661 = vadd.f32 0.0, %v660
        %v662 = vpop.f32.mrb[0].mxu0
        %v663 = vpop.f32.mrb[0].mxu0
        %v664 = vpop.f32.mrb[0].mxu0
        %665 = vdwg.mxu0
        %v666 = vpack.c.bf16 %v661, %v661
        %v668 = vsel %vm443, %v666, 0
        %v671 = vsel %vm509, %v431, 0
        %673 = vmatprep.subr.bf16.mxu0 0
        %674 = vmatpush1.bf16.msra.mxu0 %v671
        %675 = vmatprep.subr.bf16.mxu0 0
        %676 = vmatpush1.bf16.msra.mxu0 0
        %677 = vmatprep.subr.bf16.mxu0 0
        %678 = vmatpush1.bf16.msra.mxu0 0
        %679 = vmatprep.subr.bf16.mxu0 0
        %680 = vmatpush1.bf16.msra.mxu0 0
        %681 = vmatprep.subr.bf16.mxu0 0
        %682 = vmatpush1.bf16.msra.mxu0 0
        %683 = vmatprep.subr.bf16.mxu0 0
        %684 = vmatpush1.bf16.msra.mxu0 0
        %685 = vmatprep.subr.bf16.mxu0 0
        %686 = vmatpush1.bf16.msra.mxu0 0
        %687 = vmatprep.subr.bf16.mxu0 0
        %688 = vmatpush1.bf16.msra.mxu0 0
        %689 = vmatprep.subr.bf16.mxu0 0
        %690 = vmatpush1.bf16.msra.mxu0 0
        %691 = vmatprep.subr.bf16.mxu0 0
        %692 = vmatpush1.bf16.msra.mxu0 0
        %693 = vmatprep.subr.bf16.mxu0 0
        %694 = vmatpush1.bf16.msra.mxu0 0
        %695 = vmatprep.subr.bf16.mxu0 0
        %696 = vmatpush1.bf16.msra.mxu0 0
        %697 = vmatprep.subr.bf16.mxu0 0
        %698 = vmatpush1.bf16.msra.mxu0 0
        %699 = vmatprep.subr.bf16.mxu0 0
        %700 = vmatpush1.bf16.msra.mxu0 0
        %701 = vmatprep.subr.bf16.mxu0 0
        %702 = vmatpush1.bf16.msra.mxu0 0
        %703 = vmatprep.subr.bf16.mxu0 0
        %704 = vmatpush1.bf16.msra.mxu0 0
        %705 = vmatprep.mubr.bf16.mxu0 0
        %706 = vmatmul.mubr.bf16.gmra.mrb[0].mxu0 %v668
        %v707 = vpop.f32.mrb[0].mxu0
        %v708 = vadd.f32 0.0, %v707
        %v709 = vpop.f32.mrb[0].mxu0
        %v710 = vpop.f32.mrb[0].mxu0
        %v711 = vpop.f32.mrb[0].mxu0
        %712 = vdwg.mxu0
        %v714 = vsel %vm443, %v553, 0
        %v717 = vsel %vm509, %v430, 0
        %719 = vmatprep.subr.bf16.mxu0 0
        %720 = vmatpush1.bf16.msra.mxu0 %v717
        %721 = vmatprep.subr.bf16.mxu0 0
        %722 = vmatpush1.bf16.msra.mxu0 0
        %723 = vmatprep.subr.bf16.mxu0 0
        %724 = vmatpush1.bf16.msra.mxu0 0
        %725 = vmatprep.subr.bf16.mxu0 0
        %726 = vmatpush1.bf16.msra.mxu0 0
        %727 = vmatprep.subr.bf16.mxu0 0
        %728 = vmatpush1.bf16.msra.mxu0 0
        %729 = vmatprep.subr.bf16.mxu0 0
        %730 = vmatpush1.bf16.msra.mxu0 0
        %731 = vmatprep.subr.bf16.mxu0 0
        %732 = vmatpush1.bf16.msra.mxu0 0
        %733 = vmatprep.subr.bf16.mxu0 0
        %734 = vmatpush1.bf16.msra.mxu0 0
        %735 = vmatprep.subr.bf16.mxu0 0
        %736 = vmatpush1.bf16.msra.mxu0 0
        %737 = vmatprep.subr.bf16.mxu0 0
        %738 = vmatpush1.bf16.msra.mxu0 0
        %739 = vmatprep.subr.bf16.mxu0 0
        %740 = vmatpush1.bf16.msra.mxu0 0
        %741 = vmatprep.subr.bf16.mxu0 0
        %742 = vmatpush1.bf16.msra.mxu0 0
        %743 = vmatprep.subr.bf16.mxu0 0
        %744 = vmatpush1.bf16.msra.mxu0 0
        %745 = vmatprep.subr.bf16.mxu0 0
        %746 = vmatpush1.bf16.msra.mxu0 0
        %747 = vmatprep.subr.bf16.mxu0 0
        %748 = vmatpush1.bf16.msra.mxu0 0
        %749 = vmatprep.subr.bf16.mxu0 0
        %750 = vmatpush1.bf16.msra.mxu0 0
        %751 = vmatprep.mubr.bf16.mxu0 0
        %752 = vmatmul.mubr.bf16.gmra.mrb[0].mxu0 %v714
        %v753 = vpop.f32.mrb[0].mxu0
        %v754 = vadd.f32 %v708, %v753
        %v755 = vpop.f32.mrb[0].mxu0
        %v756 = vpop.f32.mrb[0].mxu0
        %v757 = vpop.f32.mrb[0].mxu0
        %758 = vdwg.mxu0
        %759 = vrot.lane.b32.xlu0 %v440, 112
        %v760 = vpop.permute.xlu0 %759
        %761 = vrot.lane.b32.xlu0 %v440, 80
        %v762 = vpop.permute.xlu0 %761
        %v764 = vsel %vm443, %v760, 0
        %v767 = vsel %vm443, %v762, 0
        %769 = vmatprep.subr.bf16.mxu0 0
        %770 = vmatpush1.bf16.xpose.msra.mxu0 %v767
        %771 = vmatprep.subr.bf16.mxu0 0
        %772 = vmatpush1.bf16.xpose.msra.mxu0 0
        %773 = vmatprep.subr.bf16.mxu0 0
        %774 = vmatpush1.bf16.xpose.msra.mxu0 0
        %775 = vmatprep.subr.bf16.mxu0 0
        %776 = vmatpush1.bf16.xpose.msra.mxu0 0
        %777 = vmatprep.subr.bf16.mxu0 0
        %778 = vmatpush1.bf16.xpose.msra.mxu0 0
        %779 = vmatprep.subr.bf16.mxu0 0
        %780 = vmatpush1.bf16.xpose.msra.mxu0 0
        %781 = vmatprep.subr.bf16.mxu0 0
        %782 = vmatpush1.bf16.xpose.msra.mxu0 0
        %783 = vmatprep.subr.bf16.mxu0 0
        %784 = vmatpush1.bf16.xpose.msra.mxu0 0
        %785 = vmatprep.subr.bf16.mxu0 0
        %786 = vmatpush1.bf16.xpose.msra.mxu0 0
        %787 = vmatprep.subr.bf16.mxu0 0
        %788 = vmatpush1.bf16.xpose.msra.mxu0 0
        %789 = vmatprep.subr.bf16.mxu0 0
        %790 = vmatpush1.bf16.xpose.msra.mxu0 0
        %791 = vmatprep.subr.bf16.mxu0 0
        %792 = vmatpush1.bf16.xpose.msra.mxu0 0
        %793 = vmatprep.subr.bf16.mxu0 0
        %794 = vmatpush1.bf16.xpose.msra.mxu0 0
        %795 = vmatprep.subr.bf16.mxu0 0
        %796 = vmatpush1.bf16.xpose.msra.mxu0 0
        %797 = vmatprep.subr.bf16.mxu0 0
        %798 = vmatpush1.bf16.xpose.msra.mxu0 0
        %799 = vmatprep.subr.bf16.mxu0 0
        %800 = vmatpush1.bf16.xpose.msra.mxu0 0
        %801 = vmatprep.mubr.bf16.mxu0 0
        %802 = vmatmul.mubr.bf16.gmra.mrb[0].mxu0 %v764
        %v803 = vpop.f32.mrb[0].mxu0
        %v804 = vadd.f32 0.0, %v803
        %v805 = vpop.f32.mrb[0].mxu0
        %v806 = vpop.f32.mrb[0].mxu0
        %v807 = vpop.f32.mrb[0].mxu0
        %808 = vdwg.mxu0
        %v809 = vmul.f32 %v804, 0.35355338
        %v810 = vadd.f32 %v809, %v429
        %v811 = vsel %vm443, %v810, -inf
        %812 = vmax.xlane.f32.xlu0 %v811
        %v813 = vpop.xlane.xlu0 %812
        %v814 = vsub.f32 %v810, %v813
        %v815 = vmul.f32 %v814, 1.442695
        %v816 = vpow.pop %v815
        %v817 = vsel %vm443, %v816, 0.0
        %818 = vadd.xlane.f32.xlu0 %v817
        %v819 = vpop.xlane.xlu0 %818
        %v820 = vrcp.pop %v819
        %v821 = vmul.f32 %v816, %v820
        %v822 = vpack.c.bf16 %v821, %v821
        %823 = vrot.lane.b32.xlu0 %v440, 48
        %v824 = vpop.permute.xlu0 %823
        %v826 = vsel %vm443, %v822, 0
        %v829 = vsel %vm509, %v824, 0
        %831 = vmatprep.subr.bf16.mxu0 0
        %832 = vmatpush1.bf16.msra.mxu0 %v829
        %833 = vmatprep.subr.bf16.mxu0 0
        %834 = vmatpush1.bf16.msra.mxu0 0
        %835 = vmatprep.subr.bf16.mxu0 0
        %836 = vmatpush1.bf16.msra.mxu0 0
        %837 = vmatprep.subr.bf16.mxu0 0
        %838 = vmatpush1.bf16.msra.mxu0 0
        %839 = vmatprep.subr.bf16.mxu0 0
        %840 = vmatpush1.bf16.msra.mxu0 0
        %841 = vmatprep.subr.bf16.mxu0 0
        %842 = vmatpush1.bf16.msra.mxu0 0
        %843 = vmatprep.subr.bf16.mxu0 0
        %844 = vmatpush1.bf16.msra.mxu0 0
        %845 = vmatprep.subr.bf16.mxu0 0
        %846 = vmatpush1.bf16.msra.mxu0 0
        %847 = vmatprep.subr.bf16.mxu0 0
        %848 = vmatpush1.bf16.msra.mxu0 0
        %849 = vmatprep.subr.bf16.mxu0 0
        %850 = vmatpush1.bf16.msra.mxu0 0
        %851 = vmatprep.subr.bf16.mxu0 0
        %852 = vmatpush1.bf16.msra.mxu0 0
        %853 = vmatprep.subr.bf16.mxu0 0
        %854 = vmatpush1.bf16.msra.mxu0 0
        %855 = vmatprep.subr.bf16.mxu0 0
        %856 = vmatpush1.bf16.msra.mxu0 0
        %857 = vmatprep.subr.bf16.mxu0 0
        %858 = vmatpush1.bf16.msra.mxu0 0
        %859 = vmatprep.subr.bf16.mxu0 0
        %860 = vmatpush1.bf16.msra.mxu0 0
        %861 = vmatprep.subr.bf16.mxu0 0
        %862 = vmatpush1.bf16.msra.mxu0 0
        %863 = vmatprep.mubr.bf16.mxu0 0
        %864 = vmatmul.mubr.bf16.gmra.mrb[0].mxu0 %v826
        %v865 = vpop.f32.mrb[0].mxu0
        %v866 = vadd.f32 0.0, %v865
        %v867 = vpop.f32.mrb[0].mxu0
        %v868 = vpop.f32.mrb[0].mxu0
        %v869 = vpop.f32.mrb[0].mxu0
        %870 = vdwg.mxu0
        %v871 = vpack.c.bf16 %v866, %v866
        %v873 = vsel %vm443, %v871, 0
        %v876 = vsel %vm509, %v432, 0
        %878 = vmatprep.subr.bf16.mxu0 0
        %879 = vmatpush1.bf16.msra.mxu0 %v876
        %880 = vmatprep.subr.bf16.mxu0 0
        %881 = vmatpush1.bf16.msra.mxu0 0
        %882 = vmatprep.subr.bf16.mxu0 0
        %883 = vmatpush1.bf16.msra.mxu0 0
        %884 = vmatprep.subr.bf16.mxu0 0
        %885 = vmatpush1.bf16.msra.mxu0 0
        %886 = vmatprep.subr.bf16.mxu0 0
        %887 = vmatpush1.bf16.msra.mxu0 0
        %888 = vmatprep.subr.bf16.mxu0 0
        %889 = vmatpush1.bf16.msra.mxu0 0
        %890 = vmatprep.subr.bf16.mxu0 0
        %891 = vmatpush1.bf16.msra.mxu0 0
        %892 = vmatprep.subr.bf16.mxu0 0
        %893 = vmatpush1.bf16.msra.mxu0 0
        %894 = vmatprep.subr.bf16.mxu0 0
        %895 = vmatpush1.bf16.msra.mxu0 0
        %896 = vmatprep.subr.bf16.mxu0 0
        %897 = vmatpush1.bf16.msra.mxu0 0
        %898 = vmatprep.subr.bf16.mxu0 0
        %899 = vmatpush1.bf16.msra.mxu0 0
        %900 = vmatprep.subr.bf16.mxu0 0
        %901 = vmatpush1.bf16.msra.mxu0 0
        %902 = vmatprep.subr.bf16.mxu0 0
        %903 = vmatpush1.bf16.msra.mxu0 0
        %904 = vmatprep.subr.bf16.mxu0 0
        %905 = vmatpush1.bf16.msra.mxu0 0
        %906 = vmatprep.subr.bf16.mxu0 0
        %907 = vmatpush1.bf16.msra.mxu0 0
        %908 = vmatprep.subr.bf16.mxu0 0
        %909 = vmatpush1.bf16.msra.mxu0 0
        %910 = vmatprep.mubr.bf16.mxu0 0
        %911 = vmatmul.mubr.bf16.gmra.mrb[0].mxu0 %v873
        %v912 = vpop.f32.mrb[0].mxu0
        %v913 = vadd.f32 0.0, %v912
        %v914 = vpop.f32.mrb[0].mxu0
        %v915 = vpop.f32.mrb[0].mxu0
        %v916 = vpop.f32.mrb[0].mxu0
        %917 = vdwg.mxu0
        %v918 = vadd.f32 %v754, %v913
        %919 = vrot.lane.b32.xlu0 %v440, 104
        %v920 = vpop.permute.xlu0 %919
        %921 = vrot.lane.b32.xlu0 %v440, 72
        %v922 = vpop.permute.xlu0 %921
        %v924 = vsel %vm443, %v920, 0
        %v927 = vsel %vm443, %v922, 0
        %929 = vmatprep.subr.bf16.mxu0 0
        %930 = vmatpush1.bf16.xpose.msra.mxu0 %v927
        %931 = vmatprep.subr.bf16.mxu0 0
        %932 = vmatpush1.bf16.xpose.msra.mxu0 0
        %933 = vmatprep.subr.bf16.mxu0 0
        %934 = vmatpush1.bf16.xpose.msra.mxu0 0
        %935 = vmatprep.subr.bf16.mxu0 0
        %936 = vmatpush1.bf16.xpose.msra.mxu0 0
        %937 = vmatprep.subr.bf16.mxu0 0
        %938 = vmatpush1.bf16.xpose.msra.mxu0 0
        %939 = vmatprep.subr.bf16.mxu0 0
        %940 = vmatpush1.bf16.xpose.msra.mxu0 0
        %941 = vmatprep.subr.bf16.mxu0 0
        %942 = vmatpush1.bf16.xpose.msra.mxu0 0
        %943 = vmatprep.subr.bf16.mxu0 0
        %944 = vmatpush1.bf16.xpose.msra.mxu0 0
        %945 = vmatprep.subr.bf16.mxu0 0
        %946 = vmatpush1.bf16.xpose.msra.mxu0 0
        %947 = vmatprep.subr.bf16.mxu0 0
        %948 = vmatpush1.bf16.xpose.msra.mxu0 0
        %949 = vmatprep.subr.bf16.mxu0 0
        %950 = vmatpush1.bf16.xpose.msra.mxu0 0
        %951 = vmatprep.subr.bf16.mxu0 0
        %952 = vmatpush1.bf16.xpose.msra.mxu0 0
        %953 = vmatprep.subr.bf16.mxu0 0
        %954 = vmatpush1.bf16.xpose.msra.mxu0 0
        %955 = vmatprep.subr.bf16.mxu0 0
        %956 = vmatpush1.bf16.xpose.msra.mxu0 0
        %957 = vmatprep.subr.bf16.mxu0 0
        %958 = vmatpush1.bf16.xpose.msra.mxu0 0
        %959 = vmatprep.subr.bf16.mxu0 0
        %960 = vmatpush1.bf16.xpose.msra.mxu0 0
        %961 = vmatprep.mubr.bf16.mxu0 0
        %962 = vmatmul.mubr.bf16.gmra.mrb[0].mxu0 %v924
        %v963 = vpop.f32.mrb[0].mxu0
        %v964 = vadd.f32 0.0, %v963
        %v965 = vpop.f32.mrb[0].mxu0
        %v966 = vpop.f32.mrb[0].mxu0
        %v967 = vpop.f32.mrb[0].mxu0
        %968 = vdwg.mxu0
        %v969 = vmul.f32 %v964, 0.35355338
        %v970 = vadd.f32 %v969, %v429
        %v971 = vsel %vm443, %v970, -inf
        %972 = vmax.xlane.f32.xlu0 %v971
        %v973 = vpop.xlane.xlu0 %972
        %v974 = vsub.f32 %v970, %v973
        %v975 = vmul.f32 %v974, 1.442695
        %v976 = vpow.pop %v975
        %v977 = vsel %vm443, %v976, 0.0
        %978 = vadd.xlane.f32.xlu0 %v977
        %v979 = vpop.xlane.xlu0 %978
        %v980 = vrcp.pop %v979
        %v981 = vmul.f32 %v976, %v980
        %v982 = vpack.c.bf16 %v981, %v981
        %983 = vrot.lane.b32.xlu0 %v440, 40
        %v984 = vpop.permute.xlu0 %983
        %v986 = vsel %vm443, %v982, 0
        %v989 = vsel %vm509, %v984, 0
        %991 = vmatprep.subr.bf16.mxu0 0
        %992 = vmatpush1.bf16.msra.mxu0 %v989
        %993 = vmatprep.subr.bf16.mxu0 0
        %994 = vmatpush1.bf16.msra.mxu0 0
        %995 = vmatprep.subr.bf16.mxu0 0
        %996 = vmatpush1.bf16.msra.mxu0 0
        %997 = vmatprep.subr.bf16.mxu0 0
        %998 = vmatpush1.bf16.msra.mxu0 0
        %999 = vmatprep.subr.bf16.mxu0 0
        %1000 = vmatpush1.bf16.msra.mxu0 0
        %1001 = vmatprep.subr.bf16.mxu0 0
        %1002 = vmatpush1.bf16.msra.mxu0 0
        %1003 = vmatprep.subr.bf16.mxu0 0
        %1004 = vmatpush1.bf16.msra.mxu0 0
        %1005 = vmatprep.subr.bf16.mxu0 0
        %1006 = vmatpush1.bf16.msra.mxu0 0
        %1007 = vmatprep.subr.bf16.mxu0 0
        %1008 = vmatpush1.bf16.msra.mxu0 0
        %1009 = vmatprep.subr.bf16.mxu0 0
        %1010 = vmatpush1.bf16.msra.mxu0 0
        %1011 = vmatprep.subr.bf16.mxu0 0
        %1012 = vmatpush1.bf16.msra.mxu0 0
        %1013 = vmatprep.subr.bf16.mxu0 0
        %1014 = vmatpush1.bf16.msra.mxu0 0
        %1015 = vmatprep.subr.bf16.mxu0 0
        %1016 = vmatpush1.bf16.msra.mxu0 0
        %1017 = vmatprep.subr.bf16.mxu0 0
        %1018 = vmatpush1.bf16.msra.mxu0 0
        %1019 = vmatprep.subr.bf16.mxu0 0
        %1020 = vmatpush1.bf16.msra.mxu0 0
        %1021 = vmatprep.subr.bf16.mxu0 0
        %1022 = vmatpush1.bf16.msra.mxu0 0
        %1023 = vmatprep.mubr.bf16.mxu0 0
        %1024 = vmatmul.mubr.bf16.gmra.mrb[0].mxu0 %v986
        %v1025 = vpop.f32.mrb[0].mxu0
        %v1026 = vadd.f32 0.0, %v1025
        %v1027 = vpop.f32.mrb[0].mxu0
        %v1028 = vpop.f32.mrb[0].mxu0
        %v1029 = vpop.f32.mrb[0].mxu0
        %1030 = vdwg.mxu0
        %v1031 = vpack.c.bf16 %v1026, %v1026
        %v1033 = vsel %vm443, %v1031, 0
        %v1036 = vsel %vm509, %v433, 0
        %1038 = vmatprep.subr.bf16.mxu0 0
        %1039 = vmatpush1.bf16.msra.mxu0 %v1036
        %1040 = vmatprep.subr.bf16.mxu0 0
        %1041 = vmatpush1.bf16.msra.mxu0 0
        %1042 = vmatprep.subr.bf16.mxu0 0
        %1043 = vmatpush1.bf16.msra.mxu0 0
        %1044 = vmatprep.subr.bf16.mxu0 0
        %1045 = vmatpush1.bf16.msra.mxu0 0
        %1046 = vmatprep.subr.bf16.mxu0 0
        %1047 = vmatpush1.bf16.msra.mxu0 0
        %1048 = vmatprep.subr.bf16.mxu0 0
        %1049 = vmatpush1.bf16.msra.mxu0 0
        %1050 = vmatprep.subr.bf16.mxu0 0
        %1051 = vmatpush1.bf16.msra.mxu0 0
        %1052 = vmatprep.subr.bf16.mxu0 0
        %1053 = vmatpush1.bf16.msra.mxu0 0
        %1054 = vmatprep.subr.bf16.mxu0 0
        %1055 = vmatpush1.bf16.msra.mxu0 0
        %1056 = vmatprep.subr.bf16.mxu0 0
        %1057 = vmatpush1.bf16.msra.mxu0 0
        %1058 = vmatprep.subr.bf16.mxu0 0
        %1059 = vmatpush1.bf16.msra.mxu0 0
        %1060 = vmatprep.subr.bf16.mxu0 0
        %1061 = vmatpush1.bf16.msra.mxu0 0
        %1062 = vmatprep.subr.bf16.mxu0 0
        %1063 = vmatpush1.bf16.msra.mxu0 0
        %1064 = vmatprep.subr.bf16.mxu0 0
        %1065 = vmatpush1.bf16.msra.mxu0 0
        %1066 = vmatprep.subr.bf16.mxu0 0
        %1067 = vmatpush1.bf16.msra.mxu0 0
        %1068 = vmatprep.subr.bf16.mxu0 0
        %1069 = vmatpush1.bf16.msra.mxu0 0
        %1070 = vmatprep.mubr.bf16.mxu0 0
        %1071 = vmatmul.mubr.bf16.gmra.mrb[0].mxu0 %v1033
        %v1072 = vpop.f32.mrb[0].mxu0
        %v1073 = vadd.f32 0.0, %v1072
        %v1074 = vpop.f32.mrb[0].mxu0
        %v1075 = vpop.f32.mrb[0].mxu0
        %v1076 = vpop.f32.mrb[0].mxu0
        %1077 = vdwg.mxu0
        %v1078 = vadd.f32 %v918, %v1073
        %v1080 = vlaneseq
        %v1081 = vshrl.u32 %v1080, 7
        %v1082 = vsub.s32 0, %v1081
        %v1083 = vrot.slane %v434, %v1082
        %v1085 = vadd.f32 %v1078, %v1083
        %v1086 = vadd.f32 %v1085, %v435
        %vm1087 = vcmask 261120
        %v1088 = vsel %vm1087, %v1086, 0.0
        %1089 = vadd.xlane.f32.xlu0 %v1088
        %v1090 = vpop.xlane.xlu0 %1089
        %v1091 = vrcp.pop 32.0
        %v1092 = vmul.f32 %v1090, %v1091
        %v1093 = vsub.f32 %v1086, %v1092
        %v1094 = vmul.f32 %v1093, %v1093
        %v1095 = vsel %vm1087, %v1094, 0.0
        %1096 = vadd.xlane.f32.xlu0 %v1095
        %v1097 = vpop.xlane.xlu0 %1096
        %v1098 = vmul.f32 %v1097, %v1091
        %v1099 = vadd.f32 %v1098, 1e-05
        %v1100 = vrsqrt.pop %v1099
        %v1101 = vmul.f32 %v1093, %v1100
        %v1103 = vlaneseq
        %v1104 = vshrl.u32 %v1103, 7
        %v1105 = vsub.s32 0, %v1104
        %v1106 = vrot.slane %v436, %v1105
        %v1108 = vmul.f32 %v1101, %v1106
        %v1110 = vlaneseq
        %v1111 = vshrl.u32 %v1110, 7
        %v1112 = vsub.s32 0, %v1111
        %v1113 = vrot.slane %v437, %v1112
        %v1115 = vadd.f32 %v1108, %v1113
        %1116 = vst.msk [vmem:[%s413] sm:$0xff] %vm1087, %v1115
        %s1117 = sand.u32 %s199, 1
        %s1118 = scalar_lea.sflag [#allocation4], %s1117
        %s1119 = sand.u32 %s199, 1
        %s1120 = smul.addr %s1119, 8
        %s1121 = scalar_lea.vmem [#allocation14], %s1120
        // Predicated region
        $region77: #{transformer_forward.26} parent=47 // pred_check
          %p1122 = pneg %p209
        $region78: #{transformer_forward.26} parent=47 // pred_check_branch
          %1124 = sbr.rel (%p1122) target = $region80
        $region79: #{transformer_forward.26} parent=47 // pred_region
          %s1126 = ssub.s32 128, 128
          %1127 = vsyncadd %s1118, %s1126
          %s1128 = smul.addr %s29, 128
          %s1129 = scalar_lea.hbm %s7, %s1128
          %s1131 = sshll.u32 %s1121, 4
          %s1132 = int_to_ptr.vmem [resolvable:$true] %s1131
          %1134 = dma.vmem_to_hbm [thread:$0]  %s1132, 128, %s1129, %s1118
        $region80: #{transformer_forward.26} parent=47 // pred_fallthru
          _
      $region48: #{transformer_forward.26} parent=5 // pred_fallthru
        _
      %p1135 = scmp.le.s32.totalorder 2, %s24
      // Predicated region
      $region81: #{transformer_forward.26} parent=5 // pred_check
        %p1136 = pneg %p1135
      $region82: #{transformer_forward.26} parent=5 // pred_check_branch
        %1138 = sbr.rel (%p1136) target = $region84
      $region83: #{transformer_forward.26} parent=5 // pred_region
        %s1139 = ssub.s32 %s24, 2
        // Predicated region
        $region85: #{transformer_forward.26} parent=83 // pred_check
          %p1140 = pneg %p215
        $region86: #{transformer_forward.26} parent=83 // pred_check_branch
          %1142 = sbr.rel (%p1140) target = $region88
        $region87: #{transformer_forward.26} parent=83 // pred_region
          %s1143 = sand.u32 %s200, 1
          %s1144 = scalar_lea.sflag [#allocation4], %s1143
          %s1145 = sand.u32 %s200, 1
          %s1146 = smul.addr %s1145, 8
          %s1147 = scalar_lea.vmem [#allocation14], %s1146
          %1148 = dma.done %s1144, 128
        $region88: #{transformer_forward.26} parent=83 // pred_fallthru
          _
      $region84: #{transformer_forward.26} parent=5 // pred_fallthru
        _
    $region6: #{transformer_forward.26} parent=1 // loop_footer
      %s28 = sadd.s32 1, %s24
    $region7: #{transformer_forward.26} parent=1 // loop_footer_branch
      %23 = sbr.rel target = $region3
    $region8: #{transformer_forward.26} parent=1 // loop_exit
      _
    %1149 = vsyncpa [#allocation3], 1
    %s1150 = scalar_lea.sflag [#allocation3], 1
    %1151 = vsyncpa %s1150, 1
    %1152 = vsyncpa [#allocation6], 1
    %s1153 = scalar_lea.sflag [#allocation6], 1
    %1154 = vsyncpa %s1153, 1
    %1155 = vsyncpa [#allocation9], 1
    %1156 = vsyncpa [#allocation12], 1
    %1157 = vsyncpa [#allocation4], 1
    %s1158 = scalar_lea.sflag [#allocation4], 1
    %1159 = vsyncpa %s1158, 1

// kernel: transformer_forward.29
$region0: #{transformer_forward.29}
  #allocation0 [shape = 'u32[]', space=smem, size = 0x4, offset = 0x4, fixed_abs, tag = 'smem constant byte address 0x4 - core index']
  #allocation1 [shape = 'u32[144,128]{1,0:T(1,128)}', space=vmem, size = 0x12000, scoped, tag = 'internal scratch']
  %s0 = inlined_call_operand.hbm [shape: bf16[2,8,32], index: 0, kind: input, shape index: {}]
  %s1 = inlined_call_operand.hbm [shape: bf16[2,8,64], index: 1, kind: input, shape index: {}]
  %s2 = inlined_call_operand.hbm [shape: f32[2,1,8], index: 2, kind: input, shape index: {}]
  %s3 = inlined_call_operand.hbm [shape: f32[2,8,32], index: 3, kind: input, shape index: {}]
  %s4 = inlined_call_operand.hbm [shape: bf16[32,32], index: 4, kind: input, shape index: {}]
  %s5 = inlined_call_operand.hbm [shape: f32[1,32], index: 5, kind: input, shape index: {}]
  %s6 = inlined_call_operand.hbm [shape: f32[1,32], index: 6, kind: input, shape index: {}]
  %s7 = inlined_call_operand.hbm [shape: f32[1,32], index: 7, kind: input, shape index: {}]
  %s8 = inlined_call_operand.hbm [shape: f32[2,8,32], index: 8, kind: output, shape index: {}]
  %s9 = sld [smem:[#allocation0]]
  $region97: #{transformer_forward.29} parent=0
    _
  %s11 = ssub.s32 1, %s9
  %s12 = scalar_select 0, %s11, %s9
  $region1: #{transformer_forward.29} parent=0
    #allocation2 [shape = 'u8[4096]{0}', space=vmem, size = 0x1000, scoped, tag = 'input window, operand 0']
    #allocation3 [shape = 's32[2]{0}', space=sflag, size = 0x8, scoped, tag = 'scoped memory for transformer_forward.29']
    #allocation4 [shape = 's32[2]{0}', space=sflag, size = 0x8, scoped, tag = 'scoped memory for transformer_forward.29']
    #allocation5 [shape = 'u8[4096]{0}', space=vmem, size = 0x1000, scoped, tag = 'input window, operand 1']
    #allocation6 [shape = 's32[2]{0}', space=sflag, size = 0x8, scoped, tag = 'scoped memory for transformer_forward.29']
    #allocation7 [shape = 'u8[1024]{0}', space=vmem, size = 0x400, scoped, tag = 'input window, operand 2']
    #allocation8 [shape = 'u8[8192]{0}', space=vmem, size = 0x2000, scoped, tag = 'input window, operand 3']
    #allocation9 [shape = 's32[2]{0}', space=sflag, size = 0x8, scoped, tag = 'scoped memory for transformer_forward.29']
    #allocation10 [shape = 'u8[8192]{0}', space=vmem, size = 0x2000, scoped, tag = 'input window, operand 4, single buffered']
    #allocation11 [shape = 'u8[512]{0}', space=vmem, size = 0x400, scoped, tag = 'input window, operand 5, single buffered']
    #allocation12 [shape = 's32[1]{0}', space=sflag, size = 0x4, scoped, tag = 'scoped memory for transformer_forward.29']
    #allocation13 [shape = 'u8[512]{0}', space=vmem, size = 0x400, scoped, tag = 'input window, operand 6, single buffered']
    #allocation14 [shape = 'u8[512]{0}', space=vmem, size = 0x400, scoped, tag = 'input window, operand 7, single buffered']
    #allocation15 [shape = 's32[1]{0}', space=sflag, size = 0x4, scoped, tag = 'scoped memory for transformer_forward.29']
    #allocation16 [shape = 'u8[8192]{0}', space=vmem, size = 0x2000, scoped, tag = 'output window, operand 0']
    %13 = vsyncpa [#allocation3], 0
    %s14 = scalar_lea.sflag [#allocation3], 1
    %15 = vsyncpa %s14, 0
    %16 = vsyncpa [#allocation6], 0
    %s17 = scalar_lea.sflag [#allocation6], 1
    %18 = vsyncpa %s17, 0
    %19 = vsyncpa [#allocation9], 0
    %s20 = scalar_lea.sflag [#allocation9], 1
    %21 = vsyncpa %s20, 0
    %22 = vsyncpa [#allocation12], 0
    %23 = vsyncpa [#allocation15], 0
    %24 = vsyncpa [#allocation4], 0
    %s25 = scalar_lea.sflag [#allocation4], 1
    %26 = vsyncpa %s25, 0
    loop: start=0, step=1, limit=4
    $region2: #{transformer_forward.29} parent=1 // loop_pre_header
      _
    $region3: #{transformer_forward.29} parent=1 // loop_header
      %s28 = sphi 0, %s32
      %p29 = scmp.ge.s32.totalorder %s28, 4
      %s38 = sphi 0, %s40
      %s41 = sphi 0, %s38
      %s42 = sphi 0, %s41
      %s58 = sphi 0, %s42
      %s64 = sphi 0, %s66
      %s67 = sphi 0, %s64
      %s68 = sphi 0, %s67
      %s84 = sphi 0, %s68
      %s90 = sphi 0, %s92
      %s93 = sphi 0, %s90
      %s94 = sphi 0, %s93
      %s110 = sphi 0, %s94
      %s116 = sphi 0, %s118
      %s119 = sphi 0, %s116
      %s120 = sphi 0, %s119
      %s136 = sphi 0, %s120
      %s140 = sphi 0, %s140
      %s142 = sphi 0, %s140
      %s143 = sphi 0, %s142
      %s157 = sphi 0, %s143
      %s161 = sphi 0, %s161
      %s163 = sphi 0, %s161
      %s164 = sphi 0, %s163
      %s178 = sphi 0, %s164
      %s182 = sphi 0, %s182
      %s184 = sphi 0, %s182
      %s185 = sphi 0, %s184
      %s199 = sphi 0, %s185
      %s203 = sphi 0, %s203
      %s205 = sphi 0, %s203
      %s206 = sphi 0, %s205
      %s220 = sphi 0, %s206
      %s226 = sphi 0, %s228
      %s229 = sphi 0, %s226
      %s230 = sphi 0, %s229
      %s246 = sphi 0, %s230
    $region4: #{transformer_forward.29} parent=1 // loop_header_branch
      %31 = sbr.rel (%p29) target = $region8
    $region5: #{transformer_forward.29} parent=1 // loop_body
      %s33 = ssub.s32 %s28, 1
      %s34 = ssub.s32 %s28, 2
      %s35 = sadd.s32 %s28, 1
      %s36 = ssub.s32 %s28, %s35
      %p37 = scmp.eq.s32.totalorder %s36, 0
      %s39 = sadd.s32 %s38, 1
      %s40 = scalar_select %p37, %s38, %s39
      %p43 = pneg %p37
      %p44 = scmp.eq.s32.totalorder %s28, 1
      %p45 = por %p43, %p44
      %p46 = scmp.ne.s32.totalorder %s38, %s41
      %p47 = scmp.eq.s32.totalorder %s28, 0
      %p48 = por %p46, %p47
      %p49 = scmp.ne.s32.totalorder %s38, %s41
      %p50 = scmp.eq.s32.totalorder %s33, 1
      %p51 = por %p49, %p50
      %p52 = scmp.ne.s32.totalorder %s41, %s42
      %p53 = scmp.eq.s32.totalorder %s33, 0
      %p54 = por %p52, %p53
      %p55 = scmp.ne.s32.totalorder %s41, %s42
      %p56 = scmp.eq.s32.totalorder %s34, 1
      %p57 = por %p55, %p56
      %p59 = scmp.ne.s32.totalorder %s42, %s58
      %p60 = scmp.eq.s32.totalorder %s34, 0
      %p61 = por %p59, %p60
      %s62 = ssub.s32 %s28, %s35
      %p63 = scmp.eq.s32.totalorder %s62, 0
      %s65 = sadd.s32 %s64, 1
      %s66 = scalar_select %p63, %s64, %s65
      %p69 = pneg %p63
      %p70 = scmp.eq.s32.totalorder %s28, 1
      %p71 = por %p69, %p70
      %p72 = scmp.ne.s32.totalorder %s64, %s67
      %p73 = scmp.eq.s32.totalorder %s28, 0
      %p74 = por %p72, %p73
      %p75 = scmp.ne.s32.totalorder %s64, %s67
      %p76 = scmp.eq.s32.totalorder %s33, 1
      %p77 = por %p75, %p76
      %p78 = scmp.ne.s32.totalorder %s67, %s68
      %p79 = scmp.eq.s32.totalorder %s33, 0
      %p80 = por %p78, %p79
      %p81 = scmp.ne.s32.totalorder %s67, %s68
      %p82 = scmp.eq.s32.totalorder %s34, 1
      %p83 = por %p81, %p82
      %p85 = scmp.ne.s32.totalorder %s68, %s84
      %p86 = scmp.eq.s32.totalorder %s34, 0
      %p87 = por %p85, %p86
      %s88 = ssub.s32 %s28, %s35
      %p89 = scmp.eq.s32.totalorder %s88, 0
      %s91 = sadd.s32 %s90, 1
      %s92 = scalar_select %p89, %s90, %s91
      %p95 = pneg %p89
      %p96 = scmp.eq.s32.totalorder %s28, 1
      %p97 = por %p95, %p96
      %p98 = scmp.ne.s32.totalorder %s90, %s93
      %p99 = scmp.eq.s32.totalorder %s28, 0
      %p100 = por %p98, %p99
      %p101 = scmp.ne.s32.totalorder %s90, %s93
      %p102 = scmp.eq.s32.totalorder %s33, 1
      %p103 = por %p101, %p102
      %p104 = scmp.ne.s32.totalorder %s93, %s94
      %p105 = scmp.eq.s32.totalorder %s33, 0
      %p106 = por %p104, %p105
      %p107 = scmp.ne.s32.totalorder %s93, %s94
      %p108 = scmp.eq.s32.totalorder %s34, 1
      %p109 = por %p107, %p108
      %p111 = scmp.ne.s32.totalorder %s94, %s110
      %p112 = scmp.eq.s32.totalorder %s34, 0
      %p113 = por %p111, %p112
      %s114 = ssub.s32 %s28, %s35
      %p115 = scmp.eq.s32.totalorder %s114, 0
      %s117 = sadd.s32 %s116, 1
      %s118 = scalar_select %p115, %s116, %s117
      %p121 = pneg %p115
      %p122 = scmp.eq.s32.totalorder %s28, 1
      %p123 = por %p121, %p122
      %p124 = scmp.ne.s32.totalorder %s116, %s119
      %p125 = scmp.eq.s32.totalorder %s28, 0
      %p126 = por %p124, %p125
      %p127 = scmp.ne.s32.totalorder %s116, %s119
      %p128 = scmp.eq.s32.totalorder %s33, 1
      %p129 = por %p127, %p128
      %p130 = scmp.ne.s32.totalorder %s119, %s120
      %p131 = scmp.eq.s32.totalorder %s33, 0
      %p132 = por %p130, %p131
      %p133 = scmp.ne.s32.totalorder %s119, %s120
      %p134 = scmp.eq.s32.totalorder %s34, 1
      %p135 = por %p133, %p134
      %p137 = scmp.ne.s32.totalorder %s120, %s136
      %p138 = scmp.eq.s32.totalorder %s34, 0
      %p139 = por %p137, %p138
      %s141 = sadd.s32 %s140, 1
      %p144 = scmp.eq.s32.totalorder %s28, 1
      %p145 = scmp.ne.s32.totalorder %s140, %s142
      %p146 = scmp.eq.s32.totalorder %s28, 0
      %p147 = por %p145, %p146
      %p148 = scmp.ne.s32.totalorder %s140, %s142
      %p149 = scmp.eq.s32.totalorder %s33, 1
      %p150 = por %p148, %p149
      %p151 = scmp.ne.s32.totalorder %s142, %s143
      %p152 = scmp.eq.s32.totalorder %s33, 0
      %p153 = por %p151, %p152
      %p154 = scmp.ne.s32.totalorder %s142, %s143
      %p155 = scmp.eq.s32.totalorder %s34, 1
      %p156 = por %p154, %p155
      %p158 = scmp.ne.s32.totalorder %s143, %s157
      %p159 = scmp.eq.s32.totalorder %s34, 0
      %p160 = por %p158, %p159
      %s162 = sadd.s32 %s161, 1
      %p165 = scmp.eq.s32.totalorder %s28, 1
      %p166 = scmp.ne.s32.totalorder %s161, %s163
      %p167 = scmp.eq.s32.totalorder %s28, 0
      %p168 = por %p166, %p167
      %p169 = scmp.ne.s32.totalorder %s161, %s163
      %p170 = scmp.eq.s32.totalorder %s33, 1
      %p171 = por %p169, %p170
      %p172 = scmp.ne.s32.totalorder %s163, %s164
      %p173 = scmp.eq.s32.totalorder %s33, 0
      %p174 = por %p172, %p173
      %p175 = scmp.ne.s32.totalorder %s163, %s164
      %p176 = scmp.eq.s32.totalorder %s34, 1
      %p177 = por %p175, %p176
      %p179 = scmp.ne.s32.totalorder %s164, %s178
      %p180 = scmp.eq.s32.totalorder %s34, 0
      %p181 = por %p179, %p180
      %s183 = sadd.s32 %s182, 1
      %p186 = scmp.eq.s32.totalorder %s28, 1
      %p187 = scmp.ne.s32.totalorder %s182, %s184
      %p188 = scmp.eq.s32.totalorder %s28, 0
      %p189 = por %p187, %p188
      %p190 = scmp.ne.s32.totalorder %s182, %s184
      %p191 = scmp.eq.s32.totalorder %s33, 1
      %p192 = por %p190, %p191
      %p193 = scmp.ne.s32.totalorder %s184, %s185
      %p194 = scmp.eq.s32.totalorder %s33, 0
      %p195 = por %p193, %p194
      %p196 = scmp.ne.s32.totalorder %s184, %s185
      %p197 = scmp.eq.s32.totalorder %s34, 1
      %p198 = por %p196, %p197
      %p200 = scmp.ne.s32.totalorder %s185, %s199
      %p201 = scmp.eq.s32.totalorder %s34, 0
      %p202 = por %p200, %p201
      %s204 = sadd.s32 %s203, 1
      %p207 = scmp.eq.s32.totalorder %s28, 1
      %p208 = scmp.ne.s32.totalorder %s203, %s205
      %p209 = scmp.eq.s32.totalorder %s28, 0
      %p210 = por %p208, %p209
      %p211 = scmp.ne.s32.totalorder %s203, %s205
      %p212 = scmp.eq.s32.totalorder %s33, 1
      %p213 = por %p211, %p212
      %p214 = scmp.ne.s32.totalorder %s205, %s206
      %p215 = scmp.eq.s32.totalorder %s33, 0
      %p216 = por %p214, %p215
      %p217 = scmp.ne.s32.totalorder %s205, %s206
      %p218 = scmp.eq.s32.totalorder %s34, 1
      %p219 = por %p217, %p218
      %p221 = scmp.ne.s32.totalorder %s206, %s220
      %p222 = scmp.eq.s32.totalorder %s34, 0
      %p223 = por %p221, %p222
      %s224 = ssub.s32 %s28, %s35
      %p225 = scmp.eq.s32.totalorder %s224, 0
      %s227 = sadd.s32 %s226, 1
      %s228 = scalar_select %p225, %s226, %s227
      %p231 = pneg %p225
      %p232 = scmp.eq.s32.totalorder %s28, 1
      %p233 = por %p231, %p232
      %p234 = scmp.ne.s32.totalorder %s226, %s229
      %p235 = scmp.eq.s32.totalorder %s28, 0
      %p236 = por %p234, %p235
      %p237 = scmp.ne.s32.totalorder %s226, %s229
      %p238 = scmp.eq.s32.totalorder %s33, 1
      %p239 = por %p237, %p238
      %p240 = scmp.ne.s32.totalorder %s229, %s230
      %p241 = scmp.eq.s32.totalorder %s33, 0
      %p242 = por %p240, %p241
      %p243 = scmp.ne.s32.totalorder %s229, %s230
      %p244 = scmp.eq.s32.totalorder %s34, 1
      %p245 = por %p243, %p244
      %p247 = scmp.ne.s32.totalorder %s230, %s246
      %p248 = scmp.eq.s32.totalorder %s34, 0
      %p249 = por %p247, %p248
      %p250 = scmp.le.s32.totalorder 1, %s28
      %p251 = scmp.lt.s32.totalorder %s28, 3
      %p252 = pnand %p250, %p251
      %p253 = pneg %p252
      // Predicated region
      $region9: #{transformer_forward.29} parent=5 // pred_check
        _
      $region10: #{transformer_forward.29} parent=5 // pred_check_branch
        %255 = sbr.rel (%p252) target = $region12
      $region11: #{transformer_forward.29} parent=5 // pred_region
        %s256 = ssub.s32 %s28, 1
        // Predicated region
        $region13: #{transformer_forward.29} parent=11 // pred_check
          %p257 = pneg %p153
        $region14: #{transformer_forward.29} parent=11 // pred_check_branch
          %259 = sbr.rel (%p257) target = $region16
        $region15: #{transformer_forward.29} parent=11 // pred_region
          %s261 = ssub.s32 256, 256
          %262 = vsyncadd [#allocation9], %s261
          %s263 = sshll.u32 [#allocation10], 4
          %s264 = int_to_ptr.vmem [resolvable:$true] %s263
          %269 = dma.hbm_to_vmem [thread:$0]  %s4, 256, %s264, [#allocation9], 64, 64, 4
        $region16: #{transformer_forward.29} parent=11 // pred_fallthru
          _
        // Predicated region
        $region17: #{transformer_forward.29} parent=11 // pred_check
          %p270 = pneg %p174
        $region18: #{transformer_forward.29} parent=11 // pred_check_branch
          %272 = sbr.rel (%p270) target = $region20
        $region19: #{transformer_forward.29} parent=11 // pred_region
          %s274 = ssub.s32 16, 16
          %275 = vsyncadd [#allocation12], %s274
          %s277 = sshll.u32 [#allocation11], 4
          %s278 = int_to_ptr.vmem [resolvable:$true] %s277
          %280 = dma.hbm_to_vmem [thread:$0]  %s5, 16, %s278, [#allocation12]
        $region20: #{transformer_forward.29} parent=11 // pred_fallthru
          _
        // Predicated region
        $region21: #{transformer_forward.29} parent=11 // pred_check
          %p281 = pneg %p195
        $region22: #{transformer_forward.29} parent=11 // pred_check_branch
          %283 = sbr.rel (%p281) target = $region24
        $region23: #{transformer_forward.29} parent=11 // pred_region
          %s285 = ssub.s32 16, 16
          %286 = vsyncadd [#allocation12], %s285
          %s288 = sshll.u32 [#allocation13], 4
          %s289 = int_to_ptr.vmem [resolvable:$true] %s288
          %291 = dma.hbm_to_vmem [thread:$0]  %s6, 16, %s289, [#allocation12]
        $region24: #{transformer_forward.29} parent=11 // pred_fallthru
          _
        // Predicated region
        $region25: #{transformer_forward.29} parent=11 // pred_check
          %p292 = pneg %p216
        $region26: #{transformer_forward.29} parent=11 // pred_check_branch
          %294 = sbr.rel (%p292) target = $region28
        $region27: #{transformer_forward.29} parent=11 // pred_region
          %s296 = ssub.s32 16, 16
          %297 = vsyncadd [#allocation15], %s296
          %s299 = sshll.u32 [#allocation14], 4
          %s300 = int_to_ptr.vmem [resolvable:$true] %s299
          %302 = dma.hbm_to_vmem [thread:$0]  %s7, 16, %s300, [#allocation15]
        $region28: #{transformer_forward.29} parent=11 // pred_fallthru
          _
      $region12: #{transformer_forward.29} parent=5 // pred_fallthru
        _
      %p303 = scmp.lt.s32.totalorder %s28, 2
      // Predicated region
      $region29: #{transformer_forward.29} parent=5 // pred_check
        %p304 = pneg %p303
      $region30: #{transformer_forward.29} parent=5 // pred_check_branch
        %306 = sbr.rel (%p304) target = $region32
      $region31: #{transformer_forward.29} parent=5 // pred_region
        // Predicated region
        $region33: #{transformer_forward.29} parent=31 // pred_check
          %p307 = pneg %p48
        $region34: #{transformer_forward.29} parent=31 // pred_check_branch
          %309 = sbr.rel (%p307) target = $region36
        $region35: #{transformer_forward.29} parent=31 // pred_region
          %s310 = sand.u32 %s38, 1
          %s311 = scalar_lea.sflag [#allocation3], %s310
          %s312 = sand.u32 %s38, 1
          %s313 = smul.addr %s312, 4
          %s314 = scalar_lea.vmem [#allocation2], %s313
          %s316 = ssub.s32 64, 64
          %317 = vsyncadd %s311, %s316
          %s318 = smul.addr %s28, 64
          %s319 = scalar_lea.hbm %s0, %s318
          %s321 = sshll.u32 %s314, 4
          %s322 = int_to_ptr.vmem [resolvable:$true] %s321
          %324 = dma.hbm_to_vmem [thread:$0]  %s319, 64, %s322, %s311
        $region36: #{transformer_forward.29} parent=31 // pred_fallthru
          _
        // Predicated region
        $region37: #{transformer_forward.29} parent=31 // pred_check
          %p325 = pneg %p74
        $region38: #{transformer_forward.29} parent=31 // pred_check_branch
          %327 = sbr.rel (%p325) target = $region40
        $region39: #{transformer_forward.29} parent=31 // pred_region
          %s328 = sand.u32 %s28, 1
          %s329 = scalar_lea.sflag [#allocation6], %s328
          %s330 = sand.u32 %s64, 1
          %s331 = smul.addr %s330, 4
          %s332 = scalar_lea.vmem [#allocation5], %s331
          %s334 = ssub.s32 64, 64
          %335 = vsyncadd %s329, %s334
          %s336 = smul.addr %s28, 64
          %s337 = scalar_lea.hbm %s1, %s336
          %s339 = sshll.u32 %s332, 4
          %s340 = int_to_ptr.vmem [resolvable:$true] %s339
          %342 = dma.hbm_to_vmem [thread:$0]  %s337, 64, %s340, %s329
        $region40: #{transformer_forward.29} parent=31 // pred_fallthru
          _
        // Predicated region
        $region41: #{transformer_forward.29} parent=31 // pred_check
          %p343 = pneg %p100
        $region42: #{transformer_forward.29} parent=31 // pred_check_branch
          %345 = sbr.rel (%p343) target = $region44
        $region43: #{transformer_forward.29} parent=31 // pred_region
          %s346 = sand.u32 %s28, 1
          %s347 = scalar_lea.sflag [#allocation6], %s346
          %s348 = sand.u32 %s90, 1
          %s349 = scalar_lea.vmem [#allocation7], %s348
          %s351 = ssub.s32 16, 16
          %352 = vsyncadd %s347, %s351
          %s353 = smul.addr %s28, 16
          %s354 = scalar_lea.hbm %s2, %s353
          %s356 = sshll.u32 %s349, 4
          %s357 = int_to_ptr.vmem [resolvable:$true] %s356
          %359 = dma.hbm_to_vmem [thread:$0]  %s354, 16, %s357, %s347
        $region44: #{transformer_forward.29} parent=31 // pred_fallthru
          _
        // Predicated region
        $region45: #{transformer_forward.29} parent=31 // pred_check
          %p360 = pneg %p126
        $region46: #{transformer_forward.29} parent=31 // pred_check_branch
          %362 = sbr.rel (%p360) target = $region48
        $region47: #{transformer_forward.29} parent=31 // pred_region
          %s363 = sand.u32 %s28, 1
          %s364 = scalar_lea.sflag [#allocation9], %s363
          %s365 = sand.u32 %s116, 1
          %s366 = smul.addr %s365, 8
          %s367 = scalar_lea.vmem [#allocation8], %s366
          %s369 = ssub.s32 128, 128
          %370 = vsyncadd %s364, %s369
          %s371 = smul.addr %s28, 128
          %s372 = scalar_lea.hbm %s3, %s371
          %s374 = sshll.u32 %s367, 4
          %s375 = int_to_ptr.vmem [resolvable:$true] %s374
          %377 = dma.hbm_to_vmem [thread:$0]  %s372, 128, %s375, %s364
        $region48: #{transformer_forward.29} parent=31 // pred_fallthru
          _
      $region32: #{transformer_forward.29} parent=5 // pred_fallthru
        _
      %p378 = scmp.le.s32.totalorder 1, %s28
      %p379 = scmp.lt.s32.totalorder %s28, 3
      %p380 = pnand %p378, %p379
      %p381 = pneg %p380
      // Predicated region
      $region49: #{transformer_forward.29} parent=5 // pred_check
        _
      $region50: #{transformer_forward.29} parent=5 // pred_check_branch
        %383 = sbr.rel (%p380) target = $region52
      $region51: #{transformer_forward.29} parent=5 // pred_region
        %s384 = ssub.s32 %s28, 1
        %s385 = sand.u32 %s41, 1
        %s386 = scalar_lea.sflag [#allocation3], %s385
        %s387 = sand.u32 %s41, 1
        %s388 = smul.addr %s387, 4
        %s389 = scalar_lea.vmem [#allocation2], %s388
        // Predicated region
        $region53: #{transformer_forward.29} parent=51 // pred_check
          %p390 = pneg %p54
        $region54: #{transformer_forward.29} parent=51 // pred_check_branch
          %392 = sbr.rel (%p390) target = $region56
        $region55: #{transformer_forward.29} parent=51 // pred_region
          %393 = dma.done %s386, 64
        $region56: #{transformer_forward.29} parent=51 // pred_fallthru
          _
        %s394 = sand.u32 %s33, 1
        %s395 = scalar_lea.sflag [#allocation6], %s394
        %s396 = sand.u32 %s67, 1
        %s397 = smul.addr %s396, 4
        %s398 = scalar_lea.vmem [#allocation5], %s397
        // Predicated region
        $region57: #{transformer_forward.29} parent=51 // pred_check
          %p399 = pneg %p80
        $region58: #{transformer_forward.29} parent=51 // pred_check_branch
          %401 = sbr.rel (%p399) target = $region60
        $region59: #{transformer_forward.29} parent=51 // pred_region
          %402 = dma.done %s395, 64
        $region60: #{transformer_forward.29} parent=51 // pred_fallthru
          _
        %s403 = sand.u32 %s33, 1
        %s404 = scalar_lea.sflag [#allocation6], %s403
        %s405 = sand.u32 %s93, 1
        %s406 = scalar_lea.vmem [#allocation7], %s405
        // Predicated region
        $region61: #{transformer_forward.29} parent=51 // pred_check
          %p407 = pneg %p106
        $region62: #{transformer_forward.29} parent=51 // pred_check_branch
          %409 = sbr.rel (%p407) target = $region64
        $region63: #{transformer_forward.29} parent=51 // pred_region
          %410 = dma.done %s404, 16
        $region64: #{transformer_forward.29} parent=51 // pred_fallthru
          _
        %s411 = sand.u32 %s33, 1
        %s412 = scalar_lea.sflag [#allocation9], %s411
        %s413 = sand.u32 %s119, 1
        %s414 = smul.addr %s413, 8
        %s415 = scalar_lea.vmem [#allocation8], %s414
        // Predicated region
        $region65: #{transformer_forward.29} parent=51 // pred_check
          %p416 = pneg %p132
        $region66: #{transformer_forward.29} parent=51 // pred_check_branch
          %418 = sbr.rel (%p416) target = $region68
        $region67: #{transformer_forward.29} parent=51 // pred_region
          %419 = dma.done %s412, 128
        $region68: #{transformer_forward.29} parent=51 // pred_fallthru
          _
        // Predicated region
        $region69: #{transformer_forward.29} parent=51 // pred_check
          %p420 = pneg %p153
        $region70: #{transformer_forward.29} parent=51 // pred_check_branch
          %422 = sbr.rel (%p420) target = $region72
        $region71: #{transformer_forward.29} parent=51 // pred_region
          %423 = dma.done [#allocation9], 256
        $region72: #{transformer_forward.29} parent=51 // pred_fallthru
          _
        // Predicated region
        $region73: #{transformer_forward.29} parent=51 // pred_check
          %p424 = pneg %p174
        $region74: #{transformer_forward.29} parent=51 // pred_check_branch
          %426 = sbr.rel (%p424) target = $region76
        $region75: #{transformer_forward.29} parent=51 // pred_region
          %427 = dma.done [#allocation12], 16
        $region76: #{transformer_forward.29} parent=51 // pred_fallthru
          _
        // Predicated region
        $region77: #{transformer_forward.29} parent=51 // pred_check
          %p428 = pneg %p195
        $region78: #{transformer_forward.29} parent=51 // pred_check_branch
          %430 = sbr.rel (%p428) target = $region80
        $region79: #{transformer_forward.29} parent=51 // pred_region
          %431 = dma.done [#allocation12], 16
        $region80: #{transformer_forward.29} parent=51 // pred_fallthru
          _
        // Predicated region
        $region81: #{transformer_forward.29} parent=51 // pred_check
          %p432 = pneg %p216
        $region82: #{transformer_forward.29} parent=51 // pred_check_branch
          %434 = sbr.rel (%p432) target = $region84
        $region83: #{transformer_forward.29} parent=51 // pred_region
          %435 = dma.done [#allocation15], 16
        $region84: #{transformer_forward.29} parent=51 // pred_fallthru
          _
        %s436 = sand.u32 %s41, 1
        %s437 = scalar_lea.sflag [#allocation3], %s436
        %s438 = sand.u32 %s41, 1
        %s439 = smul.addr %s438, 4
        %s440 = scalar_lea.vmem [#allocation2], %s439
        %p441 = pneg %p54
        %p442 = pneg %p51
        %s443 = sand.u32 %s33, 1
        %s444 = scalar_lea.sflag [#allocation6], %s443
        %s445 = sand.u32 %s67, 1
        %s446 = smul.addr %s445, 4
        %s447 = scalar_lea.vmem [#allocation5], %s446
        %p448 = pneg %p80
        %p449 = pneg %p77
        %s450 = sand.u32 %s33, 1
        %s451 = scalar_lea.sflag [#allocation6], %s450
        %s452 = sand.u32 %s93, 1
        %s453 = scalar_lea.vmem [#allocation7], %s452
        %p454 = pneg %p106
        %p455 = pneg %p103
        %s456 = sand.u32 %s33, 1
        %s457 = scalar_lea.sflag [#allocation9], %s456
        %s458 = sand.u32 %s119, 1
        %s459 = smul.addr %s458, 8
        %s460 = scalar_lea.vmem [#allocation8], %s459
        %p461 = pneg %p132
        %p462 = pneg %p129
        %p463 = pneg %p153
        %p464 = pneg %p150
        %p465 = pneg %p174
        %p466 = pneg %p171
        %p467 = pneg %p195
        %p468 = pneg %p192
        %p469 = pneg %p216
        %p470 = pneg %p213
        %p471 = pneg %p242
        %p472 = pneg %p239
        %s473 = sand.u32 %s229, 1
        %s474 = scalar_lea.sflag [#allocation4], %s473
        %s475 = sand.u32 %s229, 1
        %s476 = smul.addr %s475, 8
        %s477 = scalar_lea.vmem [#allocation16], %s476
        %v479 = vld [vmem:[%s389] sm:$0xf]
        %v480 = vld [vmem:[%s398] sm:$0xf]
        %v481 = vld [vmem:[%s406] sm:$0x1]
        %v482 = vld [vmem:[#allocation10] sm:$0xf]
        %v483 = vld [vmem:[#allocation10 + $0x4] sm:$0xf]
        %v484 = vld [vmem:[#allocation10 + $0x8] sm:$0xf]
        %v485 = vld [vmem:[#allocation10 + $0xc] sm:$0xf]
        %v486 = vld [vmem:[#allocation11] sm:$0x1]
        %v487 = vld [vmem:[%s415] sm:$0xff]
        %v488 = vld [vmem:[#allocation13] sm:$0x1]
        %v489 = vld [vmem:[#allocation14] sm:$0x1]
        %vm490 = vcmask 64512
        %v492 = vsel %vm490, %v479, 0
        %v495 = vsel %vm490, %v480, 0
        %497 = vmatprep.subr.bf16.mxu0 0
        %498 = vmatpush1.bf16.xpose.msra.mxu0 %v495
        %499 = vmatprep.subr.bf16.mxu0 0
        %500 = vmatpush1.bf16.xpose.msra.mxu0 0
        %501 = vmatprep.subr.bf16.mxu0 0
        %502 = vmatpush1.bf16.xpose.msra.mxu0 0
        %503 = vmatprep.subr.bf16.mxu0 0
        %504 = vmatpush1.bf16.xpose.msra.mxu0 0
        %505 = vmatprep.subr.bf16.mxu0 0
        %506 = vmatpush1.bf16.xpose.msra.mxu0 0
        %507 = vmatprep.subr.bf16.mxu0 0
        %508 = vmatpush1.bf16.xpose.msra.mxu0 0
        %509 = vmatprep.subr.bf16.mxu0 0
        %510 = vmatpush1.bf16.xpose.msra.mxu0 0
        %511 = vmatprep.subr.bf16.mxu0 0
        %512 = vmatpush1.bf16.xpose.msra.mxu0 0
        %513 = vmatprep.subr.bf16.mxu0 0
        %514 = vmatpush1.bf16.xpose.msra.mxu0 0
        %515 = vmatprep.subr.bf16.mxu0 0
        %516 = vmatpush1.bf16.xpose.msra.mxu0 0
        %517 = vmatprep.subr.bf16.mxu0 0
        %518 = vmatpush1.bf16.xpose.msra.mxu0 0
        %519 = vmatprep.subr.bf16.mxu0 0
        %520 = vmatpush1.bf16.xpose.msra.mxu0 0
        %521 = vmatprep.subr.bf16.mxu0 0
        %522 = vmatpush1.bf16.xpose.msra.mxu0 0
        %523 = vmatprep.subr.bf16.mxu0 0
        %524 = vmatpush1.bf16.xpose.msra.mxu0 0
        %525 = vmatprep.subr.bf16.mxu0 0
        %526 = vmatpush1.bf16.xpose.msra.mxu0 0
        %527 = vmatprep.subr.bf16.mxu0 0
        %528 = vmatpush1.bf16.xpose.msra.mxu0 0
        %529 = vmatprep.mubr.bf16.mxu0 0
        %530 = vmatmul.mubr.bf16.gmra.mrb[0].mxu0 %v492
        %v531 = vpop.f32.mrb[0].mxu0
        %v532 = vadd.f32 0.0, %v531
        %v533 = vpop.f32.mrb[0].mxu0
        %v534 = vpop.f32.mrb[0].mxu0
        %v535 = vpop.f32.mrb[0].mxu0
        %536 = vdwg.mxu0
        %v537 = vmul.f32 %v532, 0.35355338
        %v539 = vlaneseq
        %v540 = vshrl.u32 %v539, 7
        %v541 = vsub.s32 0, %v540
        %v542 = vrot.slane %v481, %v541
        %v544 = vadd.f32 %v537, %v542
        %v545 = vsel %vm490, %v544, -inf
        %546 = vmax.xlane.f32.xlu0 %v545
        %v547 = vpop.xlane.xlu0 %546
        %v548 = vsub.f32 %v544, %v547
        %v549 = vmul.f32 %v548, 1.442695
        %v550 = vpow.pop %v549
        %v551 = vsel %vm490, %v550, 0.0
        %552 = vadd.xlane.f32.xlu0 %v551
        %v553 = vpop.xlane.xlu0 %552
        %v554 = vrcp.pop %v553
        %v555 = vmul.f32 %v550, %v554
        %v556 = vpack.c.bf16 %v555, %v555
        %v558 = vunpack.c.l.b16 %v480
        %v559 = vpack.c.b16 %v558, %v558
        %560 = vrot.lane.b32.xlu0 %v559, 96
        %v561 = vpop.permute.xlu0 %560
        %v563 = vsel %vm490, %v556, 0
        %vm565 = vcmask 1043456
        %v567 = vsel %vm565, %v561, 0
        %569 = vmatprep.subr.bf16.mxu0 0
        %570 = vmatpush1.bf16.msra.mxu0 %v567
        %571 = vmatprep.subr.bf16.mxu0 0
        %572 = vmatpush1.bf16.msra.mxu0 0
        %573 = vmatprep.subr.bf16.mxu0 0
        %574 = vmatpush1.bf16.msra.mxu0 0
        %575 = vmatprep.subr.bf16.mxu0 0
        %576 = vmatpush1.bf16.msra.mxu0 0
        %577 = vmatprep.subr.bf16.mxu0 0
        %578 = vmatpush1.bf16.msra.mxu0 0
        %579 = vmatprep.subr.bf16.mxu0 0
        %580 = vmatpush1.bf16.msra.mxu0 0
        %581 = vmatprep.subr.bf16.mxu0 0
        %582 = vmatpush1.bf16.msra.mxu0 0
        %583 = vmatprep.subr.bf16.mxu0 0
        %584 = vmatpush1.bf16.msra.mxu0 0
        %585 = vmatprep.subr.bf16.mxu0 0
        %586 = vmatpush1.bf16.msra.mxu0 0
        %587 = vmatprep.subr.bf16.mxu0 0
        %588 = vmatpush1.bf16.msra.mxu0 0
        %589 = vmatprep.subr.bf16.mxu0 0
        %590 = vmatpush1.bf16.msra.mxu0 0
        %591 = vmatprep.subr.bf16.mxu0 0
        %592 = vmatpush1.bf16.msra.mxu0 0
        %593 = vmatprep.subr.bf16.mxu0 0
        %594 = vmatpush1.bf16.msra.mxu0 0
        %595 = vmatprep.subr.bf16.mxu0 0
        %596 = vmatpush1.bf16.msra.mxu0 0
        %597 = vmatprep.subr.bf16.mxu0 0
        %598 = vmatpush1.bf16.msra.mxu0 0
        %599 = vmatprep.subr.bf16.mxu0 0
        %600 = vmatpush1.bf16.msra.mxu0 0
        %601 = vmatprep.mubr.bf16.mxu0 0
        %602 = vmatmul.mubr.bf16.gmra.mrb[0].mxu0 %v563
        %v603 = vpop.f32.mrb[0].mxu0
        %v604 = vadd.f32 0.0, %v603
        %v605 = vpop.f32.mrb[0].mxu0
        %v606 = vpop.f32.mrb[0].mxu0
        %v607 = vpop.f32.mrb[0].mxu0
        %608 = vdwg.mxu0
        %v609 = vpack.c.bf16 %v604, %v604
        %v611 = vunpack.c.l.b16 %v479
        %v612 = vpack.c.b16 %v611, %v611
        %613 = vrot.lane.b32.xlu0 %v612, 120
        %v614 = vpop.permute.xlu0 %613
        %615 = vrot.lane.b32.xlu0 %v559, 120
        %v616 = vpop.permute.xlu0 %615
        %v618 = vsel %vm490, %v614, 0
        %v621 = vsel %vm490, %v616, 0
        %623 = vmatprep.subr.bf16.mxu0 0
        %624 = vmatpush1.bf16.xpose.msra.mxu0 %v621
        %625 = vmatprep.subr.bf16.mxu0 0
        %626 = vmatpush1.bf16.xpose.msra.mxu0 0
        %627 = vmatprep.subr.bf16.mxu0 0
        %628 = vmatpush1.bf16.xpose.msra.mxu0 0
        %629 = vmatprep.subr.bf16.mxu0 0
        %630 = vmatpush1.bf16.xpose.msra.mxu0 0
        %631 = vmatprep.subr.bf16.mxu0 0
        %632 = vmatpush1.bf16.xpose.msra.mxu0 0
        %633 = vmatprep.subr.bf16.mxu0 0
        %634 = vmatpush1.bf16.xpose.msra.mxu0 0
        %635 = vmatprep.subr.bf16.mxu0 0
        %636 = vmatpush1.bf16.xpose.msra.mxu0 0
        %637 = vmatprep.subr.bf16.mxu0 0
        %638 = vmatpush1.bf16.xpose.msra.mxu0 0
        %639 = vmatprep.subr.bf16.mxu0 0
        %640 = vmatpush1.bf16.xpose.msra.mxu0 0
        %641 = vmatprep.subr.bf16.mxu0 0
        %642 = vmatpush1.bf16.xpose.msra.mxu0 0
        %643 = vmatprep.subr.bf16.mxu0 0
        %644 = vmatpush1.bf16.xpose.msra.mxu0 0
        %645 = vmatprep.subr.bf16.mxu0 0
        %646 = vmatpush1.bf16.xpose.msra.mxu0 0
        %647 = vmatprep.subr.bf16.mxu0 0
        %648 = vmatpush1.bf16.xpose.msra.mxu0 0
        %649 = vmatprep.subr.bf16.mxu0 0
        %650 = vmatpush1.bf16.xpose.msra.mxu0 0
        %651 = vmatprep.subr.bf16.mxu0 0
        %652 = vmatpush1.bf16.xpose.msra.mxu0 0
        %653 = vmatprep.subr.bf16.mxu0 0
        %654 = vmatpush1.bf16.xpose.msra.mxu0 0
        %655 = vmatprep.mubr.bf16.mxu0 0
        %656 = vmatmul.mubr.bf16.gmra.mrb[0].mxu0 %v618
        %v657 = vpop.f32.mrb[0].mxu0
        %v658 = vadd.f32 0.0, %v657
        %v659 = vpop.f32.mrb[0].mxu0
        %v660 = vpop.f32.mrb[0].mxu0
        %v661 = vpop.f32.mrb[0].mxu0
        %662 = vdwg.mxu0
        %v663 = vmul.f32 %v658, 0.35355338
        %v664 = vadd.f32 %v663, %v542
        %v665 = vsel %vm490, %v664, -inf
        %666 = vmax.xlane.f32.xlu0 %v665
        %v667 = vpop.xlane.xlu0 %666
        %v668 = vsub.f32 %v664, %v667
        %v669 = vmul.f32 %v668, 1.442695
        %v670 = vpow.pop %v669
        %v671 = vsel %vm490, %v670, 0.0
        %672 = vadd.xlane.f32.xlu0 %v671
        %v673 = vpop.xlane.xlu0 %672
        %v674 = vrcp.pop %v673
        %v675 = vmul.f32 %v670, %v674
        %v676 = vpack.c.bf16 %v675, %v675
        %677 = vrot.lane.b32.xlu0 %v559, 88
        %v678 = vpop.permute.xlu0 %677
        %v680 = vsel %vm490, %v676, 0
        %v683 = vsel %vm565, %v678, 0
        %685 = vmatprep.subr.bf16.mxu0 0
        %686 = vmatpush1.bf16.msra.mxu0 %v683
        %687 = vmatprep.subr.bf16.mxu0 0
        %688 = vmatpush1.bf16.msra.mxu0 0
        %689 = vmatprep.subr.bf16.mxu0 0
        %690 = vmatpush1.bf16.msra.mxu0 0
        %691 = vmatprep.subr.bf16.mxu0 0
        %692 = vmatpush1.bf16.msra.mxu0 0
        %693 = vmatprep.subr.bf16.mxu0 0
        %694 = vmatpush1.bf16.msra.mxu0 0
        %695 = vmatprep.subr.bf16.mxu0 0
        %696 = vmatpush1.bf16.msra.mxu0 0
        %697 = vmatprep.subr.bf16.mxu0 0
        %698 = vmatpush1.bf16.msra.mxu0 0
        %699 = vmatprep.subr.bf16.mxu0 0
        %700 = vmatpush1.bf16.msra.mxu0 0
        %701 = vmatprep.subr.bf16.mxu0 0
        %702 = vmatpush1.bf16.msra.mxu0 0
        %703 = vmatprep.subr.bf16.mxu0 0
        %704 = vmatpush1.bf16.msra.mxu0 0
        %705 = vmatprep.subr.bf16.mxu0 0
        %706 = vmatpush1.bf16.msra.mxu0 0
        %707 = vmatprep.subr.bf16.mxu0 0
        %708 = vmatpush1.bf16.msra.mxu0 0
        %709 = vmatprep.subr.bf16.mxu0 0
        %710 = vmatpush1.bf16.msra.mxu0 0
        %711 = vmatprep.subr.bf16.mxu0 0
        %712 = vmatpush1.bf16.msra.mxu0 0
        %713 = vmatprep.subr.bf16.mxu0 0
        %714 = vmatpush1.bf16.msra.mxu0 0
        %715 = vmatprep.subr.bf16.mxu0 0
        %716 = vmatpush1.bf16.msra.mxu0 0
        %717 = vmatprep.mubr.bf16.mxu0 0
        %718 = vmatmul.mubr.bf16.gmra.mrb[0].mxu0 %v680
        %v719 = vpop.f32.mrb[0].mxu0
        %v720 = vadd.f32 0.0, %v719
        %v721 = vpop.f32.mrb[0].mxu0
        %v722 = vpop.f32.mrb[0].mxu0
        %v723 = vpop.f32.mrb[0].mxu0
        %724 = vdwg.mxu0
        %v725 = vpack.c.bf16 %v720, %v720
        %v727 = vsel %vm490, %v725, 0
        %v730 = vsel %vm565, %v483, 0
        %732 = vmatprep.subr.bf16.mxu0 0
        %733 = vmatpush1.bf16.msra.mxu0 %v730
        %734 = vmatprep.subr.bf16.mxu0 0
        %735 = vmatpush1.bf16.msra.mxu0 0
        %736 = vmatprep.subr.bf16.mxu0 0
        %737 = vmatpush1.bf16.msra.mxu0 0
        %738 = vmatprep.subr.bf16.mxu0 0
        %739 = vmatpush1.bf16.msra.mxu0 0
        %740 = vmatprep.subr.bf16.mxu0 0
        %741 = vmatpush1.bf16.msra.mxu0 0
        %742 = vmatprep.subr.bf16.mxu0 0
        %743 = vmatpush1.bf16.msra.mxu0 0
        %744 = vmatprep.subr.bf16.mxu0 0
        %745 = vmatpush1.bf16.msra.mxu0 0
        %746 = vmatprep.subr.bf16.mxu0 0
        %747 = vmatpush1.bf16.msra.mxu0 0
        %748 = vmatprep.subr.bf16.mxu0 0
        %749 = vmatpush1.bf16.msra.mxu0 0
        %750 = vmatprep.subr.bf16.mxu0 0
        %751 = vmatpush1.bf16.msra.mxu0 0
        %752 = vmatprep.subr.bf16.mxu0 0
        %753 = vmatpush1.bf16.msra.mxu0 0
        %754 = vmatprep.subr.bf16.mxu0 0
        %755 = vmatpush1.bf16.msra.mxu0 0
        %756 = vmatprep.subr.bf16.mxu0 0
        %757 = vmatpush1.bf16.msra.mxu0 0
        %758 = vmatprep.subr.bf16.mxu0 0
        %759 = vmatpush1.bf16.msra.mxu0 0
        %760 = vmatprep.subr.bf16.mxu0 0
        %761 = vmatpush1.bf16.msra.mxu0 0
        %762 = vmatprep.subr.bf16.mxu0 0
        %763 = vmatpush1.bf16.msra.mxu0 0
        %764 = vmatprep.mubr.bf16.mxu0 0
        %765 = vmatmul.mubr.bf16.gmra.mrb[0].mxu0 %v727
        %v766 = vpop.f32.mrb[0].mxu0
        %v767 = vadd.f32 0.0, %v766
        %v768 = vpop.f32.mrb[0].mxu0
        %v769 = vpop.f32.mrb[0].mxu0
        %v770 = vpop.f32.mrb[0].mxu0
        %771 = vdwg.mxu0
        %v773 = vsel %vm490, %v609, 0
        %v776 = vsel %vm565, %v482, 0
        %778 = vmatprep.subr.bf16.mxu0 0
        %779 = vmatpush1.bf16.msra.mxu0 %v776
        %780 = vmatprep.subr.bf16.mxu0 0
        %781 = vmatpush1.bf16.msra.mxu0 0
        %782 = vmatprep.subr.bf16.mxu0 0
        %783 = vmatpush1.bf16.msra.mxu0 0
        %784 = vmatprep.subr.bf16.mxu0 0
        %785 = vmatpush1.bf16.msra.mxu0 0
        %786 = vmatprep.subr.bf16.mxu0 0
        %787 = vmatpush1.bf16.msra.mxu0 0
        %788 = vmatprep.subr.bf16.mxu0 0
        %789 = vmatpush1.bf16.msra.mxu0 0
        %790 = vmatprep.subr.bf16.mxu0 0
        %791 = vmatpush1.bf16.msra.mxu0 0
        %792 = vmatprep.subr.bf16.mxu0 0
        %793 = vmatpush1.bf16.msra.mxu0 0
        %794 = vmatprep.subr.bf16.mxu0 0
        %795 = vmatpush1.bf16.msra.mxu0 0
        %796 = vmatprep.subr.bf16.mxu0 0
        %797 = vmatpush1.bf16.msra.mxu0 0
        %798 = vmatprep.subr.bf16.mxu0 0
        %799 = vmatpush1.bf16.msra.mxu0 0
        %800 = vmatprep.subr.bf16.mxu0 0
        %801 = vmatpush1.bf16.msra.mxu0 0
        %802 = vmatprep.subr.bf16.mxu0 0
        %803 = vmatpush1.bf16.msra.mxu0 0
        %804 = vmatprep.subr.bf16.mxu0 0
        %805 = vmatpush1.bf16.msra.mxu0 0
        %806 = vmatprep.subr.bf16.mxu0 0
        %807 = vmatpush1.bf16.msra.mxu0 0
        %808 = vmatprep.subr.bf16.mxu0 0
        %809 = vmatpush1.bf16.msra.mxu0 0
        %810 = vmatprep.mubr.bf16.mxu0 0
        %811 = vmatmul.mubr.bf16.gmra.mrb[0].mxu0 %v773
        %v812 = vpop.f32.mrb[0].mxu0
        %v813 = vadd.f32 %v767, %v812
        %v814 = vpop.f32.mrb[0].mxu0
        %v815 = vpop.f32.mrb[0].mxu0
        %v816 = vpop.f32.mrb[0].mxu0
        %817 = vdwg.mxu0
        %818 = vrot.lane.b32.xlu0 %v612, 112
        %v819 = vpop.permute.xlu0 %818
        %820 = vrot.lane.b32.xlu0 %v559, 112
        %v821 = vpop.permute.xlu0 %820
        %v823 = vsel %vm490, %v819, 0
        %v826 = vsel %vm490, %v821, 0
        %828 = vmatprep.subr.bf16.mxu0 0
        %829 = vmatpush1.bf16.xpose.msra.mxu0 %v826
        %830 = vmatprep.subr.bf16.mxu0 0
        %831 = vmatpush1.bf16.xpose.msra.mxu0 0
        %832 = vmatprep.subr.bf16.mxu0 0
        %833 = vmatpush1.bf16.xpose.msra.mxu0 0
        %834 = vmatprep.subr.bf16.mxu0 0
        %835 = vmatpush1.bf16.xpose.msra.mxu0 0
        %836 = vmatprep.subr.bf16.mxu0 0
        %837 = vmatpush1.bf16.xpose.msra.mxu0 0
        %838 = vmatprep.subr.bf16.mxu0 0
        %839 = vmatpush1.bf16.xpose.msra.mxu0 0
        %840 = vmatprep.subr.bf16.mxu0 0
        %841 = vmatpush1.bf16.xpose.msra.mxu0 0
        %842 = vmatprep.subr.bf16.mxu0 0
        %843 = vmatpush1.bf16.xpose.msra.mxu0 0
        %844 = vmatprep.subr.bf16.mxu0 0
        %845 = vmatpush1.bf16.xpose.msra.mxu0 0
        %846 = vmatprep.subr.bf16.mxu0 0
        %847 = vmatpush1.bf16.xpose.msra.mxu0 0
        %848 = vmatprep.subr.bf16.mxu0 0
        %849 = vmatpush1.bf16.xpose.msra.mxu0 0
        %850 = vmatprep.subr.bf16.mxu0 0
        %851 = vmatpush1.bf16.xpose.msra.mxu0 0
        %852 = vmatprep.subr.bf16.mxu0 0
        %853 = vmatpush1.bf16.xpose.msra.mxu0 0
        %854 = vmatprep.subr.bf16.mxu0 0
        %855 = vmatpush1.bf16.xpose.msra.mxu0 0
        %856 = vmatprep.subr.bf16.mxu0 0
        %857 = vmatpush1.bf16.xpose.msra.mxu0 0
        %858 = vmatprep.subr.bf16.mxu0 0
        %859 = vmatpush1.bf16.xpose.msra.mxu0 0
        %860 = vmatprep.mubr.bf16.mxu0 0
        %861 = vmatmul.mubr.bf16.gmra.mrb[0].mxu0 %v823
        %v862 = vpop.f32.mrb[0].mxu0
        %v863 = vadd.f32 0.0, %v862
        %v864 = vpop.f32.mrb[0].mxu0
        %v865 = vpop.f32.mrb[0].mxu0
        %v866 = vpop.f32.mrb[0].mxu0
        %867 = vdwg.mxu0
        %v868 = vmul.f32 %v863, 0.35355338
        %v869 = vadd.f32 %v868, %v542
        %v870 = vsel %vm490, %v869, -inf
        %871 = vmax.xlane.f32.xlu0 %v870
        %v872 = vpop.xlane.xlu0 %871
        %v873 = vsub.f32 %v869, %v872
        %v874 = vmul.f32 %v873, 1.442695
        %v875 = vpow.pop %v874
        %v876 = vsel %vm490, %v875, 0.0
        %877 = vadd.xlane.f32.xlu0 %v876
        %v878 = vpop.xlane.xlu0 %877
        %v879 = vrcp.pop %v878
        %v880 = vmul.f32 %v875, %v879
        %v881 = vpack.c.bf16 %v880, %v880
        %882 = vrot.lane.b32.xlu0 %v559, 80
        %v883 = vpop.permute.xlu0 %882
        %v885 = vsel %vm490, %v881, 0
        %v888 = vsel %vm565, %v883, 0
        %890 = vmatprep.subr.bf16.mxu0 0
        %891 = vmatpush1.bf16.msra.mxu0 %v888
        %892 = vmatprep.subr.bf16.mxu0 0
        %893 = vmatpush1.bf16.msra.mxu0 0
        %894 = vmatprep.subr.bf16.mxu0 0
        %895 = vmatpush1.bf16.msra.mxu0 0
        %896 = vmatprep.subr.bf16.mxu0 0
        %897 = vmatpush1.bf16.msra.mxu0 0
        %898 = vmatprep.subr.bf16.mxu0 0
        %899 = vmatpush1.bf16.msra.mxu0 0
        %900 = vmatprep.subr.bf16.mxu0 0
        %901 = vmatpush1.bf16.msra.mxu0 0
        %902 = vmatprep.subr.bf16.mxu0 0
        %903 = vmatpush1.bf16.msra.mxu0 0
        %904 = vmatprep.subr.bf16.mxu0 0
        %905 = vmatpush1.bf16.msra.mxu0 0
        %906 = vmatprep.subr.bf16.mxu0 0
        %907 = vmatpush1.bf16.msra.mxu0 0
        %908 = vmatprep.subr.bf16.mxu0 0
        %909 = vmatpush1.bf16.msra.mxu0 0
        %910 = vmatprep.subr.bf16.mxu0 0
        %911 = vmatpush1.bf16.msra.mxu0 0
        %912 = vmatprep.subr.bf16.mxu0 0
        %913 = vmatpush1.bf16.msra.mxu0 0
        %914 = vmatprep.subr.bf16.mxu0 0
        %915 = vmatpush1.bf16.msra.mxu0 0
        %916 = vmatprep.subr.bf16.mxu0 0
        %917 = vmatpush1.bf16.msra.mxu0 0
        %918 = vmatprep.subr.bf16.mxu0 0
        %919 = vmatpush1.bf16.msra.mxu0 0
        %920 = vmatprep.subr.bf16.mxu0 0
        %921 = vmatpush1.bf16.msra.mxu0 0
        %922 = vmatprep.mubr.bf16.mxu0 0
        %923 = vmatmul.mubr.bf16.gmra.mrb[0].mxu0 %v885
        %v924 = vpop.f32.mrb[0].mxu0
        %v925 = vadd.f32 0.0, %v924
        %v926 = vpop.f32.mrb[0].mxu0
        %v927 = vpop.f32.mrb[0].mxu0
        %v928 = vpop.f32.mrb[0].mxu0
        %929 = vdwg.mxu0
        %v930 = vpack.c.bf16 %v925, %v925
        %v932 = vsel %vm490, %v930, 0
        %v935 = vsel %vm565, %v484, 0
        %937 = vmatprep.subr.bf16.mxu0 0
        %938 = vmatpush1.bf16.msra.mxu0 %v935
        %939 = vmatprep.subr.bf16.mxu0 0
        %940 = vmatpush1.bf16.msra.mxu0 0
        %941 = vmatprep.subr.bf16.mxu0 0
        %942 = vmatpush1.bf16.msra.mxu0 0
        %943 = vmatprep.subr.bf16.mxu0 0
        %944 = vmatpush1.bf16.msra.mxu0 0
        %945 = vmatprep.subr.bf16.mxu0 0
        %946 = vmatpush1.bf16.msra.mxu0 0
        %947 = vmatprep.subr.bf16.mxu0 0
        %948 = vmatpush1.bf16.msra.mxu0 0
        %949 = vmatprep.subr.bf16.mxu0 0
        %950 = vmatpush1.bf16.msra.mxu0 0
        %951 = vmatprep.subr.bf16.mxu0 0
        %952 = vmatpush1.bf16.msra.mxu0 0
        %953 = vmatprep.subr.bf16.mxu0 0
        %954 = vmatpush1.bf16.msra.mxu0 0
        %955 = vmatprep.subr.bf16.mxu0 0
        %956 = vmatpush1.bf16.msra.mxu0 0
        %957 = vmatprep.subr.bf16.mxu0 0
        %958 = vmatpush1.bf16.msra.mxu0 0
        %959 = vmatprep.subr.bf16.mxu0 0
        %960 = vmatpush1.bf16.msra.mxu0 0
        %961 = vmatprep.subr.bf16.mxu0 0
        %962 = vmatpush1.bf16.msra.mxu0 0
        %963 = vmatprep.subr.bf16.mxu0 0
        %964 = vmatpush1.bf16.msra.mxu0 0
        %965 = vmatprep.subr.bf16.mxu0 0
        %966 = vmatpush1.bf16.msra.mxu0 0
        %967 = vmatprep.subr.bf16.mxu0 0
        %968 = vmatpush1.bf16.msra.mxu0 0
        %969 = vmatprep.mubr.bf16.mxu0 0
        %970 = vmatmul.mubr.bf16.gmra.mrb[0].mxu0 %v932
        %v971 = vpop.f32.mrb[0].mxu0
        %v972 = vadd.f32 0.0, %v971
        %v973 = vpop.f32.mrb[0].mxu0
        %v974 = vpop.f32.mrb[0].mxu0
        %v975 = vpop.f32.mrb[0].mxu0
        %976 = vdwg.mxu0
        %v977 = vadd.f32 %v813, %v972
        %978 = vrot.lane.b32.xlu0 %v612, 104
        %v979 = vpop.permute.xlu0 %978
        %980 = vrot.lane.b32.xlu0 %v559, 104
        %v981 = vpop.permute.xlu0 %980
        %v983 = vsel %vm490, %v979, 0
        %v986 = vsel %vm490, %v981, 0
        %988 = vmatprep.subr.bf16.mxu0 0
        %989 = vmatpush1.bf16.xpose.msra.mxu0 %v986
        %990 = vmatprep.subr.bf16.mxu0 0
        %991 = vmatpush1.bf16.xpose.msra.mxu0 0
        %992 = vmatprep.subr.bf16.mxu0 0
        %993 = vmatpush1.bf16.xpose.msra.mxu0 0
        %994 = vmatprep.subr.bf16.mxu0 0
        %995 = vmatpush1.bf16.xpose.msra.mxu0 0
        %996 = vmatprep.subr.bf16.mxu0 0
        %997 = vmatpush1.bf16.xpose.msra.mxu0 0
        %998 = vmatprep.subr.bf16.mxu0 0
        %999 = vmatpush1.bf16.xpose.msra.mxu0 0
        %1000 = vmatprep.subr.bf16.mxu0 0
        %1001 = vmatpush1.bf16.xpose.msra.mxu0 0
        %1002 = vmatprep.subr.bf16.mxu0 0
        %1003 = vmatpush1.bf16.xpose.msra.mxu0 0
        %1004 = vmatprep.subr.bf16.mxu0 0
        %1005 = vmatpush1.bf16.xpose.msra.mxu0 0
        %1006 = vmatprep.subr.bf16.mxu0 0
        %1007 = vmatpush1.bf16.xpose.msra.mxu0 0
        %1008 = vmatprep.subr.bf16.mxu0 0
        %1009 = vmatpush1.bf16.xpose.msra.mxu0 0
        %1010 = vmatprep.subr.bf16.mxu0 0
        %1011 = vmatpush1.bf16.xpose.msra.mxu0 0
        %1012 = vmatprep.subr.bf16.mxu0 0
        %1013 = vmatpush1.bf16.xpose.msra.mxu0 0
        %1014 = vmatprep.subr.bf16.mxu0 0
        %1015 = vmatpush1.bf16.xpose.msra.mxu0 0
        %1016 = vmatprep.subr.bf16.mxu0 0
        %1017 = vmatpush1.bf16.xpose.msra.mxu0 0
        %1018 = vmatprep.subr.bf16.mxu0 0
        %1019 = vmatpush1.bf16.xpose.msra.mxu0 0
        %1020 = vmatprep.mubr.bf16.mxu0 0
        %1021 = vmatmul.mubr.bf16.gmra.mrb[0].mxu0 %v983
        %v1022 = vpop.f32.mrb[0].mxu0
        %v1023 = vadd.f32 0.0, %v1022
        %v1024 = vpop.f32.mrb[0].mxu0
        %v1025 = vpop.f32.mrb[0].mxu0
        %v1026 = vpop.f32.mrb[0].mxu0
        %1027 = vdwg.mxu0
        %v1028 = vmul.f32 %v1023, 0.35355338
        %v1029 = vadd.f32 %v1028, %v542
        %v1030 = vsel %vm490, %v1029, -inf
        %1031 = vmax.xlane.f32.xlu0 %v1030
        %v1032 = vpop.xlane.xlu0 %1031
        %v1033 = vsub.f32 %v1029, %v1032
        %v1034 = vmul.f32 %v1033, 1.442695
        %v1035 = vpow.pop %v1034
        %v1036 = vsel %vm490, %v1035, 0.0
        %1037 = vadd.xlane.f32.xlu0 %v1036
        %v1038 = vpop.xlane.xlu0 %1037
        %v1039 = vrcp.pop %v1038
        %v1040 = vmul.f32 %v1035, %v1039
        %v1041 = vpack.c.bf16 %v1040, %v1040
        %1042 = vrot.lane.b32.xlu0 %v559, 72
        %v1043 = vpop.permute.xlu0 %1042
        %v1045 = vsel %vm490, %v1041, 0
        %v1048 = vsel %vm565, %v1043, 0
        %1050 = vmatprep.subr.bf16.mxu0 0
        %1051 = vmatpush1.bf16.msra.mxu0 %v1048
        %1052 = vmatprep.subr.bf16.mxu0 0
        %1053 = vmatpush1.bf16.msra.mxu0 0
        %1054 = vmatprep.subr.bf16.mxu0 0
        %1055 = vmatpush1.bf16.msra.mxu0 0
        %1056 = vmatprep.subr.bf16.mxu0 0
        %1057 = vmatpush1.bf16.msra.mxu0 0
        %1058 = vmatprep.subr.bf16.mxu0 0
        %1059 = vmatpush1.bf16.msra.mxu0 0
        %1060 = vmatprep.subr.bf16.mxu0 0
        %1061 = vmatpush1.bf16.msra.mxu0 0
        %1062 = vmatprep.subr.bf16.mxu0 0
        %1063 = vmatpush1.bf16.msra.mxu0 0
        %1064 = vmatprep.subr.bf16.mxu0 0
        %1065 = vmatpush1.bf16.msra.mxu0 0
        %1066 = vmatprep.subr.bf16.mxu0 0
        %1067 = vmatpush1.bf16.msra.mxu0 0
        %1068 = vmatprep.subr.bf16.mxu0 0
        %1069 = vmatpush1.bf16.msra.mxu0 0
        %1070 = vmatprep.subr.bf16.mxu0 0
        %1071 = vmatpush1.bf16.msra.mxu0 0
        %1072 = vmatprep.subr.bf16.mxu0 0
        %1073 = vmatpush1.bf16.msra.mxu0 0
        %1074 = vmatprep.subr.bf16.mxu0 0
        %1075 = vmatpush1.bf16.msra.mxu0 0
        %1076 = vmatprep.subr.bf16.mxu0 0
        %1077 = vmatpush1.bf16.msra.mxu0 0
        %1078 = vmatprep.subr.bf16.mxu0 0
        %1079 = vmatpush1.bf16.msra.mxu0 0
        %1080 = vmatprep.subr.bf16.mxu0 0
        %1081 = vmatpush1.bf16.msra.mxu0 0
        %1082 = vmatprep.mubr.bf16.mxu0 0
        %1083 = vmatmul.mubr.bf16.gmra.mrb[0].mxu0 %v1045
        %v1084 = vpop.f32.mrb[0].mxu0
        %v1085 = vadd.f32 0.0, %v1084
        %v1086 = vpop.f32.mrb[0].mxu0
        %v1087 = vpop.f32.mrb[0].mxu0
        %v1088 = vpop.f32.mrb[0].mxu0
        %1089 = vdwg.mxu0
        %v1090 = vpack.c.bf16 %v1085, %v1085
        %v1092 = vsel %vm490, %v1090, 0
        %v1095 = vsel %vm565, %v485, 0
        %1097 = vmatprep.subr.bf16.mxu0 0
        %1098 = vmatpush1.bf16.msra.mxu0 %v1095
        %1099 = vmatprep.subr.bf16.mxu0 0
        %1100 = vmatpush1.bf16.msra.mxu0 0
        %1101 = vmatprep.subr.bf16.mxu0 0
        %1102 = vmatpush1.bf16.msra.mxu0 0
        %1103 = vmatprep.subr.bf16.mxu0 0
        %1104 = vmatpush1.bf16.msra.mxu0 0
        %1105 = vmatprep.subr.bf16.mxu0 0
        %1106 = vmatpush1.bf16.msra.mxu0 0
        %1107 = vmatprep.subr.bf16.mxu0 0
        %1108 = vmatpush1.bf16.msra.mxu0 0
        %1109 = vmatprep.subr.bf16.mxu0 0
        %1110 = vmatpush1.bf16.msra.mxu0 0
        %1111 = vmatprep.subr.bf16.mxu0 0
        %1112 = vmatpush1.bf16.msra.mxu0 0
        %1113 = vmatprep.subr.bf16.mxu0 0
        %1114 = vmatpush1.bf16.msra.mxu0 0
        %1115 = vmatprep.subr.bf16.mxu0 0
        %1116 = vmatpush1.bf16.msra.mxu0 0
        %1117 = vmatprep.subr.bf16.mxu0 0
        %1118 = vmatpush1.bf16.msra.mxu0 0
        %1119 = vmatprep.subr.bf16.mxu0 0
        %1120 = vmatpush1.bf16.msra.mxu0 0
        %1121 = vmatprep.subr.bf16.mxu0 0
        %1122 = vmatpush1.bf16.msra.mxu0 0
        %1123 = vmatprep.subr.bf16.mxu0 0
        %1124 = vmatpush1.bf16.msra.mxu0 0
        %1125 = vmatprep.subr.bf16.mxu0 0
        %1126 = vmatpush1.bf16.msra.mxu0 0
        %1127 = vmatprep.subr.bf16.mxu0 0
        %1128 = vmatpush1.bf16.msra.mxu0 0
        %1129 = vmatprep.mubr.bf16.mxu0 0
        %1130 = vmatmul.mubr.bf16.gmra.mrb[0].mxu0 %v1092
        %v1131 = vpop.f32.mrb[0].mxu0
        %v1132 = vadd.f32 0.0, %v1131
        %v1133 = vpop.f32.mrb[0].mxu0
        %v1134 = vpop.f32.mrb[0].mxu0
        %v1135 = vpop.f32.mrb[0].mxu0
        %1136 = vdwg.mxu0
        %v1137 = vadd.f32 %v977, %v1132
        %v1139 = vlaneseq
        %v1140 = vshrl.u32 %v1139, 7
        %v1141 = vsub.s32 0, %v1140
        %v1142 = vrot.slane %v486, %v1141
        %v1144 = vadd.f32 %v1137, %v1142
        %v1145 = vadd.f32 %v1144, %v487
        %vm1146 = vcmask 261120
        %v1147 = vsel %vm1146, %v1145, 0.0
        %1148 = vadd.xlane.f32.xlu0 %v1147
        %v1149 = vpop.xlane.xlu0 %1148
        %v1150 = vrcp.pop 32.0
        %v1151 = vmul.f32 %v1149, %v1150
        %v1152 = vsub.f32 %v1145, %v1151
        %v1153 = vmul.f32 %v1152, %v1152
        %v1154 = vsel %vm1146, %v1153, 0.0
        %1155 = vadd.xlane.f32.xlu0 %v1154
        %v1156 = vpop.xlane.xlu0 %1155
        %v1157 = vmul.f32 %v1156, %v1150
        %v1158 = vadd.f32 %v1157, 1e-05
        %v1159 = vrsqrt.pop %v1158
        %v1160 = vmul.f32 %v1152, %v1159
        %v1162 = vlaneseq
        %v1163 = vshrl.u32 %v1162, 7
        %v1164 = vsub.s32 0, %v1163
        %v1165 = vrot.slane %v488, %v1164
        %v1167 = vmul.f32 %v1160, %v1165
        %v1169 = vlaneseq
        %v1170 = vshrl.u32 %v1169, 7
        %v1171 = vsub.s32 0, %v1170
        %v1172 = vrot.slane %v489, %v1171
        %v1174 = vadd.f32 %v1167, %v1172
        %1175 = vst.msk [vmem:[%s477] sm:$0xff] %vm1146, %v1174
        %s1176 = sand.u32 %s229, 1
        %s1177 = scalar_lea.sflag [#allocation4], %s1176
        %s1178 = sand.u32 %s229, 1
        %s1179 = smul.addr %s1178, 8
        %s1180 = scalar_lea.vmem [#allocation16], %s1179
        // Predicated region
        $region85: #{transformer_forward.29} parent=51 // pred_check
          %p1181 = pneg %p239
        $region86: #{transformer_forward.29} parent=51 // pred_check_branch
          %1183 = sbr.rel (%p1181) target = $region88
        $region87: #{transformer_forward.29} parent=51 // pred_region
          %s1185 = ssub.s32 128, 128
          %1186 = vsyncadd %s1177, %s1185
          %s1187 = smul.addr %s33, 128
          %s1188 = scalar_lea.hbm %s8, %s1187
          %s1190 = sshll.u32 %s1180, 4
          %s1191 = int_to_ptr.vmem [resolvable:$true] %s1190
          %1193 = dma.vmem_to_hbm [thread:$0]  %s1191, 128, %s1188, %s1177
        $region88: #{transformer_forward.29} parent=51 // pred_fallthru
          _
      $region52: #{transformer_forward.29} parent=5 // pred_fallthru
        _
      %p1194 = scmp.le.s32.totalorder 2, %s28
      // Predicated region
      $region89: #{transformer_forward.29} parent=5 // pred_check
        %p1195 = pneg %p1194
      $region90: #{transformer_forward.29} parent=5 // pred_check_branch
        %1197 = sbr.rel (%p1195) target = $region92
      $region91: #{transformer_forward.29} parent=5 // pred_region
        %s1198 = ssub.s32 %s28, 2
        // Predicated region
        $region93: #{transformer_forward.29} parent=91 // pred_check
          %p1199 = pneg %p245
        $region94: #{transformer_forward.29} parent=91 // pred_check_branch
          %1201 = sbr.rel (%p1199) target = $region96
        $region95: #{transformer_forward.29} parent=91 // pred_region
          %s1202 = sand.u32 %s230, 1
          %s1203 = scalar_lea.sflag [#allocation4], %s1202
          %s1204 = sand.u32 %s230, 1
          %s1205 = smul.addr %s1204, 8
          %s1206 = scalar_lea.vmem [#allocation16], %s1205
          %1207 = dma.done %s1203, 128
        $region96: #{transformer_forward.29} parent=91 // pred_fallthru
          _
      $region92: #{transformer_forward.29} parent=5 // pred_fallthru
        _
    $region6: #{transformer_forward.29} parent=1 // loop_footer
      %s32 = sadd.s32 1, %s28
    $region7: #{transformer_forward.29} parent=1 // loop_footer_branch
      %27 = sbr.rel target = $region3
    $region8: #{transformer_forward.29} parent=1 // loop_exit
      _
    %1208 = vsyncpa [#allocation3], 1
    %s1209 = scalar_lea.sflag [#allocation3], 1
    %1210 = vsyncpa %s1209, 1
    %1211 = vsyncpa [#allocation6], 1
    %s1212 = scalar_lea.sflag [#allocation6], 1
    %1213 = vsyncpa %s1212, 1
    %1214 = vsyncpa [#allocation9], 1
    %s1215 = scalar_lea.sflag [#allocation9], 1
    %1216 = vsyncpa %s1215, 1
    %1217 = vsyncpa [#allocation12], 1
    %1218 = vsyncpa [#allocation15], 1
    %1219 = vsyncpa [#allocation4], 1
    %s1220 = scalar_lea.sflag [#allocation4], 1
    %1221 = vsyncpa %s1220, 1

</llo_original>
